<compile_context>
chip_gen: v6e
topology: v6e:2x2x1
jax: 0.10.0
libtpu: 0.0.40
codegen_flags: <defaults>
</compile_context>

<pallas_src>
import math

import jax
import jax.numpy as jnp
from jax import lax
from jax.experimental import pallas as pl
from jax.experimental.pallas import tpu as pltpu

# ---------------- small synthetic config ----------------
B = 2
IMG = 16
PATCH = 4
WIDTH = 32            # ctx_dim == clip_model.visual.conv1.out_channels
HEADS = 2
HEAD_DIM = WIDTH // HEADS
LAYERS = 3            # clip_model.visual.transformer.layers
VIS_DIM = 24          # clip_model.visual.output_dim
N_CLS = 5
CPN = 3               # class_prompt_num
N_CTX = 4             # N_CTX_VISION
BOTTOM_LIMIT = 1      # cfg BOTTOMLIMIT(=2) - 1
META_NUM = LAYERS - BOTTOM_LIMIT
GRID_HW = IMG // PATCH
NUM_PATCHES = GRID_HW * GRID_HW
SEQ = 1 + NUM_PATCHES
CPP = 3 * PATCH * PATCH          # im2col row width
N_CAV_CTX = 10                   # CAVPT ctx tokens per layer
FC = 4 * WIDTH
LN_EPS = 1e-5

# padded / fixed layout constants (lane-dense stores + fixed 8-aligned sequence)
E_PAD = 128                      # model width padded to one full lane tile
NCLS_PAD = 128                   # classifier logits padded to one full lane tile
OUT_PAD = 128                    # visual projection output padded to one full lane tile
L_PAD = 32                       # fixed per-image row slot (covers SEQ + max prompt rows)

_VMEM = pl.BlockSpec(memory_space=pltpu.MemorySpace.VMEM)

_BLK = ('ln1_g', 'ln1_b', 'wqkv', 'bqkv', 'wo', 'bo',
        'ln2_g', 'ln2_b', 'wfc', 'bfc', 'wcp', 'bcp')
_CAV = ('meta_w', 'meta_b', 'q_w', 'k_w', 'v_w',
        'ln1_g', 'ln1_b', 'cls_w', 'ln2_g', 'ln2_b', 'ctx')
_HEAD = ('ln_post_g', 'ln_post_b', 'proj')


# ---------------- small helpers ----------------
def _bf(x):
    return x.astype(jnp.bfloat16)


def _ln(x, g, b):
    """Row-wise LayerNorm over the real WIDTH lanes of an E_PAD-wide row (f32, exact).

    Padded lanes (>= WIDTH) come out as exactly 0 because g/b are zero-padded and the
    centered value is masked before scaling."""
    lane = lax.broadcasted_iota(jnp.int32, (1, E_PAD), 1) < WIDTH
    xm = jnp.where(lane, x, 0.0)
    mu = jnp.sum(xm, axis=-1, keepdims=True) * (1.0 / WIDTH)
    xc = jnp.where(lane, x - mu, 0.0)
    var = jnp.sum(xc * xc, axis=-1, keepdims=True) * (1.0 / WIDTH)
    return xc * lax.rsqrt(var + LN_EPS) * g + b


# ---------------- fused compute cores (shared by kernels) ----------------
def _resblock_core(x, l_real, nb, blk):
    """CLIP ResidualAttentionBlock on batch-folded (nb*L_PAD, E_PAD) activations."""
    (ln1g, ln1b, wqkv, bqkv, wo, bo, ln2g, ln2b, wfc, bfc, wcp, bcp) = blk
    xn = _bf(_ln(x, ln1g[...], ln1b[...]))
    # fused QKV: one matmul, heads sliced from the result in vregs (q pre-scaled).
    qkv = jnp.dot(xn, wqkv[...], preferred_element_type=jnp.float32) + bqkv[...]
    kmask = lax.broadcasted_iota(jnp.int32, (1, L_PAD), 1) < l_real   # real key rows
    lane = lax.broadcasted_iota(jnp.int32, (L_PAD, WIDTH), 1)
    per_batch = []
    for bi in range(nb):                                   # static unroll over batch
        r0 = bi * L_PAD
        v_bf = _bf(qkv[r0:r0 + L_PAD, 2 * WIDTH:3 * WIDTH])           # all heads' values
        oh = None
        for h in range(HEADS):                             # static unroll over heads
            c = h * HEAD_DIM
            qh = qkv[r0:r0 + L_PAD, c:c + HEAD_DIM]
            kh = qkv[r0:r0 + L_PAD, WIDTH + c:WIDTH + c + HEAD_DIM]
            s = lax.dot_general(_bf(qh), _bf(kh), (((1,), (1,)), ((), ())),
                                preferred_element_type=jnp.float32)   # (L_PAD, L_PAD)
            s = jnp.where(kmask, s, -1e30)                             # mask padded keys
            m = jnp.max(s, axis=-1, keepdims=True)
            e = jnp.exp(s - m)
            l = jnp.sum(e, axis=-1, keepdims=True)
            pv = jnp.dot(_bf(e), v_bf, preferred_element_type=jnp.float32)
            pv = pv * pl.reciprocal(l, approx=True)                    # normalize via EUP
            # assemble concat-of-heads with lane selects (head h owns lanes [c, c+HEAD_DIM))
            oh = pv if h == 0 else jnp.where(lane >= c, pv, oh)
        per_batch.append(oh)                               # (L_PAD, WIDTH)
    heads_cat = jnp.concatenate(per_batch, axis=0)         # (nb*L_PAD, WIDTH), 8-aligned rows
    attn = jnp.dot(_bf(heads_cat), wo[...], preferred_element_type=jnp.float32)
    x1 = x + attn + bo[...]                                # residual + out-proj bias folded
    xn2 = _bf(_ln(x1, ln2g[...], ln2b[...]))
    h1 = jnp.dot(xn2, wfc[...], preferred_element_type=jnp.float32) + bfc[...]
    gelu = h1 * pl.reciprocal(1.0 + jnp.exp(-1.702 * h1), approx=True)   # QuickGELU via EUP
    h2 = jnp.dot(_bf(gelu), wcp[...], preferred_element_type=jnp.float32) + bcp[...]
    return x1 + h2


def _head_rows(y, nb, lnpg, lnpb, proj, out_ref):
    """ln_post + visual projection on the per-image class-token rows (rows b*L_PAD)."""
    for bi in range(nb):
        row = y[bi * L_PAD:bi * L_PAD + 1, :]
        out_ref[bi:bi + 1, :] = jnp.dot(_bf(_ln(row, lnpg[...], lnpb[...])), proj[...],
                                        preferred_element_type=jnp.float32)


# ---------------- Pallas kernels ----------------
def _stem_kernel(p_ref, wc_ref, pos_ref, g_ref, b_ref, o_ref):
    """Patch-embed matmul + class-embedding (folded into pos row 0) + pos add + ln_pre."""
    pe = jnp.dot(_bf(p_ref[...]), wc_ref[...], preferred_element_type=jnp.float32)
    o_ref[...] = _ln(pe + pos_ref[...], g_ref[...], b_ref[...])


def _make_vpt_kernel(nb, l_real):
    n_blk = len(_BLK)

    def kernel(*refs):
        x_ref, mask_ref, slab_ref = refs[0], refs[1], refs[2]
        blk = refs[3:3 + n_blk]
        o_ref = refs[3 + n_blk]
        # fixed-slot prompt write: zero non-token rows, add the VPT ctx rows in place.
        xw = x_ref[...] * mask_ref[...] + slab_ref[...]
        o_ref[...] = _resblock_core(xw, l_real, nb, blk)

    return kernel


def _make_meta_kernel(nb, final):
    """CAVPT (meta linear, 32-wide attention, classifier, lns) fused with its resblock.

    If `final`, ln_post + projection replace the full activation output."""
    n_cav, n_blk = len(_CAV), len(_BLK)

    def kernel(*refs):
        x_ref, tf_ref, mask_ref = refs[0], refs[1], refs[2]
        cav = refs[3:3 + n_cav]
        blk = refs[3 + n_cav:3 + n_cav + n_blk]
        head = refs[3 + n_cav + n_blk:3 + n_cav + n_blk + 3] if final else None
        logit_ref, out_ref, xs_ref = refs[-3], refs[-2], refs[-1]
        (meta_w, meta_b, q_w, k_w, v_w, c1g, c1b, cls_w, c2g, c2b, ctx_ref) = cav

        x = x_ref[...]
        ctx = ctx_ref[...]                                              # (10, E_PAD)
        cp0 = jnp.dot(_bf(tf_ref[...]), meta_w[...],
                      preferred_element_type=jnp.float32) + meta_b[...]  # (nb*CPN, E_PAD)
        kc = jnp.dot(_bf(ctx), k_w[...], preferred_element_type=jnp.float32)   # (10, 32)

        # start assembling next-block input in VMEM: real token rows kept, rest zeroed.
        xs_ref[...] = x * mask_ref[...]

        for bi in range(nb):                                 # static unroll over batch
            r0 = bi * L_PAD
            keys = x[r0:r0 + SEQ, :]                         # class_token (SEQ, E_PAD)
            keys_bf = _bf(keys)
            cp0_b = cp0[bi * CPN:(bi + 1) * CPN, :]
            qb = jnp.dot(_bf(cp0_b), q_w[...], preferred_element_type=jnp.float32)
            kx = jnp.dot(keys_bf, k_w[...], preferred_element_type=jnp.float32)
            # two score sub-blocks (x tokens | cav ctx) -- kv never materialized in HBM.
            sx = lax.dot_general(_bf(qb), _bf(kx), (((1,), (1,)), ((), ())),
                                 preferred_element_type=jnp.float32)    # (CPN, SEQ)
            sc = lax.dot_general(_bf(qb), _bf(kc), (((1,), (1,)), ((), ())),
                                 preferred_element_type=jnp.float32)    # (CPN, 10)
            m = jnp.maximum(jnp.max(sx, axis=-1, keepdims=True),
                            jnp.max(sc, axis=-1, keepdims=True))
            ex = jnp.exp(sx - m)
            ec = jnp.exp(sc - m)
            l = jnp.sum(ex, axis=-1, keepdims=True) + jnp.sum(ec, axis=-1, keepdims=True)
            av = (jnp.dot(_bf(ex), keys_bf, preferred_element_type=jnp.float32)
                  + jnp.dot(_bf(ec), _bf(ctx), preferred_element_type=jnp.float32))
            av = av * pl.reciprocal(l, approx=True)
            out_b = jnp.dot(_bf(av), v_w[...], preferred_element_type=jnp.float32)  # vmlp after agg.
            logit_ref[bi * CPN:(bi + 1) * CPN, :] = jnp.dot(
                _bf(_ln(out_b, c1g[...], c1b[...])), cls_w[...],
                preferred_element_type=jnp.float32)
            cp_b = _ln(out_b + cp0_b, c2g[...], c2b[...])                # (CPN, E_PAD)
            # write the class-prompt tokens into their fixed row slots.
            xs_ref[r0 + SEQ:r0 + SEQ + CPN, :] = cp_b

        y = _resblock_core(xs_ref[...], SEQ + CPN, nb, blk)
        if final:
            lnpg, lnpb, proj = head
            _head_rows(y, nb, lnpg, lnpb, proj, out_ref)     # ln_post + proj epilogue
        else:
            out_ref[...] = y

    return kernel


# ---------------- pallas_call wrappers (single invocation, whole-block VMEM) ----------------
def stem_call(patches2d, kp):
    m = patches2d.shape[0]
    return pl.pallas_call(
        _stem_kernel,
        out_shape=jax.ShapeDtypeStruct((m, E_PAD), jnp.float32),
        in_specs=[_VMEM] * 5,
        out_specs=_VMEM,
    )(patches2d, kp['wc'], kp['pos_slab'], kp['ln_pre_g'], kp['ln_pre_b'])


def vpt_block_call(x, kp, i):
    nb = x.shape[0] // L_PAD
    blk = kp['blocks'][i]
    args = [x, kp['seq_mask'], kp['vpt_slab'][i]] + [blk[k] for k in _BLK]
    return pl.pallas_call(
        _make_vpt_kernel(nb, SEQ + N_CTX),
        out_shape=jax.ShapeDtypeStruct((nb * L_PAD, E_PAD), jnp.float32),
        in_specs=[_VMEM] * len(args),
        out_specs=_VMEM,
    )(*args)


def meta_block_call(x, tf2d, kp, i, final):
    nb = x.shape[0] // L_PAD
    cav = kp['cavpt'][i]
    blk = kp['blocks'][i + BOTTOM_LIMIT]
    args = [x, tf2d, kp['seq_mask']] + [cav[k] for k in _CAV] + [blk[k] for k in _BLK]
    if final:
        args += [kp['head'][k] for k in _HEAD]
        main_shape = jax.ShapeDtypeStruct((nb, OUT_PAD), jnp.float32)
    else:
        main_shape = jax.ShapeDtypeStruct((nb * L_PAD, E_PAD), jnp.float32)
    logits, main = pl.pallas_call(
        _make_meta_kernel(nb, final),
        out_shape=(jax.ShapeDtypeStruct((nb * CPN, NCLS_PAD), jnp.float32), main_shape),
        in_specs=[_VMEM] * len(args),
        out_specs=(_VMEM, _VMEM),
        scratch_shapes=[pltpu.VMEM((nb * L_PAD, E_PAD), jnp.float32)],
    )(*args)
    return logits, main


# ---------------- forward (thin JAX glue between fused kernels) ----------------
def image_encoder_forward(kp, x_img, text_feature):
    Bn, C, H, W = x_img.shape
    gh, gw = H // PATCH, W // PATCH

    # im2col into the fixed L_PAD row layout (row 0 = cls slot, rows 1..NUM_PATCHES = patches).
    # TODO(synk): at real image sizes express this via the patch-matmul BlockSpec index_map
    # (strided patch blocks) instead of a JAX relayout.
    patches = x_img.reshape(Bn, C, gh, PATCH, gw, PATCH)
    patches = patches.transpose(0, 2, 4, 1, 3, 5).reshape(Bn, gh * gw, C * PATCH * PATCH)
    padded = jnp.zeros((Bn, L_PAD, CPP), jnp.float32).at[:, 1:1 + NUM_PATCHES, :].set(patches)

    x = stem_call(padded.reshape(Bn * L_PAD, CPP), kp)          # (B*L_PAD, E_PAD), lane-dense

    for i in range(BOTTOM_LIMIT):
        x = vpt_block_call(x, kp, i)

    tf2d = text_feature.reshape(Bn * CPN, VIS_DIM)
    layer_logits = []
    head_out = None
    for i in range(META_NUM):
        final = (i == META_NUM - 1)
        logits, main = meta_block_call(x, tf2d, kp, i, final)
        ll = logits.reshape(Bn, CPN, NCLS_PAD)[:, :, :N_CLS]
        layer_logits.append(jnp.transpose(ll, (1, 0, 2))[None])     # (1, CPN, B, N_CLS)
        if final:
            head_out = main[:, :VIS_DIM]
        else:
            x = main
    return head_out, layer_logits


# ---------------- deterministic parameter init (PyTorch layouts) ----------------
def init_params(key):
    keys = jax.random.split(key, 100)
    it = iter(keys)

    def nrm(shape, std=0.02):
        return std * jax.random.normal(next(it), shape, dtype=jnp.float32)

    ones = lambda s: jnp.ones(s, jnp.float32)
    zeros = lambda s: jnp.zeros(s, jnp.float32)

    params = {
        'conv1_w': nrm((WIDTH, 3, PATCH, PATCH)),
        'class_embedding': nrm((WIDTH,)),
        'positional_embedding': nrm((SEQ, WIDTH)),
        'ln_pre_g': ones((WIDTH,)), 'ln_pre_b': zeros((WIDTH,)),
        'ln_post_g': ones((WIDTH,)), 'ln_post_b': zeros((WIDTH,)),
        'proj': nrm((WIDTH, VIS_DIM)),
        'vpt_ctx': nrm((BOTTOM_LIMIT, N_CTX, WIDTH)),
    }
    blocks = []
    for _ in range(LAYERS):
        blocks.append({
            'ln1_g': ones((WIDTH,)), 'ln1_b': zeros((WIDTH,)),
            'ln2_g': ones((WIDTH,)), 'ln2_b': zeros((WIDTH,)),
            'in_proj_w': nrm((3 * WIDTH, WIDTH)), 'in_proj_b': nrm((3 * WIDTH,)),
            'out_proj_w': nrm((WIDTH, WIDTH)), 'out_proj_b': nrm((WIDTH,)),
            'fc_w': nrm((4 * WIDTH, WIDTH)), 'fc_b': nrm((4 * WIDTH,)),
            'cproj_w': nrm((WIDTH, 4 * WIDTH)), 'cproj_b': nrm((WIDTH,)),
        })
    params['blocks'] = blocks
    params['cavpt'] = {
        'meta_w': [nrm((WIDTH, VIS_DIM)) for _ in range(META_NUM)],
        'meta_b': [nrm((WIDTH,)) for _ in range(META_NUM)],
        'q_w': [nrm((32, WIDTH)) for _ in range(META_NUM)],
        'k_w': [nrm((32, WIDTH)) for _ in range(META_NUM)],
        'v_w': [nrm((WIDTH, WIDTH)) for _ in range(META_NUM)],
        'cls_w': [nrm((N_CLS, WIDTH)) for _ in range(META_NUM)],
        'ln1_g': [ones((WIDTH,)) for _ in range(META_NUM)],
        'ln1_b': [zeros((WIDTH,)) for _ in range(META_NUM)],
        'ln2_g': [ones((WIDTH,)) for _ in range(META_NUM)],
        'ln2_b': [zeros((WIDTH,)) for _ in range(META_NUM)],
        'ctx': nrm((META_NUM, 10, WIDTH)),
    }
    return params


# ---------------- one-time kernel-layout prep (pad / transpose / fuse / scale-fold / bf16) ----
def _pad2(a, r, c):
    a = jnp.asarray(a, jnp.float32)
    return jnp.zeros((r, c), jnp.float32).at[:a.shape[0], :a.shape[1]].set(a)


def _padrow(v, c):
    return _pad2(jnp.asarray(v, jnp.float32).reshape(1, -1), 1, c)


def prepare_params(p):
    scale = 1.0 / math.sqrt(HEAD_DIM)

    kp = {
        'wc': _bf(_pad2(p['conv1_w'].reshape(WIDTH, -1).T, CPP, E_PAD)),   # conv1 as matmul
        'ln_pre_g': _padrow(p['ln_pre_g'], E_PAD),
        'ln_pre_b': _padrow(p['ln_pre_b'], E_PAD),
        'head': {
            'ln_post_g': _padrow(p['ln_post_g'], E_PAD),
            'ln_post_b': _padrow(p['ln_post_b'], E_PAD),
            'proj': _bf(_pad2(p['proj'], E_PAD, OUT_PAD)),
        },
    }
    # class embedding folded into row 0 of the positional embedding; laid out in the fixed
    # L_PAD row slots (rows >= SEQ zero) and tiled across batch.
    pos_cls = p['positional_embedding'].at[0, :].add(p['class_embedding'])
    pos_slab = jnp.zeros((L_PAD, E_PAD), jnp.float32).at[:SEQ, :WIDTH].set(pos_cls)
    kp['pos_slab'] = jnp.tile(pos_slab, (B, 1))
    # row mask: 1 for the SEQ real token rows of each batch slot, 0 for prompt/pad rows.
    rows = jnp.arange(B * L_PAD) % L_PAD
    kp['seq_mask'] = (rows < SEQ).astype(jnp.float32)[:, None]
    # VPT-deep ctx tokens pre-placed in their fixed row slots (rows SEQ .. SEQ+N_CTX-1).
    kp['vpt_slab'] = [
        jnp.tile(jnp.zeros((L_PAD, E_PAD), jnp.float32)
                 .at[SEQ:SEQ + N_CTX, :WIDTH].set(p['vpt_ctx'][i]), (B, 1))
        for i in range(BOTTOM_LIMIT)
    ]

    blocks = []
    for b in p['blocks']:
        wq = b['in_proj_w'][:WIDTH].T * scale                 # 1/sqrt(head_dim) folded into q
        wk = b['in_proj_w'][WIDTH:2 * WIDTH].T
        wv = b['in_proj_w'][2 * WIDTH:].T
        bq = b['in_proj_b'][:WIDTH] * scale
        bkv = b['in_proj_b'][WIDTH:]
        blocks.append({
            'ln1_g': _padrow(b['ln1_g'], E_PAD), 'ln1_b': _padrow(b['ln1_b'], E_PAD),
            'wqkv': _bf(_pad2(jnp.concatenate([wq, wk, wv], axis=1), E_PAD, 3 * WIDTH)),
            'bqkv': jnp.concatenate([bq, bkv]).astype(jnp.float32).reshape(1, -1),
            'wo': _bf(_pad2(b['out_proj_w'].T, WIDTH, E_PAD)),
            'bo': _padrow(b['out_proj_b'], E_PAD),
            'ln2_g': _padrow(b['ln2_g'], E_PAD), 'ln2_b': _padrow(b['ln2_b'], E_PAD),
            'wfc': _bf(_pad2(b['fc_w'].T, E_PAD, FC)),
            'bfc': jnp.asarray(b['fc_b'], jnp.float32).reshape(1, -1),
            'wcp': _bf(_pad2(b['cproj_w'].T, FC, E_PAD)),
            'bcp': _padrow(b['cproj_b'], E_PAD),
        })
    kp['blocks'] = blocks

    cav = p['cavpt']
    kp['cavpt'] = [{
        'meta_w': _bf(_pad2(cav['meta_w'][i].T, VIS_DIM, E_PAD)),
        'meta_b': _padrow(cav['meta_b'][i], E_PAD),
        'q_w': _bf(_pad2(cav['q_w'][i].T * (1.0 / math.sqrt(32.0)), E_PAD, 32)),  # scale folded
        'k_w': _bf(_pad2(cav['k_w'][i].T, E_PAD, 32)),
        'v_w': _bf(_pad2(cav['v_w'][i].T, E_PAD, E_PAD)),
        'ln1_g': _padrow(cav['ln1_g'][i], E_PAD), 'ln1_b': _padrow(cav['ln1_b'][i], E_PAD),
        'cls_w': _bf(_pad2(cav['cls_w'][i].T, E_PAD, NCLS_PAD)),
        'ln2_g': _padrow(cav['ln2_g'][i], E_PAD), 'ln2_b': _padrow(cav['ln2_b'][i], E_PAD),
        'ctx': _pad2(cav['ctx'][i], N_CAV_CTX, E_PAD),
    } for i in range(META_NUM)]
    # TODO(synk): PyTorch reference runs the extractor in fp16 (.half()); here matmul
    # operands are bf16 with f32 accumulation and f32 LN/softmax/GELU.
    return kp


if __name__ == "__main__":
    key = jax.random.PRNGKey(0)
    kparam, kx, kt = jax.random.split(key, 3)
    params = init_params(kparam)
    kparams = prepare_params(params)
    x_img = jax.random.normal(kx, (B, 3, IMG, IMG), dtype=jnp.float32)
    text_feature = jax.random.normal(kt, (B, CPN, VIS_DIM), dtype=jnp.float32)

    fwd = jax.jit(image_encoder_forward)
    out, layer_logits = fwd(kparams, x_img, text_feature)
    out = jax.block_until_ready(out)
    layer_logits = jax.block_until_ready(layer_logits)

    assert out.shape == (B, VIS_DIM), out.shape
    assert len(layer_logits) == META_NUM
    assert layer_logits[0].shape == (1, CPN, B, N_CLS), layer_logits[0].shape
    assert bool(jnp.all(jnp.isfinite(out)))
    for ll in layer_logits:
        assert bool(jnp.all(jnp.isfinite(ll)))
    print("KERNEL_OK")
</pallas_src>

<mosaic_0001>
module attributes {stable_mosaic.version = 11 : i64} {
  func.func @kernel(%arg0: memref<64x128xf32, #tpu.memory_space<vmem>>, %arg1: memref<64x1xf32, #tpu.memory_space<vmem>>, %arg2: memref<64x128xf32, #tpu.memory_space<vmem>>, %arg3: memref<1x128xf32, #tpu.memory_space<vmem>>, %arg4: memref<1x128xf32, #tpu.memory_space<vmem>>, %arg5: memref<128x96xbf16, #tpu.memory_space<vmem>>, %arg6: memref<1x96xf32, #tpu.memory_space<vmem>>, %arg7: memref<32x128xbf16, #tpu.memory_space<vmem>>, %arg8: memref<1x128xf32, #tpu.memory_space<vmem>>, %arg9: memref<1x128xf32, #tpu.memory_space<vmem>>, %arg10: memref<1x128xf32, #tpu.memory_space<vmem>>, %arg11: memref<128x128xbf16, #tpu.memory_space<vmem>>, %arg12: memref<1x128xf32, #tpu.memory_space<vmem>>, %arg13: memref<128x128xbf16, #tpu.memory_space<vmem>>, %arg14: memref<1x128xf32, #tpu.memory_space<vmem>>, %arg15: memref<64x128xf32, #tpu.memory_space<vmem>>) attributes {dimension_semantics = [], scalar_prefetch = 0 : i64, scratch_operands = 0 : i64, tpu.core_type = #tpu.core_type<tc>} {
    %c0 = arith.constant 0 : index
    %c0_0 = arith.constant 0 : index
    %0 = vector.load %arg0[%c0, %c0_0] : memref<64x128xf32, #tpu.memory_space<vmem>>, vector<64x128xf32>
    %c0_1 = arith.constant 0 : index
    %c0_2 = arith.constant 0 : index
    %1 = vector.load %arg1[%c0_1, %c0_2] : memref<64x1xf32, #tpu.memory_space<vmem>>, vector<64x1xf32>
    %2 = vector.broadcast %1 : vector<64x1xf32> to vector<64x128xf32>
    %3 = arith.mulf %0, %2 : vector<64x128xf32>
    %c0_3 = arith.constant 0 : index
    %c0_4 = arith.constant 0 : index
    %4 = vector.load %arg2[%c0_3, %c0_4] : memref<64x128xf32, #tpu.memory_space<vmem>>, vector<64x128xf32>
    %5 = arith.addf %3, %4 : vector<64x128xf32>
    %c0_5 = arith.constant 0 : index
    %c0_6 = arith.constant 0 : index
    %6 = vector.load %arg3[%c0_5, %c0_6] : memref<1x128xf32, #tpu.memory_space<vmem>>, vector<1x128xf32>
    %c0_7 = arith.constant 0 : index
    %c0_8 = arith.constant 0 : index
    %7 = vector.load %arg4[%c0_7, %c0_8] : memref<1x128xf32, #tpu.memory_space<vmem>>, vector<1x128xf32>
    %8 = tpu.iota {dimensions = array<i32: 1>} : vector<1x128xi32>
    %c32_i32 = arith.constant 32 : i32
    %9 = vector.broadcast %c32_i32 : i32 to vector<1x128xi32>
    %10 = arith.cmpi slt, %8, %9 : vector<1x128xi32>
    %cst = arith.constant 0.000000e+00 : f32
    %11 = vector.shape_cast %10 : vector<1x128xi1> to vector<1x128xi1>
    %12 = vector.broadcast %11 : vector<1x128xi1> to vector<64x128xi1>
    %13 = vector.broadcast %cst : f32 to vector<64x128xf32>
    %14 = arith.select %12, %5, %13 : vector<64x128xi1>, vector<64x128xf32>
    %cst_9 = arith.constant dense<0.000000e+00> : vector<64xf32>
    %15 = vector.multi_reduction <add>, %14, %cst_9 [1] : vector<64x128xf32> to vector<64xf32>
    %16 = vector.shape_cast %15 : vector<64xf32> to vector<64x1xf32>
    %cst_10 = arith.constant 3.125000e-02 : f32
    %17 = vector.broadcast %cst_10 : f32 to vector<64x1xf32>
    %18 = arith.mulf %16, %17 : vector<64x1xf32>
    %19 = vector.broadcast %18 : vector<64x1xf32> to vector<64x128xf32>
    %20 = arith.subf %5, %19 : vector<64x128xf32>
    %cst_11 = arith.constant 0.000000e+00 : f32
    %21 = vector.shape_cast %10 : vector<1x128xi1> to vector<1x128xi1>
    %22 = vector.broadcast %21 : vector<1x128xi1> to vector<64x128xi1>
    %23 = vector.broadcast %cst_11 : f32 to vector<64x128xf32>
    %24 = arith.select %22, %20, %23 : vector<64x128xi1>, vector<64x128xf32>
    %25 = arith.mulf %24, %24 : vector<64x128xf32>
    %cst_12 = arith.constant dense<0.000000e+00> : vector<64xf32>
    %26 = vector.multi_reduction <add>, %25, %cst_12 [1] : vector<64x128xf32> to vector<64xf32>
    %27 = vector.shape_cast %26 : vector<64xf32> to vector<64x1xf32>
    %cst_13 = arith.constant 3.125000e-02 : f32
    %28 = vector.broadcast %cst_13 : f32 to vector<64x1xf32>
    %29 = arith.mulf %27, %28 : vector<64x1xf32>
    %cst_14 = arith.constant 9.99999974E-6 : f32
    %30 = vector.broadcast %cst_14 : f32 to vector<64x1xf32>
    %31 = arith.addf %29, %30 : vector<64x1xf32>
    %32 = math.rsqrt %31 : vector<64x1xf32>
    %33 = vector.broadcast %32 : vector<64x1xf32> to vector<64x128xf32>
    %34 = arith.mulf %24, %33 : vector<64x128xf32>
    %35 = vector.broadcast %6 : vector<1x128xf32> to vector<64x128xf32>
    %36 = arith.mulf %34, %35 : vector<64x128xf32>
    %37 = vector.broadcast %7 : vector<1x128xf32> to vector<64x128xf32>
    %38 = arith.addf %36, %37 : vector<64x128xf32>
    %39 = arith.truncf %38 : vector<64x128xf32> to vector<64x128xbf16>
    %c0_15 = arith.constant 0 : index
    %c0_16 = arith.constant 0 : index
    %40 = vector.load %arg5[%c0_15, %c0_16] : memref<128x96xbf16, #tpu.memory_space<vmem>>, vector<128x96xbf16>
    %cst_17 = arith.constant dense<0.000000e+00> : vector<64x96xf32>
    %41 = tpu.matmul %39, %40, %cst_17 {dimension_numbers = #tpu.dot_dimension_numbers<[1], [0], [0], [1], [0, 0, 1, 1], [], []>} : vector<64x128xbf16>, vector<128x96xbf16>, vector<64x96xf32> -> vector<64x96xf32>
    %c0_18 = arith.constant 0 : index
    %c0_19 = arith.constant 0 : index
    %42 = vector.load %arg6[%c0_18, %c0_19] : memref<1x96xf32, #tpu.memory_space<vmem>>, vector<1x96xf32>
    %43 = vector.broadcast %42 : vector<1x96xf32> to vector<64x96xf32>
    %44 = arith.addf %41, %43 : vector<64x96xf32>
    %45 = tpu.iota {dimensions = array<i32: 1>} : vector<1x32xi32>
    %c21_i32 = arith.constant 21 : i32
    %46 = vector.broadcast %c21_i32 : i32 to vector<1x32xi32>
    %47 = arith.cmpi slt, %45, %46 : vector<1x32xi32>
    %48 = tpu.iota {dimensions = array<i32: 1>} : vector<32x32xi32>
    %49 = vector.extract_strided_slice %44 {offsets = [0, 64], sizes = [32, 32], strides = [1, 1]} : vector<64x96xf32> to vector<32x32xf32>
    %50 = arith.truncf %49 : vector<32x32xf32> to vector<32x32xbf16>
    %51 = vector.extract_strided_slice %44 {offsets = [0, 0], sizes = [32, 16], strides = [1, 1]} : vector<64x96xf32> to vector<32x16xf32>
    %52 = vector.extract_strided_slice %44 {offsets = [0, 32], sizes = [32, 16], strides = [1, 1]} : vector<64x96xf32> to vector<32x16xf32>
    %53 = arith.truncf %51 : vector<32x16xf32> to vector<32x16xbf16>
    %54 = arith.truncf %52 : vector<32x16xf32> to vector<32x16xbf16>
    %cst_20 = arith.constant dense<0.000000e+00> : vector<32x32xf32>
    %55 = tpu.matmul %53, %54, %cst_20 {dimension_numbers = #tpu.dot_dimension_numbers<[1], [1], [0], [0], [0, 0, 1, 0], [], []>} : vector<32x16xbf16>, vector<32x16xbf16>, vector<32x32xf32> -> vector<32x32xf32>
    %cst_21 = arith.constant -1.000000e+30 : f32
    %56 = vector.shape_cast %47 : vector<1x32xi1> to vector<1x32xi1>
    %57 = vector.broadcast %56 : vector<1x32xi1> to vector<32x32xi1>
    %58 = vector.broadcast %cst_21 : f32 to vector<32x32xf32>
    %59 = arith.select %57, %55, %58 : vector<32x32xi1>, vector<32x32xf32>
    %cst_22 = arith.constant dense<0xFF800000> : vector<32xf32>
    %60 = vector.multi_reduction <maximumf>, %59, %cst_22 [1] : vector<32x32xf32> to vector<32xf32>
    %61 = vector.shape_cast %60 : vector<32xf32> to vector<32x1xf32>
    %62 = vector.broadcast %61 : vector<32x1xf32> to vector<32x32xf32>
    %63 = arith.subf %59, %62 : vector<32x32xf32>
    %64 = math.exp %63 : vector<32x32xf32>
    %cst_23 = arith.constant dense<0.000000e+00> : vector<32xf32>
    %65 = vector.multi_reduction <add>, %64, %cst_23 [1] : vector<32x32xf32> to vector<32xf32>
    %66 = vector.shape_cast %65 : vector<32xf32> to vector<32x1xf32>
    %67 = arith.truncf %64 : vector<32x32xf32> to vector<32x32xbf16>
    %cst_24 = arith.constant dense<0.000000e+00> : vector<32x32xf32>
    %68 = tpu.matmul %67, %50, %cst_24 {dimension_numbers = #tpu.dot_dimension_numbers<[1], [0], [0], [1], [0, 0, 1, 1], [], []>} : vector<32x32xbf16>, vector<32x32xbf16>, vector<32x32xf32> -> vector<32x32xf32>
    %69 = tpu.reciprocal %66 {approx = true} : vector<32x1xf32> -> vector<32x1xf32>
    %70 = vector.broadcast %69 : vector<32x1xf32> to vector<32x32xf32>
    %71 = arith.mulf %68, %70 : vector<32x32xf32>
    %72 = vector.extract_strided_slice %44 {offsets = [0, 16], sizes = [32, 16], strides = [1, 1]} : vector<64x96xf32> to vector<32x16xf32>
    %73 = vector.extract_strided_slice %44 {offsets = [0, 48], sizes = [32, 16], strides = [1, 1]} : vector<64x96xf32> to vector<32x16xf32>
    %74 = arith.truncf %72 : vector<32x16xf32> to vector<32x16xbf16>
    %75 = arith.truncf %73 : vector<32x16xf32> to vector<32x16xbf16>
    %cst_25 = arith.constant dense<0.000000e+00> : vector<32x32xf32>
    %76 = tpu.matmul %74, %75, %cst_25 {dimension_numbers = #tpu.dot_dimension_numbers<[1], [1], [0], [0], [0, 0, 1, 0], [], []>} : vector<32x16xbf16>, vector<32x16xbf16>, vector<32x32xf32> -> vector<32x32xf32>
    %cst_26 = arith.constant -1.000000e+30 : f32
    %77 = vector.shape_cast %47 : vector<1x32xi1> to vector<1x32xi1>
    %78 = vector.broadcast %77 : vector<1x32xi1> to vector<32x32xi1>
    %79 = vector.broadcast %cst_26 : f32 to vector<32x32xf32>
    %80 = arith.select %78, %76, %79 : vector<32x32xi1>, vector<32x32xf32>
    %cst_27 = arith.constant dense<0xFF800000> : vector<32xf32>
    %81 = vector.multi_reduction <maximumf>, %80, %cst_27 [1] : vector<32x32xf32> to vector<32xf32>
    %82 = vector.shape_cast %81 : vector<32xf32> to vector<32x1xf32>
    %83 = vector.broadcast %82 : vector<32x1xf32> to vector<32x32xf32>
    %84 = arith.subf %80, %83 : vector<32x32xf32>
    %85 = math.exp %84 : vector<32x32xf32>
    %cst_28 = arith.constant dense<0.000000e+00> : vector<32xf32>
    %86 = vector.multi_reduction <add>, %85, %cst_28 [1] : vector<32x32xf32> to vector<32xf32>
    %87 = vector.shape_cast %86 : vector<32xf32> to vector<32x1xf32>
    %88 = arith.truncf %85 : vector<32x32xf32> to vector<32x32xbf16>
    %cst_29 = arith.constant dense<0.000000e+00> : vector<32x32xf32>
    %89 = tpu.matmul %88, %50, %cst_29 {dimension_numbers = #tpu.dot_dimension_numbers<[1], [0], [0], [1], [0, 0, 1, 1], [], []>} : vector<32x32xbf16>, vector<32x32xbf16>, vector<32x32xf32> -> vector<32x32xf32>
    %90 = tpu.reciprocal %87 {approx = true} : vector<32x1xf32> -> vector<32x1xf32>
    %91 = vector.broadcast %90 : vector<32x1xf32> to vector<32x32xf32>
    %92 = arith.mulf %89, %91 : vector<32x32xf32>
    %c16_i32 = arith.constant 16 : i32
    %93 = vector.broadcast %c16_i32 : i32 to vector<32x32xi32>
    %94 = arith.cmpi sge, %48, %93 : vector<32x32xi32>
    %95 = arith.select %94, %92, %71 : vector<32x32xi1>, vector<32x32xf32>
    %96 = vector.extract_strided_slice %44 {offsets = [32, 64], sizes = [32, 32], strides = [1, 1]} : vector<64x96xf32> to vector<32x32xf32>
    %97 = arith.truncf %96 : vector<32x32xf32> to vector<32x32xbf16>
    %98 = vector.extract_strided_slice %44 {offsets = [32, 0], sizes = [32, 16], strides = [1, 1]} : vector<64x96xf32> to vector<32x16xf32>
    %99 = vector.extract_strided_slice %44 {offsets = [32, 32], sizes = [32, 16], strides = [1, 1]} : vector<64x96xf32> to vector<32x16xf32>
    %100 = arith.truncf %98 : vector<32x16xf32> to vector<32x16xbf16>
    %101 = arith.truncf %99 : vector<32x16xf32> to vector<32x16xbf16>
    %cst_30 = arith.constant dense<0.000000e+00> : vector<32x32xf32>
    %102 = tpu.matmul %100, %101, %cst_30 {dimension_numbers = #tpu.dot_dimension_numbers<[1], [1], [0], [0], [0, 0, 1, 0], [], []>} : vector<32x16xbf16>, vector<32x16xbf16>, vector<32x32xf32> -> vector<32x32xf32>
    %cst_31 = arith.constant -1.000000e+30 : f32
    %103 = vector.shape_cast %47 : vector<1x32xi1> to vector<1x32xi1>
    %104 = vector.broadcast %103 : vector<1x32xi1> to vector<32x32xi1>
    %105 = vector.broadcast %cst_31 : f32 to vector<32x32xf32>
    %106 = arith.select %104, %102, %105 : vector<32x32xi1>, vector<32x32xf32>
    %cst_32 = arith.constant dense<0xFF800000> : vector<32xf32>
    %107 = vector.multi_reduction <maximumf>, %106, %cst_32 [1] : vector<32x32xf32> to vector<32xf32>
    %108 = vector.shape_cast %107 : vector<32xf32> to vector<32x1xf32>
    %109 = vector.broadcast %108 : vector<32x1xf32> to vector<32x32xf32>
    %110 = arith.subf %106, %109 : vector<32x32xf32>
    %111 = math.exp %110 : vector<32x32xf32>
    %cst_33 = arith.constant dense<0.000000e+00> : vector<32xf32>
    %112 = vector.multi_reduction <add>, %111, %cst_33 [1] : vector<32x32xf32> to vector<32xf32>
    %113 = vector.shape_cast %112 : vector<32xf32> to vector<32x1xf32>
    %114 = arith.truncf %111 : vector<32x32xf32> to vector<32x32xbf16>
    %cst_34 = arith.constant dense<0.000000e+00> : vector<32x32xf32>
    %115 = tpu.matmul %114, %97, %cst_34 {dimension_numbers = #tpu.dot_dimension_numbers<[1], [0], [0], [1], [0, 0, 1, 1], [], []>} : vector<32x32xbf16>, vector<32x32xbf16>, vector<32x32xf32> -> vector<32x32xf32>
    %116 = tpu.reciprocal %113 {approx = true} : vector<32x1xf32> -> vector<32x1xf32>
    %117 = vector.broadcast %116 : vector<32x1xf32> to vector<32x32xf32>
    %118 = arith.mulf %115, %117 : vector<32x32xf32>
    %119 = vector.extract_strided_slice %44 {offsets = [32, 16], sizes = [32, 16], strides = [1, 1]} : vector<64x96xf32> to vector<32x16xf32>
    %120 = vector.extract_strided_slice %44 {offsets = [32, 48], sizes = [32, 16], strides = [1, 1]} : vector<64x96xf32> to vector<32x16xf32>
    %121 = arith.truncf %119 : vector<32x16xf32> to vector<32x16xbf16>
    %122 = arith.truncf %120 : vector<32x16xf32> to vector<32x16xbf16>
    %cst_35 = arith.constant dense<0.000000e+00> : vector<32x32xf32>
    %123 = tpu.matmul %121, %122, %cst_35 {dimension_numbers = #tpu.dot_dimension_numbers<[1], [1], [0], [0], [0, 0, 1, 0], [], []>} : vector<32x16xbf16>, vector<32x16xbf16>, vector<32x32xf32> -> vector<32x32xf32>
    %cst_36 = arith.constant -1.000000e+30 : f32
    %124 = vector.shape_cast %47 : vector<1x32xi1> to vector<1x32xi1>
    %125 = vector.broadcast %124 : vector<1x32xi1> to vector<32x32xi1>
    %126 = vector.broadcast %cst_36 : f32 to vector<32x32xf32>
    %127 = arith.select %125, %123, %126 : vector<32x32xi1>, vector<32x32xf32>
    %cst_37 = arith.constant dense<0xFF800000> : vector<32xf32>
    %128 = vector.multi_reduction <maximumf>, %127, %cst_37 [1] : vector<32x32xf32> to vector<32xf32>
    %129 = vector.shape_cast %128 : vector<32xf32> to vector<32x1xf32>
    %130 = vector.broadcast %129 : vector<32x1xf32> to vector<32x32xf32>
    %131 = arith.subf %127, %130 : vector<32x32xf32>
    %132 = math.exp %131 : vector<32x32xf32>
    %cst_38 = arith.constant dense<0.000000e+00> : vector<32xf32>
    %133 = vector.multi_reduction <add>, %132, %cst_38 [1] : vector<32x32xf32> to vector<32xf32>
    %134 = vector.shape_cast %133 : vector<32xf32> to vector<32x1xf32>
    %135 = arith.truncf %132 : vector<32x32xf32> to vector<32x32xbf16>
    %cst_39 = arith.constant dense<0.000000e+00> : vector<32x32xf32>
    %136 = tpu.matmul %135, %97, %cst_39 {dimension_numbers = #tpu.dot_dimension_numbers<[1], [0], [0], [1], [0, 0, 1, 1], [], []>} : vector<32x32xbf16>, vector<32x32xbf16>, vector<32x32xf32> -> vector<32x32xf32>
    %137 = tpu.reciprocal %134 {approx = true} : vector<32x1xf32> -> vector<32x1xf32>
    %138 = vector.broadcast %137 : vector<32x1xf32> to vector<32x32xf32>
    %139 = arith.mulf %136, %138 : vector<32x32xf32>
    %c16_i32_40 = arith.constant 16 : i32
    %140 = vector.broadcast %c16_i32_40 : i32 to vector<32x32xi32>
    %141 = arith.cmpi sge, %48, %140 : vector<32x32xi32>
    %142 = arith.select %141, %139, %118 : vector<32x32xi1>, vector<32x32xf32>
    %143 = tpu.concatenate %95, %142 in 0 : vector<32x32xf32>, vector<32x32xf32> -> vector<64x32xf32>
    %144 = arith.truncf %143 : vector<64x32xf32> to vector<64x32xbf16>
    %c0_41 = arith.constant 0 : index
    %c0_42 = arith.constant 0 : index
    %145 = vector.load %arg7[%c0_41, %c0_42] : memref<32x128xbf16, #tpu.memory_space<vmem>>, vector<32x128xbf16>
    %cst_43 = arith.constant dense<0.000000e+00> : vector<64x128xf32>
    %146 = tpu.matmul %144, %145, %cst_43 {dimension_numbers = #tpu.dot_dimension_numbers<[1], [0], [0], [1], [0, 0, 1, 1], [], []>} : vector<64x32xbf16>, vector<32x128xbf16>, vector<64x128xf32> -> vector<64x128xf32>
    %147 = arith.addf %5, %146 : vector<64x128xf32>
    %c0_44 = arith.constant 0 : index
    %c0_45 = arith.constant 0 : index
    %148 = vector.load %arg8[%c0_44, %c0_45] : memref<1x128xf32, #tpu.memory_space<vmem>>, vector<1x128xf32>
    %149 = vector.broadcast %148 : vector<1x128xf32> to vector<64x128xf32>
    %150 = arith.addf %147, %149 : vector<64x128xf32>
    %c0_46 = arith.constant 0 : index
    %c0_47 = arith.constant 0 : index
    %151 = vector.load %arg9[%c0_46, %c0_47] : memref<1x128xf32, #tpu.memory_space<vmem>>, vector<1x128xf32>
    %c0_48 = arith.constant 0 : index
    %c0_49 = arith.constant 0 : index
    %152 = vector.load %arg10[%c0_48, %c0_49] : memref<1x128xf32, #tpu.memory_space<vmem>>, vector<1x128xf32>
    %153 = tpu.iota {dimensions = array<i32: 1>} : vector<1x128xi32>
    %c32_i32_50 = arith.constant 32 : i32
    %154 = vector.broadcast %c32_i32_50 : i32 to vector<1x128xi32>
    %155 = arith.cmpi slt, %153, %154 : vector<1x128xi32>
    %cst_51 = arith.constant 0.000000e+00 : f32
    %156 = vector.shape_cast %155 : vector<1x128xi1> to vector<1x128xi1>
    %157 = vector.broadcast %156 : vector<1x128xi1> to vector<64x128xi1>
    %158 = vector.broadcast %cst_51 : f32 to vector<64x128xf32>
    %159 = arith.select %157, %150, %158 : vector<64x128xi1>, vector<64x128xf32>
    %cst_52 = arith.constant dense<0.000000e+00> : vector<64xf32>
    %160 = vector.multi_reduction <add>, %159, %cst_52 [1] : vector<64x128xf32> to vector<64xf32>
    %161 = vector.shape_cast %160 : vector<64xf32> to vector<64x1xf32>
    %cst_53 = arith.constant 3.125000e-02 : f32
    %162 = vector.broadcast %cst_53 : f32 to vector<64x1xf32>
    %163 = arith.mulf %161, %162 : vector<64x1xf32>
    %164 = vector.broadcast %163 : vector<64x1xf32> to vector<64x128xf32>
    %165 = arith.subf %150, %164 : vector<64x128xf32>
    %cst_54 = arith.constant 0.000000e+00 : f32
    %166 = vector.shape_cast %155 : vector<1x128xi1> to vector<1x128xi1>
    %167 = vector.broadcast %166 : vector<1x128xi1> to vector<64x128xi1>
    %168 = vector.broadcast %cst_54 : f32 to vector<64x128xf32>
    %169 = arith.select %167, %165, %168 : vector<64x128xi1>, vector<64x128xf32>
    %170 = arith.mulf %169, %169 : vector<64x128xf32>
    %cst_55 = arith.constant dense<0.000000e+00> : vector<64xf32>
    %171 = vector.multi_reduction <add>, %170, %cst_55 [1] : vector<64x128xf32> to vector<64xf32>
    %172 = vector.shape_cast %171 : vector<64xf32> to vector<64x1xf32>
    %cst_56 = arith.constant 3.125000e-02 : f32
    %173 = vector.broadcast %cst_56 : f32 to vector<64x1xf32>
    %174 = arith.mulf %172, %173 : vector<64x1xf32>
    %cst_57 = arith.constant 9.99999974E-6 : f32
    %175 = vector.broadcast %cst_57 : f32 to vector<64x1xf32>
    %176 = arith.addf %174, %175 : vector<64x1xf32>
    %177 = math.rsqrt %176 : vector<64x1xf32>
    %178 = vector.broadcast %177 : vector<64x1xf32> to vector<64x128xf32>
    %179 = arith.mulf %169, %178 : vector<64x128xf32>
    %180 = vector.broadcast %151 : vector<1x128xf32> to vector<64x128xf32>
    %181 = arith.mulf %179, %180 : vector<64x128xf32>
    %182 = vector.broadcast %152 : vector<1x128xf32> to vector<64x128xf32>
    %183 = arith.addf %181, %182 : vector<64x128xf32>
    %184 = arith.truncf %183 : vector<64x128xf32> to vector<64x128xbf16>
    %c0_58 = arith.constant 0 : index
    %c0_59 = arith.constant 0 : index
    %185 = vector.load %arg11[%c0_58, %c0_59] : memref<128x128xbf16, #tpu.memory_space<vmem>>, vector<128x128xbf16>
    %cst_60 = arith.constant dense<0.000000e+00> : vector<64x128xf32>
    %186 = tpu.matmul %184, %185, %cst_60 {dimension_numbers = #tpu.dot_dimension_numbers<[1], [0], [0], [1], [0, 0, 1, 1], [], []>} : vector<64x128xbf16>, vector<128x128xbf16>, vector<64x128xf32> -> vector<64x128xf32>
    %c0_61 = arith.constant 0 : index
    %c0_62 = arith.constant 0 : index
    %187 = vector.load %arg12[%c0_61, %c0_62] : memref<1x128xf32, #tpu.memory_space<vmem>>, vector<1x128xf32>
    %188 = vector.broadcast %187 : vector<1x128xf32> to vector<64x128xf32>
    %189 = arith.addf %186, %188 : vector<64x128xf32>
    %cst_63 = arith.constant -1.702000e+00 : f32
    %190 = vector.broadcast %cst_63 : f32 to vector<64x128xf32>
    %191 = arith.mulf %190, %189 : vector<64x128xf32>
    %192 = math.exp %191 : vector<64x128xf32>
    %cst_64 = arith.constant 1.000000e+00 : f32
    %193 = vector.broadcast %cst_64 : f32 to vector<64x128xf32>
    %194 = arith.addf %193, %192 : vector<64x128xf32>
    %195 = tpu.reciprocal %194 {approx = true} : vector<64x128xf32> -> vector<64x128xf32>
    %196 = arith.mulf %189, %195 : vector<64x128xf32>
    %197 = arith.truncf %196 : vector<64x128xf32> to vector<64x128xbf16>
    %c0_65 = arith.constant 0 : index
    %c0_66 = arith.constant 0 : index
    %198 = vector.load %arg13[%c0_65, %c0_66] : memref<128x128xbf16, #tpu.memory_space<vmem>>, vector<128x128xbf16>
    %cst_67 = arith.constant dense<0.000000e+00> : vector<64x128xf32>
    %199 = tpu.matmul %197, %198, %cst_67 {dimension_numbers = #tpu.dot_dimension_numbers<[1], [0], [0], [1], [0, 0, 1, 1], [], []>} : vector<64x128xbf16>, vector<128x128xbf16>, vector<64x128xf32> -> vector<64x128xf32>
    %c0_68 = arith.constant 0 : index
    %c0_69 = arith.constant 0 : index
    %200 = vector.load %arg14[%c0_68, %c0_69] : memref<1x128xf32, #tpu.memory_space<vmem>>, vector<1x128xf32>
    %201 = vector.broadcast %200 : vector<1x128xf32> to vector<64x128xf32>
    %202 = arith.addf %199, %201 : vector<64x128xf32>
    %203 = arith.addf %150, %202 : vector<64x128xf32>
    %c0_70 = arith.constant 0 : index
    %c0_71 = arith.constant 0 : index
    %204 = vector.load %arg15[%c0_70, %c0_71] : memref<64x128xf32, #tpu.memory_space<vmem>>, vector<64x128xf32>
    tpu.vector_store %arg15[%c0_70, %c0_71], %203 {strides = array<i32>} : memref<64x128xf32, #tpu.memory_space<vmem>>, vector<64x128xf32>,
    return
  }
}

module attributes {stable_mosaic.version = 11 : i64} {
  func.func @_stem_kernel(%arg0: memref<64x48xf32, #tpu.memory_space<vmem>>, %arg1: memref<48x128xbf16, #tpu.memory_space<vmem>>, %arg2: memref<64x128xf32, #tpu.memory_space<vmem>>, %arg3: memref<1x128xf32, #tpu.memory_space<vmem>>, %arg4: memref<1x128xf32, #tpu.memory_space<vmem>>, %arg5: memref<64x128xf32, #tpu.memory_space<vmem>>) attributes {dimension_semantics = [], scalar_prefetch = 0 : i64, scratch_operands = 0 : i64, tpu.core_type = #tpu.core_type<tc>} {
    %c0 = arith.constant 0 : index
    %c0_0 = arith.constant 0 : index
    %0 = vector.load %arg0[%c0, %c0_0] : memref<64x48xf32, #tpu.memory_space<vmem>>, vector<64x48xf32>
    %1 = arith.truncf %0 : vector<64x48xf32> to vector<64x48xbf16>
    %c0_1 = arith.constant 0 : index
    %c0_2 = arith.constant 0 : index
    %2 = vector.load %arg1[%c0_1, %c0_2] : memref<48x128xbf16, #tpu.memory_space<vmem>>, vector<48x128xbf16>
    %cst = arith.constant dense<0.000000e+00> : vector<64x128xf32>
    %3 = tpu.matmul %1, %2, %cst {dimension_numbers = #tpu.dot_dimension_numbers<[1], [0], [0], [1], [0, 0, 1, 1], [], []>} : vector<64x48xbf16>, vector<48x128xbf16>, vector<64x128xf32> -> vector<64x128xf32>
    %c0_3 = arith.constant 0 : index
    %c0_4 = arith.constant 0 : index
    %4 = vector.load %arg2[%c0_3, %c0_4] : memref<64x128xf32, #tpu.memory_space<vmem>>, vector<64x128xf32>
    %5 = arith.addf %3, %4 : vector<64x128xf32>
    %c0_5 = arith.constant 0 : index
    %c0_6 = arith.constant 0 : index
    %6 = vector.load %arg3[%c0_5, %c0_6] : memref<1x128xf32, #tpu.memory_space<vmem>>, vector<1x128xf32>
    %c0_7 = arith.constant 0 : index
    %c0_8 = arith.constant 0 : index
    %7 = vector.load %arg4[%c0_7, %c0_8] : memref<1x128xf32, #tpu.memory_space<vmem>>, vector<1x128xf32>
    %8 = tpu.iota {dimensions = array<i32: 1>} : vector<1x128xi32>
    %c32_i32 = arith.constant 32 : i32
    %9 = vector.broadcast %c32_i32 : i32 to vector<1x128xi32>
    %10 = arith.cmpi slt, %8, %9 : vector<1x128xi32>
    %cst_9 = arith.constant 0.000000e+00 : f32
    %11 = vector.shape_cast %10 : vector<1x128xi1> to vector<1x128xi1>
    %12 = vector.broadcast %11 : vector<1x128xi1> to vector<64x128xi1>
    %13 = vector.broadcast %cst_9 : f32 to vector<64x128xf32>
    %14 = arith.select %12, %5, %13 : vector<64x128xi1>, vector<64x128xf32>
    %cst_10 = arith.constant dense<0.000000e+00> : vector<64xf32>
    %15 = vector.multi_reduction <add>, %14, %cst_10 [1] : vector<64x128xf32> to vector<64xf32>
    %16 = vector.shape_cast %15 : vector<64xf32> to vector<64x1xf32>
    %cst_11 = arith.constant 3.125000e-02 : f32
    %17 = vector.broadcast %cst_11 : f32 to vector<64x1xf32>
    %18 = arith.mulf %16, %17 : vector<64x1xf32>
    %19 = vector.broadcast %18 : vector<64x1xf32> to vector<64x128xf32>
    %20 = arith.subf %5, %19 : vector<64x128xf32>
    %cst_12 = arith.constant 0.000000e+00 : f32
    %21 = vector.shape_cast %10 : vector<1x128xi1> to vector<1x128xi1>
    %22 = vector.broadcast %21 : vector<1x128xi1> to vector<64x128xi1>
    %23 = vector.broadcast %cst_12 : f32 to vector<64x128xf32>
    %24 = arith.select %22, %20, %23 : vector<64x128xi1>, vector<64x128xf32>
    %25 = arith.mulf %24, %24 : vector<64x128xf32>
    %cst_13 = arith.constant dense<0.000000e+00> : vector<64xf32>
    %26 = vector.multi_reduction <add>, %25, %cst_13 [1] : vector<64x128xf32> to vector<64xf32>
    %27 = vector.shape_cast %26 : vector<64xf32> to vector<64x1xf32>
    %cst_14 = arith.constant 3.125000e-02 : f32
    %28 = vector.broadcast %cst_14 : f32 to vector<64x1xf32>
    %29 = arith.mulf %27, %28 : vector<64x1xf32>
    %cst_15 = arith.constant 9.99999974E-6 : f32
    %30 = vector.broadcast %cst_15 : f32 to vector<64x1xf32>
    %31 = arith.addf %29, %30 : vector<64x1xf32>
    %32 = math.rsqrt %31 : vector<64x1xf32>
    %33 = vector.broadcast %32 : vector<64x1xf32> to vector<64x128xf32>
    %34 = arith.mulf %24, %33 : vector<64x128xf32>
    %35 = vector.broadcast %6 : vector<1x128xf32> to vector<64x128xf32>
    %36 = arith.mulf %34, %35 : vector<64x128xf32>
    %37 = vector.broadcast %7 : vector<1x128xf32> to vector<64x128xf32>
    %38 = arith.addf %36, %37 : vector<64x128xf32>
    %c0_16 = arith.constant 0 : index
    %c0_17 = arith.constant 0 : index
    %39 = vector.load %arg5[%c0_16, %c0_17] : memref<64x128xf32, #tpu.memory_space<vmem>>, vector<64x128xf32>
    tpu.vector_store %arg5[%c0_16, %c0_17], %38 {strides = array<i32>} : memref<64x128xf32, #tpu.memory_space<vmem>>, vector<64x128xf32>,
    return
  }
}

module attributes {stable_mosaic.version = 11 : i64} {
  func.func @kernel(%arg0: memref<64x128xf32, #tpu.memory_space<vmem>>, %arg1: memref<6x24xf32, #tpu.memory_space<vmem>>, %arg2: memref<64x1xf32, #tpu.memory_space<vmem>>, %arg3: memref<24x128xbf16, #tpu.memory_space<vmem>>, %arg4: memref<1x128xf32, #tpu.memory_space<vmem>>, %arg5: memref<128x32xbf16, #tpu.memory_space<vmem>>, %arg6: memref<128x32xbf16, #tpu.memory_space<vmem>>, %arg7: memref<128x128xbf16, #tpu.memory_space<vmem>>, %arg8: memref<1x128xf32, #tpu.memory_space<vmem>>, %arg9: memref<1x128xf32, #tpu.memory_space<vmem>>, %arg10: memref<128x128xbf16, #tpu.memory_space<vmem>>, %arg11: memref<1x128xf32, #tpu.memory_space<vmem>>, %arg12: memref<1x128xf32, #tpu.memory_space<vmem>>, %arg13: memref<10x128xf32, #tpu.memory_space<vmem>>, %arg14: memref<1x128xf32, #tpu.memory_space<vmem>>, %arg15: memref<1x128xf32, #tpu.memory_space<vmem>>, %arg16: memref<128x96xbf16, #tpu.memory_space<vmem>>, %arg17: memref<1x96xf32, #tpu.memory_space<vmem>>, %arg18: memref<32x128xbf16, #tpu.memory_space<vmem>>, %arg19: memref<1x128xf32, #tpu.memory_space<vmem>>, %arg20: memref<1x128xf32, #tpu.memory_space<vmem>>, %arg21: memref<1x128xf32, #tpu.memory_space<vmem>>, %arg22: memref<128x128xbf16, #tpu.memory_space<vmem>>, %arg23: memref<1x128xf32, #tpu.memory_space<vmem>>, %arg24: memref<128x128xbf16, #tpu.memory_space<vmem>>, %arg25: memref<1x128xf32, #tpu.memory_space<vmem>>, %arg26: memref<6x128xf32, #tpu.memory_space<vmem>>, %arg27: memref<64x128xf32, #tpu.memory_space<vmem>>, %arg28: memref<64x128xf32, #tpu.memory_space<vmem>>) attributes {dimension_semantics = [], scalar_prefetch = 0 : i64, scratch_operands = 1 : i64, tpu.core_type = #tpu.core_type<tc>} {
    %c0 = arith.constant 0 : index
    %c0_0 = arith.constant 0 : index
    %0 = vector.load %arg0[%c0, %c0_0] : memref<64x128xf32, #tpu.memory_space<vmem>>, vector<64x128xf32>
    %c0_1 = arith.constant 0 : index
    %c0_2 = arith.constant 0 : index
    %1 = vector.load %arg13[%c0_1, %c0_2] : memref<10x128xf32, #tpu.memory_space<vmem>>, vector<10x128xf32>
    %c0_3 = arith.constant 0 : index
    %c0_4 = arith.constant 0 : index
    %2 = vector.load %arg1[%c0_3, %c0_4] : memref<6x24xf32, #tpu.memory_space<vmem>>, vector<6x24xf32>
    %3 = arith.truncf %2 : vector<6x24xf32> to vector<6x24xbf16>
    %c0_5 = arith.constant 0 : index
    %c0_6 = arith.constant 0 : index
    %4 = vector.load %arg3[%c0_5, %c0_6] : memref<24x128xbf16, #tpu.memory_space<vmem>>, vector<24x128xbf16>
    %cst = arith.constant dense<0.000000e+00> : vector<6x128xf32>
    %5 = tpu.matmul %3, %4, %cst {dimension_numbers = #tpu.dot_dimension_numbers<[1], [0], [0], [1], [0, 0, 1, 1], [], []>} : vector<6x24xbf16>, vector<24x128xbf16>, vector<6x128xf32> -> vector<6x128xf32>
    %c0_7 = arith.constant 0 : index
    %c0_8 = arith.constant 0 : index
    %6 = vector.load %arg4[%c0_7, %c0_8] : memref<1x128xf32, #tpu.memory_space<vmem>>, vector<1x128xf32>
    %7 = vector.broadcast %6 : vector<1x128xf32> to vector<6x128xf32>
    %8 = arith.addf %5, %7 : vector<6x128xf32>
    %9 = arith.truncf %1 : vector<10x128xf32> to vector<10x128xbf16>
    %c0_9 = arith.constant 0 : index
    %c0_10 = arith.constant 0 : index
    %10 = vector.load %arg6[%c0_9, %c0_10] : memref<128x32xbf16, #tpu.memory_space<vmem>>, vector<128x32xbf16>
    %cst_11 = arith.constant dense<0.000000e+00> : vector<10x32xf32>
    %11 = tpu.matmul %9, %10, %cst_11 {dimension_numbers = #tpu.dot_dimension_numbers<[1], [0], [0], [1], [0, 0, 1, 1], [], []>} : vector<10x128xbf16>, vector<128x32xbf16>, vector<10x32xf32> -> vector<10x32xf32>
    %c0_12 = arith.constant 0 : index
    %c0_13 = arith.constant 0 : index
    %12 = vector.load %arg2[%c0_12, %c0_13] : memref<64x1xf32, #tpu.memory_space<vmem>>, vector<64x1xf32>
    %13 = vector.broadcast %12 : vector<64x1xf32> to vector<64x128xf32>
    %14 = arith.mulf %0, %13 : vector<64x128xf32>
    %c0_14 = arith.constant 0 : index
    %c0_15 = arith.constant 0 : index
    %15 = vector.load %arg28[%c0_14, %c0_15] : memref<64x128xf32, #tpu.memory_space<vmem>>, vector<64x128xf32>
    tpu.vector_store %arg28[%c0_14, %c0_15], %14 {strides = array<i32>} : memref<64x128xf32, #tpu.memory_space<vmem>>, vector<64x128xf32>,
    %16 = vector.extract_strided_slice %0 {offsets = [0, 0], sizes = [17, 128], strides = [1, 1]} : vector<64x128xf32> to vector<17x128xf32>
    %17 = arith.truncf %16 : vector<17x128xf32> to vector<17x128xbf16>
    %18 = vector.extract_strided_slice %8 {offsets = [0, 0], sizes = [3, 128], strides = [1, 1]} : vector<6x128xf32> to vector<3x128xf32>
    %19 = arith.truncf %18 : vector<3x128xf32> to vector<3x128xbf16>
    %c0_16 = arith.constant 0 : index
    %c0_17 = arith.constant 0 : index
    %20 = vector.load %arg5[%c0_16, %c0_17] : memref<128x32xbf16, #tpu.memory_space<vmem>>, vector<128x32xbf16>
    %cst_18 = arith.constant dense<0.000000e+00> : vector<3x32xf32>
    %21 = tpu.matmul %19, %20, %cst_18 {dimension_numbers = #tpu.dot_dimension_numbers<[1], [0], [0], [1], [0, 0, 1, 1], [], []>} : vector<3x128xbf16>, vector<128x32xbf16>, vector<3x32xf32> -> vector<3x32xf32>
    %c0_19 = arith.constant 0 : index
    %c0_20 = arith.constant 0 : index
    %22 = vector.load %arg6[%c0_19, %c0_20] : memref<128x32xbf16, #tpu.memory_space<vmem>>, vector<128x32xbf16>
    %cst_21 = arith.constant dense<0.000000e+00> : vector<17x32xf32>
    %23 = tpu.matmul %17, %22, %cst_21 {dimension_numbers = #tpu.dot_dimension_numbers<[1], [0], [0], [1], [0, 0, 1, 1], [], []>} : vector<17x128xbf16>, vector<128x32xbf16>, vector<17x32xf32> -> vector<17x32xf32>
    %24 = arith.truncf %21 : vector<3x32xf32> to vector<3x32xbf16>
    %25 = arith.truncf %23 : vector<17x32xf32> to vector<17x32xbf16>
    %cst_22 = arith.constant dense<0.000000e+00> : vector<3x17xf32>
    %26 = tpu.matmul %24, %25, %cst_22 {dimension_numbers = #tpu.dot_dimension_numbers<[1], [1], [0], [0], [0, 0, 1, 0], [], []>} : vector<3x32xbf16>, vector<17x32xbf16>, vector<3x17xf32> -> vector<3x17xf32>
    %27 = arith.truncf %21 : vector<3x32xf32> to vector<3x32xbf16>
    %28 = arith.truncf %11 : vector<10x32xf32> to vector<10x32xbf16>
    %cst_23 = arith.constant dense<0.000000e+00> : vector<3x10xf32>
    %29 = tpu.matmul %27, %28, %cst_23 {dimension_numbers = #tpu.dot_dimension_numbers<[1], [1], [0], [0], [0, 0, 1, 0], [], []>} : vector<3x32xbf16>, vector<10x32xbf16>, vector<3x10xf32> -> vector<3x10xf32>
    %cst_24 = arith.constant dense<0xFF800000> : vector<3xf32>
    %30 = vector.multi_reduction <maximumf>, %26, %cst_24 [1] : vector<3x17xf32> to vector<3xf32>
    %31 = vector.shape_cast %30 : vector<3xf32> to vector<3x1xf32>
    %cst_25 = arith.constant dense<0xFF800000> : vector<3xf32>
    %32 = vector.multi_reduction <maximumf>, %29, %cst_25 [1] : vector<3x10xf32> to vector<3xf32>
    %33 = vector.shape_cast %32 : vector<3xf32> to vector<3x1xf32>
    %34 = arith.maximumf %31, %33 : vector<3x1xf32>
    %35 = vector.broadcast %34 : vector<3x1xf32> to vector<3x17xf32>
    %36 = arith.subf %26, %35 : vector<3x17xf32>
    %37 = math.exp %36 : vector<3x17xf32>
    %38 = vector.broadcast %34 : vector<3x1xf32> to vector<3x10xf32>
    %39 = arith.subf %29, %38 : vector<3x10xf32>
    %40 = math.exp %39 : vector<3x10xf32>
    %cst_26 = arith.constant dense<0.000000e+00> : vector<3xf32>
    %41 = vector.multi_reduction <add>, %37, %cst_26 [1] : vector<3x17xf32> to vector<3xf32>
    %42 = vector.shape_cast %41 : vector<3xf32> to vector<3x1xf32>
    %cst_27 = arith.constant dense<0.000000e+00> : vector<3xf32>
    %43 = vector.multi_reduction <add>, %40, %cst_27 [1] : vector<3x10xf32> to vector<3xf32>
    %44 = vector.shape_cast %43 : vector<3xf32> to vector<3x1xf32>
    %45 = arith.addf %42, %44 : vector<3x1xf32>
    %46 = arith.truncf %37 : vector<3x17xf32> to vector<3x17xbf16>
    %cst_28 = arith.constant dense<0.000000e+00> : vector<3x128xf32>
    %47 = tpu.matmul %46, %17, %cst_28 {dimension_numbers = #tpu.dot_dimension_numbers<[1], [0], [0], [1], [0, 0, 1, 1], [], []>} : vector<3x17xbf16>, vector<17x128xbf16>, vector<3x128xf32> -> vector<3x128xf32>
    %48 = arith.truncf %40 : vector<3x10xf32> to vector<3x10xbf16>
    %49 = arith.truncf %1 : vector<10x128xf32> to vector<10x128xbf16>
    %cst_29 = arith.constant dense<0.000000e+00> : vector<3x128xf32>
    %50 = tpu.matmul %48, %49, %cst_29 {dimension_numbers = #tpu.dot_dimension_numbers<[1], [0], [0], [1], [0, 0, 1, 1], [], []>} : vector<3x10xbf16>, vector<10x128xbf16>, vector<3x128xf32> -> vector<3x128xf32>
    %51 = arith.addf %47, %50 : vector<3x128xf32>
    %52 = tpu.reciprocal %45 {approx = true} : vector<3x1xf32> -> vector<3x1xf32>
    %53 = vector.broadcast %52 : vector<3x1xf32> to vector<3x128xf32>
    %54 = arith.mulf %51, %53 : vector<3x128xf32>
    %55 = arith.truncf %54 : vector<3x128xf32> to vector<3x128xbf16>
    %c0_30 = arith.constant 0 : index
    %c0_31 = arith.constant 0 : index
    %56 = vector.load %arg7[%c0_30, %c0_31] : memref<128x128xbf16, #tpu.memory_space<vmem>>, vector<128x128xbf16>
    %cst_32 = arith.constant dense<0.000000e+00> : vector<3x128xf32>
    %57 = tpu.matmul %55, %56, %cst_32 {dimension_numbers = #tpu.dot_dimension_numbers<[1], [0], [0], [1], [0, 0, 1, 1], [], []>} : vector<3x128xbf16>, vector<128x128xbf16>, vector<3x128xf32> -> vector<3x128xf32>
    %c0_33 = arith.constant 0 : index
    %c0_34 = arith.constant 0 : index
    %58 = vector.load %arg8[%c0_33, %c0_34] : memref<1x128xf32, #tpu.memory_space<vmem>>, vector<1x128xf32>
    %c0_35 = arith.constant 0 : index
    %c0_36 = arith.constant 0 : index
    %59 = vector.load %arg9[%c0_35, %c0_36] : memref<1x128xf32, #tpu.memory_space<vmem>>, vector<1x128xf32>
    %60 = tpu.iota {dimensions = array<i32: 1>} : vector<1x128xi32>
    %c32_i32 = arith.constant 32 : i32
    %61 = vector.broadcast %c32_i32 : i32 to vector<1x128xi32>
    %62 = arith.cmpi slt, %60, %61 : vector<1x128xi32>
    %cst_37 = arith.constant 0.000000e+00 : f32
    %63 = vector.shape_cast %62 : vector<1x128xi1> to vector<1x128xi1>
    %64 = vector.broadcast %63 : vector<1x128xi1> to vector<3x128xi1>
    %65 = vector.broadcast %cst_37 : f32 to vector<3x128xf32>
    %66 = arith.select %64, %57, %65 : vector<3x128xi1>, vector<3x128xf32>
    %cst_38 = arith.constant dense<0.000000e+00> : vector<3xf32>
    %67 = vector.multi_reduction <add>, %66, %cst_38 [1] : vector<3x128xf32> to vector<3xf32>
    %68 = vector.shape_cast %67 : vector<3xf32> to vector<3x1xf32>
    %cst_39 = arith.constant 3.125000e-02 : f32
    %69 = vector.broadcast %cst_39 : f32 to vector<3x1xf32>
    %70 = arith.mulf %68, %69 : vector<3x1xf32>
    %71 = vector.broadcast %70 : vector<3x1xf32> to vector<3x128xf32>
    %72 = arith.subf %57, %71 : vector<3x128xf32>
    %cst_40 = arith.constant 0.000000e+00 : f32
    %73 = vector.shape_cast %62 : vector<1x128xi1> to vector<1x128xi1>
    %74 = vector.broadcast %73 : vector<1x128xi1> to vector<3x128xi1>
    %75 = vector.broadcast %cst_40 : f32 to vector<3x128xf32>
    %76 = arith.select %74, %72, %75 : vector<3x128xi1>, vector<3x128xf32>
    %77 = arith.mulf %76, %76 : vector<3x128xf32>
    %cst_41 = arith.constant dense<0.000000e+00> : vector<3xf32>
    %78 = vector.multi_reduction <add>, %77, %cst_41 [1] : vector<3x128xf32> to vector<3xf32>
    %79 = vector.shape_cast %78 : vector<3xf32> to vector<3x1xf32>
    %cst_42 = arith.constant 3.125000e-02 : f32
    %80 = vector.broadcast %cst_42 : f32 to vector<3x1xf32>
    %81 = arith.mulf %79, %80 : vector<3x1xf32>
    %cst_43 = arith.constant 9.99999974E-6 : f32
    %82 = vector.broadcast %cst_43 : f32 to vector<3x1xf32>
    %83 = arith.addf %81, %82 : vector<3x1xf32>
    %84 = math.rsqrt %83 : vector<3x1xf32>
    %85 = vector.broadcast %84 : vector<3x1xf32> to vector<3x128xf32>
    %86 = arith.mulf %76, %85 : vector<3x128xf32>
    %87 = vector.broadcast %58 : vector<1x128xf32> to vector<3x128xf32>
    %88 = arith.mulf %86, %87 : vector<3x128xf32>
    %89 = vector.broadcast %59 : vector<1x128xf32> to vector<3x128xf32>
    %90 = arith.addf %88, %89 : vector<3x128xf32>
    %91 = arith.truncf %90 : vector<3x128xf32> to vector<3x128xbf16>
    %c0_44 = arith.constant 0 : index
    %c0_45 = arith.constant 0 : index
    %92 = vector.load %arg10[%c0_44, %c0_45] : memref<128x128xbf16, #tpu.memory_space<vmem>>, vector<128x128xbf16>
    %cst_46 = arith.constant dense<0.000000e+00> : vector<3x128xf32>
    %93 = tpu.matmul %91, %92, %cst_46 {dimension_numbers = #tpu.dot_dimension_numbers<[1], [0], [0], [1], [0, 0, 1, 1], [], []>} : vector<3x128xbf16>, vector<128x128xbf16>, vector<3x128xf32> -> vector<3x128xf32>
    %c0_47 = arith.constant 0 : index
    %c0_48 = arith.constant 0 : index
    %94 = vector.load %arg26[%c0_47, %c0_48] : memref<6x128xf32, #tpu.memory_space<vmem>>, vector<3x128xf32>
    tpu.vector_store %arg26[%c0_47, %c0_48], %93 {strides = array<i32>} : memref<6x128xf32, #tpu.memory_space<vmem>>, vector<3x128xf32>,
    %95 = arith.addf %57, %18 : vector<3x128xf32>
    %c0_49 = arith.constant 0 : index
    %c0_50 = arith.constant 0 : index
    %96 = vector.load %arg11[%c0_49, %c0_50] : memref<1x128xf32, #tpu.memory_space<vmem>>, vector<1x128xf32>
    %c0_51 = arith.constant 0 : index
    %c0_52 = arith.constant 0 : index
    %97 = vector.load %arg12[%c0_51, %c0_52] : memref<1x128xf32, #tpu.memory_space<vmem>>, vector<1x128xf32>
    %98 = tpu.iota {dimensions = array<i32: 1>} : vector<1x128xi32>
    %c32_i32_53 = arith.constant 32 : i32
    %99 = vector.broadcast %c32_i32_53 : i32 to vector<1x128xi32>
    %100 = arith.cmpi slt, %98, %99 : vector<1x128xi32>
    %cst_54 = arith.constant 0.000000e+00 : f32
    %101 = vector.shape_cast %100 : vector<1x128xi1> to vector<1x128xi1>
    %102 = vector.broadcast %101 : vector<1x128xi1> to vector<3x128xi1>
    %103 = vector.broadcast %cst_54 : f32 to vector<3x128xf32>
    %104 = arith.select %102, %95, %103 : vector<3x128xi1>, vector<3x128xf32>
    %cst_55 = arith.constant dense<0.000000e+00> : vector<3xf32>
    %105 = vector.multi_reduction <add>, %104, %cst_55 [1] : vector<3x128xf32> to vector<3xf32>
    %106 = vector.shape_cast %105 : vector<3xf32> to vector<3x1xf32>
    %cst_56 = arith.constant 3.125000e-02 : f32
    %107 = vector.broadcast %cst_56 : f32 to vector<3x1xf32>
    %108 = arith.mulf %106, %107 : vector<3x1xf32>
    %109 = vector.broadcast %108 : vector<3x1xf32> to vector<3x128xf32>
    %110 = arith.subf %95, %109 : vector<3x128xf32>
    %cst_57 = arith.constant 0.000000e+00 : f32
    %111 = vector.shape_cast %100 : vector<1x128xi1> to vector<1x128xi1>
    %112 = vector.broadcast %111 : vector<1x128xi1> to vector<3x128xi1>
    %113 = vector.broadcast %cst_57 : f32 to vector<3x128xf32>
    %114 = arith.select %112, %110, %113 : vector<3x128xi1>, vector<3x128xf32>
    %115 = arith.mulf %114, %114 : vector<3x128xf32>
    %cst_58 = arith.constant dense<0.000000e+00> : vector<3xf32>
    %116 = vector.multi_reduction <add>, %115, %cst_58 [1] : vector<3x128xf32> to vector<3xf32>
    %117 = vector.shape_cast %116 : vector<3xf32> to vector<3x1xf32>
    %cst_59 = arith.constant 3.125000e-02 : f32
    %118 = vector.broadcast %cst_59 : f32 to vector<3x1xf32>
    %119 = arith.mulf %117, %118 : vector<3x1xf32>
    %cst_60 = arith.constant 9.99999974E-6 : f32
    %120 = vector.broadcast %cst_60 : f32 to vector<3x1xf32>
    %121 = arith.addf %119, %120 : vector<3x1xf32>
    %122 = math.rsqrt %121 : vector<3x1xf32>
    %123 = vector.broadcast %122 : vector<3x1xf32> to vector<3x128xf32>
    %124 = arith.mulf %114, %123 : vector<3x128xf32>
    %125 = vector.broadcast %96 : vector<1x128xf32> to vector<3x128xf32>
    %126 = arith.mulf %124, %125 : vector<3x128xf32>
    %127 = vector.broadcast %97 : vector<1x128xf32> to vector<3x128xf32>
    %128 = arith.addf %126, %127 : vector<3x128xf32>
    %c17 = arith.constant 17 : index
    %c0_61 = arith.constant 0 : index
    %129 = vector.load %arg28[%c17, %c0_61] : memref<64x128xf32, #tpu.memory_space<vmem>>, vector<3x128xf32>
    tpu.vector_store %arg28[%c17, %c0_61], %128 {strides = array<i32>} : memref<64x128xf32, #tpu.memory_space<vmem>>, vector<3x128xf32>,
    %130 = vector.extract_strided_slice %0 {offsets = [32, 0], sizes = [17, 128], strides = [1, 1]} : vector<64x128xf32> to vector<17x128xf32>
    %131 = arith.truncf %130 : vector<17x128xf32> to vector<17x128xbf16>
    %132 = vector.extract_strided_slice %8 {offsets = [3, 0], sizes = [3, 128], strides = [1, 1]} : vector<6x128xf32> to vector<3x128xf32>
    %133 = arith.truncf %132 : vector<3x128xf32> to vector<3x128xbf16>
    %c0_62 = arith.constant 0 : index
    %c0_63 = arith.constant 0 : index
    %134 = vector.load %arg5[%c0_62, %c0_63] : memref<128x32xbf16, #tpu.memory_space<vmem>>, vector<128x32xbf16>
    %cst_64 = arith.constant dense<0.000000e+00> : vector<3x32xf32>
    %135 = tpu.matmul %133, %134, %cst_64 {dimension_numbers = #tpu.dot_dimension_numbers<[1], [0], [0], [1], [0, 0, 1, 1], [], []>} : vector<3x128xbf16>, vector<128x32xbf16>, vector<3x32xf32> -> vector<3x32xf32>
    %c0_65 = arith.constant 0 : index
    %c0_66 = arith.constant 0 : index
    %136 = vector.load %arg6[%c0_65, %c0_66] : memref<128x32xbf16, #tpu.memory_space<vmem>>, vector<128x32xbf16>
    %cst_67 = arith.constant dense<0.000000e+00> : vector<17x32xf32>
    %137 = tpu.matmul %131, %136, %cst_67 {dimension_numbers = #tpu.dot_dimension_numbers<[1], [0], [0], [1], [0, 0, 1, 1], [], []>} : vector<17x128xbf16>, vector<128x32xbf16>, vector<17x32xf32> -> vector<17x32xf32>
    %138 = arith.truncf %135 : vector<3x32xf32> to vector<3x32xbf16>
    %139 = arith.truncf %137 : vector<17x32xf32> to vector<17x32xbf16>
    %cst_68 = arith.constant dense<0.000000e+00> : vector<3x17xf32>
    %140 = tpu.matmul %138, %139, %cst_68 {dimension_numbers = #tpu.dot_dimension_numbers<[1], [1], [0], [0], [0, 0, 1, 0], [], []>} : vector<3x32xbf16>, vector<17x32xbf16>, vector<3x17xf32> -> vector<3x17xf32>
    %141 = arith.truncf %135 : vector<3x32xf32> to vector<3x32xbf16>
    %142 = arith.truncf %11 : vector<10x32xf32> to vector<10x32xbf16>
    %cst_69 = arith.constant dense<0.000000e+00> : vector<3x10xf32>
    %143 = tpu.matmul %141, %142, %cst_69 {dimension_numbers = #tpu.dot_dimension_numbers<[1], [1], [0], [0], [0, 0, 1, 0], [], []>} : vector<3x32xbf16>, vector<10x32xbf16>, vector<3x10xf32> -> vector<3x10xf32>
    %cst_70 = arith.constant dense<0xFF800000> : vector<3xf32>
    %144 = vector.multi_reduction <maximumf>, %140, %cst_70 [1] : vector<3x17xf32> to vector<3xf32>
    %145 = vector.shape_cast %144 : vector<3xf32> to vector<3x1xf32>
    %cst_71 = arith.constant dense<0xFF800000> : vector<3xf32>
    %146 = vector.multi_reduction <maximumf>, %143, %cst_71 [1] : vector<3x10xf32> to vector<3xf32>
    %147 = vector.shape_cast %146 : vector<3xf32> to vector<3x1xf32>
    %148 = arith.maximumf %145, %147 : vector<3x1xf32>
    %149 = vector.broadcast %148 : vector<3x1xf32> to vector<3x17xf32>
    %150 = arith.subf %140, %149 : vector<3x17xf32>
    %151 = math.exp %150 : vector<3x17xf32>
    %152 = vector.broadcast %148 : vector<3x1xf32> to vector<3x10xf32>
    %153 = arith.subf %143, %152 : vector<3x10xf32>
    %154 = math.exp %153 : vector<3x10xf32>
    %cst_72 = arith.constant dense<0.000000e+00> : vector<3xf32>
    %155 = vector.multi_reduction <add>, %151, %cst_72 [1] : vector<3x17xf32> to vector<3xf32>
    %156 = vector.shape_cast %155 : vector<3xf32> to vector<3x1xf32>
    %cst_73 = arith.constant dense<0.000000e+00> : vector<3xf32>
    %157 = vector.multi_reduction <add>, %154, %cst_73 [1] : vector<3x10xf32> to vector<3xf32>
    %158 = vector.shape_cast %157 : vector<3xf32> to vector<3x1xf32>
    %159 = arith.addf %156, %158 : vector<3x1xf32>
    %160 = arith.truncf %151 : vector<3x17xf32> to vector<3x17xbf16>
    %cst_74 = arith.constant dense<0.000000e+00> : vector<3x128xf32>
    %161 = tpu.matmul %160, %131, %cst_74 {dimension_numbers = #tpu.dot_dimension_numbers<[1], [0], [0], [1], [0, 0, 1, 1], [], []>} : vector<3x17xbf16>, vector<17x128xbf16>, vector<3x128xf32> -> vector<3x128xf32>
    %162 = arith.truncf %154 : vector<3x10xf32> to vector<3x10xbf16>
    %163 = arith.truncf %1 : vector<10x128xf32> to vector<10x128xbf16>
    %cst_75 = arith.constant dense<0.000000e+00> : vector<3x128xf32>
    %164 = tpu.matmul %162, %163, %cst_75 {dimension_numbers = #tpu.dot_dimension_numbers<[1], [0], [0], [1], [0, 0, 1, 1], [], []>} : vector<3x10xbf16>, vector<10x128xbf16>, vector<3x128xf32> -> vector<3x128xf32>
    %165 = arith.addf %161, %164 : vector<3x128xf32>
    %166 = tpu.reciprocal %159 {approx = true} : vector<3x1xf32> -> vector<3x1xf32>
    %167 = vector.broadcast %166 : vector<3x1xf32> to vector<3x128xf32>
    %168 = arith.mulf %165, %167 : vector<3x128xf32>
    %169 = arith.truncf %168 : vector<3x128xf32> to vector<3x128xbf16>
    %c0_76 = arith.constant 0 : index
    %c0_77 = arith.constant 0 : index
    %170 = vector.load %arg7[%c0_76, %c0_77] : memref<128x128xbf16, #tpu.memory_space<vmem>>, vector<128x128xbf16>
    %cst_78 = arith.constant dense<0.000000e+00> : vector<3x128xf32>
    %171 = tpu.matmul %169, %170, %cst_78 {dimension_numbers = #tpu.dot_dimension_numbers<[1], [0], [0], [1], [0, 0, 1, 1], [], []>} : vector<3x128xbf16>, vector<128x128xbf16>, vector<3x128xf32> -> vector<3x128xf32>
    %c0_79 = arith.constant 0 : index
    %c0_80 = arith.constant 0 : index
    %172 = vector.load %arg8[%c0_79, %c0_80] : memref<1x128xf32, #tpu.memory_space<vmem>>, vector<1x128xf32>
    %c0_81 = arith.constant 0 : index
    %c0_82 = arith.constant 0 : index
    %173 = vector.load %arg9[%c0_81, %c0_82] : memref<1x128xf32, #tpu.memory_space<vmem>>, vector<1x128xf32>
    %174 = tpu.iota {dimensions = array<i32: 1>} : vector<1x128xi32>
    %c32_i32_83 = arith.constant 32 : i32
    %175 = vector.broadcast %c32_i32_83 : i32 to vector<1x128xi32>
    %176 = arith.cmpi slt, %174, %175 : vector<1x128xi32>
    %cst_84 = arith.constant 0.000000e+00 : f32
    %177 = vector.shape_cast %176 : vector<1x128xi1> to vector<1x128xi1>
    %178 = vector.broadcast %177 : vector<1x128xi1> to vector<3x128xi1>
    %179 = vector.broadcast %cst_84 : f32 to vector<3x128xf32>
    %180 = arith.select %178, %171, %179 : vector<3x128xi1>, vector<3x128xf32>
    %cst_85 = arith.constant dense<0.000000e+00> : vector<3xf32>
    %181 = vector.multi_reduction <add>, %180, %cst_85 [1] : vector<3x128xf32> to vector<3xf32>
    %182 = vector.shape_cast %181 : vector<3xf32> to vector<3x1xf32>
    %cst_86 = arith.constant 3.125000e-02 : f32
    %183 = vector.broadcast %cst_86 : f32 to vector<3x1xf32>
    %184 = arith.mulf %182, %183 : vector<3x1xf32>
    %185 = vector.broadcast %184 : vector<3x1xf32> to vector<3x128xf32>
    %186 = arith.subf %171, %185 : vector<3x128xf32>
    %cst_87 = arith.constant 0.000000e+00 : f32
    %187 = vector.shape_cast %176 : vector<1x128xi1> to vector<1x128xi1>
    %188 = vector.broadcast %187 : vector<1x128xi1> to vector<3x128xi1>
    %189 = vector.broadcast %cst_87 : f32 to vector<3x128xf32>
    %190 = arith.select %188, %186, %189 : vector<3x128xi1>, vector<3x128xf32>
    %191 = arith.mulf %190, %190 : vector<3x128xf32>
    %cst_88 = arith.constant dense<0.000000e+00> : vector<3xf32>
    %192 = vector.multi_reduction <add>, %191, %cst_88 [1] : vector<3x128xf32> to vector<3xf32>
    %193 = vector.shape_cast %192 : vector<3xf32> to vector<3x1xf32>
    %cst_89 = arith.constant 3.125000e-02 : f32
    %194 = vector.broadcast %cst_89 : f32 to vector<3x1xf32>
    %195 = arith.mulf %193, %194 : vector<3x1xf32>
    %cst_90 = arith.constant 9.99999974E-6 : f32
    %196 = vector.broadcast %cst_90 : f32 to vector<3x1xf32>
    %197 = arith.addf %195, %196 : vector<3x1xf32>
    %198 = math.rsqrt %197 : vector<3x1xf32>
    %199 = vector.broadcast %198 : vector<3x1xf32> to vector<3x128xf32>
    %200 = arith.mulf %190, %199 : vector<3x128xf32>
    %201 = vector.broadcast %172 : vector<1x128xf32> to vector<3x128xf32>
    %202 = arith.mulf %200, %201 : vector<3x128xf32>
    %203 = vector.broadcast %173 : vector<1x128xf32> to vector<3x128xf32>
    %204 = arith.addf %202, %203 : vector<3x128xf32>
    %205 = arith.truncf %204 : vector<3x128xf32> to vector<3x128xbf16>
    %c0_91 = arith.constant 0 : index
    %c0_92 = arith.constant 0 : index
    %206 = vector.load %arg10[%c0_91, %c0_92] : memref<128x128xbf16, #tpu.memory_space<vmem>>, vector<128x128xbf16>
    %cst_93 = arith.constant dense<0.000000e+00> : vector<3x128xf32>
    %207 = tpu.matmul %205, %206, %cst_93 {dimension_numbers = #tpu.dot_dimension_numbers<[1], [0], [0], [1], [0, 0, 1, 1], [], []>} : vector<3x128xbf16>, vector<128x128xbf16>, vector<3x128xf32> -> vector<3x128xf32>
    %c3 = arith.constant 3 : index
    %c0_94 = arith.constant 0 : index
    %208 = vector.load %arg26[%c3, %c0_94] : memref<6x128xf32, #tpu.memory_space<vmem>>, vector<3x128xf32>
    tpu.vector_store %arg26[%c3, %c0_94], %207 {strides = array<i32>} : memref<6x128xf32, #tpu.memory_space<vmem>>, vector<3x128xf32>,
    %209 = arith.addf %171, %132 : vector<3x128xf32>
    %c0_95 = arith.constant 0 : index
    %c0_96 = arith.constant 0 : index
    %210 = vector.load %arg11[%c0_95, %c0_96] : memref<1x128xf32, #tpu.memory_space<vmem>>, vector<1x128xf32>
    %c0_97 = arith.constant 0 : index
    %c0_98 = arith.constant 0 : index
    %211 = vector.load %arg12[%c0_97, %c0_98] : memref<1x128xf32, #tpu.memory_space<vmem>>, vector<1x128xf32>
    %212 = tpu.iota {dimensions = array<i32: 1>} : vector<1x128xi32>
    %c32_i32_99 = arith.constant 32 : i32
    %213 = vector.broadcast %c32_i32_99 : i32 to vector<1x128xi32>
    %214 = arith.cmpi slt, %212, %213 : vector<1x128xi32>
    %cst_100 = arith.constant 0.000000e+00 : f32
    %215 = vector.shape_cast %214 : vector<1x128xi1> to vector<1x128xi1>
    %216 = vector.broadcast %215 : vector<1x128xi1> to vector<3x128xi1>
    %217 = vector.broadcast %cst_100 : f32 to vector<3x128xf32>
    %218 = arith.select %216, %209, %217 : vector<3x128xi1>, vector<3x128xf32>
    %cst_101 = arith.constant dense<0.000000e+00> : vector<3xf32>
    %219 = vector.multi_reduction <add>, %218, %cst_101 [1] : vector<3x128xf32> to vector<3xf32>
    %220 = vector.shape_cast %219 : vector<3xf32> to vector<3x1xf32>
    %cst_102 = arith.constant 3.125000e-02 : f32
    %221 = vector.broadcast %cst_102 : f32 to vector<3x1xf32>
    %222 = arith.mulf %220, %221 : vector<3x1xf32>
    %223 = vector.broadcast %222 : vector<3x1xf32> to vector<3x128xf32>
    %224 = arith.subf %209, %223 : vector<3x128xf32>
    %cst_103 = arith.constant 0.000000e+00 : f32
    %225 = vector.shape_cast %214 : vector<1x128xi1> to vector<1x128xi1>
    %226 = vector.broadcast %225 : vector<1x128xi1> to vector<3x128xi1>
    %227 = vector.broadcast %cst_103 : f32 to vector<3x128xf32>
    %228 = arith.select %226, %224, %227 : vector<3x128xi1>, vector<3x128xf32>
    %229 = arith.mulf %228, %228 : vector<3x128xf32>
    %cst_104 = arith.constant dense<0.000000e+00> : vector<3xf32>
    %230 = vector.multi_reduction <add>, %229, %cst_104 [1] : vector<3x128xf32> to vector<3xf32>
    %231 = vector.shape_cast %230 : vector<3xf32> to vector<3x1xf32>
    %cst_105 = arith.constant 3.125000e-02 : f32
    %232 = vector.broadcast %cst_105 : f32 to vector<3x1xf32>
    %233 = arith.mulf %231, %232 : vector<3x1xf32>
    %cst_106 = arith.constant 9.99999974E-6 : f32
    %234 = vector.broadcast %cst_106 : f32 to vector<3x1xf32>
    %235 = arith.addf %233, %234 : vector<3x1xf32>
    %236 = math.rsqrt %235 : vector<3x1xf32>
    %237 = vector.broadcast %236 : vector<3x1xf32> to vector<3x128xf32>
    %238 = arith.mulf %228, %237 : vector<3x128xf32>
    %239 = vector.broadcast %210 : vector<1x128xf32> to vector<3x128xf32>
    %240 = arith.mulf %238, %239 : vector<3x128xf32>
    %241 = vector.broadcast %211 : vector<1x128xf32> to vector<3x128xf32>
    %242 = arith.addf %240, %241 : vector<3x128xf32>
    %c49 = arith.constant 49 : index
    %c0_107 = arith.constant 0 : index
    %243 = vector.load %arg28[%c49, %c0_107] : memref<64x128xf32, #tpu.memory_space<vmem>>, vector<3x128xf32>
    tpu.vector_store %arg28[%c49, %c0_107], %242 {strides = array<i32>} : memref<64x128xf32, #tpu.memory_space<vmem>>, vector<3x128xf32>,
    %c0_108 = arith.constant 0 : index
    %c0_109 = arith.constant 0 : index
    %244 = vector.load %arg28[%c0_108, %c0_109] : memref<64x128xf32, #tpu.memory_space<vmem>>, vector<64x128xf32>
    %c0_110 = arith.constant 0 : index
    %c0_111 = arith.constant 0 : index
    %245 = vector.load %arg14[%c0_110, %c0_111] : memref<1x128xf32, #tpu.memory_space<vmem>>, vector<1x128xf32>
    %c0_112 = arith.constant 0 : index
    %c0_113 = arith.constant 0 : index
    %246 = vector.load %arg15[%c0_112, %c0_113] : memref<1x128xf32, #tpu.memory_space<vmem>>, vector<1x128xf32>
    %247 = tpu.iota {dimensions = array<i32: 1>} : vector<1x128xi32>
    %c32_i32_114 = arith.constant 32 : i32
    %248 = vector.broadcast %c32_i32_114 : i32 to vector<1x128xi32>
    %249 = arith.cmpi slt, %247, %248 : vector<1x128xi32>
    %cst_115 = arith.constant 0.000000e+00 : f32
    %250 = vector.shape_cast %249 : vector<1x128xi1> to vector<1x128xi1>
    %251 = vector.broadcast %250 : vector<1x128xi1> to vector<64x128xi1>
    %252 = vector.broadcast %cst_115 : f32 to vector<64x128xf32>
    %253 = arith.select %251, %244, %252 : vector<64x128xi1>, vector<64x128xf32>
    %cst_116 = arith.constant dense<0.000000e+00> : vector<64xf32>
    %254 = vector.multi_reduction <add>, %253, %cst_116 [1] : vector<64x128xf32> to vector<64xf32>
    %255 = vector.shape_cast %254 : vector<64xf32> to vector<64x1xf32>
    %cst_117 = arith.constant 3.125000e-02 : f32
    %256 = vector.broadcast %cst_117 : f32 to vector<64x1xf32>
    %257 = arith.mulf %255, %256 : vector<64x1xf32>
    %258 = vector.broadcast %257 : vector<64x1xf32> to vector<64x128xf32>
    %259 = arith.subf %244, %258 : vector<64x128xf32>
    %cst_118 = arith.constant 0.000000e+00 : f32
    %260 = vector.shape_cast %249 : vector<1x128xi1> to vector<1x128xi1>
    %261 = vector.broadcast %260 : vector<1x128xi1> to vector<64x128xi1>
    %262 = vector.broadcast %cst_118 : f32 to vector<64x128xf32>
    %263 = arith.select %261, %259, %262 : vector<64x128xi1>, vector<64x128xf32>
    %264 = arith.mulf %263, %263 : vector<64x128xf32>
    %cst_119 = arith.constant dense<0.000000e+00> : vector<64xf32>
    %265 = vector.multi_reduction <add>, %264, %cst_119 [1] : vector<64x128xf32> to vector<64xf32>
    %266 = vector.shape_cast %265 : vector<64xf32> to vector<64x1xf32>
    %cst_120 = arith.constant 3.125000e-02 : f32
    %267 = vector.broadcast %cst_120 : f32 to vector<64x1xf32>
    %268 = arith.mulf %266, %267 : vector<64x1xf32>
    %cst_121 = arith.constant 9.99999974E-6 : f32
    %269 = vector.broadcast %cst_121 : f32 to vector<64x1xf32>
    %270 = arith.addf %268, %269 : vector<64x1xf32>
    %271 = math.rsqrt %270 : vector<64x1xf32>
    %272 = vector.broadcast %271 : vector<64x1xf32> to vector<64x128xf32>
    %273 = arith.mulf %263, %272 : vector<64x128xf32>
    %274 = vector.broadcast %245 : vector<1x128xf32> to vector<64x128xf32>
    %275 = arith.mulf %273, %274 : vector<64x128xf32>
    %276 = vector.broadcast %246 : vector<1x128xf32> to vector<64x128xf32>
    %277 = arith.addf %275, %276 : vector<64x128xf32>
    %278 = arith.truncf %277 : vector<64x128xf32> to vector<64x128xbf16>
    %c0_122 = arith.constant 0 : index
    %c0_123 = arith.constant 0 : index
    %279 = vector.load %arg16[%c0_122, %c0_123] : memref<128x96xbf16, #tpu.memory_space<vmem>>, vector<128x96xbf16>
    %cst_124 = arith.constant dense<0.000000e+00> : vector<64x96xf32>
    %280 = tpu.matmul %278, %279, %cst_124 {dimension_numbers = #tpu.dot_dimension_numbers<[1], [0], [0], [1], [0, 0, 1, 1], [], []>} : vector<64x128xbf16>, vector<128x96xbf16>, vector<64x96xf32> -> vector<64x96xf32>
    %c0_125 = arith.constant 0 : index
    %c0_126 = arith.constant 0 : index
    %281 = vector.load %arg17[%c0_125, %c0_126] : memref<1x96xf32, #tpu.memory_space<vmem>>, vector<1x96xf32>
    %282 = vector.broadcast %281 : vector<1x96xf32> to vector<64x96xf32>
    %283 = arith.addf %280, %282 : vector<64x96xf32>
    %284 = tpu.iota {dimensions = array<i32: 1>} : vector<1x32xi32>
    %c20_i32 = arith.constant 20 : i32
    %285 = vector.broadcast %c20_i32 : i32 to vector<1x32xi32>
    %286 = arith.cmpi slt, %284, %285 : vector<1x32xi32>
    %287 = tpu.iota {dimensions = array<i32: 1>} : vector<32x32xi32>
    %288 = vector.extract_strided_slice %283 {offsets = [0, 64], sizes = [32, 32], strides = [1, 1]} : vector<64x96xf32> to vector<32x32xf32>
    %289 = arith.truncf %288 : vector<32x32xf32> to vector<32x32xbf16>
    %290 = vector.extract_strided_slice %283 {offsets = [0, 0], sizes = [32, 16], strides = [1, 1]} : vector<64x96xf32> to vector<32x16xf32>
    %291 = vector.extract_strided_slice %283 {offsets = [0, 32], sizes = [32, 16], strides = [1, 1]} : vector<64x96xf32> to vector<32x16xf32>
    %292 = arith.truncf %290 : vector<32x16xf32> to vector<32x16xbf16>
    %293 = arith.truncf %291 : vector<32x16xf32> to vector<32x16xbf16>
    %cst_127 = arith.constant dense<0.000000e+00> : vector<32x32xf32>
    %294 = tpu.matmul %292, %293, %cst_127 {dimension_numbers = #tpu.dot_dimension_numbers<[1], [1], [0], [0], [0, 0, 1, 0], [], []>} : vector<32x16xbf16>, vector<32x16xbf16>, vector<32x32xf32> -> vector<32x32xf32>
    %cst_128 = arith.constant -1.000000e+30 : f32
    %295 = vector.shape_cast %286 : vector<1x32xi1> to vector<1x32xi1>
    %296 = vector.broadcast %295 : vector<1x32xi1> to vector<32x32xi1>
    %297 = vector.broadcast %cst_128 : f32 to vector<32x32xf32>
    %298 = arith.select %296, %294, %297 : vector<32x32xi1>, vector<32x32xf32>
    %cst_129 = arith.constant dense<0xFF800000> : vector<32xf32>
    %299 = vector.multi_reduction <maximumf>, %298, %cst_129 [1] : vector<32x32xf32> to vector<32xf32>
    %300 = vector.shape_cast %299 : vector<32xf32> to vector<32x1xf32>
    %301 = vector.broadcast %300 : vector<32x1xf32> to vector<32x32xf32>
    %302 = arith.subf %298, %301 : vector<32x32xf32>
    %303 = math.exp %302 : vector<32x32xf32>
    %cst_130 = arith.constant dense<0.000000e+00> : vector<32xf32>
    %304 = vector.multi_reduction <add>, %303, %cst_130 [1] : vector<32x32xf32> to vector<32xf32>
    %305 = vector.shape_cast %304 : vector<32xf32> to vector<32x1xf32>
    %306 = arith.truncf %303 : vector<32x32xf32> to vector<32x32xbf16>
    %cst_131 = arith.constant dense<0.000000e+00> : vector<32x32xf32>
    %307 = tpu.matmul %306, %289, %cst_131 {dimension_numbers = #tpu.dot_dimension_numbers<[1], [0], [0], [1], [0, 0, 1, 1], [], []>} : vector<32x32xbf16>, vector<32x32xbf16>, vector<32x32xf32> -> vector<32x32xf32>
    %308 = tpu.reciprocal %305 {approx = true} : vector<32x1xf32> -> vector<32x1xf32>
    %309 = vector.broadcast %308 : vector<32x1xf32> to vector<32x32xf32>
    %310 = arith.mulf %307, %309 : vector<32x32xf32>
    %311 = vector.extract_strided_slice %283 {offsets = [0, 16], sizes = [32, 16], strides = [1, 1]} : vector<64x96xf32> to vector<32x16xf32>
    %312 = vector.extract_strided_slice %283 {offsets = [0, 48], sizes = [32, 16], strides = [1, 1]} : vector<64x96xf32> to vector<32x16xf32>
    %313 = arith.truncf %311 : vector<32x16xf32> to vector<32x16xbf16>
    %314 = arith.truncf %312 : vector<32x16xf32> to vector<32x16xbf16>
    %cst_132 = arith.constant dense<0.000000e+00> : vector<32x32xf32>
    %315 = tpu.matmul %313, %314, %cst_132 {dimension_numbers = #tpu.dot_dimension_numbers<[1], [1], [0], [0], [0, 0, 1, 0], [], []>} : vector<32x16xbf16>, vector<32x16xbf16>, vector<32x32xf32> -> vector<32x32xf32>
    %cst_133 = arith.constant -1.000000e+30 : f32
    %316 = vector.shape_cast %286 : vector<1x32xi1> to vector<1x32xi1>
    %317 = vector.broadcast %316 : vector<1x32xi1> to vector<32x32xi1>
    %318 = vector.broadcast %cst_133 : f32 to vector<32x32xf32>
    %319 = arith.select %317, %315, %318 : vector<32x32xi1>, vector<32x32xf32>
    %cst_134 = arith.constant dense<0xFF800000> : vector<32xf32>
    %320 = vector.multi_reduction <maximumf>, %319, %cst_134 [1] : vector<32x32xf32> to vector<32xf32>
    %321 = vector.shape_cast %320 : vector<32xf32> to vector<32x1xf32>
    %322 = vector.broadcast %321 : vector<32x1xf32> to vector<32x32xf32>
    %323 = arith.subf %319, %322 : vector<32x32xf32>
    %324 = math.exp %323 : vector<32x32xf32>
    %cst_135 = arith.constant dense<0.000000e+00> : vector<32xf32>
    %325 = vector.multi_reduction <add>, %324, %cst_135 [1] : vector<32x32xf32> to vector<32xf32>
    %326 = vector.shape_cast %325 : vector<32xf32> to vector<32x1xf32>
    %327 = arith.truncf %324 : vector<32x32xf32> to vector<32x32xbf16>
    %cst_136 = arith.constant dense<0.000000e+00> : vector<32x32xf32>
    %328 = tpu.matmul %327, %289, %cst_136 {dimension_numbers = #tpu.dot_dimension_numbers<[1], [0], [0], [1], [0, 0, 1, 1], [], []>} : vector<32x32xbf16>, vector<32x32xbf16>, vector<32x32xf32> -> vector<32x32xf32>
    %329 = tpu.reciprocal %326 {approx = true} : vector<32x1xf32> -> vector<32x1xf32>
    %330 = vector.broadcast %329 : vector<32x1xf32> to vector<32x32xf32>
    %331 = arith.mulf %328, %330 : vector<32x32xf32>
    %c16_i32 = arith.constant 16 : i32
    %332 = vector.broadcast %c16_i32 : i32 to vector<32x32xi32>
    %333 = arith.cmpi sge, %287, %332 : vector<32x32xi32>
    %334 = arith.select %333, %331, %310 : vector<32x32xi1>, vector<32x32xf32>
    %335 = vector.extract_strided_slice %283 {offsets = [32, 64], sizes = [32, 32], strides = [1, 1]} : vector<64x96xf32> to vector<32x32xf32>
    %336 = arith.truncf %335 : vector<32x32xf32> to vector<32x32xbf16>
    %337 = vector.extract_strided_slice %283 {offsets = [32, 0], sizes = [32, 16], strides = [1, 1]} : vector<64x96xf32> to vector<32x16xf32>
    %338 = vector.extract_strided_slice %283 {offsets = [32, 32], sizes = [32, 16], strides = [1, 1]} : vector<64x96xf32> to vector<32x16xf32>
    %339 = arith.truncf %337 : vector<32x16xf32> to vector<32x16xbf16>
    %340 = arith.truncf %338 : vector<32x16xf32> to vector<32x16xbf16>
    %cst_137 = arith.constant dense<0.000000e+00> : vector<32x32xf32>
    %341 = tpu.matmul %339, %340, %cst_137 {dimension_numbers = #tpu.dot_dimension_numbers<[1], [1], [0], [0], [0, 0, 1, 0], [], []>} : vector<32x16xbf16>, vector<32x16xbf16>, vector<32x32xf32> -> vector<32x32xf32>
    %cst_138 = arith.constant -1.000000e+30 : f32
    %342 = vector.shape_cast %286 : vector<1x32xi1> to vector<1x32xi1>
    %343 = vector.broadcast %342 : vector<1x32xi1> to vector<32x32xi1>
    %344 = vector.broadcast %cst_138 : f32 to vector<32x32xf32>
    %345 = arith.select %343, %341, %344 : vector<32x32xi1>, vector<32x32xf32>
    %cst_139 = arith.constant dense<0xFF800000> : vector<32xf32>
    %346 = vector.multi_reduction <maximumf>, %345, %cst_139 [1] : vector<32x32xf32> to vector<32xf32>
    %347 = vector.shape_cast %346 : vector<32xf32> to vector<32x1xf32>
    %348 = vector.broadcast %347 : vector<32x1xf32> to vector<32x32xf32>
    %349 = arith.subf %345, %348 : vector<32x32xf32>
    %350 = math.exp %349 : vector<32x32xf32>
    %cst_140 = arith.constant dense<0.000000e+00> : vector<32xf32>
    %351 = vector.multi_reduction <add>, %350, %cst_140 [1] : vector<32x32xf32> to vector<32xf32>
    %352 = vector.shape_cast %351 : vector<32xf32> to vector<32x1xf32>
    %353 = arith.truncf %350 : vector<32x32xf32> to vector<32x32xbf16>
    %cst_141 = arith.constant dense<0.000000e+00> : vector<32x32xf32>
    %354 = tpu.matmul %353, %336, %cst_141 {dimension_numbers = #tpu.dot_dimension_numbers<[1], [0], [0], [1], [0, 0, 1, 1], [], []>} : vector<32x32xbf16>, vector<32x32xbf16>, vector<32x32xf32> -> vector<32x32xf32>
    %355 = tpu.reciprocal %352 {approx = true} : vector<32x1xf32> -> vector<32x1xf32>
    %356 = vector.broadcast %355 : vector<32x1xf32> to vector<32x32xf32>
    %357 = arith.mulf %354, %356 : vector<32x32xf32>
    %358 = vector.extract_strided_slice %283 {offsets = [32, 16], sizes = [32, 16], strides = [1, 1]} : vector<64x96xf32> to vector<32x16xf32>
    %359 = vector.extract_strided_slice %283 {offsets = [32, 48], sizes = [32, 16], strides = [1, 1]} : vector<64x96xf32> to vector<32x16xf32>
    %360 = arith.truncf %358 : vector<32x16xf32> to vector<32x16xbf16>
    %361 = arith.truncf %359 : vector<32x16xf32> to vector<32x16xbf16>
    %cst_142 = arith.constant dense<0.000000e+00> : vector<32x32xf32>
    %362 = tpu.matmul %360, %361, %cst_142 {dimension_numbers = #tpu.dot_dimension_numbers<[1], [1], [0], [0], [0, 0, 1, 0], [], []>} : vector<32x16xbf16>, vector<32x16xbf16>, vector<32x32xf32> -> vector<32x32xf32>
    %cst_143 = arith.constant -1.000000e+30 : f32
    %363 = vector.shape_cast %286 : vector<1x32xi1> to vector<1x32xi1>
    %364 = vector.broadcast %363 : vector<1x32xi1> to vector<32x32xi1>
    %365 = vector.broadcast %cst_143 : f32 to vector<32x32xf32>
    %366 = arith.select %364, %362, %365 : vector<32x32xi1>, vector<32x32xf32>
    %cst_144 = arith.constant dense<0xFF800000> : vector<32xf32>
    %367 = vector.multi_reduction <maximumf>, %366, %cst_144 [1] : vector<32x32xf32> to vector<32xf32>
    %368 = vector.shape_cast %367 : vector<32xf32> to vector<32x1xf32>
    %369 = vector.broadcast %368 : vector<32x1xf32> to vector<32x32xf32>
    %370 = arith.subf %366, %369 : vector<32x32xf32>
    %371 = math.exp %370 : vector<32x32xf32>
    %cst_145 = arith.constant dense<0.000000e+00> : vector<32xf32>
    %372 = vector.multi_reduction <add>, %371, %cst_145 [1] : vector<32x32xf32> to vector<32xf32>
    %373 = vector.shape_cast %372 : vector<32xf32> to vector<32x1xf32>
    %374 = arith.truncf %371 : vector<32x32xf32> to vector<32x32xbf16>
    %cst_146 = arith.constant dense<0.000000e+00> : vector<32x32xf32>
    %375 = tpu.matmul %374, %336, %cst_146 {dimension_numbers = #tpu.dot_dimension_numbers<[1], [0], [0], [1], [0, 0, 1, 1], [], []>} : vector<32x32xbf16>, vector<32x32xbf16>, vector<32x32xf32> -> vector<32x32xf32>
    %376 = tpu.reciprocal %373 {approx = true} : vector<32x1xf32> -> vector<32x1xf32>
    %377 = vector.broadcast %376 : vector<32x1xf32> to vector<32x32xf32>
    %378 = arith.mulf %375, %377 : vector<32x32xf32>
    %c16_i32_147 = arith.constant 16 : i32
    %379 = vector.broadcast %c16_i32_147 : i32 to vector<32x32xi32>
    %380 = arith.cmpi sge, %287, %379 : vector<32x32xi32>
    %381 = arith.select %380, %378, %357 : vector<32x32xi1>, vector<32x32xf32>
    %382 = tpu.concatenate %334, %381 in 0 : vector<32x32xf32>, vector<32x32xf32> -> vector<64x32xf32>
    %383 = arith.truncf %382 : vector<64x32xf32> to vector<64x32xbf16>
    %c0_148 = arith.constant 0 : index
    %c0_149 = arith.constant 0 : index
    %384 = vector.load %arg18[%c0_148, %c0_149] : memref<32x128xbf16, #tpu.memory_space<vmem>>, vector<32x128xbf16>
    %cst_150 = arith.constant dense<0.000000e+00> : vector<64x128xf32>
    %385 = tpu.matmul %383, %384, %cst_150 {dimension_numbers = #tpu.dot_dimension_numbers<[1], [0], [0], [1], [0, 0, 1, 1], [], []>} : vector<64x32xbf16>, vector<32x128xbf16>, vector<64x128xf32> -> vector<64x128xf32>
    %386 = arith.addf %244, %385 : vector<64x128xf32>
    %c0_151 = arith.constant 0 : index
    %c0_152 = arith.constant 0 : index
    %387 = vector.load %arg19[%c0_151, %c0_152] : memref<1x128xf32, #tpu.memory_space<vmem>>, vector<1x128xf32>
    %388 = vector.broadcast %387 : vector<1x128xf32> to vector<64x128xf32>
    %389 = arith.addf %386, %388 : vector<64x128xf32>
    %c0_153 = arith.constant 0 : index
    %c0_154 = arith.constant 0 : index
    %390 = vector.load %arg20[%c0_153, %c0_154] : memref<1x128xf32, #tpu.memory_space<vmem>>, vector<1x128xf32>
    %c0_155 = arith.constant 0 : index
    %c0_156 = arith.constant 0 : index
    %391 = vector.load %arg21[%c0_155, %c0_156] : memref<1x128xf32, #tpu.memory_space<vmem>>, vector<1x128xf32>
    %392 = tpu.iota {dimensions = array<i32: 1>} : vector<1x128xi32>
    %c32_i32_157 = arith.constant 32 : i32
    %393 = vector.broadcast %c32_i32_157 : i32 to vector<1x128xi32>
    %394 = arith.cmpi slt, %392, %393 : vector<1x128xi32>
    %cst_158 = arith.constant 0.000000e+00 : f32
    %395 = vector.shape_cast %394 : vector<1x128xi1> to vector<1x128xi1>
    %396 = vector.broadcast %395 : vector<1x128xi1> to vector<64x128xi1>
    %397 = vector.broadcast %cst_158 : f32 to vector<64x128xf32>
    %398 = arith.select %396, %389, %397 : vector<64x128xi1>, vector<64x128xf32>
    %cst_159 = arith.constant dense<0.000000e+00> : vector<64xf32>
    %399 = vector.multi_reduction <add>, %398, %cst_159 [1] : vector<64x128xf32> to vector<64xf32>
    %400 = vector.shape_cast %399 : vector<64xf32> to vector<64x1xf32>
    %cst_160 = arith.constant 3.125000e-02 : f32
    %401 = vector.broadcast %cst_160 : f32 to vector<64x1xf32>
    %402 = arith.mulf %400, %401 : vector<64x1xf32>
    %403 = vector.broadcast %402 : vector<64x1xf32> to vector<64x128xf32>
    %404 = arith.subf %389, %403 : vector<64x128xf32>
    %cst_161 = arith.constant 0.000000e+00 : f32
    %405 = vector.shape_cast %394 : vector<1x128xi1> to vector<1x128xi1>
    %406 = vector.broadcast %405 : vector<1x128xi1> to vector<64x128xi1>
    %407 = vector.broadcast %cst_161 : f32 to vector<64x128xf32>
    %408 = arith.select %406, %404, %407 : vector<64x128xi1>, vector<64x128xf32>
    %409 = arith.mulf %408, %408 : vector<64x128xf32>
    %cst_162 = arith.constant dense<0.000000e+00> : vector<64xf32>
    %410 = vector.multi_reduction <add>, %409, %cst_162 [1] : vector<64x128xf32> to vector<64xf32>
    %411 = vector.shape_cast %410 : vector<64xf32> to vector<64x1xf32>
    %cst_163 = arith.constant 3.125000e-02 : f32
    %412 = vector.broadcast %cst_163 : f32 to vector<64x1xf32>
    %413 = arith.mulf %411, %412 : vector<64x1xf32>
    %cst_164 = arith.constant 9.99999974E-6 : f32
    %414 = vector.broadcast %cst_164 : f32 to vector<64x1xf32>
    %415 = arith.addf %413, %414 : vector<64x1xf32>
    %416 = math.rsqrt %415 : vector<64x1xf32>
    %417 = vector.broadcast %416 : vector<64x1xf32> to vector<64x128xf32>
    %418 = arith.mulf %408, %417 : vector<64x128xf32>
    %419 = vector.broadcast %390 : vector<1x128xf32> to vector<64x128xf32>
    %420 = arith.mulf %418, %419 : vector<64x128xf32>
    %421 = vector.broadcast %391 : vector<1x128xf32> to vector<64x128xf32>
    %422 = arith.addf %420, %421 : vector<64x128xf32>
    %423 = arith.truncf %422 : vector<64x128xf32> to vector<64x128xbf16>
    %c0_165 = arith.constant 0 : index
    %c0_166 = arith.constant 0 : index
    %424 = vector.load %arg22[%c0_165, %c0_166] : memref<128x128xbf16, #tpu.memory_space<vmem>>, vector<128x128xbf16>
    %cst_167 = arith.constant dense<0.000000e+00> : vector<64x128xf32>
    %425 = tpu.matmul %423, %424, %cst_167 {dimension_numbers = #tpu.dot_dimension_numbers<[1], [0], [0], [1], [0, 0, 1, 1], [], []>} : vector<64x128xbf16>, vector<128x128xbf16>, vector<64x128xf32> -> vector<64x128xf32>
    %c0_168 = arith.constant 0 : index
    %c0_169 = arith.constant 0 : index
    %426 = vector.load %arg23[%c0_168, %c0_169] : memref<1x128xf32, #tpu.memory_space<vmem>>, vector<1x128xf32>
    %427 = vector.broadcast %426 : vector<1x128xf32> to vector<64x128xf32>
    %428 = arith.addf %425, %427 : vector<64x128xf32>
    %cst_170 = arith.constant -1.702000e+00 : f32
    %429 = vector.broadcast %cst_170 : f32 to vector<64x128xf32>
    %430 = arith.mulf %429, %428 : vector<64x128xf32>
    %431 = math.exp %430 : vector<64x128xf32>
    %cst_171 = arith.constant 1.000000e+00 : f32
    %432 = vector.broadcast %cst_171 : f32 to vector<64x128xf32>
    %433 = arith.addf %432, %431 : vector<64x128xf32>
    %434 = tpu.reciprocal %433 {approx = true} : vector<64x128xf32> -> vector<64x128xf32>
    %435 = arith.mulf %428, %434 : vector<64x128xf32>
    %436 = arith.truncf %435 : vector<64x128xf32> to vector<64x128xbf16>
    %c0_172 = arith.constant 0 : index
    %c0_173 = arith.constant 0 : index
    %437 = vector.load %arg24[%c0_172, %c0_173] : memref<128x128xbf16, #tpu.memory_space<vmem>>, vector<128x128xbf16>
    %cst_174 = arith.constant dense<0.000000e+00> : vector<64x128xf32>
    %438 = tpu.matmul %436, %437, %cst_174 {dimension_numbers = #tpu.dot_dimension_numbers<[1], [0], [0], [1], [0, 0, 1, 1], [], []>} : vector<64x128xbf16>, vector<128x128xbf16>, vector<64x128xf32> -> vector<64x128xf32>
    %c0_175 = arith.constant 0 : index
    %c0_176 = arith.constant 0 : index
    %439 = vector.load %arg25[%c0_175, %c0_176] : memref<1x128xf32, #tpu.memory_space<vmem>>, vector<1x128xf32>
    %440 = vector.broadcast %439 : vector<1x128xf32> to vector<64x128xf32>
    %441 = arith.addf %438, %440 : vector<64x128xf32>
    %442 = arith.addf %389, %441 : vector<64x128xf32>
    %c0_177 = arith.constant 0 : index
    %c0_178 = arith.constant 0 : index
    %443 = vector.load %arg27[%c0_177, %c0_178] : memref<64x128xf32, #tpu.memory_space<vmem>>, vector<64x128xf32>
    tpu.vector_store %arg27[%c0_177, %c0_178], %442 {strides = array<i32>} : memref<64x128xf32, #tpu.memory_space<vmem>>, vector<64x128xf32>,
    return
  }
}

module attributes {stable_mosaic.version = 11 : i64} {
  func.func @kernel(%arg0: memref<64x128xf32, #tpu.memory_space<vmem>>, %arg1: memref<6x24xf32, #tpu.memory_space<vmem>>, %arg2: memref<64x1xf32, #tpu.memory_space<vmem>>, %arg3: memref<24x128xbf16, #tpu.memory_space<vmem>>, %arg4: memref<1x128xf32, #tpu.memory_space<vmem>>, %arg5: memref<128x32xbf16, #tpu.memory_space<vmem>>, %arg6: memref<128x32xbf16, #tpu.memory_space<vmem>>, %arg7: memref<128x128xbf16, #tpu.memory_space<vmem>>, %arg8: memref<1x128xf32, #tpu.memory_space<vmem>>, %arg9: memref<1x128xf32, #tpu.memory_space<vmem>>, %arg10: memref<128x128xbf16, #tpu.memory_space<vmem>>, %arg11: memref<1x128xf32, #tpu.memory_space<vmem>>, %arg12: memref<1x128xf32, #tpu.memory_space<vmem>>, %arg13: memref<10x128xf32, #tpu.memory_space<vmem>>, %arg14: memref<1x128xf32, #tpu.memory_space<vmem>>, %arg15: memref<1x128xf32, #tpu.memory_space<vmem>>, %arg16: memref<128x96xbf16, #tpu.memory_space<vmem>>, %arg17: memref<1x96xf32, #tpu.memory_space<vmem>>, %arg18: memref<32x128xbf16, #tpu.memory_space<vmem>>, %arg19: memref<1x128xf32, #tpu.memory_space<vmem>>, %arg20: memref<1x128xf32, #tpu.memory_space<vmem>>, %arg21: memref<1x128xf32, #tpu.memory_space<vmem>>, %arg22: memref<128x128xbf16, #tpu.memory_space<vmem>>, %arg23: memref<1x128xf32, #tpu.memory_space<vmem>>, %arg24: memref<128x128xbf16, #tpu.memory_space<vmem>>, %arg25: memref<1x128xf32, #tpu.memory_space<vmem>>, %arg26: memref<1x128xf32, #tpu.memory_space<vmem>>, %arg27: memref<1x128xf32, #tpu.memory_space<vmem>>, %arg28: memref<128x128xbf16, #tpu.memory_space<vmem>>, %arg29: memref<6x128xf32, #tpu.memory_space<vmem>>, %arg30: memref<2x128xf32, #tpu.memory_space<vmem>>, %arg31: memref<64x128xf32, #tpu.memory_space<vmem>>) attributes {dimension_semantics = [], scalar_prefetch = 0 : i64, scratch_operands = 1 : i64, tpu.core_type = #tpu.core_type<tc>} {
    %c0 = arith.constant 0 : index
    %c0_0 = arith.constant 0 : index
    %0 = vector.load %arg0[%c0, %c0_0] : memref<64x128xf32, #tpu.memory_space<vmem>>, vector<64x128xf32>
    %c0_1 = arith.constant 0 : index
    %c0_2 = arith.constant 0 : index
    %1 = vector.load %arg13[%c0_1, %c0_2] : memref<10x128xf32, #tpu.memory_space<vmem>>, vector<10x128xf32>
    %c0_3 = arith.constant 0 : index
    %c0_4 = arith.constant 0 : index
    %2 = vector.load %arg1[%c0_3, %c0_4] : memref<6x24xf32, #tpu.memory_space<vmem>>, vector<6x24xf32>
    %3 = arith.truncf %2 : vector<6x24xf32> to vector<6x24xbf16>
    %c0_5 = arith.constant 0 : index
    %c0_6 = arith.constant 0 : index
    %4 = vector.load %arg3[%c0_5, %c0_6] : memref<24x128xbf16, #tpu.memory_space<vmem>>, vector<24x128xbf16>
    %cst = arith.constant dense<0.000000e+00> : vector<6x128xf32>
    %5 = tpu.matmul %3, %4, %cst {dimension_numbers = #tpu.dot_dimension_numbers<[1], [0], [0], [1], [0, 0, 1, 1], [], []>} : vector<6x24xbf16>, vector<24x128xbf16>, vector<6x128xf32> -> vector<6x128xf32>
    %c0_7 = arith.constant 0 : index
    %c0_8 = arith.constant 0 : index
    %6 = vector.load %arg4[%c0_7, %c0_8] : memref<1x128xf32, #tpu.memory_space<vmem>>, vector<1x128xf32>
    %7 = vector.broadcast %6 : vector<1x128xf32> to vector<6x128xf32>
    %8 = arith.addf %5, %7 : vector<6x128xf32>
    %9 = arith.truncf %1 : vector<10x128xf32> to vector<10x128xbf16>
    %c0_9 = arith.constant 0 : index
    %c0_10 = arith.constant 0 : index
    %10 = vector.load %arg6[%c0_9, %c0_10] : memref<128x32xbf16, #tpu.memory_space<vmem>>, vector<128x32xbf16>
    %cst_11 = arith.constant dense<0.000000e+00> : vector<10x32xf32>
    %11 = tpu.matmul %9, %10, %cst_11 {dimension_numbers = #tpu.dot_dimension_numbers<[1], [0], [0], [1], [0, 0, 1, 1], [], []>} : vector<10x128xbf16>, vector<128x32xbf16>, vector<10x32xf32> -> vector<10x32xf32>
    %c0_12 = arith.constant 0 : index
    %c0_13 = arith.constant 0 : index
    %12 = vector.load %arg2[%c0_12, %c0_13] : memref<64x1xf32, #tpu.memory_space<vmem>>, vector<64x1xf32>
    %13 = vector.broadcast %12 : vector<64x1xf32> to vector<64x128xf32>
    %14 = arith.mulf %0, %13 : vector<64x128xf32>
    %c0_14 = arith.constant 0 : index
    %c0_15 = arith.constant 0 : index
    %15 = vector.load %arg31[%c0_14, %c0_15] : memref<64x128xf32, #tpu.memory_space<vmem>>, vector<64x128xf32>
    tpu.vector_store %arg31[%c0_14, %c0_15], %14 {strides = array<i32>} : memref<64x128xf32, #tpu.memory_space<vmem>>, vector<64x128xf32>,
    %16 = vector.extract_strided_slice %0 {offsets = [0, 0], sizes = [17, 128], strides = [1, 1]} : vector<64x128xf32> to vector<17x128xf32>
    %17 = arith.truncf %16 : vector<17x128xf32> to vector<17x128xbf16>
    %18 = vector.extract_strided_slice %8 {offsets = [0, 0], sizes = [3, 128], strides = [1, 1]} : vector<6x128xf32> to vector<3x128xf32>
    %19 = arith.truncf %18 : vector<3x128xf32> to vector<3x128xbf16>
    %c0_16 = arith.constant 0 : index
    %c0_17 = arith.constant 0 : index
    %20 = vector.load %arg5[%c0_16, %c0_17] : memref<128x32xbf16, #tpu.memory_space<vmem>>, vector<128x32xbf16>
    %cst_18 = arith.constant dense<0.000000e+00> : vector<3x32xf32>
    %21 = tpu.matmul %19, %20, %cst_18 {dimension_numbers = #tpu.dot_dimension_numbers<[1], [0], [0], [1], [0, 0, 1, 1], [], []>} : vector<3x128xbf16>, vector<128x32xbf16>, vector<3x32xf32> -> vector<3x32xf32>
    %c0_19 = arith.constant 0 : index
    %c0_20 = arith.constant 0 : index
    %22 = vector.load %arg6[%c0_19, %c0_20] : memref<128x32xbf16, #tpu.memory_space<vmem>>, vector<128x32xbf16>
    %cst_21 = arith.constant dense<0.000000e+00> : vector<17x32xf32>
    %23 = tpu.matmul %17, %22, %cst_21 {dimension_numbers = #tpu.dot_dimension_numbers<[1], [0], [0], [1], [0, 0, 1, 1], [], []>} : vector<17x128xbf16>, vector<128x32xbf16>, vector<17x32xf32> -> vector<17x32xf32>
    %24 = arith.truncf %21 : vector<3x32xf32> to vector<3x32xbf16>
    %25 = arith.truncf %23 : vector<17x32xf32> to vector<17x32xbf16>
    %cst_22 = arith.constant dense<0.000000e+00> : vector<3x17xf32>
    %26 = tpu.matmul %24, %25, %cst_22 {dimension_numbers = #tpu.dot_dimension_numbers<[1], [1], [0], [0], [0, 0, 1, 0], [], []>} : vector<3x32xbf16>, vector<17x32xbf16>, vector<3x17xf32> -> vector<3x17xf32>
    %27 = arith.truncf %21 : vector<3x32xf32> to vector<3x32xbf16>
    %28 = arith.truncf %11 : vector<10x32xf32> to vector<10x32xbf16>
    %cst_23 = arith.constant dense<0.000000e+00> : vector<3x10xf32>
    %29 = tpu.matmul %27, %28, %cst_23 {dimension_numbers = #tpu.dot_dimension_numbers<[1], [1], [0], [0], [0, 0, 1, 0], [], []>} : vector<3x32xbf16>, vector<10x32xbf16>, vector<3x10xf32> -> vector<3x10xf32>
    %cst_24 = arith.constant dense<0xFF800000> : vector<3xf32>
    %30 = vector.multi_reduction <maximumf>, %26, %cst_24 [1] : vector<3x17xf32> to vector<3xf32>
    %31 = vector.shape_cast %30 : vector<3xf32> to vector<3x1xf32>
    %cst_25 = arith.constant dense<0xFF800000> : vector<3xf32>
    %32 = vector.multi_reduction <maximumf>, %29, %cst_25 [1] : vector<3x10xf32> to vector<3xf32>
    %33 = vector.shape_cast %32 : vector<3xf32> to vector<3x1xf32>
    %34 = arith.maximumf %31, %33 : vector<3x1xf32>
    %35 = vector.broadcast %34 : vector<3x1xf32> to vector<3x17xf32>
    %36 = arith.subf %26, %35 : vector<3x17xf32>
    %37 = math.exp %36 : vector<3x17xf32>
    %38 = vector.broadcast %34 : vector<3x1xf32> to vector<3x10xf32>
    %39 = arith.subf %29, %38 : vector<3x10xf32>
    %40 = math.exp %39 : vector<3x10xf32>
    %cst_26 = arith.constant dense<0.000000e+00> : vector<3xf32>
    %41 = vector.multi_reduction <add>, %37, %cst_26 [1] : vector<3x17xf32> to vector<3xf32>
    %42 = vector.shape_cast %41 : vector<3xf32> to vector<3x1xf32>
    %cst_27 = arith.constant dense<0.000000e+00> : vector<3xf32>
    %43 = vector.multi_reduction <add>, %40, %cst_27 [1] : vector<3x10xf32> to vector<3xf32>
    %44 = vector.shape_cast %43 : vector<3xf32> to vector<3x1xf32>
    %45 = arith.addf %42, %44 : vector<3x1xf32>
    %46 = arith.truncf %37 : vector<3x17xf32> to vector<3x17xbf16>
    %cst_28 = arith.constant dense<0.000000e+00> : vector<3x128xf32>
    %47 = tpu.matmul %46, %17, %cst_28 {dimension_numbers = #tpu.dot_dimension_numbers<[1], [0], [0], [1], [0, 0, 1, 1], [], []>} : vector<3x17xbf16>, vector<17x128xbf16>, vector<3x128xf32> -> vector<3x128xf32>
    %48 = arith.truncf %40 : vector<3x10xf32> to vector<3x10xbf16>
    %49 = arith.truncf %1 : vector<10x128xf32> to vector<10x128xbf16>
    %cst_29 = arith.constant dense<0.000000e+00> : vector<3x128xf32>
    %50 = tpu.matmul %48, %49, %cst_29 {dimension_numbers = #tpu.dot_dimension_numbers<[1], [0], [0], [1], [0, 0, 1, 1], [], []>} : vector<3x10xbf16>, vector<10x128xbf16>, vector<3x128xf32> -> vector<3x128xf32>
    %51 = arith.addf %47, %50 : vector<3x128xf32>
    %52 = tpu.reciprocal %45 {approx = true} : vector<3x1xf32> -> vector<3x1xf32>
    %53 = vector.broadcast %52 : vector<3x1xf32> to vector<3x128xf32>
    %54 = arith.mulf %51, %53 : vector<3x128xf32>
    %55 = arith.truncf %54 : vector<3x128xf32> to vector<3x128xbf16>
    %c0_30 = arith.constant 0 : index
    %c0_31 = arith.constant 0 : index
    %56 = vector.load %arg7[%c0_30, %c0_31] : memref<128x128xbf16, #tpu.memory_space<vmem>>, vector<128x128xbf16>
    %cst_32 = arith.constant dense<0.000000e+00> : vector<3x128xf32>
    %57 = tpu.matmul %55, %56, %cst_32 {dimension_numbers = #tpu.dot_dimension_numbers<[1], [0], [0], [1], [0, 0, 1, 1], [], []>} : vector<3x128xbf16>, vector<128x128xbf16>, vector<3x128xf32> -> vector<3x128xf32>
    %c0_33 = arith.constant 0 : index
    %c0_34 = arith.constant 0 : index
    %58 = vector.load %arg8[%c0_33, %c0_34] : memref<1x128xf32, #tpu.memory_space<vmem>>, vector<1x128xf32>
    %c0_35 = arith.constant 0 : index
    %c0_36 = arith.constant 0 : index
    %59 = vector.load %arg9[%c0_35, %c0_36] : memref<1x128xf32, #tpu.memory_space<vmem>>, vector<1x128xf32>
    %60 = tpu.iota {dimensions = array<i32: 1>} : vector<1x128xi32>
    %c32_i32 = arith.constant 32 : i32
    %61 = vector.broadcast %c32_i32 : i32 to vector<1x128xi32>
    %62 = arith.cmpi slt, %60, %61 : vector<1x128xi32>
    %cst_37 = arith.constant 0.000000e+00 : f32
    %63 = vector.shape_cast %62 : vector<1x128xi1> to vector<1x128xi1>
    %64 = vector.broadcast %63 : vector<1x128xi1> to vector<3x128xi1>
    %65 = vector.broadcast %cst_37 : f32 to vector<3x128xf32>
    %66 = arith.select %64, %57, %65 : vector<3x128xi1>, vector<3x128xf32>
    %cst_38 = arith.constant dense<0.000000e+00> : vector<3xf32>
    %67 = vector.multi_reduction <add>, %66, %cst_38 [1] : vector<3x128xf32> to vector<3xf32>
    %68 = vector.shape_cast %67 : vector<3xf32> to vector<3x1xf32>
    %cst_39 = arith.constant 3.125000e-02 : f32
    %69 = vector.broadcast %cst_39 : f32 to vector<3x1xf32>
    %70 = arith.mulf %68, %69 : vector<3x1xf32>
    %71 = vector.broadcast %70 : vector<3x1xf32> to vector<3x128xf32>
    %72 = arith.subf %57, %71 : vector<3x128xf32>
    %cst_40 = arith.constant 0.000000e+00 : f32
    %73 = vector.shape_cast %62 : vector<1x128xi1> to vector<1x128xi1>
    %74 = vector.broadcast %73 : vector<1x128xi1> to vector<3x128xi1>
    %75 = vector.broadcast %cst_40 : f32 to vector<3x128xf32>
    %76 = arith.select %74, %72, %75 : vector<3x128xi1>, vector<3x128xf32>
    %77 = arith.mulf %76, %76 : vector<3x128xf32>
    %cst_41 = arith.constant dense<0.000000e+00> : vector<3xf32>
    %78 = vector.multi_reduction <add>, %77, %cst_41 [1] : vector<3x128xf32> to vector<3xf32>
    %79 = vector.shape_cast %78 : vector<3xf32> to vector<3x1xf32>
    %cst_42 = arith.constant 3.125000e-02 : f32
    %80 = vector.broadcast %cst_42 : f32 to vector<3x1xf32>
    %81 = arith.mulf %79, %80 : vector<3x1xf32>
    %cst_43 = arith.constant 9.99999974E-6 : f32
    %82 = vector.broadcast %cst_43 : f32 to vector<3x1xf32>
    %83 = arith.addf %81, %82 : vector<3x1xf32>
    %84 = math.rsqrt %83 : vector<3x1xf32>
    %85 = vector.broadcast %84 : vector<3x1xf32> to vector<3x128xf32>
    %86 = arith.mulf %76, %85 : vector<3x128xf32>
    %87 = vector.broadcast %58 : vector<1x128xf32> to vector<3x128xf32>
    %88 = arith.mulf %86, %87 : vector<3x128xf32>
    %89 = vector.broadcast %59 : vector<1x128xf32> to vector<3x128xf32>
    %90 = arith.addf %88, %89 : vector<3x128xf32>
    %91 = arith.truncf %90 : vector<3x128xf32> to vector<3x128xbf16>
    %c0_44 = arith.constant 0 : index
    %c0_45 = arith.constant 0 : index
    %92 = vector.load %arg10[%c0_44, %c0_45] : memref<128x128xbf16, #tpu.memory_space<vmem>>, vector<128x128xbf16>
    %cst_46 = arith.constant dense<0.000000e+00> : vector<3x128xf32>
    %93 = tpu.matmul %91, %92, %cst_46 {dimension_numbers = #tpu.dot_dimension_numbers<[1], [0], [0], [1], [0, 0, 1, 1], [], []>} : vector<3x128xbf16>, vector<128x128xbf16>, vector<3x128xf32> -> vector<3x128xf32>
    %c0_47 = arith.constant 0 : index
    %c0_48 = arith.constant 0 : index
    %94 = vector.load %arg29[%c0_47, %c0_48] : memref<6x128xf32, #tpu.memory_space<vmem>>, vector<3x128xf32>
    tpu.vector_store %arg29[%c0_47, %c0_48], %93 {strides = array<i32>} : memref<6x128xf32, #tpu.memory_space<vmem>>, vector<3x128xf32>,
    %95 = arith.addf %57, %18 : vector<3x128xf32>
    %c0_49 = arith.constant 0 : index
    %c0_50 = arith.constant 0 : index
    %96 = vector.load %arg11[%c0_49, %c0_50] : memref<1x128xf32, #tpu.memory_space<vmem>>, vector<1x128xf32>
    %c0_51 = arith.constant 0 : index
    %c0_52 = arith.constant 0 : index
    %97 = vector.load %arg12[%c0_51, %c0_52] : memref<1x128xf32, #tpu.memory_space<vmem>>, vector<1x128xf32>
    %98 = tpu.iota {dimensions = array<i32: 1>} : vector<1x128xi32>
    %c32_i32_53 = arith.constant 32 : i32
    %99 = vector.broadcast %c32_i32_53 : i32 to vector<1x128xi32>
    %100 = arith.cmpi slt, %98, %99 : vector<1x128xi32>
    %cst_54 = arith.constant 0.000000e+00 : f32
    %101 = vector.shape_cast %100 : vector<1x128xi1> to vector<1x128xi1>
    %102 = vector.broadcast %101 : vector<1x128xi1> to vector<3x128xi1>
    %103 = vector.broadcast %cst_54 : f32 to vector<3x128xf32>
    %104 = arith.select %102, %95, %103 : vector<3x128xi1>, vector<3x128xf32>
    %cst_55 = arith.constant dense<0.000000e+00> : vector<3xf32>
    %105 = vector.multi_reduction <add>, %104, %cst_55 [1] : vector<3x128xf32> to vector<3xf32>
    %106 = vector.shape_cast %105 : vector<3xf32> to vector<3x1xf32>
    %cst_56 = arith.constant 3.125000e-02 : f32
    %107 = vector.broadcast %cst_56 : f32 to vector<3x1xf32>
    %108 = arith.mulf %106, %107 : vector<3x1xf32>
    %109 = vector.broadcast %108 : vector<3x1xf32> to vector<3x128xf32>
    %110 = arith.subf %95, %109 : vector<3x128xf32>
    %cst_57 = arith.constant 0.000000e+00 : f32
    %111 = vector.shape_cast %100 : vector<1x128xi1> to vector<1x128xi1>
    %112 = vector.broadcast %111 : vector<1x128xi1> to vector<3x128xi1>
    %113 = vector.broadcast %cst_57 : f32 to vector<3x128xf32>
    %114 = arith.select %112, %110, %113 : vector<3x128xi1>, vector<3x128xf32>
    %115 = arith.mulf %114, %114 : vector<3x128xf32>
    %cst_58 = arith.constant dense<0.000000e+00> : vector<3xf32>
    %116 = vector.multi_reduction <add>, %115, %cst_58 [1] : vector<3x128xf32> to vector<3xf32>
    %117 = vector.shape_cast %116 : vector<3xf32> to vector<3x1xf32>
    %cst_59 = arith.constant 3.125000e-02 : f32
    %118 = vector.broadcast %cst_59 : f32 to vector<3x1xf32>
    %119 = arith.mulf %117, %118 : vector<3x1xf32>
    %cst_60 = arith.constant 9.99999974E-6 : f32
    %120 = vector.broadcast %cst_60 : f32 to vector<3x1xf32>
    %121 = arith.addf %119, %120 : vector<3x1xf32>
    %122 = math.rsqrt %121 : vector<3x1xf32>
    %123 = vector.broadcast %122 : vector<3x1xf32> to vector<3x128xf32>
    %124 = arith.mulf %114, %123 : vector<3x128xf32>
    %125 = vector.broadcast %96 : vector<1x128xf32> to vector<3x128xf32>
    %126 = arith.mulf %124, %125 : vector<3x128xf32>
    %127 = vector.broadcast %97 : vector<1x128xf32> to vector<3x128xf32>
    %128 = arith.addf %126, %127 : vector<3x128xf32>
    %c17 = arith.constant 17 : index
    %c0_61 = arith.constant 0 : index
    %129 = vector.load %arg31[%c17, %c0_61] : memref<64x128xf32, #tpu.memory_space<vmem>>, vector<3x128xf32>
    tpu.vector_store %arg31[%c17, %c0_61], %128 {strides = array<i32>} : memref<64x128xf32, #tpu.memory_space<vmem>>, vector<3x128xf32>,
    %130 = vector.extract_strided_slice %0 {offsets = [32, 0], sizes = [17, 128], strides = [1, 1]} : vector<64x128xf32> to vector<17x128xf32>
    %131 = arith.truncf %130 : vector<17x128xf32> to vector<17x128xbf16>
    %132 = vector.extract_strided_slice %8 {offsets = [3, 0], sizes = [3, 128], strides = [1, 1]} : vector<6x128xf32> to vector<3x128xf32>
    %133 = arith.truncf %132 : vector<3x128xf32> to vector<3x128xbf16>
    %c0_62 = arith.constant 0 : index
    %c0_63 = arith.constant 0 : index
    %134 = vector.load %arg5[%c0_62, %c0_63] : memref<128x32xbf16, #tpu.memory_space<vmem>>, vector<128x32xbf16>
    %cst_64 = arith.constant dense<0.000000e+00> : vector<3x32xf32>
    %135 = tpu.matmul %133, %134, %cst_64 {dimension_numbers = #tpu.dot_dimension_numbers<[1], [0], [0], [1], [0, 0, 1, 1], [], []>} : vector<3x128xbf16>, vector<128x32xbf16>, vector<3x32xf32> -> vector<3x32xf32>
    %c0_65 = arith.constant 0 : index
    %c0_66 = arith.constant 0 : index
    %136 = vector.load %arg6[%c0_65, %c0_66] : memref<128x32xbf16, #tpu.memory_space<vmem>>, vector<128x32xbf16>
    %cst_67 = arith.constant dense<0.000000e+00> : vector<17x32xf32>
    %137 = tpu.matmul %131, %136, %cst_67 {dimension_numbers = #tpu.dot_dimension_numbers<[1], [0], [0], [1], [0, 0, 1, 1], [], []>} : vector<17x128xbf16>, vector<128x32xbf16>, vector<17x32xf32> -> vector<17x32xf32>
    %138 = arith.truncf %135 : vector<3x32xf32> to vector<3x32xbf16>
    %139 = arith.truncf %137 : vector<17x32xf32> to vector<17x32xbf16>
    %cst_68 = arith.constant dense<0.000000e+00> : vector<3x17xf32>
    %140 = tpu.matmul %138, %139, %cst_68 {dimension_numbers = #tpu.dot_dimension_numbers<[1], [1], [0], [0], [0, 0, 1, 0], [], []>} : vector<3x32xbf16>, vector<17x32xbf16>, vector<3x17xf32> -> vector<3x17xf32>
    %141 = arith.truncf %135 : vector<3x32xf32> to vector<3x32xbf16>
    %142 = arith.truncf %11 : vector<10x32xf32> to vector<10x32xbf16>
    %cst_69 = arith.constant dense<0.000000e+00> : vector<3x10xf32>
    %143 = tpu.matmul %141, %142, %cst_69 {dimension_numbers = #tpu.dot_dimension_numbers<[1], [1], [0], [0], [0, 0, 1, 0], [], []>} : vector<3x32xbf16>, vector<10x32xbf16>, vector<3x10xf32> -> vector<3x10xf32>
    %cst_70 = arith.constant dense<0xFF800000> : vector<3xf32>
    %144 = vector.multi_reduction <maximumf>, %140, %cst_70 [1] : vector<3x17xf32> to vector<3xf32>
    %145 = vector.shape_cast %144 : vector<3xf32> to vector<3x1xf32>
    %cst_71 = arith.constant dense<0xFF800000> : vector<3xf32>
    %146 = vector.multi_reduction <maximumf>, %143, %cst_71 [1] : vector<3x10xf32> to vector<3xf32>
    %147 = vector.shape_cast %146 : vector<3xf32> to vector<3x1xf32>
    %148 = arith.maximumf %145, %147 : vector<3x1xf32>
    %149 = vector.broadcast %148 : vector<3x1xf32> to vector<3x17xf32>
    %150 = arith.subf %140, %149 : vector<3x17xf32>
    %151 = math.exp %150 : vector<3x17xf32>
    %152 = vector.broadcast %148 : vector<3x1xf32> to vector<3x10xf32>
    %153 = arith.subf %143, %152 : vector<3x10xf32>
    %154 = math.exp %153 : vector<3x10xf32>
    %cst_72 = arith.constant dense<0.000000e+00> : vector<3xf32>
    %155 = vector.multi_reduction <add>, %151, %cst_72 [1] : vector<3x17xf32> to vector<3xf32>
    %156 = vector.shape_cast %155 : vector<3xf32> to vector<3x1xf32>
    %cst_73 = arith.constant dense<0.000000e+00> : vector<3xf32>
    %157 = vector.multi_reduction <add>, %154, %cst_73 [1] : vector<3x10xf32> to vector<3xf32>
    %158 = vector.shape_cast %157 : vector<3xf32> to vector<3x1xf32>
    %159 = arith.addf %156, %158 : vector<3x1xf32>
    %160 = arith.truncf %151 : vector<3x17xf32> to vector<3x17xbf16>
    %cst_74 = arith.constant dense<0.000000e+00> : vector<3x128xf32>
    %161 = tpu.matmul %160, %131, %cst_74 {dimension_numbers = #tpu.dot_dimension_numbers<[1], [0], [0], [1], [0, 0, 1, 1], [], []>} : vector<3x17xbf16>, vector<17x128xbf16>, vector<3x128xf32> -> vector<3x128xf32>
    %162 = arith.truncf %154 : vector<3x10xf32> to vector<3x10xbf16>
    %163 = arith.truncf %1 : vector<10x128xf32> to vector<10x128xbf16>
    %cst_75 = arith.constant dense<0.000000e+00> : vector<3x128xf32>
    %164 = tpu.matmul %162, %163, %cst_75 {dimension_numbers = #tpu.dot_dimension_numbers<[1], [0], [0], [1], [0, 0, 1, 1], [], []>} : vector<3x10xbf16>, vector<10x128xbf16>, vector<3x128xf32> -> vector<3x128xf32>
    %165 = arith.addf %161, %164 : vector<3x128xf32>
    %166 = tpu.reciprocal %159 {approx = true} : vector<3x1xf32> -> vector<3x1xf32>
    %167 = vector.broadcast %166 : vector<3x1xf32> to vector<3x128xf32>
    %168 = arith.mulf %165, %167 : vector<3x128xf32>
    %169 = arith.truncf %168 : vector<3x128xf32> to vector<3x128xbf16>
    %c0_76 = arith.constant 0 : index
    %c0_77 = arith.constant 0 : index
    %170 = vector.load %arg7[%c0_76, %c0_77] : memref<128x128xbf16, #tpu.memory_space<vmem>>, vector<128x128xbf16>
    %cst_78 = arith.constant dense<0.000000e+00> : vector<3x128xf32>
    %171 = tpu.matmul %169, %170, %cst_78 {dimension_numbers = #tpu.dot_dimension_numbers<[1], [0], [0], [1], [0, 0, 1, 1], [], []>} : vector<3x128xbf16>, vector<128x128xbf16>, vector<3x128xf32> -> vector<3x128xf32>
    %c0_79 = arith.constant 0 : index
    %c0_80 = arith.constant 0 : index
    %172 = vector.load %arg8[%c0_79, %c0_80] : memref<1x128xf32, #tpu.memory_space<vmem>>, vector<1x128xf32>
    %c0_81 = arith.constant 0 : index
    %c0_82 = arith.constant 0 : index
    %173 = vector.load %arg9[%c0_81, %c0_82] : memref<1x128xf32, #tpu.memory_space<vmem>>, vector<1x128xf32>
    %174 = tpu.iota {dimensions = array<i32: 1>} : vector<1x128xi32>
    %c32_i32_83 = arith.constant 32 : i32
    %175 = vector.broadcast %c32_i32_83 : i32 to vector<1x128xi32>
    %176 = arith.cmpi slt, %174, %175 : vector<1x128xi32>
    %cst_84 = arith.constant 0.000000e+00 : f32
    %177 = vector.shape_cast %176 : vector<1x128xi1> to vector<1x128xi1>
    %178 = vector.broadcast %177 : vector<1x128xi1> to vector<3x128xi1>
    %179 = vector.broadcast %cst_84 : f32 to vector<3x128xf32>
    %180 = arith.select %178, %171, %179 : vector<3x128xi1>, vector<3x128xf32>
    %cst_85 = arith.constant dense<0.000000e+00> : vector<3xf32>
    %181 = vector.multi_reduction <add>, %180, %cst_85 [1] : vector<3x128xf32> to vector<3xf32>
    %182 = vector.shape_cast %181 : vector<3xf32> to vector<3x1xf32>
    %cst_86 = arith.constant 3.125000e-02 : f32
    %183 = vector.broadcast %cst_86 : f32 to vector<3x1xf32>
    %184 = arith.mulf %182, %183 : vector<3x1xf32>
    %185 = vector.broadcast %184 : vector<3x1xf32> to vector<3x128xf32>
    %186 = arith.subf %171, %185 : vector<3x128xf32>
    %cst_87 = arith.constant 0.000000e+00 : f32
    %187 = vector.shape_cast %176 : vector<1x128xi1> to vector<1x128xi1>
    %188 = vector.broadcast %187 : vector<1x128xi1> to vector<3x128xi1>
    %189 = vector.broadcast %cst_87 : f32 to vector<3x128xf32>
    %190 = arith.select %188, %186, %189 : vector<3x128xi1>, vector<3x128xf32>
    %191 = arith.mulf %190, %190 : vector<3x128xf32>
    %cst_88 = arith.constant dense<0.000000e+00> : vector<3xf32>
    %192 = vector.multi_reduction <add>, %191, %cst_88 [1] : vector<3x128xf32> to vector<3xf32>
    %193 = vector.shape_cast %192 : vector<3xf32> to vector<3x1xf32>
    %cst_89 = arith.constant 3.125000e-02 : f32
    %194 = vector.broadcast %cst_89 : f32 to vector<3x1xf32>
    %195 = arith.mulf %193, %194 : vector<3x1xf32>
    %cst_90 = arith.constant 9.99999974E-6 : f32
    %196 = vector.broadcast %cst_90 : f32 to vector<3x1xf32>
    %197 = arith.addf %195, %196 : vector<3x1xf32>
    %198 = math.rsqrt %197 : vector<3x1xf32>
    %199 = vector.broadcast %198 : vector<3x1xf32> to vector<3x128xf32>
    %200 = arith.mulf %190, %199 : vector<3x128xf32>
    %201 = vector.broadcast %172 : vector<1x128xf32> to vector<3x128xf32>
    %202 = arith.mulf %200, %201 : vector<3x128xf32>
    %203 = vector.broadcast %173 : vector<1x128xf32> to vector<3x128xf32>
    %204 = arith.addf %202, %203 : vector<3x128xf32>
    %205 = arith.truncf %204 : vector<3x128xf32> to vector<3x128xbf16>
    %c0_91 = arith.constant 0 : index
    %c0_92 = arith.constant 0 : index
    %206 = vector.load %arg10[%c0_91, %c0_92] : memref<128x128xbf16, #tpu.memory_space<vmem>>, vector<128x128xbf16>
    %cst_93 = arith.constant dense<0.000000e+00> : vector<3x128xf32>
    %207 = tpu.matmul %205, %206, %cst_93 {dimension_numbers = #tpu.dot_dimension_numbers<[1], [0], [0], [1], [0, 0, 1, 1], [], []>} : vector<3x128xbf16>, vector<128x128xbf16>, vector<3x128xf32> -> vector<3x128xf32>
    %c3 = arith.constant 3 : index
    %c0_94 = arith.constant 0 : index
    %208 = vector.load %arg29[%c3, %c0_94] : memref<6x128xf32, #tpu.memory_space<vmem>>, vector<3x128xf32>
    tpu.vector_store %arg29[%c3, %c0_94], %207 {strides = array<i32>} : memref<6x128xf32, #tpu.memory_space<vmem>>, vector<3x128xf32>,
    %209 = arith.addf %171, %132 : vector<3x128xf32>
    %c0_95 = arith.constant 0 : index
    %c0_96 = arith.constant 0 : index
    %210 = vector.load %arg11[%c0_95, %c0_96] : memref<1x128xf32, #tpu.memory_space<vmem>>, vector<1x128xf32>
    %c0_97 = arith.constant 0 : index
    %c0_98 = arith.constant 0 : index
    %211 = vector.load %arg12[%c0_97, %c0_98] : memref<1x128xf32, #tpu.memory_space<vmem>>, vector<1x128xf32>
    %212 = tpu.iota {dimensions = array<i32: 1>} : vector<1x128xi32>
    %c32_i32_99 = arith.constant 32 : i32
    %213 = vector.broadcast %c32_i32_99 : i32 to vector<1x128xi32>
    %214 = arith.cmpi slt, %212, %213 : vector<1x128xi32>
    %cst_100 = arith.constant 0.000000e+00 : f32
    %215 = vector.shape_cast %214 : vector<1x128xi1> to vector<1x128xi1>
    %216 = vector.broadcast %215 : vector<1x128xi1> to vector<3x128xi1>
    %217 = vector.broadcast %cst_100 : f32 to vector<3x128xf32>
    %218 = arith.select %216, %209, %217 : vector<3x128xi1>, vector<3x128xf32>
    %cst_101 = arith.constant dense<0.000000e+00> : vector<3xf32>
    %219 = vector.multi_reduction <add>, %218, %cst_101 [1] : vector<3x128xf32> to vector<3xf32>
    %220 = vector.shape_cast %219 : vector<3xf32> to vector<3x1xf32>
    %cst_102 = arith.constant 3.125000e-02 : f32
    %221 = vector.broadcast %cst_102 : f32 to vector<3x1xf32>
    %222 = arith.mulf %220, %221 : vector<3x1xf32>
    %223 = vector.broadcast %222 : vector<3x1xf32> to vector<3x128xf32>
    %224 = arith.subf %209, %223 : vector<3x128xf32>
    %cst_103 = arith.constant 0.000000e+00 : f32
    %225 = vector.shape_cast %214 : vector<1x128xi1> to vector<1x128xi1>
    %226 = vector.broadcast %225 : vector<1x128xi1> to vector<3x128xi1>
    %227 = vector.broadcast %cst_103 : f32 to vector<3x128xf32>
    %228 = arith.select %226, %224, %227 : vector<3x128xi1>, vector<3x128xf32>
    %229 = arith.mulf %228, %228 : vector<3x128xf32>
    %cst_104 = arith.constant dense<0.000000e+00> : vector<3xf32>
    %230 = vector.multi_reduction <add>, %229, %cst_104 [1] : vector<3x128xf32> to vector<3xf32>
    %231 = vector.shape_cast %230 : vector<3xf32> to vector<3x1xf32>
    %cst_105 = arith.constant 3.125000e-02 : f32
    %232 = vector.broadcast %cst_105 : f32 to vector<3x1xf32>
    %233 = arith.mulf %231, %232 : vector<3x1xf32>
    %cst_106 = arith.constant 9.99999974E-6 : f32
    %234 = vector.broadcast %cst_106 : f32 to vector<3x1xf32>
    %235 = arith.addf %233, %234 : vector<3x1xf32>
    %236 = math.rsqrt %235 : vector<3x1xf32>
    %237 = vector.broadcast %236 : vector<3x1xf32> to vector<3x128xf32>
    %238 = arith.mulf %228, %237 : vector<3x128xf32>
    %239 = vector.broadcast %210 : vector<1x128xf32> to vector<3x128xf32>
    %240 = arith.mulf %238, %239 : vector<3x128xf32>
    %241 = vector.broadcast %211 : vector<1x128xf32> to vector<3x128xf32>
    %242 = arith.addf %240, %241 : vector<3x128xf32>
    %c49 = arith.constant 49 : index
    %c0_107 = arith.constant 0 : index
    %243 = vector.load %arg31[%c49, %c0_107] : memref<64x128xf32, #tpu.memory_space<vmem>>, vector<3x128xf32>
    tpu.vector_store %arg31[%c49, %c0_107], %242 {strides = array<i32>} : memref<64x128xf32, #tpu.memory_space<vmem>>, vector<3x128xf32>,
    %c0_108 = arith.constant 0 : index
    %c0_109 = arith.constant 0 : index
    %244 = vector.load %arg31[%c0_108, %c0_109] : memref<64x128xf32, #tpu.memory_space<vmem>>, vector<64x128xf32>
    %c0_110 = arith.constant 0 : index
    %c0_111 = arith.constant 0 : index
    %245 = vector.load %arg14[%c0_110, %c0_111] : memref<1x128xf32, #tpu.memory_space<vmem>>, vector<1x128xf32>
    %c0_112 = arith.constant 0 : index
    %c0_113 = arith.constant 0 : index
    %246 = vector.load %arg15[%c0_112, %c0_113] : memref<1x128xf32, #tpu.memory_space<vmem>>, vector<1x128xf32>
    %247 = tpu.iota {dimensions = array<i32: 1>} : vector<1x128xi32>
    %c32_i32_114 = arith.constant 32 : i32
    %248 = vector.broadcast %c32_i32_114 : i32 to vector<1x128xi32>
    %249 = arith.cmpi slt, %247, %248 : vector<1x128xi32>
    %cst_115 = arith.constant 0.000000e+00 : f32
    %250 = vector.shape_cast %249 : vector<1x128xi1> to vector<1x128xi1>
    %251 = vector.broadcast %250 : vector<1x128xi1> to vector<64x128xi1>
    %252 = vector.broadcast %cst_115 : f32 to vector<64x128xf32>
    %253 = arith.select %251, %244, %252 : vector<64x128xi1>, vector<64x128xf32>
    %cst_116 = arith.constant dense<0.000000e+00> : vector<64xf32>
    %254 = vector.multi_reduction <add>, %253, %cst_116 [1] : vector<64x128xf32> to vector<64xf32>
    %255 = vector.shape_cast %254 : vector<64xf32> to vector<64x1xf32>
    %cst_117 = arith.constant 3.125000e-02 : f32
    %256 = vector.broadcast %cst_117 : f32 to vector<64x1xf32>
    %257 = arith.mulf %255, %256 : vector<64x1xf32>
    %258 = vector.broadcast %257 : vector<64x1xf32> to vector<64x128xf32>
    %259 = arith.subf %244, %258 : vector<64x128xf32>
    %cst_118 = arith.constant 0.000000e+00 : f32
    %260 = vector.shape_cast %249 : vector<1x128xi1> to vector<1x128xi1>
    %261 = vector.broadcast %260 : vector<1x128xi1> to vector<64x128xi1>
    %262 = vector.broadcast %cst_118 : f32 to vector<64x128xf32>
    %263 = arith.select %261, %259, %262 : vector<64x128xi1>, vector<64x128xf32>
    %264 = arith.mulf %263, %263 : vector<64x128xf32>
    %cst_119 = arith.constant dense<0.000000e+00> : vector<64xf32>
    %265 = vector.multi_reduction <add>, %264, %cst_119 [1] : vector<64x128xf32> to vector<64xf32>
    %266 = vector.shape_cast %265 : vector<64xf32> to vector<64x1xf32>
    %cst_120 = arith.constant 3.125000e-02 : f32
    %267 = vector.broadcast %cst_120 : f32 to vector<64x1xf32>
    %268 = arith.mulf %266, %267 : vector<64x1xf32>
    %cst_121 = arith.constant 9.99999974E-6 : f32
    %269 = vector.broadcast %cst_121 : f32 to vector<64x1xf32>
    %270 = arith.addf %268, %269 : vector<64x1xf32>
    %271 = math.rsqrt %270 : vector<64x1xf32>
    %272 = vector.broadcast %271 : vector<64x1xf32> to vector<64x128xf32>
    %273 = arith.mulf %263, %272 : vector<64x128xf32>
    %274 = vector.broadcast %245 : vector<1x128xf32> to vector<64x128xf32>
    %275 = arith.mulf %273, %274 : vector<64x128xf32>
    %276 = vector.broadcast %246 : vector<1x128xf32> to vector<64x128xf32>
    %277 = arith.addf %275, %276 : vector<64x128xf32>
    %278 = arith.truncf %277 : vector<64x128xf32> to vector<64x128xbf16>
    %c0_122 = arith.constant 0 : index
    %c0_123 = arith.constant 0 : index
    %279 = vector.load %arg16[%c0_122, %c0_123] : memref<128x96xbf16, #tpu.memory_space<vmem>>, vector<128x96xbf16>
    %cst_124 = arith.constant dense<0.000000e+00> : vector<64x96xf32>
    %280 = tpu.matmul %278, %279, %cst_124 {dimension_numbers = #tpu.dot_dimension_numbers<[1], [0], [0], [1], [0, 0, 1, 1], [], []>} : vector<64x128xbf16>, vector<128x96xbf16>, vector<64x96xf32> -> vector<64x96xf32>
    %c0_125 = arith.constant 0 : index
    %c0_126 = arith.constant 0 : index
    %281 = vector.load %arg17[%c0_125, %c0_126] : memref<1x96xf32, #tpu.memory_space<vmem>>, vector<1x96xf32>
    %282 = vector.broadcast %281 : vector<1x96xf32> to vector<64x96xf32>
    %283 = arith.addf %280, %282 : vector<64x96xf32>
    %284 = tpu.iota {dimensions = array<i32: 1>} : vector<1x32xi32>
    %c20_i32 = arith.constant 20 : i32
    %285 = vector.broadcast %c20_i32 : i32 to vector<1x32xi32>
    %286 = arith.cmpi slt, %284, %285 : vector<1x32xi32>
    %287 = tpu.iota {dimensions = array<i32: 1>} : vector<32x32xi32>
    %288 = vector.extract_strided_slice %283 {offsets = [0, 64], sizes = [32, 32], strides = [1, 1]} : vector<64x96xf32> to vector<32x32xf32>
    %289 = arith.truncf %288 : vector<32x32xf32> to vector<32x32xbf16>
    %290 = vector.extract_strided_slice %283 {offsets = [0, 0], sizes = [32, 16], strides = [1, 1]} : vector<64x96xf32> to vector<32x16xf32>
    %291 = vector.extract_strided_slice %283 {offsets = [0, 32], sizes = [32, 16], strides = [1, 1]} : vector<64x96xf32> to vector<32x16xf32>
    %292 = arith.truncf %290 : vector<32x16xf32> to vector<32x16xbf16>
    %293 = arith.truncf %291 : vector<32x16xf32> to vector<32x16xbf16>
    %cst_127 = arith.constant dense<0.000000e+00> : vector<32x32xf32>
    %294 = tpu.matmul %292, %293, %cst_127 {dimension_numbers = #tpu.dot_dimension_numbers<[1], [1], [0], [0], [0, 0, 1, 0], [], []>} : vector<32x16xbf16>, vector<32x16xbf16>, vector<32x32xf32> -> vector<32x32xf32>
    %cst_128 = arith.constant -1.000000e+30 : f32
    %295 = vector.shape_cast %286 : vector<1x32xi1> to vector<1x32xi1>
    %296 = vector.broadcast %295 : vector<1x32xi1> to vector<32x32xi1>
    %297 = vector.broadcast %cst_128 : f32 to vector<32x32xf32>
    %298 = arith.select %296, %294, %297 : vector<32x32xi1>, vector<32x32xf32>
    %cst_129 = arith.constant dense<0xFF800000> : vector<32xf32>
    %299 = vector.multi_reduction <maximumf>, %298, %cst_129 [1] : vector<32x32xf32> to vector<32xf32>
    %300 = vector.shape_cast %299 : vector<32xf32> to vector<32x1xf32>
    %301 = vector.broadcast %300 : vector<32x1xf32> to vector<32x32xf32>
    %302 = arith.subf %298, %301 : vector<32x32xf32>
    %303 = math.exp %302 : vector<32x32xf32>
    %cst_130 = arith.constant dense<0.000000e+00> : vector<32xf32>
    %304 = vector.multi_reduction <add>, %303, %cst_130 [1] : vector<32x32xf32> to vector<32xf32>
    %305 = vector.shape_cast %304 : vector<32xf32> to vector<32x1xf32>
    %306 = arith.truncf %303 : vector<32x32xf32> to vector<32x32xbf16>
    %cst_131 = arith.constant dense<0.000000e+00> : vector<32x32xf32>
    %307 = tpu.matmul %306, %289, %cst_131 {dimension_numbers = #tpu.dot_dimension_numbers<[1], [0], [0], [1], [0, 0, 1, 1], [], []>} : vector<32x32xbf16>, vector<32x32xbf16>, vector<32x32xf32> -> vector<32x32xf32>
    %308 = tpu.reciprocal %305 {approx = true} : vector<32x1xf32> -> vector<32x1xf32>
    %309 = vector.broadcast %308 : vector<32x1xf32> to vector<32x32xf32>
    %310 = arith.mulf %307, %309 : vector<32x32xf32>
    %311 = vector.extract_strided_slice %283 {offsets = [0, 16], sizes = [32, 16], strides = [1, 1]} : vector<64x96xf32> to vector<32x16xf32>
    %312 = vector.extract_strided_slice %283 {offsets = [0, 48], sizes = [32, 16], strides = [1, 1]} : vector<64x96xf32> to vector<32x16xf32>
    %313 = arith.truncf %311 : vector<32x16xf32> to vector<32x16xbf16>
    %314 = arith.truncf %312 : vector<32x16xf32> to vector<32x16xbf16>
    %cst_132 = arith.constant dense<0.000000e+00> : vector<32x32xf32>
    %315 = tpu.matmul %313, %314, %cst_132 {dimension_numbers = #tpu.dot_dimension_numbers<[1], [1], [0], [0], [0, 0, 1, 0], [], []>} : vector<32x16xbf16>, vector<32x16xbf16>, vector<32x32xf32> -> vector<32x32xf32>
    %cst_133 = arith.constant -1.000000e+30 : f32
    %316 = vector.shape_cast %286 : vector<1x32xi1> to vector<1x32xi1>
    %317 = vector.broadcast %316 : vector<1x32xi1> to vector<32x32xi1>
    %318 = vector.broadcast %cst_133 : f32 to vector<32x32xf32>
    %319 = arith.select %317, %315, %318 : vector<32x32xi1>, vector<32x32xf32>
    %cst_134 = arith.constant dense<0xFF800000> : vector<32xf32>
    %320 = vector.multi_reduction <maximumf>, %319, %cst_134 [1] : vector<32x32xf32> to vector<32xf32>
    %321 = vector.shape_cast %320 : vector<32xf32> to vector<32x1xf32>
    %322 = vector.broadcast %321 : vector<32x1xf32> to vector<32x32xf32>
    %323 = arith.subf %319, %322 : vector<32x32xf32>
    %324 = math.exp %323 : vector<32x32xf32>
    %cst_135 = arith.constant dense<0.000000e+00> : vector<32xf32>
    %325 = vector.multi_reduction <add>, %324, %cst_135 [1] : vector<32x32xf32> to vector<32xf32>
    %326 = vector.shape_cast %325 : vector<32xf32> to vector<32x1xf32>
    %327 = arith.truncf %324 : vector<32x32xf32> to vector<32x32xbf16>
    %cst_136 = arith.constant dense<0.000000e+00> : vector<32x32xf32>
    %328 = tpu.matmul %327, %289, %cst_136 {dimension_numbers = #tpu.dot_dimension_numbers<[1], [0], [0], [1], [0, 0, 1, 1], [], []>} : vector<32x32xbf16>, vector<32x32xbf16>, vector<32x32xf32> -> vector<32x32xf32>
    %329 = tpu.reciprocal %326 {approx = true} : vector<32x1xf32> -> vector<32x1xf32>
    %330 = vector.broadcast %329 : vector<32x1xf32> to vector<32x32xf32>
    %331 = arith.mulf %328, %330 : vector<32x32xf32>
    %c16_i32 = arith.constant 16 : i32
    %332 = vector.broadcast %c16_i32 : i32 to vector<32x32xi32>
    %333 = arith.cmpi sge, %287, %332 : vector<32x32xi32>
    %334 = arith.select %333, %331, %310 : vector<32x32xi1>, vector<32x32xf32>
    %335 = vector.extract_strided_slice %283 {offsets = [32, 64], sizes = [32, 32], strides = [1, 1]} : vector<64x96xf32> to vector<32x32xf32>
    %336 = arith.truncf %335 : vector<32x32xf32> to vector<32x32xbf16>
    %337 = vector.extract_strided_slice %283 {offsets = [32, 0], sizes = [32, 16], strides = [1, 1]} : vector<64x96xf32> to vector<32x16xf32>
    %338 = vector.extract_strided_slice %283 {offsets = [32, 32], sizes = [32, 16], strides = [1, 1]} : vector<64x96xf32> to vector<32x16xf32>
    %339 = arith.truncf %337 : vector<32x16xf32> to vector<32x16xbf16>
    %340 = arith.truncf %338 : vector<32x16xf32> to vector<32x16xbf16>
    %cst_137 = arith.constant dense<0.000000e+00> : vector<32x32xf32>
    %341 = tpu.matmul %339, %340, %cst_137 {dimension_numbers = #tpu.dot_dimension_numbers<[1], [1], [0], [0], [0, 0, 1, 0], [], []>} : vector<32x16xbf16>, vector<32x16xbf16>, vector<32x32xf32> -> vector<32x32xf32>
    %cst_138 = arith.constant -1.000000e+30 : f32
    %342 = vector.shape_cast %286 : vector<1x32xi1> to vector<1x32xi1>
    %343 = vector.broadcast %342 : vector<1x32xi1> to vector<32x32xi1>
    %344 = vector.broadcast %cst_138 : f32 to vector<32x32xf32>
    %345 = arith.select %343, %341, %344 : vector<32x32xi1>, vector<32x32xf32>
    %cst_139 = arith.constant dense<0xFF800000> : vector<32xf32>
    %346 = vector.multi_reduction <maximumf>, %345, %cst_139 [1] : vector<32x32xf32> to vector<32xf32>
    %347 = vector.shape_cast %346 : vector<32xf32> to vector<32x1xf32>
    %348 = vector.broadcast %347 : vector<32x1xf32> to vector<32x32xf32>
    %349 = arith.subf %345, %348 : vector<32x32xf32>
    %350 = math.exp %349 : vector<32x32xf32>
    %cst_140 = arith.constant dense<0.000000e+00> : vector<32xf32>
    %351 = vector.multi_reduction <add>, %350, %cst_140 [1] : vector<32x32xf32> to vector<32xf32>
    %352 = vector.shape_cast %351 : vector<32xf32> to vector<32x1xf32>
    %353 = arith.truncf %350 : vector<32x32xf32> to vector<32x32xbf16>
    %cst_141 = arith.constant dense<0.000000e+00> : vector<32x32xf32>
    %354 = tpu.matmul %353, %336, %cst_141 {dimension_numbers = #tpu.dot_dimension_numbers<[1], [0], [0], [1], [0, 0, 1, 1], [], []>} : vector<32x32xbf16>, vector<32x32xbf16>, vector<32x32xf32> -> vector<32x32xf32>
    %355 = tpu.reciprocal %352 {approx = true} : vector<32x1xf32> -> vector<32x1xf32>
    %356 = vector.broadcast %355 : vector<32x1xf32> to vector<32x32xf32>
    %357 = arith.mulf %354, %356 : vector<32x32xf32>
    %358 = vector.extract_strided_slice %283 {offsets = [32, 16], sizes = [32, 16], strides = [1, 1]} : vector<64x96xf32> to vector<32x16xf32>
    %359 = vector.extract_strided_slice %283 {offsets = [32, 48], sizes = [32, 16], strides = [1, 1]} : vector<64x96xf32> to vector<32x16xf32>
    %360 = arith.truncf %358 : vector<32x16xf32> to vector<32x16xbf16>
    %361 = arith.truncf %359 : vector<32x16xf32> to vector<32x16xbf16>
    %cst_142 = arith.constant dense<0.000000e+00> : vector<32x32xf32>
    %362 = tpu.matmul %360, %361, %cst_142 {dimension_numbers = #tpu.dot_dimension_numbers<[1], [1], [0], [0], [0, 0, 1, 0], [], []>} : vector<32x16xbf16>, vector<32x16xbf16>, vector<32x32xf32> -> vector<32x32xf32>
    %cst_143 = arith.constant -1.000000e+30 : f32
    %363 = vector.shape_cast %286 : vector<1x32xi1> to vector<1x32xi1>
    %364 = vector.broadcast %363 : vector<1x32xi1> to vector<32x32xi1>
    %365 = vector.broadcast %cst_143 : f32 to vector<32x32xf32>
    %366 = arith.select %364, %362, %365 : vector<32x32xi1>, vector<32x32xf32>
    %cst_144 = arith.constant dense<0xFF800000> : vector<32xf32>
    %367 = vector.multi_reduction <maximumf>, %366, %cst_144 [1] : vector<32x32xf32> to vector<32xf32>
    %368 = vector.shape_cast %367 : vector<32xf32> to vector<32x1xf32>
    %369 = vector.broadcast %368 : vector<32x1xf32> to vector<32x32xf32>
    %370 = arith.subf %366, %369 : vector<32x32xf32>
    %371 = math.exp %370 : vector<32x32xf32>
    %cst_145 = arith.constant dense<0.000000e+00> : vector<32xf32>
    %372 = vector.multi_reduction <add>, %371, %cst_145 [1] : vector<32x32xf32> to vector<32xf32>
    %373 = vector.shape_cast %372 : vector<32xf32> to vector<32x1xf32>
    %374 = arith.truncf %371 : vector<32x32xf32> to vector<32x32xbf16>
    %cst_146 = arith.constant dense<0.000000e+00> : vector<32x32xf32>
    %375 = tpu.matmul %374, %336, %cst_146 {dimension_numbers = #tpu.dot_dimension_numbers<[1], [0], [0], [1], [0, 0, 1, 1], [], []>} : vector<32x32xbf16>, vector<32x32xbf16>, vector<32x32xf32> -> vector<32x32xf32>
    %376 = tpu.reciprocal %373 {approx = true} : vector<32x1xf32> -> vector<32x1xf32>
    %377 = vector.broadcast %376 : vector<32x1xf32> to vector<32x32xf32>
    %378 = arith.mulf %375, %377 : vector<32x32xf32>
    %c16_i32_147 = arith.constant 16 : i32
    %379 = vector.broadcast %c16_i32_147 : i32 to vector<32x32xi32>
    %380 = arith.cmpi sge, %287, %379 : vector<32x32xi32>
    %381 = arith.select %380, %378, %357 : vector<32x32xi1>, vector<32x32xf32>
    %382 = tpu.concatenate %334, %381 in 0 : vector<32x32xf32>, vector<32x32xf32> -> vector<64x32xf32>
    %383 = arith.truncf %382 : vector<64x32xf32> to vector<64x32xbf16>
    %c0_148 = arith.constant 0 : index
    %c0_149 = arith.constant 0 : index
    %384 = vector.load %arg18[%c0_148, %c0_149] : memref<32x128xbf16, #tpu.memory_space<vmem>>, vector<32x128xbf16>
    %cst_150 = arith.constant dense<0.000000e+00> : vector<64x128xf32>
    %385 = tpu.matmul %383, %384, %cst_150 {dimension_numbers = #tpu.dot_dimension_numbers<[1], [0], [0], [1], [0, 0, 1, 1], [], []>} : vector<64x32xbf16>, vector<32x128xbf16>, vector<64x128xf32> -> vector<64x128xf32>
    %386 = arith.addf %244, %385 : vector<64x128xf32>
    %c0_151 = arith.constant 0 : index
    %c0_152 = arith.constant 0 : index
    %387 = vector.load %arg19[%c0_151, %c0_152] : memref<1x128xf32, #tpu.memory_space<vmem>>, vector<1x128xf32>
    %388 = vector.broadcast %387 : vector<1x128xf32> to vector<64x128xf32>
    %389 = arith.addf %386, %388 : vector<64x128xf32>
    %c0_153 = arith.constant 0 : index
    %c0_154 = arith.constant 0 : index
    %390 = vector.load %arg20[%c0_153, %c0_154] : memref<1x128xf32, #tpu.memory_space<vmem>>, vector<1x128xf32>
    %c0_155 = arith.constant 0 : index
    %c0_156 = arith.constant 0 : index
    %391 = vector.load %arg21[%c0_155, %c0_156] : memref<1x128xf32, #tpu.memory_space<vmem>>, vector<1x128xf32>
    %392 = tpu.iota {dimensions = array<i32: 1>} : vector<1x128xi32>
    %c32_i32_157 = arith.constant 32 : i32
    %393 = vector.broadcast %c32_i32_157 : i32 to vector<1x128xi32>
    %394 = arith.cmpi slt, %392, %393 : vector<1x128xi32>
    %cst_158 = arith.constant 0.000000e+00 : f32
    %395 = vector.shape_cast %394 : vector<1x128xi1> to vector<1x128xi1>
    %396 = vector.broadcast %395 : vector<1x128xi1> to vector<64x128xi1>
    %397 = vector.broadcast %cst_158 : f32 to vector<64x128xf32>
    %398 = arith.select %396, %389, %397 : vector<64x128xi1>, vector<64x128xf32>
    %cst_159 = arith.constant dense<0.000000e+00> : vector<64xf32>
    %399 = vector.multi_reduction <add>, %398, %cst_159 [1] : vector<64x128xf32> to vector<64xf32>
    %400 = vector.shape_cast %399 : vector<64xf32> to vector<64x1xf32>
    %cst_160 = arith.constant 3.125000e-02 : f32
    %401 = vector.broadcast %cst_160 : f32 to vector<64x1xf32>
    %402 = arith.mulf %400, %401 : vector<64x1xf32>
    %403 = vector.broadcast %402 : vector<64x1xf32> to vector<64x128xf32>
    %404 = arith.subf %389, %403 : vector<64x128xf32>
    %cst_161 = arith.constant 0.000000e+00 : f32
    %405 = vector.shape_cast %394 : vector<1x128xi1> to vector<1x128xi1>
    %406 = vector.broadcast %405 : vector<1x128xi1> to vector<64x128xi1>
    %407 = vector.broadcast %cst_161 : f32 to vector<64x128xf32>
    %408 = arith.select %406, %404, %407 : vector<64x128xi1>, vector<64x128xf32>
    %409 = arith.mulf %408, %408 : vector<64x128xf32>
    %cst_162 = arith.constant dense<0.000000e+00> : vector<64xf32>
    %410 = vector.multi_reduction <add>, %409, %cst_162 [1] : vector<64x128xf32> to vector<64xf32>
    %411 = vector.shape_cast %410 : vector<64xf32> to vector<64x1xf32>
    %cst_163 = arith.constant 3.125000e-02 : f32
    %412 = vector.broadcast %cst_163 : f32 to vector<64x1xf32>
    %413 = arith.mulf %411, %412 : vector<64x1xf32>
    %cst_164 = arith.constant 9.99999974E-6 : f32
    %414 = vector.broadcast %cst_164 : f32 to vector<64x1xf32>
    %415 = arith.addf %413, %414 : vector<64x1xf32>
    %416 = math.rsqrt %415 : vector<64x1xf32>
    %417 = vector.broadcast %416 : vector<64x1xf32> to vector<64x128xf32>
    %418 = arith.mulf %408, %417 : vector<64x128xf32>
    %419 = vector.broadcast %390 : vector<1x128xf32> to vector<64x128xf32>
    %420 = arith.mulf %418, %419 : vector<64x128xf32>
    %421 = vector.broadcast %391 : vector<1x128xf32> to vector<64x128xf32>
    %422 = arith.addf %420, %421 : vector<64x128xf32>
    %423 = arith.truncf %422 : vector<64x128xf32> to vector<64x128xbf16>
    %c0_165 = arith.constant 0 : index
    %c0_166 = arith.constant 0 : index
    %424 = vector.load %arg22[%c0_165, %c0_166] : memref<128x128xbf16, #tpu.memory_space<vmem>>, vector<128x128xbf16>
    %cst_167 = arith.constant dense<0.000000e+00> : vector<64x128xf32>
    %425 = tpu.matmul %423, %424, %cst_167 {dimension_numbers = #tpu.dot_dimension_numbers<[1], [0], [0], [1], [0, 0, 1, 1], [], []>} : vector<64x128xbf16>, vector<128x128xbf16>, vector<64x128xf32> -> vector<64x128xf32>
    %c0_168 = arith.constant 0 : index
    %c0_169 = arith.constant 0 : index
    %426 = vector.load %arg23[%c0_168, %c0_169] : memref<1x128xf32, #tpu.memory_space<vmem>>, vector<1x128xf32>
    %427 = vector.broadcast %426 : vector<1x128xf32> to vector<64x128xf32>
    %428 = arith.addf %425, %427 : vector<64x128xf32>
    %cst_170 = arith.constant -1.702000e+00 : f32
    %429 = vector.broadcast %cst_170 : f32 to vector<64x128xf32>
    %430 = arith.mulf %429, %428 : vector<64x128xf32>
    %431 = math.exp %430 : vector<64x128xf32>
    %cst_171 = arith.constant 1.000000e+00 : f32
    %432 = vector.broadcast %cst_171 : f32 to vector<64x128xf32>
    %433 = arith.addf %432, %431 : vector<64x128xf32>
    %434 = tpu.reciprocal %433 {approx = true} : vector<64x128xf32> -> vector<64x128xf32>
    %435 = arith.mulf %428, %434 : vector<64x128xf32>
    %436 = arith.truncf %435 : vector<64x128xf32> to vector<64x128xbf16>
    %c0_172 = arith.constant 0 : index
    %c0_173 = arith.constant 0 : index
    %437 = vector.load %arg24[%c0_172, %c0_173] : memref<128x128xbf16, #tpu.memory_space<vmem>>, vector<128x128xbf16>
    %cst_174 = arith.constant dense<0.000000e+00> : vector<64x128xf32>
    %438 = tpu.matmul %436, %437, %cst_174 {dimension_numbers = #tpu.dot_dimension_numbers<[1], [0], [0], [1], [0, 0, 1, 1], [], []>} : vector<64x128xbf16>, vector<128x128xbf16>, vector<64x128xf32> -> vector<64x128xf32>
    %c0_175 = arith.constant 0 : index
    %c0_176 = arith.constant 0 : index
    %439 = vector.load %arg25[%c0_175, %c0_176] : memref<1x128xf32, #tpu.memory_space<vmem>>, vector<1x128xf32>
    %440 = vector.broadcast %439 : vector<1x128xf32> to vector<64x128xf32>
    %441 = arith.addf %438, %440 : vector<64x128xf32>
    %442 = arith.addf %389, %441 : vector<64x128xf32>
    %443 = vector.extract_strided_slice %442 {offsets = [0, 0], sizes = [1, 128], strides = [1, 1]} : vector<64x128xf32> to vector<1x128xf32>
    %c0_177 = arith.constant 0 : index
    %c0_178 = arith.constant 0 : index
    %444 = vector.load %arg26[%c0_177, %c0_178] : memref<1x128xf32, #tpu.memory_space<vmem>>, vector<1x128xf32>
    %c0_179 = arith.constant 0 : index
    %c0_180 = arith.constant 0 : index
    %445 = vector.load %arg27[%c0_179, %c0_180] : memref<1x128xf32, #tpu.memory_space<vmem>>, vector<1x128xf32>
    %446 = tpu.iota {dimensions = array<i32: 1>} : vector<1x128xi32>
    %c32_i32_181 = arith.constant 32 : i32
    %447 = vector.broadcast %c32_i32_181 : i32 to vector<1x128xi32>
    %448 = arith.cmpi slt, %446, %447 : vector<1x128xi32>
    %cst_182 = arith.constant 0.000000e+00 : f32
    %449 = vector.broadcast %cst_182 : f32 to vector<1x128xf32>
    %450 = arith.select %448, %443, %449 : vector<1x128xi1>, vector<1x128xf32>
    %cst_183 = arith.constant dense<0.000000e+00> : vector<1xf32>
    %451 = vector.multi_reduction <add>, %450, %cst_183 [1] : vector<1x128xf32> to vector<1xf32>
    %452 = vector.shape_cast %451 : vector<1xf32> to vector<1x1xf32>
    %cst_184 = arith.constant 3.125000e-02 : f32
    %453 = vector.broadcast %cst_184 : f32 to vector<1x1xf32>
    %454 = arith.mulf %452, %453 : vector<1x1xf32>
    %455 = vector.broadcast %454 : vector<1x1xf32> to vector<1x128xf32>
    %456 = arith.subf %443, %455 : vector<1x128xf32>
    %cst_185 = arith.constant 0.000000e+00 : f32
    %457 = vector.broadcast %cst_185 : f32 to vector<1x128xf32>
    %458 = arith.select %448, %456, %457 : vector<1x128xi1>, vector<1x128xf32>
    %459 = arith.mulf %458, %458 : vector<1x128xf32>
    %cst_186 = arith.constant dense<0.000000e+00> : vector<1xf32>
    %460 = vector.multi_reduction <add>, %459, %cst_186 [1] : vector<1x128xf32> to vector<1xf32>
    %461 = vector.shape_cast %460 : vector<1xf32> to vector<1x1xf32>
    %cst_187 = arith.constant 3.125000e-02 : f32
    %462 = vector.broadcast %cst_187 : f32 to vector<1x1xf32>
    %463 = arith.mulf %461, %462 : vector<1x1xf32>
    %cst_188 = arith.constant 9.99999974E-6 : f32
    %464 = vector.broadcast %cst_188 : f32 to vector<1x1xf32>
    %465 = arith.addf %463, %464 : vector<1x1xf32>
    %466 = math.rsqrt %465 : vector<1x1xf32>
    %467 = vector.broadcast %466 : vector<1x1xf32> to vector<1x128xf32>
    %468 = arith.mulf %458, %467 : vector<1x128xf32>
    %469 = arith.mulf %468, %444 : vector<1x128xf32>
    %470 = arith.addf %469, %445 : vector<1x128xf32>
    %471 = arith.truncf %470 : vector<1x128xf32> to vector<1x128xbf16>
    %c0_189 = arith.constant 0 : index
    %c0_190 = arith.constant 0 : index
    %472 = vector.load %arg28[%c0_189, %c0_190] : memref<128x128xbf16, #tpu.memory_space<vmem>>, vector<128x128xbf16>
    %cst_191 = arith.constant dense<0.000000e+00> : vector<1x128xf32>
    %473 = tpu.matmul %471, %472, %cst_191 {dimension_numbers = #tpu.dot_dimension_numbers<[1], [0], [0], [1], [0, 0, 1, 1], [], []>} : vector<1x128xbf16>, vector<128x128xbf16>, vector<1x128xf32> -> vector<1x128xf32>
    %c0_192 = arith.constant 0 : index
    %c0_193 = arith.constant 0 : index
    %474 = vector.load %arg30[%c0_192, %c0_193] : memref<2x128xf32, #tpu.memory_space<vmem>>, vector<1x128xf32>
    tpu.vector_store %arg30[%c0_192, %c0_193], %473 {strides = array<i32>} : memref<2x128xf32, #tpu.memory_space<vmem>>, vector<1x128xf32>,
    %475 = vector.extract_strided_slice %442 {offsets = [32, 0], sizes = [1, 128], strides = [1, 1]} : vector<64x128xf32> to vector<1x128xf32>
    %c0_194 = arith.constant 0 : index
    %c0_195 = arith.constant 0 : index
    %476 = vector.load %arg26[%c0_194, %c0_195] : memref<1x128xf32, #tpu.memory_space<vmem>>, vector<1x128xf32>
    %c0_196 = arith.constant 0 : index
    %c0_197 = arith.constant 0 : index
    %477 = vector.load %arg27[%c0_196, %c0_197] : memref<1x128xf32, #tpu.memory_space<vmem>>, vector<1x128xf32>
    %478 = tpu.iota {dimensions = array<i32: 1>} : vector<1x128xi32>
    %c32_i32_198 = arith.constant 32 : i32
    %479 = vector.broadcast %c32_i32_198 : i32 to vector<1x128xi32>
    %480 = arith.cmpi slt, %478, %479 : vector<1x128xi32>
    %cst_199 = arith.constant 0.000000e+00 : f32
    %481 = vector.broadcast %cst_199 : f32 to vector<1x128xf32>
    %482 = arith.select %480, %475, %481 : vector<1x128xi1>, vector<1x128xf32>
    %cst_200 = arith.constant dense<0.000000e+00> : vector<1xf32>
    %483 = vector.multi_reduction <add>, %482, %cst_200 [1] : vector<1x128xf32> to vector<1xf32>
    %484 = vector.shape_cast %483 : vector<1xf32> to vector<1x1xf32>
    %cst_201 = arith.constant 3.125000e-02 : f32
    %485 = vector.broadcast %cst_201 : f32 to vector<1x1xf32>
    %486 = arith.mulf %484, %485 : vector<1x1xf32>
    %487 = vector.broadcast %486 : vector<1x1xf32> to vector<1x128xf32>
    %488 = arith.subf %475, %487 : vector<1x128xf32>
    %cst_202 = arith.constant 0.000000e+00 : f32
    %489 = vector.broadcast %cst_202 : f32 to vector<1x128xf32>
    %490 = arith.select %480, %488, %489 : vector<1x128xi1>, vector<1x128xf32>
    %491 = arith.mulf %490, %490 : vector<1x128xf32>
    %cst_203 = arith.constant dense<0.000000e+00> : vector<1xf32>
    %492 = vector.multi_reduction <add>, %491, %cst_203 [1] : vector<1x128xf32> to vector<1xf32>
    %493 = vector.shape_cast %492 : vector<1xf32> to vector<1x1xf32>
    %cst_204 = arith.constant 3.125000e-02 : f32
    %494 = vector.broadcast %cst_204 : f32 to vector<1x1xf32>
    %495 = arith.mulf %493, %494 : vector<1x1xf32>
    %cst_205 = arith.constant 9.99999974E-6 : f32
    %496 = vector.broadcast %cst_205 : f32 to vector<1x1xf32>
    %497 = arith.addf %495, %496 : vector<1x1xf32>
    %498 = math.rsqrt %497 : vector<1x1xf32>
    %499 = vector.broadcast %498 : vector<1x1xf32> to vector<1x128xf32>
    %500 = arith.mulf %490, %499 : vector<1x128xf32>
    %501 = arith.mulf %500, %476 : vector<1x128xf32>
    %502 = arith.addf %501, %477 : vector<1x128xf32>
    %503 = arith.truncf %502 : vector<1x128xf32> to vector<1x128xbf16>
    %c0_206 = arith.constant 0 : index
    %c0_207 = arith.constant 0 : index
    %504 = vector.load %arg28[%c0_206, %c0_207] : memref<128x128xbf16, #tpu.memory_space<vmem>>, vector<128x128xbf16>
    %cst_208 = arith.constant dense<0.000000e+00> : vector<1x128xf32>
    %505 = tpu.matmul %503, %504, %cst_208 {dimension_numbers = #tpu.dot_dimension_numbers<[1], [0], [0], [1], [0, 0, 1, 1], [], []>} : vector<1x128xbf16>, vector<128x128xbf16>, vector<1x128xf32> -> vector<1x128xf32>
    %c1 = arith.constant 1 : index
    %c0_209 = arith.constant 0 : index
    %506 = vector.load %arg30[%c1, %c0_209] : memref<2x128xf32, #tpu.memory_space<vmem>>, vector<1x128xf32>
    tpu.vector_store %arg30[%c1, %c0_209], %505 {strides = array<i32>} : memref<2x128xf32, #tpu.memory_space<vmem>>, vector<1x128xf32>,
    return
  }
}

</mosaic_0001>

<llo_original>
// kernel: image_encoder_forward.4
$region0: #{image_encoder_forward.4}
  #allocation0 [shape = 'u32[]', space=smem, size = 0x4, offset = 0x4, fixed_abs, tag = 'smem constant byte address 0x4 - core index']
  #allocation1 [shape = 'u32[144,128]{1,0:T(1,128)}', space=vmem, size = 0x12000, scoped, tag = 'internal scratch']
  %s0 = inlined_call_operand.vmem [shape: f32[64,48], index: 0, kind: input, shape index: {}]
  %s1 = inlined_call_operand.vmem [shape: bf16[48,128], index: 1, kind: input, shape index: {}]
  %s2 = inlined_call_operand.vmem [shape: f32[64,128], index: 2, kind: input, shape index: {}]
  %s3 = inlined_call_operand.vmem [shape: f32[1,128], index: 3, kind: input, shape index: {}]
  %s4 = inlined_call_operand.vmem [shape: f32[1,128], index: 4, kind: input, shape index: {}]
  %s5 = inlined_call_operand.vmem [shape: f32[64,128], index: 5, kind: output, shape index: {}]
  %s6 = sld [smem:[#allocation0]]
  $region30: #{image_encoder_forward.4} parent=0
    _
  %s8 = ssub.s32 1, %s6
  %s9 = scalar_select 0, %s8, %s6
  // Predicated region
  $region2: #{image_encoder_forward.4} parent=0 // pred_check
    _
  $region3: #{image_encoder_forward.4} parent=0 // pred_check_branch
    %11 = sbr.rel (0) target = $region5
  $region4: #{image_encoder_forward.4} parent=0 // pred_region
    _
  $region5: #{image_encoder_forward.4} parent=0 // pred_fallthru
    _
  // Predicated region
  $region6: #{image_encoder_forward.4} parent=0 // pred_check
    _
  $region7: #{image_encoder_forward.4} parent=0 // pred_check_branch
    %13 = sbr.rel (0) target = $region9
  $region8: #{image_encoder_forward.4} parent=0 // pred_region
    _
  $region9: #{image_encoder_forward.4} parent=0 // pred_fallthru
    _
  // Predicated region
  $region10: #{image_encoder_forward.4} parent=0 // pred_check
    _
  $region11: #{image_encoder_forward.4} parent=0 // pred_check_branch
    %15 = sbr.rel (0) target = $region13
  $region12: #{image_encoder_forward.4} parent=0 // pred_region
    _
  $region13: #{image_encoder_forward.4} parent=0 // pred_fallthru
    _
  // Predicated region
  $region14: #{image_encoder_forward.4} parent=0 // pred_check
    _
  $region15: #{image_encoder_forward.4} parent=0 // pred_check_branch
    %17 = sbr.rel (0) target = $region17
  $region16: #{image_encoder_forward.4} parent=0 // pred_region
    _
  $region17: #{image_encoder_forward.4} parent=0 // pred_fallthru
    _
  // Predicated region
  $region18: #{image_encoder_forward.4} parent=0 // pred_check
    _
  $region19: #{image_encoder_forward.4} parent=0 // pred_check_branch
    %19 = sbr.rel (0) target = $region21
  $region20: #{image_encoder_forward.4} parent=0 // pred_region
    _
  $region21: #{image_encoder_forward.4} parent=0 // pred_fallthru
    _
  %v21 = vld [vmem:[%s0] sm:$0xff]
  %v22 = vld [vmem:[%s0 + $0x8] sm:$0xff]
  %v23 = vld [vmem:[%s0 + $0x10] sm:$0xff]
  %v24 = vld [vmem:[%s0 + $0x18] sm:$0xff]
  %v25 = vld [vmem:[%s0 + $0x20] sm:$0xff]
  %v26 = vld [vmem:[%s0 + $0x28] sm:$0xff]
  %v27 = vld [vmem:[%s0 + $0x30] sm:$0xff]
  %v28 = vld [vmem:[%s0 + $0x38] sm:$0xff]
  %v29 = vpack.c.bf16 %v22, %v21
  %v30 = vpack.c.bf16 %v24, %v23
  %v31 = vpack.c.bf16 %v26, %v25
  %v32 = vpack.c.bf16 %v28, %v27
  %v33 = vld [vmem:[%s1] sm:$0xf]
  %v34 = vld [vmem:[%s1 + $0x4] sm:$0xf]
  %v35 = vld [vmem:[%s1 + $0x8] sm:$0xf]
  %v36 = vld [vmem:[%s1 + $0xc] sm:$0xf]
  %v37 = vld [vmem:[%s1 + $0x10] sm:$0xf]
  %v38 = vld [vmem:[%s1 + $0x14] sm:$0xf]
  %v39 = vld [vmem:[%s2] sm:$0xff]
  %v40 = vld [vmem:[%s2 + $0x8] sm:$0xff]
  %v41 = vld [vmem:[%s2 + $0x10] sm:$0xff]
  %v42 = vld [vmem:[%s2 + $0x18] sm:$0xff]
  %v43 = vld [vmem:[%s2 + $0x20] sm:$0xff]
  %v44 = vld [vmem:[%s2 + $0x28] sm:$0xff]
  %v45 = vld [vmem:[%s2 + $0x30] sm:$0xff]
  %v46 = vld [vmem:[%s2 + $0x38] sm:$0xff]
  %v53 = vunpack.c.l.b16 %v33
  %v54 = vunpack.c.l.b16 %v34
  %v55 = vunpack.c.l.b16 %v35
  %v56 = vunpack.c.l.b16 %v36
  %v57 = vunpack.c.l.b16 %v37
  %v58 = vunpack.c.l.b16 %v38
  %v59 = vpack.c.b16 %v54, %v53
  %v60 = vpack.c.b16 %v56, %v55
  %v61 = vpack.c.b16 %v58, %v57
  %vm65 = vcmask 392192
  %v67 = vsel %vm65, %v29, 0
  %v70 = vsel %vm65, %v30, 0
  %v73 = vsel %vm65, %v31, 0
  %v76 = vsel %vm65, %v32, 0
  %78 = vmatprep.subr.bf16.mxu0 0
  %79 = vmatpush1.bf16.msra.mxu0 0
  %80 = vmatprep.subr.bf16.mxu0 0
  %81 = vmatpush1.bf16.msra.mxu0 0
  %82 = vmatprep.subr.bf16.mxu0 0
  %83 = vmatpush1.bf16.msra.mxu0 0
  %84 = vmatprep.subr.bf16.mxu0 0
  %85 = vmatpush1.bf16.msra.mxu0 0
  %86 = vmatprep.subr.bf16.mxu0 0
  %87 = vmatpush1.bf16.msra.mxu0 0
  %88 = vmatprep.subr.bf16.mxu0 0
  %89 = vmatpush1.bf16.msra.mxu0 %v61
  %90 = vmatprep.subr.bf16.mxu0 0
  %91 = vmatpush1.bf16.msra.mxu0 %v60
  %92 = vmatprep.subr.bf16.mxu0 0
  %93 = vmatpush1.bf16.msra.mxu0 %v59
  %94 = vmatprep.subr.bf16.mxu0 0
  %95 = vmatpush2.bf16.msra.mxu0 0
  %96 = vmatprep.subr.bf16.mxu0 0
  %97 = vmatpush2.bf16.msra.mxu0 0
  %98 = vmatprep.subr.bf16.mxu0 0
  %99 = vmatpush2.bf16.msra.mxu0 0
  %100 = vmatprep.subr.bf16.mxu0 0
  %101 = vmatpush2.bf16.msra.mxu0 0
  %102 = vmatprep.subr.bf16.mxu0 0
  %103 = vmatpush2.bf16.msra.mxu0 0
  %104 = vmatprep.subr.bf16.mxu0 0
  %105 = vmatpush2.bf16.msra.mxu0 0
  %106 = vmatprep.subr.bf16.mxu0 0
  %107 = vmatpush2.bf16.msra.mxu0 0
  %108 = vmatprep.subr.bf16.mxu0 0
  %109 = vmatpush2.bf16.msra.mxu0 0
  %110 = vmatprep.mubr.bf16.mxu0 0
  %111 = vmatmul.mubr.bf16.gmra.mxu0 %v67
  %v112 = vpop.f32.mrf.mxu0
  %v113 = vadd.f32 %v39, %v112
  %v114 = vpop.f32.mrf.mxu0
  %v115 = vpop.f32.mrf.mxu0
  %v116 = vadd.f32 %v40, %v115
  %v117 = vpop.f32.mrf.mxu0
  %118 = vmatprep.mubr.bf16.mxu0 0
  %119 = vmatmul.mubr.bf16.gmra.mxu0 %v70
  %v120 = vpop.f32.mrf.mxu0
  %v121 = vadd.f32 %v41, %v120
  %v122 = vpop.f32.mrf.mxu0
  %v123 = vpop.f32.mrf.mxu0
  %v124 = vadd.f32 %v42, %v123
  %v125 = vpop.f32.mrf.mxu0
  %126 = vmatprep.mubr.bf16.mxu0 0
  %127 = vmatmul.mubr.bf16.gmra.mxu0 %v73
  %v128 = vpop.f32.mrf.mxu0
  %v129 = vadd.f32 %v43, %v128
  %v130 = vpop.f32.mrf.mxu0
  %v131 = vpop.f32.mrf.mxu0
  %v132 = vadd.f32 %v44, %v131
  %v133 = vpop.f32.mrf.mxu0
  %134 = vmatprep.mubr.bf16.mxu0 0
  %135 = vmatmul.mubr.bf16.gmra.mxu0 %v76
  %v136 = vpop.f32.mrf.mxu0
  %v137 = vadd.f32 %v45, %v136
  %v138 = vpop.f32.mrf.mxu0
  %v139 = vpop.f32.mrf.mxu0
  %v140 = vadd.f32 %v46, %v139
  %v141 = vpop.f32.mrf.mxu0
  %142 = vdwg.mxu0
  %v143 = vld [vmem:[%s3] sm:$0x1]
  %v144 = vld [vmem:[%s4] sm:$0x1]
  %v145 = vlaneseq
  %v146 = vand.u32 %v145, 127
  %vm147 = vcmp.lt.s32.totalorder %v146, 32
  %v148 = vsel %vm147, 1, 0
  %vm149 = vcmp.eq.s32.totalorder %v148, 1
  %v150 = vsel %vm149, %v113, 0.0
  %v151 = vsel %vm149, %v116, 0.0
  %v152 = vsel %vm149, %v121, 0.0
  %v153 = vsel %vm149, %v124, 0.0
  %v154 = vsel %vm149, %v129, 0.0
  %v155 = vsel %vm149, %v132, 0.0
  %v156 = vsel %vm149, %v137, 0.0
  %v157 = vsel %vm149, %v140, 0.0
  %158 = vadd.xlane.f32.xlu0 %v150
  %v159 = vpop.xlane.xlu0 %158
  %160 = vadd.xlane.f32.xlu0 %v151
  %v161 = vpop.xlane.xlu0 %160
  %162 = vadd.xlane.f32.xlu0 %v152
  %v163 = vpop.xlane.xlu0 %162
  %164 = vadd.xlane.f32.xlu0 %v153
  %v165 = vpop.xlane.xlu0 %164
  %166 = vadd.xlane.f32.xlu0 %v154
  %v167 = vpop.xlane.xlu0 %166
  %168 = vadd.xlane.f32.xlu0 %v155
  %v169 = vpop.xlane.xlu0 %168
  %170 = vadd.xlane.f32.xlu0 %v156
  %v171 = vpop.xlane.xlu0 %170
  %172 = vadd.xlane.f32.xlu0 %v157
  %v173 = vpop.xlane.xlu0 %172
  %v174 = vmul.f32 %v159, 0.03125
  %v175 = vmul.f32 %v161, 0.03125
  %v176 = vmul.f32 %v163, 0.03125
  %v177 = vmul.f32 %v165, 0.03125
  %v178 = vmul.f32 %v167, 0.03125
  %v179 = vmul.f32 %v169, 0.03125
  %v180 = vmul.f32 %v171, 0.03125
  %v181 = vmul.f32 %v173, 0.03125
  %v182 = vsub.f32 %v113, %v174
  %v183 = vsub.f32 %v116, %v175
  %v184 = vsub.f32 %v121, %v176
  %v185 = vsub.f32 %v124, %v177
  %v186 = vsub.f32 %v129, %v178
  %v187 = vsub.f32 %v132, %v179
  %v188 = vsub.f32 %v137, %v180
  %v189 = vsub.f32 %v140, %v181
  %v190 = vsel %vm149, %v182, 0.0
  %v191 = vsel %vm149, %v183, 0.0
  %v192 = vsel %vm149, %v184, 0.0
  %v193 = vsel %vm149, %v185, 0.0
  %v194 = vsel %vm149, %v186, 0.0
  %v195 = vsel %vm149, %v187, 0.0
  %v196 = vsel %vm149, %v188, 0.0
  %v197 = vsel %vm149, %v189, 0.0
  %v198 = vmul.f32 %v190, %v190
  %v199 = vmul.f32 %v191, %v191
  %v200 = vmul.f32 %v192, %v192
  %v201 = vmul.f32 %v193, %v193
  %v202 = vmul.f32 %v194, %v194
  %v203 = vmul.f32 %v195, %v195
  %v204 = vmul.f32 %v196, %v196
  %v205 = vmul.f32 %v197, %v197
  %206 = vadd.xlane.f32.xlu0 %v198
  %v207 = vpop.xlane.xlu0 %206
  %208 = vadd.xlane.f32.xlu0 %v199
  %v209 = vpop.xlane.xlu0 %208
  %210 = vadd.xlane.f32.xlu0 %v200
  %v211 = vpop.xlane.xlu0 %210
  %212 = vadd.xlane.f32.xlu0 %v201
  %v213 = vpop.xlane.xlu0 %212
  %214 = vadd.xlane.f32.xlu0 %v202
  %v215 = vpop.xlane.xlu0 %214
  %216 = vadd.xlane.f32.xlu0 %v203
  %v217 = vpop.xlane.xlu0 %216
  %218 = vadd.xlane.f32.xlu0 %v204
  %v219 = vpop.xlane.xlu0 %218
  %220 = vadd.xlane.f32.xlu0 %v205
  %v221 = vpop.xlane.xlu0 %220
  %v222 = vmul.f32 %v207, 0.03125
  %v223 = vmul.f32 %v209, 0.03125
  %v224 = vmul.f32 %v211, 0.03125
  %v225 = vmul.f32 %v213, 0.03125
  %v226 = vmul.f32 %v215, 0.03125
  %v227 = vmul.f32 %v217, 0.03125
  %v228 = vmul.f32 %v219, 0.03125
  %v229 = vmul.f32 %v221, 0.03125
  %v230 = vadd.f32 %v222, 1e-05
  %v231 = vadd.f32 %v223, 1e-05
  %v232 = vadd.f32 %v224, 1e-05
  %v233 = vadd.f32 %v225, 1e-05
  %v234 = vadd.f32 %v226, 1e-05
  %v235 = vadd.f32 %v227, 1e-05
  %v236 = vadd.f32 %v228, 1e-05
  %v237 = vadd.f32 %v229, 1e-05
  %v238 = vrsqrt.pop %v230
  %v239 = vrsqrt.pop %v231
  %v240 = vrsqrt.pop %v232
  %v241 = vrsqrt.pop %v233
  %v242 = vrsqrt.pop %v234
  %v243 = vrsqrt.pop %v235
  %v244 = vrsqrt.pop %v236
  %v245 = vrsqrt.pop %v237
  %v246 = vmul.f32 %v190, %v238
  %v247 = vmul.f32 %v191, %v239
  %v248 = vmul.f32 %v192, %v240
  %v249 = vmul.f32 %v193, %v241
  %v250 = vmul.f32 %v194, %v242
  %v251 = vmul.f32 %v195, %v243
  %v252 = vmul.f32 %v196, %v244
  %v253 = vmul.f32 %v197, %v245
  %v255 = vlaneseq
  %v256 = vshrl.u32 %v255, 7
  %v257 = vsub.s32 0, %v256
  %v258 = vrot.slane %v143, %v257
  %v260 = vmul.f32 %v246, %v258
  %v261 = vmul.f32 %v247, %v258
  %v262 = vmul.f32 %v248, %v258
  %v263 = vmul.f32 %v249, %v258
  %v264 = vmul.f32 %v250, %v258
  %v265 = vmul.f32 %v251, %v258
  %v266 = vmul.f32 %v252, %v258
  %v267 = vmul.f32 %v253, %v258
  %v269 = vlaneseq
  %v270 = vshrl.u32 %v269, 7
  %v271 = vsub.s32 0, %v270
  %v272 = vrot.slane %v144, %v271
  %v274 = vadd.f32 %v260, %v272
  %v275 = vadd.f32 %v261, %v272
  %v276 = vadd.f32 %v262, %v272
  %v277 = vadd.f32 %v263, %v272
  %v278 = vadd.f32 %v264, %v272
  %v279 = vadd.f32 %v265, %v272
  %v280 = vadd.f32 %v266, %v272
  %v281 = vadd.f32 %v267, %v272
  %282 = vst [vmem:[%s5] sm:$0xff] %v274
  %283 = vst [vmem:[%s5 + $0x8] sm:$0xff] %v275
  %284 = vst [vmem:[%s5 + $0x10] sm:$0xff] %v276
  %285 = vst [vmem:[%s5 + $0x18] sm:$0xff] %v277
  %286 = vst [vmem:[%s5 + $0x20] sm:$0xff] %v278
  %287 = vst [vmem:[%s5 + $0x28] sm:$0xff] %v279
  %288 = vst [vmem:[%s5 + $0x30] sm:$0xff] %v280
  %289 = vst [vmem:[%s5 + $0x38] sm:$0xff] %v281
  // Predicated region
  $region22: #{image_encoder_forward.4} parent=0 // pred_check
    _
  $region23: #{image_encoder_forward.4} parent=0 // pred_check_branch
    %291 = sbr.rel (0) target = $region25
  $region24: #{image_encoder_forward.4} parent=0 // pred_region
    _
  $region25: #{image_encoder_forward.4} parent=0 // pred_fallthru
    _
  // Predicated region
  $region26: #{image_encoder_forward.4} parent=0 // pred_check
    _
  $region27: #{image_encoder_forward.4} parent=0 // pred_check_branch
    %293 = sbr.rel (0) target = $region29
  $region28: #{image_encoder_forward.4} parent=0 // pred_region
    _
  $region29: #{image_encoder_forward.4} parent=0 // pred_fallthru
    _

// kernel: image_encoder_forward.5
$region0: #{image_encoder_forward.5}
  #allocation0 [shape = 'u32[]', space=smem, size = 0x4, offset = 0x4, fixed_abs, tag = 'smem constant byte address 0x4 - core index']
  #allocation1 [shape = 'u32[144,128]{1,0:T(1,128)}', space=vmem, size = 0x12000, scoped, tag = 'internal scratch']
  %s0 = inlined_call_operand.vmem [shape: f32[64,128], index: 0, kind: input, shape index: {}]
  %s1 = inlined_call_operand.vmem [shape: f32[64,1], index: 1, kind: input, shape index: {}]
  %s2 = inlined_call_operand.vmem [shape: f32[64,128], index: 2, kind: input, shape index: {}]
  %s3 = inlined_call_operand.vmem [shape: f32[1,128], index: 3, kind: input, shape index: {}]
  %s4 = inlined_call_operand.vmem [shape: f32[1,128], index: 4, kind: input, shape index: {}]
  %s5 = inlined_call_operand.vmem [shape: bf16[128,96], index: 5, kind: input, shape index: {}]
  %s6 = inlined_call_operand.vmem [shape: f32[1,96], index: 6, kind: input, shape index: {}]
  %s7 = inlined_call_operand.vmem [shape: bf16[32,128], index: 7, kind: input, shape index: {}]
  %s8 = inlined_call_operand.vmem [shape: f32[1,128], index: 8, kind: input, shape index: {}]
  %s9 = inlined_call_operand.vmem [shape: f32[1,128], index: 9, kind: input, shape index: {}]
  %s10 = inlined_call_operand.vmem [shape: f32[1,128], index: 10, kind: input, shape index: {}]
  %s11 = inlined_call_operand.vmem [shape: bf16[128,128], index: 11, kind: input, shape index: {}]
  %s12 = inlined_call_operand.vmem [shape: f32[1,128], index: 12, kind: input, shape index: {}]
  %s13 = inlined_call_operand.vmem [shape: bf16[128,128], index: 13, kind: input, shape index: {}]
  %s14 = inlined_call_operand.vmem [shape: f32[1,128], index: 14, kind: input, shape index: {}]
  %s15 = inlined_call_operand.vmem [shape: f32[64,128], index: 15, kind: output, shape index: {}]
  %s16 = sld [smem:[#allocation0]]
  $region70: #{image_encoder_forward.5} parent=0
    _
  %s18 = ssub.s32 1, %s16
  %s19 = scalar_select 0, %s18, %s16
  // Predicated region
  $region2: #{image_encoder_forward.5} parent=0 // pred_check
    _
  $region3: #{image_encoder_forward.5} parent=0 // pred_check_branch
    %21 = sbr.rel (0) target = $region5
  $region4: #{image_encoder_forward.5} parent=0 // pred_region
    _
  $region5: #{image_encoder_forward.5} parent=0 // pred_fallthru
    _
  // Predicated region
  $region6: #{image_encoder_forward.5} parent=0 // pred_check
    _
  $region7: #{image_encoder_forward.5} parent=0 // pred_check_branch
    %23 = sbr.rel (0) target = $region9
  $region8: #{image_encoder_forward.5} parent=0 // pred_region
    _
  $region9: #{image_encoder_forward.5} parent=0 // pred_fallthru
    _
  // Predicated region
  $region10: #{image_encoder_forward.5} parent=0 // pred_check
    _
  $region11: #{image_encoder_forward.5} parent=0 // pred_check_branch
    %25 = sbr.rel (0) target = $region13
  $region12: #{image_encoder_forward.5} parent=0 // pred_region
    _
  $region13: #{image_encoder_forward.5} parent=0 // pred_fallthru
    _
  // Predicated region
  $region14: #{image_encoder_forward.5} parent=0 // pred_check
    _
  $region15: #{image_encoder_forward.5} parent=0 // pred_check_branch
    %27 = sbr.rel (0) target = $region17
  $region16: #{image_encoder_forward.5} parent=0 // pred_region
    _
  $region17: #{image_encoder_forward.5} parent=0 // pred_fallthru
    _
  // Predicated region
  $region18: #{image_encoder_forward.5} parent=0 // pred_check
    _
  $region19: #{image_encoder_forward.5} parent=0 // pred_check_branch
    %29 = sbr.rel (0) target = $region21
  $region20: #{image_encoder_forward.5} parent=0 // pred_region
    _
  $region21: #{image_encoder_forward.5} parent=0 // pred_fallthru
    _
  // Predicated region
  $region22: #{image_encoder_forward.5} parent=0 // pred_check
    _
  $region23: #{image_encoder_forward.5} parent=0 // pred_check_branch
    %31 = sbr.rel (0) target = $region25
  $region24: #{image_encoder_forward.5} parent=0 // pred_region
    _
  $region25: #{image_encoder_forward.5} parent=0 // pred_fallthru
    _
  // Predicated region
  $region26: #{image_encoder_forward.5} parent=0 // pred_check
    _
  $region27: #{image_encoder_forward.5} parent=0 // pred_check_branch
    %33 = sbr.rel (0) target = $region29
  $region28: #{image_encoder_forward.5} parent=0 // pred_region
    _
  $region29: #{image_encoder_forward.5} parent=0 // pred_fallthru
    _
  // Predicated region
  $region30: #{image_encoder_forward.5} parent=0 // pred_check
    _
  $region31: #{image_encoder_forward.5} parent=0 // pred_check_branch
    %35 = sbr.rel (0) target = $region33
  $region32: #{image_encoder_forward.5} parent=0 // pred_region
    _
  $region33: #{image_encoder_forward.5} parent=0 // pred_fallthru
    _
  // Predicated region
  $region34: #{image_encoder_forward.5} parent=0 // pred_check
    _
  $region35: #{image_encoder_forward.5} parent=0 // pred_check_branch
    %37 = sbr.rel (0) target = $region37
  $region36: #{image_encoder_forward.5} parent=0 // pred_region
    _
  $region37: #{image_encoder_forward.5} parent=0 // pred_fallthru
    _
  // Predicated region
  $region38: #{image_encoder_forward.5} parent=0 // pred_check
    _
  $region39: #{image_encoder_forward.5} parent=0 // pred_check_branch
    %39 = sbr.rel (0) target = $region41
  $region40: #{image_encoder_forward.5} parent=0 // pred_region
    _
  $region41: #{image_encoder_forward.5} parent=0 // pred_fallthru
    _
  // Predicated region
  $region42: #{image_encoder_forward.5} parent=0 // pred_check
    _
  $region43: #{image_encoder_forward.5} parent=0 // pred_check_branch
    %41 = sbr.rel (0) target = $region45
  $region44: #{image_encoder_forward.5} parent=0 // pred_region
    _
  $region45: #{image_encoder_forward.5} parent=0 // pred_fallthru
    _
  // Predicated region
  $region46: #{image_encoder_forward.5} parent=0 // pred_check
    _
  $region47: #{image_encoder_forward.5} parent=0 // pred_check_branch
    %43 = sbr.rel (0) target = $region49
  $region48: #{image_encoder_forward.5} parent=0 // pred_region
    _
  $region49: #{image_encoder_forward.5} parent=0 // pred_fallthru
    _
  // Predicated region
  $region50: #{image_encoder_forward.5} parent=0 // pred_check
    _
  $region51: #{image_encoder_forward.5} parent=0 // pred_check_branch
    %45 = sbr.rel (0) target = $region53
  $region52: #{image_encoder_forward.5} parent=0 // pred_region
    _
  $region53: #{image_encoder_forward.5} parent=0 // pred_fallthru
    _
  // Predicated region
  $region54: #{image_encoder_forward.5} parent=0 // pred_check
    _
  $region55: #{image_encoder_forward.5} parent=0 // pred_check_branch
    %47 = sbr.rel (0) target = $region57
  $region56: #{image_encoder_forward.5} parent=0 // pred_region
    _
  $region57: #{image_encoder_forward.5} parent=0 // pred_fallthru
    _
  // Predicated region
  $region58: #{image_encoder_forward.5} parent=0 // pred_check
    _
  $region59: #{image_encoder_forward.5} parent=0 // pred_check_branch
    %49 = sbr.rel (0) target = $region61
  $region60: #{image_encoder_forward.5} parent=0 // pred_region
    _
  $region61: #{image_encoder_forward.5} parent=0 // pred_fallthru
    _
  %v51 = vld [vmem:[%s0] sm:$0xff]
  %v52 = vld [vmem:[%s0 + $0x8] sm:$0xff]
  %v53 = vld [vmem:[%s0 + $0x10] sm:$0xff]
  %v54 = vld [vmem:[%s0 + $0x18] sm:$0xff]
  %v55 = vld [vmem:[%s0 + $0x20] sm:$0xff]
  %v56 = vld [vmem:[%s0 + $0x28] sm:$0xff]
  %v57 = vld [vmem:[%s0 + $0x30] sm:$0xff]
  %v58 = vld [vmem:[%s0 + $0x38] sm:$0xff]
  %v59 = vld [vmem:[%s1] sm:$0xff]
  %v60 = vld [vmem:[%s1 + $0x8] sm:$0xff]
  %v61 = vld [vmem:[%s1 + $0x10] sm:$0xff]
  %v62 = vld [vmem:[%s1 + $0x18] sm:$0xff]
  %v63 = vld [vmem:[%s1 + $0x20] sm:$0xff]
  %v64 = vld [vmem:[%s1 + $0x28] sm:$0xff]
  %v65 = vld [vmem:[%s1 + $0x30] sm:$0xff]
  %v66 = vld [vmem:[%s1 + $0x38] sm:$0xff]
  %68 = vset.pattern.permute.xlu0 0
  %69 = vperm.xlu0 %68, %v59
  %v70 = vpop.permute.xlu0 %69
  %73 = vset.pattern.permute.xlu0 0
  %74 = vperm.xlu0 %73, %v60
  %v75 = vpop.permute.xlu0 %74
  %78 = vset.pattern.permute.xlu0 0
  %79 = vperm.xlu0 %78, %v61
  %v80 = vpop.permute.xlu0 %79
  %83 = vset.pattern.permute.xlu0 0
  %84 = vperm.xlu0 %83, %v62
  %v85 = vpop.permute.xlu0 %84
  %88 = vset.pattern.permute.xlu0 0
  %89 = vperm.xlu0 %88, %v63
  %v90 = vpop.permute.xlu0 %89
  %93 = vset.pattern.permute.xlu0 0
  %94 = vperm.xlu0 %93, %v64
  %v95 = vpop.permute.xlu0 %94
  %98 = vset.pattern.permute.xlu0 0
  %99 = vperm.xlu0 %98, %v65
  %v100 = vpop.permute.xlu0 %99
  %103 = vset.pattern.permute.xlu0 0
  %104 = vperm.xlu0 %103, %v66
  %v105 = vpop.permute.xlu0 %104
  %v107 = vmul.f32 %v51, %v70
  %v108 = vmul.f32 %v52, %v75
  %v109 = vmul.f32 %v53, %v80
  %v110 = vmul.f32 %v54, %v85
  %v111 = vmul.f32 %v55, %v90
  %v112 = vmul.f32 %v56, %v95
  %v113 = vmul.f32 %v57, %v100
  %v114 = vmul.f32 %v58, %v105
  %v115 = vld [vmem:[%s2] sm:$0xff]
  %v116 = vld [vmem:[%s2 + $0x8] sm:$0xff]
  %v117 = vld [vmem:[%s2 + $0x10] sm:$0xff]
  %v118 = vld [vmem:[%s2 + $0x18] sm:$0xff]
  %v119 = vld [vmem:[%s2 + $0x20] sm:$0xff]
  %v120 = vld [vmem:[%s2 + $0x28] sm:$0xff]
  %v121 = vld [vmem:[%s2 + $0x30] sm:$0xff]
  %v122 = vld [vmem:[%s2 + $0x38] sm:$0xff]
  %v123 = vadd.f32 %v107, %v115
  %v124 = vadd.f32 %v108, %v116
  %v125 = vadd.f32 %v109, %v117
  %v126 = vadd.f32 %v110, %v118
  %v127 = vadd.f32 %v111, %v119
  %v128 = vadd.f32 %v112, %v120
  %v129 = vadd.f32 %v113, %v121
  %v130 = vadd.f32 %v114, %v122
  %v131 = vld [vmem:[%s3] sm:$0x1]
  %v132 = vld [vmem:[%s4] sm:$0x1]
  %v133 = vlaneseq
  %v134 = vand.u32 %v133, 127
  %vm135 = vcmp.lt.s32.totalorder %v134, 32
  %v136 = vsel %vm135, 1, 0
  %vm137 = vcmp.eq.s32.totalorder %v136, 1
  %v138 = vsel %vm137, %v123, 0.0
  %v139 = vsel %vm137, %v124, 0.0
  %v140 = vsel %vm137, %v125, 0.0
  %v141 = vsel %vm137, %v126, 0.0
  %v142 = vsel %vm137, %v127, 0.0
  %v143 = vsel %vm137, %v128, 0.0
  %v144 = vsel %vm137, %v129, 0.0
  %v145 = vsel %vm137, %v130, 0.0
  %146 = vadd.xlane.f32.xlu0 %v138
  %v147 = vpop.xlane.xlu0 %146
  %148 = vadd.xlane.f32.xlu0 %v139
  %v149 = vpop.xlane.xlu0 %148
  %150 = vadd.xlane.f32.xlu0 %v140
  %v151 = vpop.xlane.xlu0 %150
  %152 = vadd.xlane.f32.xlu0 %v141
  %v153 = vpop.xlane.xlu0 %152
  %154 = vadd.xlane.f32.xlu0 %v142
  %v155 = vpop.xlane.xlu0 %154
  %156 = vadd.xlane.f32.xlu0 %v143
  %v157 = vpop.xlane.xlu0 %156
  %158 = vadd.xlane.f32.xlu0 %v144
  %v159 = vpop.xlane.xlu0 %158
  %160 = vadd.xlane.f32.xlu0 %v145
  %v161 = vpop.xlane.xlu0 %160
  %v162 = vmul.f32 %v147, 0.03125
  %v163 = vmul.f32 %v149, 0.03125
  %v164 = vmul.f32 %v151, 0.03125
  %v165 = vmul.f32 %v153, 0.03125
  %v166 = vmul.f32 %v155, 0.03125
  %v167 = vmul.f32 %v157, 0.03125
  %v168 = vmul.f32 %v159, 0.03125
  %v169 = vmul.f32 %v161, 0.03125
  %v170 = vsub.f32 %v123, %v162
  %v171 = vsub.f32 %v124, %v163
  %v172 = vsub.f32 %v125, %v164
  %v173 = vsub.f32 %v126, %v165
  %v174 = vsub.f32 %v127, %v166
  %v175 = vsub.f32 %v128, %v167
  %v176 = vsub.f32 %v129, %v168
  %v177 = vsub.f32 %v130, %v169
  %v178 = vsel %vm137, %v170, 0.0
  %v179 = vsel %vm137, %v171, 0.0
  %v180 = vsel %vm137, %v172, 0.0
  %v181 = vsel %vm137, %v173, 0.0
  %v182 = vsel %vm137, %v174, 0.0
  %v183 = vsel %vm137, %v175, 0.0
  %v184 = vsel %vm137, %v176, 0.0
  %v185 = vsel %vm137, %v177, 0.0
  %v186 = vmul.f32 %v178, %v178
  %v187 = vmul.f32 %v179, %v179
  %v188 = vmul.f32 %v180, %v180
  %v189 = vmul.f32 %v181, %v181
  %v190 = vmul.f32 %v182, %v182
  %v191 = vmul.f32 %v183, %v183
  %v192 = vmul.f32 %v184, %v184
  %v193 = vmul.f32 %v185, %v185
  %194 = vadd.xlane.f32.xlu0 %v186
  %v195 = vpop.xlane.xlu0 %194
  %196 = vadd.xlane.f32.xlu0 %v187
  %v197 = vpop.xlane.xlu0 %196
  %198 = vadd.xlane.f32.xlu0 %v188
  %v199 = vpop.xlane.xlu0 %198
  %200 = vadd.xlane.f32.xlu0 %v189
  %v201 = vpop.xlane.xlu0 %200
  %202 = vadd.xlane.f32.xlu0 %v190
  %v203 = vpop.xlane.xlu0 %202
  %204 = vadd.xlane.f32.xlu0 %v191
  %v205 = vpop.xlane.xlu0 %204
  %206 = vadd.xlane.f32.xlu0 %v192
  %v207 = vpop.xlane.xlu0 %206
  %208 = vadd.xlane.f32.xlu0 %v193
  %v209 = vpop.xlane.xlu0 %208
  %v210 = vmul.f32 %v195, 0.03125
  %v211 = vmul.f32 %v197, 0.03125
  %v212 = vmul.f32 %v199, 0.03125
  %v213 = vmul.f32 %v201, 0.03125
  %v214 = vmul.f32 %v203, 0.03125
  %v215 = vmul.f32 %v205, 0.03125
  %v216 = vmul.f32 %v207, 0.03125
  %v217 = vmul.f32 %v209, 0.03125
  %v218 = vadd.f32 %v210, 1e-05
  %v219 = vadd.f32 %v211, 1e-05
  %v220 = vadd.f32 %v212, 1e-05
  %v221 = vadd.f32 %v213, 1e-05
  %v222 = vadd.f32 %v214, 1e-05
  %v223 = vadd.f32 %v215, 1e-05
  %v224 = vadd.f32 %v216, 1e-05
  %v225 = vadd.f32 %v217, 1e-05
  %v226 = vrsqrt.pop %v218
  %v227 = vrsqrt.pop %v219
  %v228 = vrsqrt.pop %v220
  %v229 = vrsqrt.pop %v221
  %v230 = vrsqrt.pop %v222
  %v231 = vrsqrt.pop %v223
  %v232 = vrsqrt.pop %v224
  %v233 = vrsqrt.pop %v225
  %v234 = vmul.f32 %v178, %v226
  %v235 = vmul.f32 %v179, %v227
  %v236 = vmul.f32 %v180, %v228
  %v237 = vmul.f32 %v181, %v229
  %v238 = vmul.f32 %v182, %v230
  %v239 = vmul.f32 %v183, %v231
  %v240 = vmul.f32 %v184, %v232
  %v241 = vmul.f32 %v185, %v233
  %v243 = vlaneseq
  %v244 = vshrl.u32 %v243, 7
  %v245 = vsub.s32 0, %v244
  %v246 = vrot.slane %v131, %v245
  %v248 = vmul.f32 %v234, %v246
  %v249 = vmul.f32 %v235, %v246
  %v250 = vmul.f32 %v236, %v246
  %v251 = vmul.f32 %v237, %v246
  %v252 = vmul.f32 %v238, %v246
  %v253 = vmul.f32 %v239, %v246
  %v254 = vmul.f32 %v240, %v246
  %v255 = vmul.f32 %v241, %v246
  %v257 = vlaneseq
  %v258 = vshrl.u32 %v257, 7
  %v259 = vsub.s32 0, %v258
  %v260 = vrot.slane %v132, %v259
  %v262 = vadd.f32 %v248, %v260
  %v263 = vadd.f32 %v249, %v260
  %v264 = vadd.f32 %v250, %v260
  %v265 = vadd.f32 %v251, %v260
  %v266 = vadd.f32 %v252, %v260
  %v267 = vadd.f32 %v253, %v260
  %v268 = vadd.f32 %v254, %v260
  %v269 = vadd.f32 %v255, %v260
  %v270 = vpack.c.bf16 %v263, %v262
  %v271 = vpack.c.bf16 %v265, %v264
  %v272 = vpack.c.bf16 %v267, %v266
  %v273 = vpack.c.bf16 %v269, %v268
  %v274 = vld [vmem:[%s5] sm:$0xf]
  %v275 = vld [vmem:[%s5 + $0x4] sm:$0xf]
  %v276 = vld [vmem:[%s5 + $0x8] sm:$0xf]
  %v277 = vld [vmem:[%s5 + $0xc] sm:$0xf]
  %v278 = vld [vmem:[%s5 + $0x10] sm:$0xf]
  %v279 = vld [vmem:[%s5 + $0x14] sm:$0xf]
  %v280 = vld [vmem:[%s5 + $0x18] sm:$0xf]
  %v281 = vld [vmem:[%s5 + $0x1c] sm:$0xf]
  %v282 = vld [vmem:[%s5 + $0x20] sm:$0xf]
  %v283 = vld [vmem:[%s5 + $0x24] sm:$0xf]
  %v284 = vld [vmem:[%s5 + $0x28] sm:$0xf]
  %v285 = vld [vmem:[%s5 + $0x2c] sm:$0xf]
  %v286 = vld [vmem:[%s5 + $0x30] sm:$0xf]
  %v287 = vld [vmem:[%s5 + $0x34] sm:$0xf]
  %v288 = vld [vmem:[%s5 + $0x38] sm:$0xf]
  %v289 = vld [vmem:[%s5 + $0x3c] sm:$0xf]
  %v290 = vld [vmem:[%s6] sm:$0x1]
  %v292 = vlaneseq
  %v293 = vshrl.u32 %v292, 7
  %v294 = vsub.s32 0, %v293
  %v295 = vrot.slane %v290, %v294
  %v313 = vunpack.c.l.b16 %v274
  %v314 = vunpack.c.l.b16 %v275
  %v315 = vunpack.c.l.b16 %v276
  %v316 = vunpack.c.l.b16 %v277
  %v317 = vunpack.c.l.b16 %v278
  %v318 = vunpack.c.l.b16 %v279
  %v319 = vunpack.c.l.b16 %v280
  %v320 = vunpack.c.l.b16 %v281
  %v321 = vunpack.c.l.b16 %v282
  %v322 = vunpack.c.l.b16 %v283
  %v323 = vunpack.c.l.b16 %v284
  %v324 = vunpack.c.l.b16 %v285
  %v325 = vunpack.c.l.b16 %v286
  %v326 = vunpack.c.l.b16 %v287
  %v327 = vunpack.c.l.b16 %v288
  %v328 = vunpack.c.l.b16 %v289
  %v329 = vpack.c.b16 %v314, %v313
  %v330 = vpack.c.b16 %v316, %v315
  %v331 = vpack.c.b16 %v318, %v317
  %v332 = vpack.c.b16 %v320, %v319
  %v333 = vpack.c.b16 %v322, %v321
  %v334 = vpack.c.b16 %v324, %v323
  %v335 = vpack.c.b16 %v326, %v325
  %v336 = vpack.c.b16 %v328, %v327
  %345 = vmatprep.subr.bf16.mxu0 0
  %346 = vmatpush1.bf16.msra.mxu0 %v336
  %347 = vmatprep.subr.bf16.mxu0 0
  %348 = vmatpush1.bf16.msra.mxu0 %v335
  %349 = vmatprep.subr.bf16.mxu0 0
  %350 = vmatpush1.bf16.msra.mxu0 %v334
  %351 = vmatprep.subr.bf16.mxu0 0
  %352 = vmatpush1.bf16.msra.mxu0 %v333
  %353 = vmatprep.subr.bf16.mxu0 0
  %354 = vmatpush1.bf16.msra.mxu0 %v332
  %355 = vmatprep.subr.bf16.mxu0 0
  %356 = vmatpush1.bf16.msra.mxu0 %v331
  %357 = vmatprep.subr.bf16.mxu0 0
  %358 = vmatpush1.bf16.msra.mxu0 %v330
  %359 = vmatprep.subr.bf16.mxu0 0
  %360 = vmatpush1.bf16.msra.mxu0 %v329
  %361 = vmatprep.subr.bf16.mxu0 0
  %362 = vmatpush2.bf16.msra.mxu0 0
  %363 = vmatprep.subr.bf16.mxu0 0
  %364 = vmatpush2.bf16.msra.mxu0 0
  %365 = vmatprep.subr.bf16.mxu0 0
  %366 = vmatpush2.bf16.msra.mxu0 0
  %367 = vmatprep.subr.bf16.mxu0 0
  %368 = vmatpush2.bf16.msra.mxu0 0
  %369 = vmatprep.subr.bf16.mxu0 0
  %370 = vmatpush2.bf16.msra.mxu0 0
  %371 = vmatprep.subr.bf16.mxu0 0
  %372 = vmatpush2.bf16.msra.mxu0 0
  %373 = vmatprep.subr.bf16.mxu0 0
  %374 = vmatpush2.bf16.msra.mxu0 0
  %375 = vmatprep.subr.bf16.mxu0 0
  %376 = vmatpush2.bf16.msra.mxu0 0
  %377 = vmatprep.mubr.bf16.mxu0 0
  %378 = vmatmul.mubr.bf16.gmra.mxu0 %v270
  %v379 = vpop.f32.mrf.mxu0
  %v380 = vadd.f32 %v295, %v379
  %v381 = vpop.f32.mrf.mxu0
  %v382 = vpop.f32.mrf.mxu0
  %v383 = vadd.f32 %v295, %v382
  %v384 = vpop.f32.mrf.mxu0
  %385 = vmatprep.mubr.bf16.mxu0 0
  %386 = vmatmul.mubr.bf16.gmra.mxu0 %v271
  %v387 = vpop.f32.mrf.mxu0
  %v388 = vadd.f32 %v295, %v387
  %v389 = vpop.f32.mrf.mxu0
  %v390 = vpop.f32.mrf.mxu0
  %v391 = vadd.f32 %v295, %v390
  %v392 = vpop.f32.mrf.mxu0
  %393 = vmatprep.mubr.bf16.mxu0 0
  %394 = vmatmul.mubr.bf16.gmra.mxu0 %v272
  %v395 = vpop.f32.mrf.mxu0
  %v396 = vadd.f32 %v295, %v395
  %v397 = vpop.f32.mrf.mxu0
  %v398 = vpop.f32.mrf.mxu0
  %v399 = vadd.f32 %v295, %v398
  %v400 = vpop.f32.mrf.mxu0
  %401 = vmatprep.mubr.bf16.mxu0 0
  %402 = vmatmul.mubr.bf16.gmra.mxu0 %v273
  %v403 = vpop.f32.mrf.mxu0
  %v404 = vadd.f32 %v295, %v403
  %v405 = vpop.f32.mrf.mxu0
  %v406 = vpop.f32.mrf.mxu0
  %v407 = vadd.f32 %v295, %v406
  %v408 = vpop.f32.mrf.mxu0
  %409 = vdwg.mxu0
  %vm410 = vcmp.lt.s32.totalorder %v134, 21
  %v411 = vpack.c.bf16 %v383, %v380
  %v412 = vpack.c.bf16 %v391, %v388
  %415 = vrot.lane.b32.xlu0 %v411, 96
  %v416 = vpop.permute.xlu0 %415
  %417 = vrot.lane.b32.xlu0 %v412, 96
  %v418 = vpop.permute.xlu0 %417
  %vm419 = vcmask 130048
  %v421 = vsel %vm419, %v411, 0
  %v424 = vsel %vm419, %v412, 0
  %v427 = vsel %vm419, %v416, 0
  %v430 = vsel %vm419, %v418, 0
  %432 = vmatprep.subr.bf16.mxu0 0
  %433 = vmatpush1.bf16.xpose.msra.mxu0 0
  %434 = vmatprep.subr.bf16.mxu0 0
  %435 = vmatpush1.bf16.xpose.msra.mxu0 0
  %436 = vmatprep.subr.bf16.mxu0 0
  %437 = vmatpush1.bf16.xpose.msra.mxu0 0
  %438 = vmatprep.subr.bf16.mxu0 0
  %439 = vmatpush1.bf16.xpose.msra.mxu0 0
  %440 = vmatprep.subr.bf16.mxu0 0
  %441 = vmatpush1.bf16.xpose.msra.mxu0 0
  %442 = vmatprep.subr.bf16.mxu0 0
  %443 = vmatpush1.bf16.xpose.msra.mxu0 0
  %444 = vmatprep.subr.bf16.mxu0 0
  %445 = vmatpush1.bf16.xpose.msra.mxu0 %v430
  %446 = vmatprep.subr.bf16.mxu0 0
  %447 = vmatpush1.bf16.xpose.msra.mxu0 %v427
  %448 = vmatprep.subr.bf16.mxu0 0
  %449 = vmatpush2.bf16.xpose.msra.mxu0 0
  %450 = vmatprep.subr.bf16.mxu0 0
  %451 = vmatpush2.bf16.xpose.msra.mxu0 0
  %452 = vmatprep.subr.bf16.mxu0 0
  %453 = vmatpush2.bf16.xpose.msra.mxu0 0
  %454 = vmatprep.subr.bf16.mxu0 0
  %455 = vmatpush2.bf16.xpose.msra.mxu0 0
  %456 = vmatprep.subr.bf16.mxu0 0
  %457 = vmatpush2.bf16.xpose.msra.mxu0 0
  %458 = vmatprep.subr.bf16.mxu0 0
  %459 = vmatpush2.bf16.xpose.msra.mxu0 0
  %460 = vmatprep.subr.bf16.mxu0 0
  %461 = vmatpush2.bf16.xpose.msra.mxu0 0
  %462 = vmatprep.subr.bf16.mxu0 0
  %463 = vmatpush2.bf16.xpose.msra.mxu0 0
  %464 = vmatprep.mubr.bf16.mxu0 0
  %465 = vmatmul.mubr.bf16.gmra.mxu0 %v421
  %v466 = vpop.f32.mrf.mxu0
  %v467 = vadd.f32 0.0, %v466
  %v468 = vpop.f32.mrf.mxu0
  %v469 = vpop.f32.mrf.mxu0
  %v470 = vadd.f32 0.0, %v469
  %v471 = vpop.f32.mrf.mxu0
  %472 = vmatprep.mubr.bf16.mxu0 0
  %473 = vmatmul.mubr.bf16.gmra.mxu0 %v424
  %v474 = vpop.f32.mrf.mxu0
  %v475 = vadd.f32 0.0, %v474
  %v476 = vpop.f32.mrf.mxu0
  %v477 = vpop.f32.mrf.mxu0
  %v478 = vadd.f32 0.0, %v477
  %v479 = vpop.f32.mrf.mxu0
  %480 = vdwg.mxu0
  %v481 = vsel %vm410, 1, 0
  %vm482 = vcmp.eq.s32.totalorder %v481, 1
  %v483 = vsel %vm482, %v467, -1e+30
  %v484 = vsel %vm482, %v470, -1e+30
  %v485 = vsel %vm482, %v475, -1e+30
  %v486 = vsel %vm482, %v478, -1e+30
  %vm487 = vcmask 261120
  %v488 = vsel %vm487, %v483, -inf
  %489 = vmax.xlane.f32.xlu0 %v488
  %v490 = vpop.xlane.xlu0 %489
  %v491 = vsel %vm487, %v484, -inf
  %492 = vmax.xlane.f32.xlu0 %v491
  %v493 = vpop.xlane.xlu0 %492
  %v494 = vsel %vm487, %v485, -inf
  %495 = vmax.xlane.f32.xlu0 %v494
  %v496 = vpop.xlane.xlu0 %495
  %v497 = vsel %vm487, %v486, -inf
  %498 = vmax.xlane.f32.xlu0 %v497
  %v499 = vpop.xlane.xlu0 %498
  %v500 = vsub.f32 %v483, %v490
  %v501 = vsub.f32 %v484, %v493
  %v502 = vsub.f32 %v485, %v496
  %v503 = vsub.f32 %v486, %v499
  %v504 = vmul.f32 %v500, 1.442695
  %v505 = vpow.pop %v504
  %v506 = vmul.f32 %v501, 1.442695
  %v507 = vpow.pop %v506
  %v508 = vmul.f32 %v502, 1.442695
  %v509 = vpow.pop %v508
  %v510 = vmul.f32 %v503, 1.442695
  %v511 = vpow.pop %v510
  %v512 = vsel %vm487, %v505, 0.0
  %513 = vadd.xlane.f32.xlu0 %v512
  %v514 = vpop.xlane.xlu0 %513
  %v515 = vsel %vm487, %v507, 0.0
  %516 = vadd.xlane.f32.xlu0 %v515
  %v517 = vpop.xlane.xlu0 %516
  %v518 = vsel %vm487, %v509, 0.0
  %519 = vadd.xlane.f32.xlu0 %v518
  %v520 = vpop.xlane.xlu0 %519
  %v521 = vsel %vm487, %v511, 0.0
  %522 = vadd.xlane.f32.xlu0 %v521
  %v523 = vpop.xlane.xlu0 %522
  %v524 = vpack.c.bf16 %v507, %v505
  %v525 = vpack.c.bf16 %v511, %v509
  %526 = vrot.lane.b32.xlu0 %v411, 64
  %v527 = vpop.permute.xlu0 %526
  %528 = vrot.lane.b32.xlu0 %v412, 64
  %v529 = vpop.permute.xlu0 %528
  %v533 = vsel %vm487, %v524, 0
  %v536 = vsel %vm487, %v525, 0
  %538 = vmatprep.subr.bf16.mxu0 0
  %539 = vmatpush1.bf16.msra.mxu0 0
  %540 = vmatprep.subr.bf16.mxu0 0
  %541 = vmatpush1.bf16.msra.mxu0 0
  %542 = vmatprep.subr.bf16.mxu0 0
  %543 = vmatpush1.bf16.msra.mxu0 0
  %544 = vmatprep.subr.bf16.mxu0 0
  %545 = vmatpush1.bf16.msra.mxu0 0
  %546 = vmatprep.subr.bf16.mxu0 0
  %547 = vmatpush1.bf16.msra.mxu0 0
  %548 = vmatprep.subr.bf16.mxu0 0
  %549 = vmatpush1.bf16.msra.mxu0 0
  %550 = vmatprep.subr.bf16.mxu0 0
  %551 = vmatpush1.bf16.msra.mxu0 %v529
  %552 = vmatprep.subr.bf16.mxu0 0
  %553 = vmatpush1.bf16.msra.mxu0 %v527
  %554 = vmatprep.subr.bf16.mxu0 0
  %555 = vmatpush2.bf16.msra.mxu0 0
  %556 = vmatprep.subr.bf16.mxu0 0
  %557 = vmatpush2.bf16.msra.mxu0 0
  %558 = vmatprep.subr.bf16.mxu0 0
  %559 = vmatpush2.bf16.msra.mxu0 0
  %560 = vmatprep.subr.bf16.mxu0 0
  %561 = vmatpush2.bf16.msra.mxu0 0
  %562 = vmatprep.subr.bf16.mxu0 0
  %563 = vmatpush2.bf16.msra.mxu0 0
  %564 = vmatprep.subr.bf16.mxu0 0
  %565 = vmatpush2.bf16.msra.mxu0 0
  %566 = vmatprep.subr.bf16.mxu0 0
  %567 = vmatpush2.bf16.msra.mxu0 0
  %568 = vmatprep.subr.bf16.mxu0 0
  %569 = vmatpush2.bf16.msra.mxu0 0
  %570 = vmatprep.mubr.bf16.mxu0 0
  %571 = vmatmul.mubr.bf16.gmra.mxu0 %v533
  %v572 = vpop.f32.mrf.mxu0
  %v573 = vadd.f32 0.0, %v572
  %v574 = vpop.f32.mrf.mxu0
  %v575 = vpop.f32.mrf.mxu0
  %v576 = vadd.f32 0.0, %v575
  %v577 = vpop.f32.mrf.mxu0
  %578 = vmatprep.mubr.bf16.mxu0 0
  %579 = vmatmul.mubr.bf16.gmra.mxu0 %v536
  %v580 = vpop.f32.mrf.mxu0
  %v581 = vadd.f32 0.0, %v580
  %v582 = vpop.f32.mrf.mxu0
  %v583 = vpop.f32.mrf.mxu0
  %v584 = vadd.f32 0.0, %v583
  %v585 = vpop.f32.mrf.mxu0
  %586 = vdwg.mxu0
  %v587 = vrcp.pop %v514
  %v588 = vrcp.pop %v517
  %v589 = vrcp.pop %v520
  %v590 = vrcp.pop %v523
  %v591 = vmul.f32 %v573, %v587
  %v592 = vmul.f32 %v576, %v588
  %v593 = vmul.f32 %v581, %v589
  %v594 = vmul.f32 %v584, %v590
  %595 = vrot.lane.b32.xlu0 %v411, 112
  %v596 = vpop.permute.xlu0 %595
  %597 = vrot.lane.b32.xlu0 %v412, 112
  %v598 = vpop.permute.xlu0 %597
  %599 = vrot.lane.b32.xlu0 %v411, 80
  %v600 = vpop.permute.xlu0 %599
  %601 = vrot.lane.b32.xlu0 %v412, 80
  %v602 = vpop.permute.xlu0 %601
  %v604 = vsel %vm419, %v596, 0
  %v607 = vsel %vm419, %v598, 0
  %v610 = vsel %vm419, %v600, 0
  %v613 = vsel %vm419, %v602, 0
  %615 = vmatprep.subr.bf16.mxu0 0
  %616 = vmatpush1.bf16.xpose.msra.mxu0 0
  %617 = vmatprep.subr.bf16.mxu0 0
  %618 = vmatpush1.bf16.xpose.msra.mxu0 0
  %619 = vmatprep.subr.bf16.mxu0 0
  %620 = vmatpush1.bf16.xpose.msra.mxu0 0
  %621 = vmatprep.subr.bf16.mxu0 0
  %622 = vmatpush1.bf16.xpose.msra.mxu0 0
  %623 = vmatprep.subr.bf16.mxu0 0
  %624 = vmatpush1.bf16.xpose.msra.mxu0 0
  %625 = vmatprep.subr.bf16.mxu0 0
  %626 = vmatpush1.bf16.xpose.msra.mxu0 0
  %627 = vmatprep.subr.bf16.mxu0 0
  %628 = vmatpush1.bf16.xpose.msra.mxu0 %v613
  %629 = vmatprep.subr.bf16.mxu0 0
  %630 = vmatpush1.bf16.xpose.msra.mxu0 %v610
  %631 = vmatprep.subr.bf16.mxu0 0
  %632 = vmatpush2.bf16.xpose.msra.mxu0 0
  %633 = vmatprep.subr.bf16.mxu0 0
  %634 = vmatpush2.bf16.xpose.msra.mxu0 0
  %635 = vmatprep.subr.bf16.mxu0 0
  %636 = vmatpush2.bf16.xpose.msra.mxu0 0
  %637 = vmatprep.subr.bf16.mxu0 0
  %638 = vmatpush2.bf16.xpose.msra.mxu0 0
  %639 = vmatprep.subr.bf16.mxu0 0
  %640 = vmatpush2.bf16.xpose.msra.mxu0 0
  %641 = vmatprep.subr.bf16.mxu0 0
  %642 = vmatpush2.bf16.xpose.msra.mxu0 0
  %643 = vmatprep.subr.bf16.mxu0 0
  %644 = vmatpush2.bf16.xpose.msra.mxu0 0
  %645 = vmatprep.subr.bf16.mxu0 0
  %646 = vmatpush2.bf16.xpose.msra.mxu0 0
  %647 = vmatprep.mubr.bf16.mxu0 0
  %648 = vmatmul.mubr.bf16.gmra.mxu0 %v604
  %v649 = vpop.f32.mrf.mxu0
  %v650 = vadd.f32 0.0, %v649
  %v651 = vpop.f32.mrf.mxu0
  %v652 = vpop.f32.mrf.mxu0
  %v653 = vadd.f32 0.0, %v652
  %v654 = vpop.f32.mrf.mxu0
  %655 = vmatprep.mubr.bf16.mxu0 0
  %656 = vmatmul.mubr.bf16.gmra.mxu0 %v607
  %v657 = vpop.f32.mrf.mxu0
  %v658 = vadd.f32 0.0, %v657
  %v659 = vpop.f32.mrf.mxu0
  %v660 = vpop.f32.mrf.mxu0
  %v661 = vadd.f32 0.0, %v660
  %v662 = vpop.f32.mrf.mxu0
  %663 = vdwg.mxu0
  %v664 = vsel %vm482, %v650, -1e+30
  %v665 = vsel %vm482, %v653, -1e+30
  %v666 = vsel %vm482, %v658, -1e+30
  %v667 = vsel %vm482, %v661, -1e+30
  %v668 = vsel %vm487, %v664, -inf
  %669 = vmax.xlane.f32.xlu0 %v668
  %v670 = vpop.xlane.xlu0 %669
  %v671 = vsel %vm487, %v665, -inf
  %672 = vmax.xlane.f32.xlu0 %v671
  %v673 = vpop.xlane.xlu0 %672
  %v674 = vsel %vm487, %v666, -inf
  %675 = vmax.xlane.f32.xlu0 %v674
  %v676 = vpop.xlane.xlu0 %675
  %v677 = vsel %vm487, %v667, -inf
  %678 = vmax.xlane.f32.xlu0 %v677
  %v679 = vpop.xlane.xlu0 %678
  %v680 = vsub.f32 %v664, %v670
  %v681 = vsub.f32 %v665, %v673
  %v682 = vsub.f32 %v666, %v676
  %v683 = vsub.f32 %v667, %v679
  %v684 = vmul.f32 %v680, 1.442695
  %v685 = vpow.pop %v684
  %v686 = vmul.f32 %v681, 1.442695
  %v687 = vpow.pop %v686
  %v688 = vmul.f32 %v682, 1.442695
  %v689 = vpow.pop %v688
  %v690 = vmul.f32 %v683, 1.442695
  %v691 = vpow.pop %v690
  %v692 = vsel %vm487, %v685, 0.0
  %693 = vadd.xlane.f32.xlu0 %v692
  %v694 = vpop.xlane.xlu0 %693
  %v695 = vsel %vm487, %v687, 0.0
  %696 = vadd.xlane.f32.xlu0 %v695
  %v697 = vpop.xlane.xlu0 %696
  %v698 = vsel %vm487, %v689, 0.0
  %699 = vadd.xlane.f32.xlu0 %v698
  %v700 = vpop.xlane.xlu0 %699
  %v701 = vsel %vm487, %v691, 0.0
  %702 = vadd.xlane.f32.xlu0 %v701
  %v703 = vpop.xlane.xlu0 %702
  %v704 = vpack.c.bf16 %v687, %v685
  %v705 = vpack.c.bf16 %v691, %v689
  %v707 = vsel %vm487, %v704, 0
  %v710 = vsel %vm487, %v705, 0
  %712 = vmatprep.subr.bf16.mxu0 0
  %713 = vmatpush1.bf16.msra.mxu0 0
  %714 = vmatprep.subr.bf16.mxu0 0
  %715 = vmatpush1.bf16.msra.mxu0 0
  %716 = vmatprep.subr.bf16.mxu0 0
  %717 = vmatpush1.bf16.msra.mxu0 0
  %718 = vmatprep.subr.bf16.mxu0 0
  %719 = vmatpush1.bf16.msra.mxu0 0
  %720 = vmatprep.subr.bf16.mxu0 0
  %721 = vmatpush1.bf16.msra.mxu0 0
  %722 = vmatprep.subr.bf16.mxu0 0
  %723 = vmatpush1.bf16.msra.mxu0 0
  %724 = vmatprep.subr.bf16.mxu0 0
  %725 = vmatpush1.bf16.msra.mxu0 %v529
  %726 = vmatprep.subr.bf16.mxu0 0
  %727 = vmatpush1.bf16.msra.mxu0 %v527
  %728 = vmatprep.subr.bf16.mxu0 0
  %729 = vmatpush2.bf16.msra.mxu0 0
  %730 = vmatprep.subr.bf16.mxu0 0
  %731 = vmatpush2.bf16.msra.mxu0 0
  %732 = vmatprep.subr.bf16.mxu0 0
  %733 = vmatpush2.bf16.msra.mxu0 0
  %734 = vmatprep.subr.bf16.mxu0 0
  %735 = vmatpush2.bf16.msra.mxu0 0
  %736 = vmatprep.subr.bf16.mxu0 0
  %737 = vmatpush2.bf16.msra.mxu0 0
  %738 = vmatprep.subr.bf16.mxu0 0
  %739 = vmatpush2.bf16.msra.mxu0 0
  %740 = vmatprep.subr.bf16.mxu0 0
  %741 = vmatpush2.bf16.msra.mxu0 0
  %742 = vmatprep.subr.bf16.mxu0 0
  %743 = vmatpush2.bf16.msra.mxu0 0
  %744 = vmatprep.mubr.bf16.mxu0 0
  %745 = vmatmul.mubr.bf16.gmra.mxu0 %v707
  %v746 = vpop.f32.mrf.mxu0
  %v747 = vadd.f32 0.0, %v746
  %v748 = vpop.f32.mrf.mxu0
  %v749 = vpop.f32.mrf.mxu0
  %v750 = vadd.f32 0.0, %v749
  %v751 = vpop.f32.mrf.mxu0
  %752 = vmatprep.mubr.bf16.mxu0 0
  %753 = vmatmul.mubr.bf16.gmra.mxu0 %v710
  %v754 = vpop.f32.mrf.mxu0
  %v755 = vadd.f32 0.0, %v754
  %v756 = vpop.f32.mrf.mxu0
  %v757 = vpop.f32.mrf.mxu0
  %v758 = vadd.f32 0.0, %v757
  %v759 = vpop.f32.mrf.mxu0
  %760 = vdwg.mxu0
  %v761 = vrcp.pop %v694
  %v762 = vrcp.pop %v697
  %v763 = vrcp.pop %v700
  %v764 = vrcp.pop %v703
  %v765 = vmul.f32 %v747, %v761
  %v766 = vmul.f32 %v750, %v762
  %v767 = vmul.f32 %v755, %v763
  %v768 = vmul.f32 %v758, %v764
  %vm769 = vcmp.ge.s32.totalorder %v134, 16
  %v770 = vsel %vm769, %v765, %v591
  %v771 = vsel %vm769, %v766, %v592
  %v772 = vsel %vm769, %v767, %v593
  %v773 = vsel %vm769, %v768, %v594
  %v774 = vpack.c.bf16 %v399, %v396
  %v775 = vpack.c.bf16 %v407, %v404
  %778 = vrot.lane.b32.xlu0 %v774, 96
  %v779 = vpop.permute.xlu0 %778
  %780 = vrot.lane.b32.xlu0 %v775, 96
  %v781 = vpop.permute.xlu0 %780
  %v783 = vsel %vm419, %v774, 0
  %v786 = vsel %vm419, %v775, 0
  %v789 = vsel %vm419, %v779, 0
  %v792 = vsel %vm419, %v781, 0
  %794 = vmatprep.subr.bf16.mxu0 0
  %795 = vmatpush1.bf16.xpose.msra.mxu0 0
  %796 = vmatprep.subr.bf16.mxu0 0
  %797 = vmatpush1.bf16.xpose.msra.mxu0 0
  %798 = vmatprep.subr.bf16.mxu0 0
  %799 = vmatpush1.bf16.xpose.msra.mxu0 0
  %800 = vmatprep.subr.bf16.mxu0 0
  %801 = vmatpush1.bf16.xpose.msra.mxu0 0
  %802 = vmatprep.subr.bf16.mxu0 0
  %803 = vmatpush1.bf16.xpose.msra.mxu0 0
  %804 = vmatprep.subr.bf16.mxu0 0
  %805 = vmatpush1.bf16.xpose.msra.mxu0 0
  %806 = vmatprep.subr.bf16.mxu0 0
  %807 = vmatpush1.bf16.xpose.msra.mxu0 %v792
  %808 = vmatprep.subr.bf16.mxu0 0
  %809 = vmatpush1.bf16.xpose.msra.mxu0 %v789
  %810 = vmatprep.subr.bf16.mxu0 0
  %811 = vmatpush2.bf16.xpose.msra.mxu0 0
  %812 = vmatprep.subr.bf16.mxu0 0
  %813 = vmatpush2.bf16.xpose.msra.mxu0 0
  %814 = vmatprep.subr.bf16.mxu0 0
  %815 = vmatpush2.bf16.xpose.msra.mxu0 0
  %816 = vmatprep.subr.bf16.mxu0 0
  %817 = vmatpush2.bf16.xpose.msra.mxu0 0
  %818 = vmatprep.subr.bf16.mxu0 0
  %819 = vmatpush2.bf16.xpose.msra.mxu0 0
  %820 = vmatprep.subr.bf16.mxu0 0
  %821 = vmatpush2.bf16.xpose.msra.mxu0 0
  %822 = vmatprep.subr.bf16.mxu0 0
  %823 = vmatpush2.bf16.xpose.msra.mxu0 0
  %824 = vmatprep.subr.bf16.mxu0 0
  %825 = vmatpush2.bf16.xpose.msra.mxu0 0
  %826 = vmatprep.mubr.bf16.mxu0 0
  %827 = vmatmul.mubr.bf16.gmra.mxu0 %v783
  %v828 = vpop.f32.mrf.mxu0
  %v829 = vadd.f32 0.0, %v828
  %v830 = vpop.f32.mrf.mxu0
  %v831 = vpop.f32.mrf.mxu0
  %v832 = vadd.f32 0.0, %v831
  %v833 = vpop.f32.mrf.mxu0
  %834 = vmatprep.mubr.bf16.mxu0 0
  %835 = vmatmul.mubr.bf16.gmra.mxu0 %v786
  %v836 = vpop.f32.mrf.mxu0
  %v837 = vadd.f32 0.0, %v836
  %v838 = vpop.f32.mrf.mxu0
  %v839 = vpop.f32.mrf.mxu0
  %v840 = vadd.f32 0.0, %v839
  %v841 = vpop.f32.mrf.mxu0
  %842 = vdwg.mxu0
  %v843 = vsel %vm482, %v829, -1e+30
  %v844 = vsel %vm482, %v832, -1e+30
  %v845 = vsel %vm482, %v837, -1e+30
  %v846 = vsel %vm482, %v840, -1e+30
  %v847 = vsel %vm487, %v843, -inf
  %848 = vmax.xlane.f32.xlu0 %v847
  %v849 = vpop.xlane.xlu0 %848
  %v850 = vsel %vm487, %v844, -inf
  %851 = vmax.xlane.f32.xlu0 %v850
  %v852 = vpop.xlane.xlu0 %851
  %v853 = vsel %vm487, %v845, -inf
  %854 = vmax.xlane.f32.xlu0 %v853
  %v855 = vpop.xlane.xlu0 %854
  %v856 = vsel %vm487, %v846, -inf
  %857 = vmax.xlane.f32.xlu0 %v856
  %v858 = vpop.xlane.xlu0 %857
  %v859 = vsub.f32 %v843, %v849
  %v860 = vsub.f32 %v844, %v852
  %v861 = vsub.f32 %v845, %v855
  %v862 = vsub.f32 %v846, %v858
  %v863 = vmul.f32 %v859, 1.442695
  %v864 = vpow.pop %v863
  %v865 = vmul.f32 %v860, 1.442695
  %v866 = vpow.pop %v865
  %v867 = vmul.f32 %v861, 1.442695
  %v868 = vpow.pop %v867
  %v869 = vmul.f32 %v862, 1.442695
  %v870 = vpow.pop %v869
  %v871 = vsel %vm487, %v864, 0.0
  %872 = vadd.xlane.f32.xlu0 %v871
  %v873 = vpop.xlane.xlu0 %872
  %v874 = vsel %vm487, %v866, 0.0
  %875 = vadd.xlane.f32.xlu0 %v874
  %v876 = vpop.xlane.xlu0 %875
  %v877 = vsel %vm487, %v868, 0.0
  %878 = vadd.xlane.f32.xlu0 %v877
  %v879 = vpop.xlane.xlu0 %878
  %v880 = vsel %vm487, %v870, 0.0
  %881 = vadd.xlane.f32.xlu0 %v880
  %v882 = vpop.xlane.xlu0 %881
  %v883 = vpack.c.bf16 %v866, %v864
  %v884 = vpack.c.bf16 %v870, %v868
  %885 = vrot.lane.b32.xlu0 %v774, 64
  %v886 = vpop.permute.xlu0 %885
  %887 = vrot.lane.b32.xlu0 %v775, 64
  %v888 = vpop.permute.xlu0 %887
  %v892 = vsel %vm487, %v883, 0
  %v895 = vsel %vm487, %v884, 0
  %897 = vmatprep.subr.bf16.mxu0 0
  %898 = vmatpush1.bf16.msra.mxu0 0
  %899 = vmatprep.subr.bf16.mxu0 0
  %900 = vmatpush1.bf16.msra.mxu0 0
  %901 = vmatprep.subr.bf16.mxu0 0
  %902 = vmatpush1.bf16.msra.mxu0 0
  %903 = vmatprep.subr.bf16.mxu0 0
  %904 = vmatpush1.bf16.msra.mxu0 0
  %905 = vmatprep.subr.bf16.mxu0 0
  %906 = vmatpush1.bf16.msra.mxu0 0
  %907 = vmatprep.subr.bf16.mxu0 0
  %908 = vmatpush1.bf16.msra.mxu0 0
  %909 = vmatprep.subr.bf16.mxu0 0
  %910 = vmatpush1.bf16.msra.mxu0 %v888
  %911 = vmatprep.subr.bf16.mxu0 0
  %912 = vmatpush1.bf16.msra.mxu0 %v886
  %913 = vmatprep.subr.bf16.mxu0 0
  %914 = vmatpush2.bf16.msra.mxu0 0
  %915 = vmatprep.subr.bf16.mxu0 0
  %916 = vmatpush2.bf16.msra.mxu0 0
  %917 = vmatprep.subr.bf16.mxu0 0
  %918 = vmatpush2.bf16.msra.mxu0 0
  %919 = vmatprep.subr.bf16.mxu0 0
  %920 = vmatpush2.bf16.msra.mxu0 0
  %921 = vmatprep.subr.bf16.mxu0 0
  %922 = vmatpush2.bf16.msra.mxu0 0
  %923 = vmatprep.subr.bf16.mxu0 0
  %924 = vmatpush2.bf16.msra.mxu0 0
  %925 = vmatprep.subr.bf16.mxu0 0
  %926 = vmatpush2.bf16.msra.mxu0 0
  %927 = vmatprep.subr.bf16.mxu0 0
  %928 = vmatpush2.bf16.msra.mxu0 0
  %929 = vmatprep.mubr.bf16.mxu0 0
  %930 = vmatmul.mubr.bf16.gmra.mxu0 %v892
  %v931 = vpop.f32.mrf.mxu0
  %v932 = vadd.f32 0.0, %v931
  %v933 = vpop.f32.mrf.mxu0
  %v934 = vpop.f32.mrf.mxu0
  %v935 = vadd.f32 0.0, %v934
  %v936 = vpop.f32.mrf.mxu0
  %937 = vmatprep.mubr.bf16.mxu0 0
  %938 = vmatmul.mubr.bf16.gmra.mxu0 %v895
  %v939 = vpop.f32.mrf.mxu0
  %v940 = vadd.f32 0.0, %v939
  %v941 = vpop.f32.mrf.mxu0
  %v942 = vpop.f32.mrf.mxu0
  %v943 = vadd.f32 0.0, %v942
  %v944 = vpop.f32.mrf.mxu0
  %945 = vdwg.mxu0
  %v946 = vrcp.pop %v873
  %v947 = vrcp.pop %v876
  %v948 = vrcp.pop %v879
  %v949 = vrcp.pop %v882
  %v950 = vmul.f32 %v932, %v946
  %v951 = vmul.f32 %v935, %v947
  %v952 = vmul.f32 %v940, %v948
  %v953 = vmul.f32 %v943, %v949
  %954 = vrot.lane.b32.xlu0 %v774, 112
  %v955 = vpop.permute.xlu0 %954
  %956 = vrot.lane.b32.xlu0 %v775, 112
  %v957 = vpop.permute.xlu0 %956
  %958 = vrot.lane.b32.xlu0 %v774, 80
  %v959 = vpop.permute.xlu0 %958
  %960 = vrot.lane.b32.xlu0 %v775, 80
  %v961 = vpop.permute.xlu0 %960
  %v963 = vsel %vm419, %v955, 0
  %v966 = vsel %vm419, %v957, 0
  %v969 = vsel %vm419, %v959, 0
  %v972 = vsel %vm419, %v961, 0
  %974 = vmatprep.subr.bf16.mxu0 0
  %975 = vmatpush1.bf16.xpose.msra.mxu0 0
  %976 = vmatprep.subr.bf16.mxu0 0
  %977 = vmatpush1.bf16.xpose.msra.mxu0 0
  %978 = vmatprep.subr.bf16.mxu0 0
  %979 = vmatpush1.bf16.xpose.msra.mxu0 0
  %980 = vmatprep.subr.bf16.mxu0 0
  %981 = vmatpush1.bf16.xpose.msra.mxu0 0
  %982 = vmatprep.subr.bf16.mxu0 0
  %983 = vmatpush1.bf16.xpose.msra.mxu0 0
  %984 = vmatprep.subr.bf16.mxu0 0
  %985 = vmatpush1.bf16.xpose.msra.mxu0 0
  %986 = vmatprep.subr.bf16.mxu0 0
  %987 = vmatpush1.bf16.xpose.msra.mxu0 %v972
  %988 = vmatprep.subr.bf16.mxu0 0
  %989 = vmatpush1.bf16.xpose.msra.mxu0 %v969
  %990 = vmatprep.subr.bf16.mxu0 0
  %991 = vmatpush2.bf16.xpose.msra.mxu0 0
  %992 = vmatprep.subr.bf16.mxu0 0
  %993 = vmatpush2.bf16.xpose.msra.mxu0 0
  %994 = vmatprep.subr.bf16.mxu0 0
  %995 = vmatpush2.bf16.xpose.msra.mxu0 0
  %996 = vmatprep.subr.bf16.mxu0 0
  %997 = vmatpush2.bf16.xpose.msra.mxu0 0
  %998 = vmatprep.subr.bf16.mxu0 0
  %999 = vmatpush2.bf16.xpose.msra.mxu0 0
  %1000 = vmatprep.subr.bf16.mxu0 0
  %1001 = vmatpush2.bf16.xpose.msra.mxu0 0
  %1002 = vmatprep.subr.bf16.mxu0 0
  %1003 = vmatpush2.bf16.xpose.msra.mxu0 0
  %1004 = vmatprep.subr.bf16.mxu0 0
  %1005 = vmatpush2.bf16.xpose.msra.mxu0 0
  %1006 = vmatprep.mubr.bf16.mxu0 0
  %1007 = vmatmul.mubr.bf16.gmra.mxu0 %v963
  %v1008 = vpop.f32.mrf.mxu0
  %v1009 = vadd.f32 0.0, %v1008
  %v1010 = vpop.f32.mrf.mxu0
  %v1011 = vpop.f32.mrf.mxu0
  %v1012 = vadd.f32 0.0, %v1011
  %v1013 = vpop.f32.mrf.mxu0
  %1014 = vmatprep.mubr.bf16.mxu0 0
  %1015 = vmatmul.mubr.bf16.gmra.mxu0 %v966
  %v1016 = vpop.f32.mrf.mxu0
  %v1017 = vadd.f32 0.0, %v1016
  %v1018 = vpop.f32.mrf.mxu0
  %v1019 = vpop.f32.mrf.mxu0
  %v1020 = vadd.f32 0.0, %v1019
  %v1021 = vpop.f32.mrf.mxu0
  %1022 = vdwg.mxu0
  %v1023 = vsel %vm482, %v1009, -1e+30
  %v1024 = vsel %vm482, %v1012, -1e+30
  %v1025 = vsel %vm482, %v1017, -1e+30
  %v1026 = vsel %vm482, %v1020, -1e+30
  %v1027 = vsel %vm487, %v1023, -inf
  %1028 = vmax.xlane.f32.xlu0 %v1027
  %v1029 = vpop.xlane.xlu0 %1028
  %v1030 = vsel %vm487, %v1024, -inf
  %1031 = vmax.xlane.f32.xlu0 %v1030
  %v1032 = vpop.xlane.xlu0 %1031
  %v1033 = vsel %vm487, %v1025, -inf
  %1034 = vmax.xlane.f32.xlu0 %v1033
  %v1035 = vpop.xlane.xlu0 %1034
  %v1036 = vsel %vm487, %v1026, -inf
  %1037 = vmax.xlane.f32.xlu0 %v1036
  %v1038 = vpop.xlane.xlu0 %1037
  %v1039 = vsub.f32 %v1023, %v1029
  %v1040 = vsub.f32 %v1024, %v1032
  %v1041 = vsub.f32 %v1025, %v1035
  %v1042 = vsub.f32 %v1026, %v1038
  %v1043 = vmul.f32 %v1039, 1.442695
  %v1044 = vpow.pop %v1043
  %v1045 = vmul.f32 %v1040, 1.442695
  %v1046 = vpow.pop %v1045
  %v1047 = vmul.f32 %v1041, 1.442695
  %v1048 = vpow.pop %v1047
  %v1049 = vmul.f32 %v1042, 1.442695
  %v1050 = vpow.pop %v1049
  %v1051 = vsel %vm487, %v1044, 0.0
  %1052 = vadd.xlane.f32.xlu0 %v1051
  %v1053 = vpop.xlane.xlu0 %1052
  %v1054 = vsel %vm487, %v1046, 0.0
  %1055 = vadd.xlane.f32.xlu0 %v1054
  %v1056 = vpop.xlane.xlu0 %1055
  %v1057 = vsel %vm487, %v1048, 0.0
  %1058 = vadd.xlane.f32.xlu0 %v1057
  %v1059 = vpop.xlane.xlu0 %1058
  %v1060 = vsel %vm487, %v1050, 0.0
  %1061 = vadd.xlane.f32.xlu0 %v1060
  %v1062 = vpop.xlane.xlu0 %1061
  %v1063 = vpack.c.bf16 %v1046, %v1044
  %v1064 = vpack.c.bf16 %v1050, %v1048
  %v1066 = vsel %vm487, %v1063, 0
  %v1069 = vsel %vm487, %v1064, 0
  %1071 = vmatprep.subr.bf16.mxu0 0
  %1072 = vmatpush1.bf16.msra.mxu0 0
  %1073 = vmatprep.subr.bf16.mxu0 0
  %1074 = vmatpush1.bf16.msra.mxu0 0
  %1075 = vmatprep.subr.bf16.mxu0 0
  %1076 = vmatpush1.bf16.msra.mxu0 0
  %1077 = vmatprep.subr.bf16.mxu0 0
  %1078 = vmatpush1.bf16.msra.mxu0 0
  %1079 = vmatprep.subr.bf16.mxu0 0
  %1080 = vmatpush1.bf16.msra.mxu0 0
  %1081 = vmatprep.subr.bf16.mxu0 0
  %1082 = vmatpush1.bf16.msra.mxu0 0
  %1083 = vmatprep.subr.bf16.mxu0 0
  %1084 = vmatpush1.bf16.msra.mxu0 %v888
  %1085 = vmatprep.subr.bf16.mxu0 0
  %1086 = vmatpush1.bf16.msra.mxu0 %v886
  %1087 = vmatprep.subr.bf16.mxu0 0
  %1088 = vmatpush2.bf16.msra.mxu0 0
  %1089 = vmatprep.subr.bf16.mxu0 0
  %1090 = vmatpush2.bf16.msra.mxu0 0
  %1091 = vmatprep.subr.bf16.mxu0 0
  %1092 = vmatpush2.bf16.msra.mxu0 0
  %1093 = vmatprep.subr.bf16.mxu0 0
  %1094 = vmatpush2.bf16.msra.mxu0 0
  %1095 = vmatprep.subr.bf16.mxu0 0
  %1096 = vmatpush2.bf16.msra.mxu0 0
  %1097 = vmatprep.subr.bf16.mxu0 0
  %1098 = vmatpush2.bf16.msra.mxu0 0
  %1099 = vmatprep.subr.bf16.mxu0 0
  %1100 = vmatpush2.bf16.msra.mxu0 0
  %1101 = vmatprep.subr.bf16.mxu0 0
  %1102 = vmatpush2.bf16.msra.mxu0 0
  %1103 = vmatprep.mubr.bf16.mxu0 0
  %1104 = vmatmul.mubr.bf16.gmra.mxu0 %v1066
  %v1105 = vpop.f32.mrf.mxu0
  %v1106 = vadd.f32 0.0, %v1105
  %v1107 = vpop.f32.mrf.mxu0
  %v1108 = vpop.f32.mrf.mxu0
  %v1109 = vadd.f32 0.0, %v1108
  %v1110 = vpop.f32.mrf.mxu0
  %1111 = vmatprep.mubr.bf16.mxu0 0
  %1112 = vmatmul.mubr.bf16.gmra.mxu0 %v1069
  %v1113 = vpop.f32.mrf.mxu0
  %v1114 = vadd.f32 0.0, %v1113
  %v1115 = vpop.f32.mrf.mxu0
  %v1116 = vpop.f32.mrf.mxu0
  %v1117 = vadd.f32 0.0, %v1116
  %v1118 = vpop.f32.mrf.mxu0
  %1119 = vdwg.mxu0
  %v1120 = vrcp.pop %v1053
  %v1121 = vrcp.pop %v1056
  %v1122 = vrcp.pop %v1059
  %v1123 = vrcp.pop %v1062
  %v1124 = vmul.f32 %v1106, %v1120
  %v1125 = vmul.f32 %v1109, %v1121
  %v1126 = vmul.f32 %v1114, %v1122
  %v1127 = vmul.f32 %v1117, %v1123
  %v1128 = vsel %vm769, %v1124, %v950
  %v1129 = vsel %vm769, %v1125, %v951
  %v1130 = vsel %vm769, %v1126, %v952
  %v1131 = vsel %vm769, %v1127, %v953
  %v1132 = vpack.c.bf16 %v771, %v770
  %v1133 = vpack.c.bf16 %v773, %v772
  %v1134 = vpack.c.bf16 %v1129, %v1128
  %v1135 = vpack.c.bf16 %v1131, %v1130
  %v1136 = vld [vmem:[%s7] sm:$0xf]
  %v1137 = vld [vmem:[%s7 + $0x4] sm:$0xf]
  %v1138 = vld [vmem:[%s7 + $0x8] sm:$0xf]
  %v1139 = vld [vmem:[%s7 + $0xc] sm:$0xf]
  %v1144 = vunpack.c.l.b16 %v1136
  %v1145 = vunpack.c.l.b16 %v1137
  %v1146 = vunpack.c.l.b16 %v1138
  %v1147 = vunpack.c.l.b16 %v1139
  %v1148 = vpack.c.b16 %v1145, %v1144
  %v1149 = vpack.c.b16 %v1147, %v1146
  %v1153 = vsel %vm487, %v1132, 0
  %v1156 = vsel %vm487, %v1133, 0
  %v1159 = vsel %vm487, %v1134, 0
  %v1162 = vsel %vm487, %v1135, 0
  %1164 = vmatprep.subr.bf16.mxu0 0
  %1165 = vmatpush1.bf16.msra.mxu0 0
  %1166 = vmatprep.subr.bf16.mxu0 0
  %1167 = vmatpush1.bf16.msra.mxu0 0
  %1168 = vmatprep.subr.bf16.mxu0 0
  %1169 = vmatpush1.bf16.msra.mxu0 0
  %1170 = vmatprep.subr.bf16.mxu0 0
  %1171 = vmatpush1.bf16.msra.mxu0 0
  %1172 = vmatprep.subr.bf16.mxu0 0
  %1173 = vmatpush1.bf16.msra.mxu0 0
  %1174 = vmatprep.subr.bf16.mxu0 0
  %1175 = vmatpush1.bf16.msra.mxu0 0
  %1176 = vmatprep.subr.bf16.mxu0 0
  %1177 = vmatpush1.bf16.msra.mxu0 %v1149
  %1178 = vmatprep.subr.bf16.mxu0 0
  %1179 = vmatpush1.bf16.msra.mxu0 %v1148
  %1180 = vmatprep.subr.bf16.mxu0 0
  %1181 = vmatpush2.bf16.msra.mxu0 0
  %1182 = vmatprep.subr.bf16.mxu0 0
  %1183 = vmatpush2.bf16.msra.mxu0 0
  %1184 = vmatprep.subr.bf16.mxu0 0
  %1185 = vmatpush2.bf16.msra.mxu0 0
  %1186 = vmatprep.subr.bf16.mxu0 0
  %1187 = vmatpush2.bf16.msra.mxu0 0
  %1188 = vmatprep.subr.bf16.mxu0 0
  %1189 = vmatpush2.bf16.msra.mxu0 0
  %1190 = vmatprep.subr.bf16.mxu0 0
  %1191 = vmatpush2.bf16.msra.mxu0 0
  %1192 = vmatprep.subr.bf16.mxu0 0
  %1193 = vmatpush2.bf16.msra.mxu0 0
  %1194 = vmatprep.subr.bf16.mxu0 0
  %1195 = vmatpush2.bf16.msra.mxu0 0
  %1196 = vmatprep.mubr.bf16.mxu0 0
  %1197 = vmatmul.mubr.bf16.gmra.mxu0 %v1153
  %v1198 = vpop.f32.mrf.mxu0
  %v1199 = vadd.f32 0.0, %v1198
  %v1200 = vpop.f32.mrf.mxu0
  %v1201 = vpop.f32.mrf.mxu0
  %v1202 = vadd.f32 0.0, %v1201
  %v1203 = vpop.f32.mrf.mxu0
  %1204 = vmatprep.mubr.bf16.mxu0 0
  %1205 = vmatmul.mubr.bf16.gmra.mxu0 %v1156
  %v1206 = vpop.f32.mrf.mxu0
  %v1207 = vadd.f32 0.0, %v1206
  %v1208 = vpop.f32.mrf.mxu0
  %v1209 = vpop.f32.mrf.mxu0
  %v1210 = vadd.f32 0.0, %v1209
  %v1211 = vpop.f32.mrf.mxu0
  %1212 = vmatprep.mubr.bf16.mxu0 0
  %1213 = vmatmul.mubr.bf16.gmra.mxu0 %v1159
  %v1214 = vpop.f32.mrf.mxu0
  %v1215 = vadd.f32 0.0, %v1214
  %v1216 = vpop.f32.mrf.mxu0
  %v1217 = vpop.f32.mrf.mxu0
  %v1218 = vadd.f32 0.0, %v1217
  %v1219 = vpop.f32.mrf.mxu0
  %1220 = vmatprep.mubr.bf16.mxu0 0
  %1221 = vmatmul.mubr.bf16.gmra.mxu0 %v1162
  %v1222 = vpop.f32.mrf.mxu0
  %v1223 = vadd.f32 0.0, %v1222
  %v1224 = vpop.f32.mrf.mxu0
  %v1225 = vpop.f32.mrf.mxu0
  %v1226 = vadd.f32 0.0, %v1225
  %v1227 = vpop.f32.mrf.mxu0
  %1228 = vdwg.mxu0
  %v1229 = vadd.f32 %v123, %v1199
  %v1230 = vadd.f32 %v124, %v1202
  %v1231 = vadd.f32 %v125, %v1207
  %v1232 = vadd.f32 %v126, %v1210
  %v1233 = vadd.f32 %v127, %v1215
  %v1234 = vadd.f32 %v128, %v1218
  %v1235 = vadd.f32 %v129, %v1223
  %v1236 = vadd.f32 %v130, %v1226
  %v1237 = vld [vmem:[%s8] sm:$0x1]
  %v1239 = vlaneseq
  %v1240 = vshrl.u32 %v1239, 7
  %v1241 = vsub.s32 0, %v1240
  %v1242 = vrot.slane %v1237, %v1241
  %v1244 = vadd.f32 %v1229, %v1242
  %v1245 = vadd.f32 %v1230, %v1242
  %v1246 = vadd.f32 %v1231, %v1242
  %v1247 = vadd.f32 %v1232, %v1242
  %v1248 = vadd.f32 %v1233, %v1242
  %v1249 = vadd.f32 %v1234, %v1242
  %v1250 = vadd.f32 %v1235, %v1242
  %v1251 = vadd.f32 %v1236, %v1242
  %v1252 = vld [vmem:[%s9] sm:$0x1]
  %v1253 = vld [vmem:[%s10] sm:$0x1]
  %v1254 = vsel %vm137, %v1244, 0.0
  %v1255 = vsel %vm137, %v1245, 0.0
  %v1256 = vsel %vm137, %v1246, 0.0
  %v1257 = vsel %vm137, %v1247, 0.0
  %v1258 = vsel %vm137, %v1248, 0.0
  %v1259 = vsel %vm137, %v1249, 0.0
  %v1260 = vsel %vm137, %v1250, 0.0
  %v1261 = vsel %vm137, %v1251, 0.0
  %1262 = vadd.xlane.f32.xlu0 %v1254
  %v1263 = vpop.xlane.xlu0 %1262
  %1264 = vadd.xlane.f32.xlu0 %v1255
  %v1265 = vpop.xlane.xlu0 %1264
  %1266 = vadd.xlane.f32.xlu0 %v1256
  %v1267 = vpop.xlane.xlu0 %1266
  %1268 = vadd.xlane.f32.xlu0 %v1257
  %v1269 = vpop.xlane.xlu0 %1268
  %1270 = vadd.xlane.f32.xlu0 %v1258
  %v1271 = vpop.xlane.xlu0 %1270
  %1272 = vadd.xlane.f32.xlu0 %v1259
  %v1273 = vpop.xlane.xlu0 %1272
  %1274 = vadd.xlane.f32.xlu0 %v1260
  %v1275 = vpop.xlane.xlu0 %1274
  %1276 = vadd.xlane.f32.xlu0 %v1261
  %v1277 = vpop.xlane.xlu0 %1276
  %v1278 = vmul.f32 %v1263, 0.03125
  %v1279 = vmul.f32 %v1265, 0.03125
  %v1280 = vmul.f32 %v1267, 0.03125
  %v1281 = vmul.f32 %v1269, 0.03125
  %v1282 = vmul.f32 %v1271, 0.03125
  %v1283 = vmul.f32 %v1273, 0.03125
  %v1284 = vmul.f32 %v1275, 0.03125
  %v1285 = vmul.f32 %v1277, 0.03125
  %v1286 = vsub.f32 %v1244, %v1278
  %v1287 = vsub.f32 %v1245, %v1279
  %v1288 = vsub.f32 %v1246, %v1280
  %v1289 = vsub.f32 %v1247, %v1281
  %v1290 = vsub.f32 %v1248, %v1282
  %v1291 = vsub.f32 %v1249, %v1283
  %v1292 = vsub.f32 %v1250, %v1284
  %v1293 = vsub.f32 %v1251, %v1285
  %v1294 = vsel %vm137, %v1286, 0.0
  %v1295 = vsel %vm137, %v1287, 0.0
  %v1296 = vsel %vm137, %v1288, 0.0
  %v1297 = vsel %vm137, %v1289, 0.0
  %v1298 = vsel %vm137, %v1290, 0.0
  %v1299 = vsel %vm137, %v1291, 0.0
  %v1300 = vsel %vm137, %v1292, 0.0
  %v1301 = vsel %vm137, %v1293, 0.0
  %v1302 = vmul.f32 %v1294, %v1294
  %v1303 = vmul.f32 %v1295, %v1295
  %v1304 = vmul.f32 %v1296, %v1296
  %v1305 = vmul.f32 %v1297, %v1297
  %v1306 = vmul.f32 %v1298, %v1298
  %v1307 = vmul.f32 %v1299, %v1299
  %v1308 = vmul.f32 %v1300, %v1300
  %v1309 = vmul.f32 %v1301, %v1301
  %1310 = vadd.xlane.f32.xlu0 %v1302
  %v1311 = vpop.xlane.xlu0 %1310
  %1312 = vadd.xlane.f32.xlu0 %v1303
  %v1313 = vpop.xlane.xlu0 %1312
  %1314 = vadd.xlane.f32.xlu0 %v1304
  %v1315 = vpop.xlane.xlu0 %1314
  %1316 = vadd.xlane.f32.xlu0 %v1305
  %v1317 = vpop.xlane.xlu0 %1316
  %1318 = vadd.xlane.f32.xlu0 %v1306
  %v1319 = vpop.xlane.xlu0 %1318
  %1320 = vadd.xlane.f32.xlu0 %v1307
  %v1321 = vpop.xlane.xlu0 %1320
  %1322 = vadd.xlane.f32.xlu0 %v1308
  %v1323 = vpop.xlane.xlu0 %1322
  %1324 = vadd.xlane.f32.xlu0 %v1309
  %v1325 = vpop.xlane.xlu0 %1324
  %v1326 = vmul.f32 %v1311, 0.03125
  %v1327 = vmul.f32 %v1313, 0.03125
  %v1328 = vmul.f32 %v1315, 0.03125
  %v1329 = vmul.f32 %v1317, 0.03125
  %v1330 = vmul.f32 %v1319, 0.03125
  %v1331 = vmul.f32 %v1321, 0.03125
  %v1332 = vmul.f32 %v1323, 0.03125
  %v1333 = vmul.f32 %v1325, 0.03125
  %v1334 = vadd.f32 %v1326, 1e-05
  %v1335 = vadd.f32 %v1327, 1e-05
  %v1336 = vadd.f32 %v1328, 1e-05
  %v1337 = vadd.f32 %v1329, 1e-05
  %v1338 = vadd.f32 %v1330, 1e-05
  %v1339 = vadd.f32 %v1331, 1e-05
  %v1340 = vadd.f32 %v1332, 1e-05
  %v1341 = vadd.f32 %v1333, 1e-05
  %v1342 = vrsqrt.pop %v1334
  %v1343 = vrsqrt.pop %v1335
  %v1344 = vrsqrt.pop %v1336
  %v1345 = vrsqrt.pop %v1337
  %v1346 = vrsqrt.pop %v1338
  %v1347 = vrsqrt.pop %v1339
  %v1348 = vrsqrt.pop %v1340
  %v1349 = vrsqrt.pop %v1341
  %v1350 = vmul.f32 %v1294, %v1342
  %v1351 = vmul.f32 %v1295, %v1343
  %v1352 = vmul.f32 %v1296, %v1344
  %v1353 = vmul.f32 %v1297, %v1345
  %v1354 = vmul.f32 %v1298, %v1346
  %v1355 = vmul.f32 %v1299, %v1347
  %v1356 = vmul.f32 %v1300, %v1348
  %v1357 = vmul.f32 %v1301, %v1349
  %v1359 = vlaneseq
  %v1360 = vshrl.u32 %v1359, 7
  %v1361 = vsub.s32 0, %v1360
  %v1362 = vrot.slane %v1252, %v1361
  %v1364 = vmul.f32 %v1350, %v1362
  %v1365 = vmul.f32 %v1351, %v1362
  %v1366 = vmul.f32 %v1352, %v1362
  %v1367 = vmul.f32 %v1353, %v1362
  %v1368 = vmul.f32 %v1354, %v1362
  %v1369 = vmul.f32 %v1355, %v1362
  %v1370 = vmul.f32 %v1356, %v1362
  %v1371 = vmul.f32 %v1357, %v1362
  %v1373 = vlaneseq
  %v1374 = vshrl.u32 %v1373, 7
  %v1375 = vsub.s32 0, %v1374
  %v1376 = vrot.slane %v1253, %v1375
  %v1378 = vadd.f32 %v1364, %v1376
  %v1379 = vadd.f32 %v1365, %v1376
  %v1380 = vadd.f32 %v1366, %v1376
  %v1381 = vadd.f32 %v1367, %v1376
  %v1382 = vadd.f32 %v1368, %v1376
  %v1383 = vadd.f32 %v1369, %v1376
  %v1384 = vadd.f32 %v1370, %v1376
  %v1385 = vadd.f32 %v1371, %v1376
  %v1386 = vpack.c.bf16 %v1379, %v1378
  %v1387 = vpack.c.bf16 %v1381, %v1380
  %v1388 = vpack.c.bf16 %v1383, %v1382
  %v1389 = vpack.c.bf16 %v1385, %v1384
  %v1390 = vld [vmem:[%s11] sm:$0xf]
  %v1391 = vld [vmem:[%s11 + $0x4] sm:$0xf]
  %v1392 = vld [vmem:[%s11 + $0x8] sm:$0xf]
  %v1393 = vld [vmem:[%s11 + $0xc] sm:$0xf]
  %v1394 = vld [vmem:[%s11 + $0x10] sm:$0xf]
  %v1395 = vld [vmem:[%s11 + $0x14] sm:$0xf]
  %v1396 = vld [vmem:[%s11 + $0x18] sm:$0xf]
  %v1397 = vld [vmem:[%s11 + $0x1c] sm:$0xf]
  %v1398 = vld [vmem:[%s11 + $0x20] sm:$0xf]
  %v1399 = vld [vmem:[%s11 + $0x24] sm:$0xf]
  %v1400 = vld [vmem:[%s11 + $0x28] sm:$0xf]
  %v1401 = vld [vmem:[%s11 + $0x2c] sm:$0xf]
  %v1402 = vld [vmem:[%s11 + $0x30] sm:$0xf]
  %v1403 = vld [vmem:[%s11 + $0x34] sm:$0xf]
  %v1404 = vld [vmem:[%s11 + $0x38] sm:$0xf]
  %v1405 = vld [vmem:[%s11 + $0x3c] sm:$0xf]
  %v1406 = vld [vmem:[%s12] sm:$0x1]
  %v1408 = vlaneseq
  %v1409 = vshrl.u32 %v1408, 7
  %v1410 = vsub.s32 0, %v1409
  %v1411 = vrot.slane %v1406, %v1410
  %v1429 = vunpack.c.l.b16 %v1390
  %v1430 = vunpack.c.l.b16 %v1391
  %v1431 = vunpack.c.l.b16 %v1392
  %v1432 = vunpack.c.l.b16 %v1393
  %v1433 = vunpack.c.l.b16 %v1394
  %v1434 = vunpack.c.l.b16 %v1395
  %v1435 = vunpack.c.l.b16 %v1396
  %v1436 = vunpack.c.l.b16 %v1397
  %v1437 = vunpack.c.l.b16 %v1398
  %v1438 = vunpack.c.l.b16 %v1399
  %v1439 = vunpack.c.l.b16 %v1400
  %v1440 = vunpack.c.l.b16 %v1401
  %v1441 = vunpack.c.l.b16 %v1402
  %v1442 = vunpack.c.l.b16 %v1403
  %v1443 = vunpack.c.l.b16 %v1404
  %v1444 = vunpack.c.l.b16 %v1405
  %v1445 = vpack.c.b16 %v1430, %v1429
  %v1446 = vpack.c.b16 %v1432, %v1431
  %v1447 = vpack.c.b16 %v1434, %v1433
  %v1448 = vpack.c.b16 %v1436, %v1435
  %v1449 = vpack.c.b16 %v1438, %v1437
  %v1450 = vpack.c.b16 %v1440, %v1439
  %v1451 = vpack.c.b16 %v1442, %v1441
  %v1452 = vpack.c.b16 %v1444, %v1443
  %1461 = vmatprep.subr.bf16.mxu0 0
  %1462 = vmatpush1.bf16.msra.mxu0 %v1452
  %1463 = vmatprep.subr.bf16.mxu0 0
  %1464 = vmatpush1.bf16.msra.mxu0 %v1451
  %1465 = vmatprep.subr.bf16.mxu0 0
  %1466 = vmatpush1.bf16.msra.mxu0 %v1450
  %1467 = vmatprep.subr.bf16.mxu0 0
  %1468 = vmatpush1.bf16.msra.mxu0 %v1449
  %1469 = vmatprep.subr.bf16.mxu0 0
  %1470 = vmatpush1.bf16.msra.mxu0 %v1448
  %1471 = vmatprep.subr.bf16.mxu0 0
  %1472 = vmatpush1.bf16.msra.mxu0 %v1447
  %1473 = vmatprep.subr.bf16.mxu0 0
  %1474 = vmatpush1.bf16.msra.mxu0 %v1446
  %1475 = vmatprep.subr.bf16.mxu0 0
  %1476 = vmatpush1.bf16.msra.mxu0 %v1445
  %1477 = vmatprep.subr.bf16.mxu0 0
  %1478 = vmatpush2.bf16.msra.mxu0 0
  %1479 = vmatprep.subr.bf16.mxu0 0
  %1480 = vmatpush2.bf16.msra.mxu0 0
  %1481 = vmatprep.subr.bf16.mxu0 0
  %1482 = vmatpush2.bf16.msra.mxu0 0
  %1483 = vmatprep.subr.bf16.mxu0 0
  %1484 = vmatpush2.bf16.msra.mxu0 0
  %1485 = vmatprep.subr.bf16.mxu0 0
  %1486 = vmatpush2.bf16.msra.mxu0 0
  %1487 = vmatprep.subr.bf16.mxu0 0
  %1488 = vmatpush2.bf16.msra.mxu0 0
  %1489 = vmatprep.subr.bf16.mxu0 0
  %1490 = vmatpush2.bf16.msra.mxu0 0
  %1491 = vmatprep.subr.bf16.mxu0 0
  %1492 = vmatpush2.bf16.msra.mxu0 0
  %1493 = vmatprep.mubr.bf16.mxu0 0
  %1494 = vmatmul.mubr.bf16.gmra.mxu0 %v1386
  %v1495 = vpop.f32.mrf.mxu0
  %v1496 = vadd.f32 %v1411, %v1495
  %v1497 = vpop.f32.mrf.mxu0
  %v1498 = vpop.f32.mrf.mxu0
  %v1499 = vadd.f32 %v1411, %v1498
  %v1500 = vpop.f32.mrf.mxu0
  %1501 = vmatprep.mubr.bf16.mxu0 0
  %1502 = vmatmul.mubr.bf16.gmra.mxu0 %v1387
  %v1503 = vpop.f32.mrf.mxu0
  %v1504 = vadd.f32 %v1411, %v1503
  %v1505 = vpop.f32.mrf.mxu0
  %v1506 = vpop.f32.mrf.mxu0
  %v1507 = vadd.f32 %v1411, %v1506
  %v1508 = vpop.f32.mrf.mxu0
  %1509 = vmatprep.mubr.bf16.mxu0 0
  %1510 = vmatmul.mubr.bf16.gmra.mxu0 %v1388
  %v1511 = vpop.f32.mrf.mxu0
  %v1512 = vadd.f32 %v1411, %v1511
  %v1513 = vpop.f32.mrf.mxu0
  %v1514 = vpop.f32.mrf.mxu0
  %v1515 = vadd.f32 %v1411, %v1514
  %v1516 = vpop.f32.mrf.mxu0
  %1517 = vmatprep.mubr.bf16.mxu0 0
  %1518 = vmatmul.mubr.bf16.gmra.mxu0 %v1389
  %v1519 = vpop.f32.mrf.mxu0
  %v1520 = vadd.f32 %v1411, %v1519
  %v1521 = vpop.f32.mrf.mxu0
  %v1522 = vpop.f32.mrf.mxu0
  %v1523 = vadd.f32 %v1411, %v1522
  %v1524 = vpop.f32.mrf.mxu0
  %1525 = vdwg.mxu0
  %v1526 = vmul.f32 %v1496, -1.702
  %v1527 = vmul.f32 %v1499, -1.702
  %v1528 = vmul.f32 %v1504, -1.702
  %v1529 = vmul.f32 %v1507, -1.702
  %v1530 = vmul.f32 %v1512, -1.702
  %v1531 = vmul.f32 %v1515, -1.702
  %v1532 = vmul.f32 %v1520, -1.702
  %v1533 = vmul.f32 %v1523, -1.702
  %v1534 = vmul.f32 %v1526, 1.442695
  %v1535 = vpow.pop %v1534
  %v1536 = vmul.f32 %v1527, 1.442695
  %v1537 = vpow.pop %v1536
  %v1538 = vmul.f32 %v1528, 1.442695
  %v1539 = vpow.pop %v1538
  %v1540 = vmul.f32 %v1529, 1.442695
  %v1541 = vpow.pop %v1540
  %v1542 = vmul.f32 %v1530, 1.442695
  %v1543 = vpow.pop %v1542
  %v1544 = vmul.f32 %v1531, 1.442695
  %v1545 = vpow.pop %v1544
  %v1546 = vmul.f32 %v1532, 1.442695
  %v1547 = vpow.pop %v1546
  %v1548 = vmul.f32 %v1533, 1.442695
  %v1549 = vpow.pop %v1548
  %v1550 = vadd.f32 %v1535, 1.0
  %v1551 = vadd.f32 %v1537, 1.0
  %v1552 = vadd.f32 %v1539, 1.0
  %v1553 = vadd.f32 %v1541, 1.0
  %v1554 = vadd.f32 %v1543, 1.0
  %v1555 = vadd.f32 %v1545, 1.0
  %v1556 = vadd.f32 %v1547, 1.0
  %v1557 = vadd.f32 %v1549, 1.0
  %v1558 = vrcp.pop %v1550
  %v1559 = vrcp.pop %v1551
  %v1560 = vrcp.pop %v1552
  %v1561 = vrcp.pop %v1553
  %v1562 = vrcp.pop %v1554
  %v1563 = vrcp.pop %v1555
  %v1564 = vrcp.pop %v1556
  %v1565 = vrcp.pop %v1557
  %v1566 = vmul.f32 %v1496, %v1558
  %v1567 = vmul.f32 %v1499, %v1559
  %v1568 = vmul.f32 %v1504, %v1560
  %v1569 = vmul.f32 %v1507, %v1561
  %v1570 = vmul.f32 %v1512, %v1562
  %v1571 = vmul.f32 %v1515, %v1563
  %v1572 = vmul.f32 %v1520, %v1564
  %v1573 = vmul.f32 %v1523, %v1565
  %v1574 = vpack.c.bf16 %v1567, %v1566
  %v1575 = vpack.c.bf16 %v1569, %v1568
  %v1576 = vpack.c.bf16 %v1571, %v1570
  %v1577 = vpack.c.bf16 %v1573, %v1572
  %v1578 = vld [vmem:[%s13] sm:$0xf]
  %v1579 = vld [vmem:[%s13 + $0x4] sm:$0xf]
  %v1580 = vld [vmem:[%s13 + $0x8] sm:$0xf]
  %v1581 = vld [vmem:[%s13 + $0xc] sm:$0xf]
  %v1582 = vld [vmem:[%s13 + $0x10] sm:$0xf]
  %v1583 = vld [vmem:[%s13 + $0x14] sm:$0xf]
  %v1584 = vld [vmem:[%s13 + $0x18] sm:$0xf]
  %v1585 = vld [vmem:[%s13 + $0x1c] sm:$0xf]
  %v1586 = vld [vmem:[%s13 + $0x20] sm:$0xf]
  %v1587 = vld [vmem:[%s13 + $0x24] sm:$0xf]
  %v1588 = vld [vmem:[%s13 + $0x28] sm:$0xf]
  %v1589 = vld [vmem:[%s13 + $0x2c] sm:$0xf]
  %v1590 = vld [vmem:[%s13 + $0x30] sm:$0xf]
  %v1591 = vld [vmem:[%s13 + $0x34] sm:$0xf]
  %v1592 = vld [vmem:[%s13 + $0x38] sm:$0xf]
  %v1593 = vld [vmem:[%s13 + $0x3c] sm:$0xf]
  %v1594 = vld [vmem:[%s14] sm:$0x1]
  %v1596 = vlaneseq
  %v1597 = vshrl.u32 %v1596, 7
  %v1598 = vsub.s32 0, %v1597
  %v1599 = vrot.slane %v1594, %v1598
  %v1617 = vunpack.c.l.b16 %v1578
  %v1618 = vunpack.c.l.b16 %v1579
  %v1619 = vunpack.c.l.b16 %v1580
  %v1620 = vunpack.c.l.b16 %v1581
  %v1621 = vunpack.c.l.b16 %v1582
  %v1622 = vunpack.c.l.b16 %v1583
  %v1623 = vunpack.c.l.b16 %v1584
  %v1624 = vunpack.c.l.b16 %v1585
  %v1625 = vunpack.c.l.b16 %v1586
  %v1626 = vunpack.c.l.b16 %v1587
  %v1627 = vunpack.c.l.b16 %v1588
  %v1628 = vunpack.c.l.b16 %v1589
  %v1629 = vunpack.c.l.b16 %v1590
  %v1630 = vunpack.c.l.b16 %v1591
  %v1631 = vunpack.c.l.b16 %v1592
  %v1632 = vunpack.c.l.b16 %v1593
  %v1633 = vpack.c.b16 %v1618, %v1617
  %v1634 = vpack.c.b16 %v1620, %v1619
  %v1635 = vpack.c.b16 %v1622, %v1621
  %v1636 = vpack.c.b16 %v1624, %v1623
  %v1637 = vpack.c.b16 %v1626, %v1625
  %v1638 = vpack.c.b16 %v1628, %v1627
  %v1639 = vpack.c.b16 %v1630, %v1629
  %v1640 = vpack.c.b16 %v1632, %v1631
  %1649 = vmatprep.subr.bf16.mxu0 0
  %1650 = vmatpush1.bf16.msra.mxu0 %v1640
  %1651 = vmatprep.subr.bf16.mxu0 0
  %1652 = vmatpush1.bf16.msra.mxu0 %v1639
  %1653 = vmatprep.subr.bf16.mxu0 0
  %1654 = vmatpush1.bf16.msra.mxu0 %v1638
  %1655 = vmatprep.subr.bf16.mxu0 0
  %1656 = vmatpush1.bf16.msra.mxu0 %v1637
  %1657 = vmatprep.subr.bf16.mxu0 0
  %1658 = vmatpush1.bf16.msra.mxu0 %v1636
  %1659 = vmatprep.subr.bf16.mxu0 0
  %1660 = vmatpush1.bf16.msra.mxu0 %v1635
  %1661 = vmatprep.subr.bf16.mxu0 0
  %1662 = vmatpush1.bf16.msra.mxu0 %v1634
  %1663 = vmatprep.subr.bf16.mxu0 0
  %1664 = vmatpush1.bf16.msra.mxu0 %v1633
  %1665 = vmatprep.subr.bf16.mxu0 0
  %1666 = vmatpush2.bf16.msra.mxu0 0
  %1667 = vmatprep.subr.bf16.mxu0 0
  %1668 = vmatpush2.bf16.msra.mxu0 0
  %1669 = vmatprep.subr.bf16.mxu0 0
  %1670 = vmatpush2.bf16.msra.mxu0 0
  %1671 = vmatprep.subr.bf16.mxu0 0
  %1672 = vmatpush2.bf16.msra.mxu0 0
  %1673 = vmatprep.subr.bf16.mxu0 0
  %1674 = vmatpush2.bf16.msra.mxu0 0
  %1675 = vmatprep.subr.bf16.mxu0 0
  %1676 = vmatpush2.bf16.msra.mxu0 0
  %1677 = vmatprep.subr.bf16.mxu0 0
  %1678 = vmatpush2.bf16.msra.mxu0 0
  %1679 = vmatprep.subr.bf16.mxu0 0
  %1680 = vmatpush2.bf16.msra.mxu0 0
  %1681 = vmatprep.mubr.bf16.mxu0 0
  %1682 = vmatmul.mubr.bf16.gmra.mxu0 %v1574
  %v1683 = vpop.f32.mrf.mxu0
  %v1684 = vadd.f32 %v1599, %v1683
  %v1685 = vpop.f32.mrf.mxu0
  %v1686 = vpop.f32.mrf.mxu0
  %v1687 = vadd.f32 %v1599, %v1686
  %v1688 = vpop.f32.mrf.mxu0
  %1689 = vmatprep.mubr.bf16.mxu0 0
  %1690 = vmatmul.mubr.bf16.gmra.mxu0 %v1575
  %v1691 = vpop.f32.mrf.mxu0
  %v1692 = vadd.f32 %v1599, %v1691
  %v1693 = vpop.f32.mrf.mxu0
  %v1694 = vpop.f32.mrf.mxu0
  %v1695 = vadd.f32 %v1599, %v1694
  %v1696 = vpop.f32.mrf.mxu0
  %1697 = vmatprep.mubr.bf16.mxu0 0
  %1698 = vmatmul.mubr.bf16.gmra.mxu0 %v1576
  %v1699 = vpop.f32.mrf.mxu0
  %v1700 = vadd.f32 %v1599, %v1699
  %v1701 = vpop.f32.mrf.mxu0
  %v1702 = vpop.f32.mrf.mxu0
  %v1703 = vadd.f32 %v1599, %v1702
  %v1704 = vpop.f32.mrf.mxu0
  %1705 = vmatprep.mubr.bf16.mxu0 0
  %1706 = vmatmul.mubr.bf16.gmra.mxu0 %v1577
  %v1707 = vpop.f32.mrf.mxu0
  %v1708 = vadd.f32 %v1599, %v1707
  %v1709 = vpop.f32.mrf.mxu0
  %v1710 = vpop.f32.mrf.mxu0
  %v1711 = vadd.f32 %v1599, %v1710
  %v1712 = vpop.f32.mrf.mxu0
  %1713 = vdwg.mxu0
  %v1714 = vadd.f32 %v1244, %v1684
  %v1715 = vadd.f32 %v1245, %v1687
  %v1716 = vadd.f32 %v1246, %v1692
  %v1717 = vadd.f32 %v1247, %v1695
  %v1718 = vadd.f32 %v1248, %v1700
  %v1719 = vadd.f32 %v1249, %v1703
  %v1720 = vadd.f32 %v1250, %v1708
  %v1721 = vadd.f32 %v1251, %v1711
  %1722 = vst [vmem:[%s15] sm:$0xff] %v1714
  %1723 = vst [vmem:[%s15 + $0x8] sm:$0xff] %v1715
  %1724 = vst [vmem:[%s15 + $0x10] sm:$0xff] %v1716
  %1725 = vst [vmem:[%s15 + $0x18] sm:$0xff] %v1717
  %1726 = vst [vmem:[%s15 + $0x20] sm:$0xff] %v1718
  %1727 = vst [vmem:[%s15 + $0x28] sm:$0xff] %v1719
  %1728 = vst [vmem:[%s15 + $0x30] sm:$0xff] %v1720
  %1729 = vst [vmem:[%s15 + $0x38] sm:$0xff] %v1721
  // Predicated region
  $region62: #{image_encoder_forward.5} parent=0 // pred_check
    _
  $region63: #{image_encoder_forward.5} parent=0 // pred_check_branch
    %1731 = sbr.rel (0) target = $region65
  $region64: #{image_encoder_forward.5} parent=0 // pred_region
    _
  $region65: #{image_encoder_forward.5} parent=0 // pred_fallthru
    _
  // Predicated region
  $region66: #{image_encoder_forward.5} parent=0 // pred_check
    _
  $region67: #{image_encoder_forward.5} parent=0 // pred_check_branch
    %1733 = sbr.rel (0) target = $region69
  $region68: #{image_encoder_forward.5} parent=0 // pred_region
    _
  $region69: #{image_encoder_forward.5} parent=0 // pred_fallthru
    _

// kernel: image_encoder_forward.6
$region0: #{image_encoder_forward.6}
  #allocation0 [shape = 'u32[]', space=smem, size = 0x4, offset = 0x4, fixed_abs, tag = 'smem constant byte address 0x4 - core index']
  #allocation1 [shape = 'u32[144,128]{1,0:T(1,128)}', space=vmem, size = 0x12000, scoped, tag = 'internal scratch']
  #allocation2 [shape = 'f32[64,128]{1,0:T(8,128)}', space=vmem, size = 0x8000, scoped, tag = 'scratch operand']
  %s0 = inlined_call_operand.vmem [shape: f32[64,128], index: 0, kind: input, shape index: {}]
  %s1 = inlined_call_operand.vmem [shape: f32[6,24], index: 1, kind: input, shape index: {}]
  %s2 = inlined_call_operand.vmem [shape: f32[64,1], index: 2, kind: input, shape index: {}]
  %s3 = inlined_call_operand.vmem [shape: bf16[24,128], index: 3, kind: input, shape index: {}]
  %s4 = inlined_call_operand.hbm [shape: f32[1,128], index: 4, kind: input, shape index: {}]
  %s5 = inlined_call_operand.vmem [shape: bf16[128,32], index: 5, kind: input, shape index: {}]
  %s6 = inlined_call_operand.vmem [shape: bf16[128,32], index: 6, kind: input, shape index: {}]
  %s7 = inlined_call_operand.vmem [shape: bf16[128,128], index: 7, kind: input, shape index: {}]
  %s8 = inlined_call_operand.hbm [shape: f32[1,128], index: 8, kind: input, shape index: {}]
  %s9 = inlined_call_operand.hbm [shape: f32[1,128], index: 9, kind: input, shape index: {}]
  %s10 = inlined_call_operand.vmem [shape: bf16[128,128], index: 10, kind: input, shape index: {}]
  %s11 = inlined_call_operand.hbm [shape: f32[1,128], index: 11, kind: input, shape index: {}]
  %s12 = inlined_call_operand.hbm [shape: f32[1,128], index: 12, kind: input, shape index: {}]
  %s13 = inlined_call_operand.vmem [shape: f32[10,128], index: 13, kind: input, shape index: {}]
  %s14 = inlined_call_operand.hbm [shape: f32[1,128], index: 14, kind: input, shape index: {}]
  %s15 = inlined_call_operand.hbm [shape: f32[1,128], index: 15, kind: input, shape index: {}]
  %s16 = inlined_call_operand.vmem [shape: bf16[128,96], index: 16, kind: input, shape index: {}]
  %s17 = inlined_call_operand.hbm [shape: f32[1,96], index: 17, kind: input, shape index: {}]
  %s18 = inlined_call_operand.vmem [shape: bf16[32,128], index: 18, kind: input, shape index: {}]
  %s19 = inlined_call_operand.hbm [shape: f32[1,128], index: 19, kind: input, shape index: {}]
  %s20 = inlined_call_operand.hbm [shape: f32[1,128], index: 20, kind: input, shape index: {}]
  %s21 = inlined_call_operand.hbm [shape: f32[1,128], index: 21, kind: input, shape index: {}]
  %s22 = inlined_call_operand.vmem [shape: bf16[128,128], index: 22, kind: input, shape index: {}]
  %s23 = inlined_call_operand.hbm [shape: f32[1,128], index: 23, kind: input, shape index: {}]
  %s24 = inlined_call_operand.vmem [shape: bf16[128,128], index: 24, kind: input, shape index: {}]
  %s25 = inlined_call_operand.hbm [shape: f32[1,128], index: 25, kind: input, shape index: {}]
  %s26 = inlined_call_operand.vmem [shape: f32[6,128], index: 26, kind: output, shape index: {0}]
  %s27 = inlined_call_operand.vmem [shape: f32[64,128], index: 27, kind: output, shape index: {1}]
  %28 = xla_tuple %s26, %s27
  %s29 = sld [smem:[#allocation0]]
  $region174: #{image_encoder_forward.6} parent=0
    _
  %s31 = ssub.s32 1, %s29
  %s32 = scalar_select 0, %s31, %s29
  $region1: #{image_encoder_forward.6} parent=0
    #allocation3 [shape = 'u8[512]{0}', space=vmem, size = 0x400, scoped, tag = 'input window, operand 4, single buffered']
    #allocation4 [shape = 's32[1]{0}', space=sflag, size = 0x4, scoped, tag = 'scoped memory for image_encoder_forward.6']
    #allocation5 [shape = 'u8[512]{0}', space=vmem, size = 0x400, scoped, tag = 'input window, operand 8, single buffered']
    #allocation6 [shape = 's32[1]{0}', space=sflag, size = 0x4, scoped, tag = 'scoped memory for image_encoder_forward.6']
    #allocation7 [shape = 'u8[512]{0}', space=vmem, size = 0x400, scoped, tag = 'input window, operand 9, single buffered']
    #allocation8 [shape = 'u8[512]{0}', space=vmem, size = 0x400, scoped, tag = 'input window, operand 11, single buffered']
    #allocation9 [shape = 's32[1]{0}', space=sflag, size = 0x4, scoped, tag = 'scoped memory for image_encoder_forward.6']
    #allocation10 [shape = 'u8[512]{0}', space=vmem, size = 0x400, scoped, tag = 'input window, operand 12, single buffered']
    #allocation11 [shape = 'u8[512]{0}', space=vmem, size = 0x400, scoped, tag = 'input window, operand 14, single buffered']
    #allocation12 [shape = 's32[1]{0}', space=sflag, size = 0x4, scoped, tag = 'scoped memory for image_encoder_forward.6']
    #allocation13 [shape = 'u8[512]{0}', space=vmem, size = 0x400, scoped, tag = 'input window, operand 15, single buffered']
    #allocation14 [shape = 'u8[512]{0}', space=vmem, size = 0x400, scoped, tag = 'input window, operand 17, single buffered']
    #allocation15 [shape = 's32[1]{0}', space=sflag, size = 0x4, scoped, tag = 'scoped memory for image_encoder_forward.6']
    #allocation16 [shape = 'u8[512]{0}', space=vmem, size = 0x400, scoped, tag = 'input window, operand 19, single buffered']
    #allocation17 [shape = 'u8[512]{0}', space=vmem, size = 0x400, scoped, tag = 'input window, operand 20, single buffered']
    #allocation18 [shape = 's32[1]{0}', space=sflag, size = 0x4, scoped, tag = 'scoped memory for image_encoder_forward.6']
    #allocation19 [shape = 'u8[512]{0}', space=vmem, size = 0x400, scoped, tag = 'input window, operand 21, single buffered']
    #allocation20 [shape = 'u8[512]{0}', space=vmem, size = 0x400, scoped, tag = 'input window, operand 23, single buffered']
    #allocation21 [shape = 's32[1]{0}', space=sflag, size = 0x4, scoped, tag = 'scoped memory for image_encoder_forward.6']
    #allocation22 [shape = 'u8[512]{0}', space=vmem, size = 0x400, scoped, tag = 'input window, operand 25, single buffered']
    %33 = vsyncpa [#allocation4], 0
    %34 = vsyncpa [#allocation6], 0
    %35 = vsyncpa [#allocation9], 0
    %36 = vsyncpa [#allocation12], 0
    %37 = vsyncpa [#allocation15], 0
    %38 = vsyncpa [#allocation18], 0
    %39 = vsyncpa [#allocation21], 0
    // Predicated region
    $region2: #{image_encoder_forward.6} parent=1 // pred_check
      _
    $region3: #{image_encoder_forward.6} parent=1 // pred_check_branch
      %41 = sbr.rel (0) target = $region5
    $region4: #{image_encoder_forward.6} parent=1 // pred_region
      _
    $region5: #{image_encoder_forward.6} parent=1 // pred_fallthru
      _
    // Predicated region
    $region6: #{image_encoder_forward.6} parent=1 // pred_check
      _
    $region7: #{image_encoder_forward.6} parent=1 // pred_check_branch
      %43 = sbr.rel (0) target = $region9
    $region8: #{image_encoder_forward.6} parent=1 // pred_region
      _
    $region9: #{image_encoder_forward.6} parent=1 // pred_fallthru
      _
    // Predicated region
    $region10: #{image_encoder_forward.6} parent=1 // pred_check
      _
    $region11: #{image_encoder_forward.6} parent=1 // pred_check_branch
      %45 = sbr.rel (0) target = $region13
    $region12: #{image_encoder_forward.6} parent=1 // pred_region
      _
    $region13: #{image_encoder_forward.6} parent=1 // pred_fallthru
      _
    // Predicated region
    $region14: #{image_encoder_forward.6} parent=1 // pred_check
      _
    $region15: #{image_encoder_forward.6} parent=1 // pred_check_branch
      %47 = sbr.rel (0) target = $region17
    $region16: #{image_encoder_forward.6} parent=1 // pred_region
      _
    $region17: #{image_encoder_forward.6} parent=1 // pred_fallthru
      _
    // Predicated region
    $region18: #{image_encoder_forward.6} parent=1 // pred_check
      _
    $region19: #{image_encoder_forward.6} parent=1 // pred_check_branch
      %49 = sbr.rel (0) target = $region21
    $region20: #{image_encoder_forward.6} parent=1 // pred_region
      %s51 = ssub.s32 16, 16
      %52 = vsyncadd [#allocation4], %s51
      %s54 = sshll.u32 [#allocation3], 4
      %s55 = int_to_ptr.vmem [resolvable:$true] %s54
      %57 = dma.hbm_to_vmem [thread:$0]  %s4, 16, %s55, [#allocation4]
    $region21: #{image_encoder_forward.6} parent=1 // pred_fallthru
      _
    // Predicated region
    $region22: #{image_encoder_forward.6} parent=1 // pred_check
      _
    $region23: #{image_encoder_forward.6} parent=1 // pred_check_branch
      %59 = sbr.rel (0) target = $region25
    $region24: #{image_encoder_forward.6} parent=1 // pred_region
      _
    $region25: #{image_encoder_forward.6} parent=1 // pred_fallthru
      _
    // Predicated region
    $region26: #{image_encoder_forward.6} parent=1 // pred_check
      _
    $region27: #{image_encoder_forward.6} parent=1 // pred_check_branch
      %61 = sbr.rel (0) target = $region29
    $region28: #{image_encoder_forward.6} parent=1 // pred_region
      _
    $region29: #{image_encoder_forward.6} parent=1 // pred_fallthru
      _
    // Predicated region
    $region30: #{image_encoder_forward.6} parent=1 // pred_check
      _
    $region31: #{image_encoder_forward.6} parent=1 // pred_check_branch
      %63 = sbr.rel (0) target = $region33
    $region32: #{image_encoder_forward.6} parent=1 // pred_region
      _
    $region33: #{image_encoder_forward.6} parent=1 // pred_fallthru
      _
    // Predicated region
    $region34: #{image_encoder_forward.6} parent=1 // pred_check
      _
    $region35: #{image_encoder_forward.6} parent=1 // pred_check_branch
      %65 = sbr.rel (0) target = $region37
    $region36: #{image_encoder_forward.6} parent=1 // pred_region
      %s67 = ssub.s32 16, 16
      %68 = vsyncadd [#allocation6], %s67
      %s70 = sshll.u32 [#allocation5], 4
      %s71 = int_to_ptr.vmem [resolvable:$true] %s70
      %73 = dma.hbm_to_vmem [thread:$0]  %s8, 16, %s71, [#allocation6]
    $region37: #{image_encoder_forward.6} parent=1 // pred_fallthru
      _
    // Predicated region
    $region38: #{image_encoder_forward.6} parent=1 // pred_check
      _
    $region39: #{image_encoder_forward.6} parent=1 // pred_check_branch
      %75 = sbr.rel (0) target = $region41
    $region40: #{image_encoder_forward.6} parent=1 // pred_region
      %s77 = ssub.s32 16, 16
      %78 = vsyncadd [#allocation6], %s77
      %s80 = sshll.u32 [#allocation7], 4
      %s81 = int_to_ptr.vmem [resolvable:$true] %s80
      %83 = dma.hbm_to_vmem [thread:$0]  %s9, 16, %s81, [#allocation6]
    $region41: #{image_encoder_forward.6} parent=1 // pred_fallthru
      _
    // Predicated region
    $region42: #{image_encoder_forward.6} parent=1 // pred_check
      _
    $region43: #{image_encoder_forward.6} parent=1 // pred_check_branch
      %85 = sbr.rel (0) target = $region45
    $region44: #{image_encoder_forward.6} parent=1 // pred_region
      _
    $region45: #{image_encoder_forward.6} parent=1 // pred_fallthru
      _
    // Predicated region
    $region46: #{image_encoder_forward.6} parent=1 // pred_check
      _
    $region47: #{image_encoder_forward.6} parent=1 // pred_check_branch
      %87 = sbr.rel (0) target = $region49
    $region48: #{image_encoder_forward.6} parent=1 // pred_region
      %s89 = ssub.s32 16, 16
      %90 = vsyncadd [#allocation9], %s89
      %s92 = sshll.u32 [#allocation8], 4
      %s93 = int_to_ptr.vmem [resolvable:$true] %s92
      %95 = dma.hbm_to_vmem [thread:$0]  %s11, 16, %s93, [#allocation9]
    $region49: #{image_encoder_forward.6} parent=1 // pred_fallthru
      _
    // Predicated region
    $region50: #{image_encoder_forward.6} parent=1 // pred_check
      _
    $region51: #{image_encoder_forward.6} parent=1 // pred_check_branch
      %97 = sbr.rel (0) target = $region53
    $region52: #{image_encoder_forward.6} parent=1 // pred_region
      %s99 = ssub.s32 16, 16
      %100 = vsyncadd [#allocation9], %s99
      %s102 = sshll.u32 [#allocation10], 4
      %s103 = int_to_ptr.vmem [resolvable:$true] %s102
      %105 = dma.hbm_to_vmem [thread:$0]  %s12, 16, %s103, [#allocation9]
    $region53: #{image_encoder_forward.6} parent=1 // pred_fallthru
      _
    // Predicated region
    $region54: #{image_encoder_forward.6} parent=1 // pred_check
      _
    $region55: #{image_encoder_forward.6} parent=1 // pred_check_branch
      %107 = sbr.rel (0) target = $region57
    $region56: #{image_encoder_forward.6} parent=1 // pred_region
      _
    $region57: #{image_encoder_forward.6} parent=1 // pred_fallthru
      _
    // Predicated region
    $region58: #{image_encoder_forward.6} parent=1 // pred_check
      _
    $region59: #{image_encoder_forward.6} parent=1 // pred_check_branch
      %109 = sbr.rel (0) target = $region61
    $region60: #{image_encoder_forward.6} parent=1 // pred_region
      %s111 = ssub.s32 16, 16
      %112 = vsyncadd [#allocation12], %s111
      %s114 = sshll.u32 [#allocation11], 4
      %s115 = int_to_ptr.vmem [resolvable:$true] %s114
      %117 = dma.hbm_to_vmem [thread:$0]  %s14, 16, %s115, [#allocation12]
    $region61: #{image_encoder_forward.6} parent=1 // pred_fallthru
      _
    // Predicated region
    $region62: #{image_encoder_forward.6} parent=1 // pred_check
      _
    $region63: #{image_encoder_forward.6} parent=1 // pred_check_branch
      %119 = sbr.rel (0) target = $region65
    $region64: #{image_encoder_forward.6} parent=1 // pred_region
      %s121 = ssub.s32 16, 16
      %122 = vsyncadd [#allocation12], %s121
      %s124 = sshll.u32 [#allocation13], 4
      %s125 = int_to_ptr.vmem [resolvable:$true] %s124
      %127 = dma.hbm_to_vmem [thread:$0]  %s15, 16, %s125, [#allocation12]
    $region65: #{image_encoder_forward.6} parent=1 // pred_fallthru
      _
    // Predicated region
    $region66: #{image_encoder_forward.6} parent=1 // pred_check
      _
    $region67: #{image_encoder_forward.6} parent=1 // pred_check_branch
      %129 = sbr.rel (0) target = $region69
    $region68: #{image_encoder_forward.6} parent=1 // pred_region
      _
    $region69: #{image_encoder_forward.6} parent=1 // pred_fallthru
      _
    // Predicated region
    $region70: #{image_encoder_forward.6} parent=1 // pred_check
      _
    $region71: #{image_encoder_forward.6} parent=1 // pred_check_branch
      %131 = sbr.rel (0) target = $region73
    $region72: #{image_encoder_forward.6} parent=1 // pred_region
      %s133 = ssub.s32 16, 16
      %134 = vsyncadd [#allocation15], %s133
      %s136 = sshll.u32 [#allocation14], 4
      %s137 = int_to_ptr.vmem [resolvable:$true] %s136
      %139 = dma.hbm_to_vmem [thread:$0]  %s17, 16, %s137, [#allocation15]
    $region73: #{image_encoder_forward.6} parent=1 // pred_fallthru
      _
    // Predicated region
    $region74: #{image_encoder_forward.6} parent=1 // pred_check
      _
    $region75: #{image_encoder_forward.6} parent=1 // pred_check_branch
      %141 = sbr.rel (0) target = $region77
    $region76: #{image_encoder_forward.6} parent=1 // pred_region
      _
    $region77: #{image_encoder_forward.6} parent=1 // pred_fallthru
      _
    // Predicated region
    $region78: #{image_encoder_forward.6} parent=1 // pred_check
      _
    $region79: #{image_encoder_forward.6} parent=1 // pred_check_branch
      %143 = sbr.rel (0) target = $region81
    $region80: #{image_encoder_forward.6} parent=1 // pred_region
      %s145 = ssub.s32 16, 16
      %146 = vsyncadd [#allocation15], %s145
      %s148 = sshll.u32 [#allocation16], 4
      %s149 = int_to_ptr.vmem [resolvable:$true] %s148
      %151 = dma.hbm_to_vmem [thread:$0]  %s19, 16, %s149, [#allocation15]
    $region81: #{image_encoder_forward.6} parent=1 // pred_fallthru
      _
    // Predicated region
    $region82: #{image_encoder_forward.6} parent=1 // pred_check
      _
    $region83: #{image_encoder_forward.6} parent=1 // pred_check_branch
      %153 = sbr.rel (0) target = $region85
    $region84: #{image_encoder_forward.6} parent=1 // pred_region
      %s155 = ssub.s32 16, 16
      %156 = vsyncadd [#allocation18], %s155
      %s158 = sshll.u32 [#allocation17], 4
      %s159 = int_to_ptr.vmem [resolvable:$true] %s158
      %161 = dma.hbm_to_vmem [thread:$0]  %s20, 16, %s159, [#allocation18]
    $region85: #{image_encoder_forward.6} parent=1 // pred_fallthru
      _
    // Predicated region
    $region86: #{image_encoder_forward.6} parent=1 // pred_check
      _
    $region87: #{image_encoder_forward.6} parent=1 // pred_check_branch
      %163 = sbr.rel (0) target = $region89
    $region88: #{image_encoder_forward.6} parent=1 // pred_region
      %s165 = ssub.s32 16, 16
      %166 = vsyncadd [#allocation18], %s165
      %s168 = sshll.u32 [#allocation19], 4
      %s169 = int_to_ptr.vmem [resolvable:$true] %s168
      %171 = dma.hbm_to_vmem [thread:$0]  %s21, 16, %s169, [#allocation18]
    $region89: #{image_encoder_forward.6} parent=1 // pred_fallthru
      _
    // Predicated region
    $region90: #{image_encoder_forward.6} parent=1 // pred_check
      _
    $region91: #{image_encoder_forward.6} parent=1 // pred_check_branch
      %173 = sbr.rel (0) target = $region93
    $region92: #{image_encoder_forward.6} parent=1 // pred_region
      _
    $region93: #{image_encoder_forward.6} parent=1 // pred_fallthru
      _
    // Predicated region
    $region94: #{image_encoder_forward.6} parent=1 // pred_check
      _
    $region95: #{image_encoder_forward.6} parent=1 // pred_check_branch
      %175 = sbr.rel (0) target = $region97
    $region96: #{image_encoder_forward.6} parent=1 // pred_region
      %s177 = ssub.s32 16, 16
      %178 = vsyncadd [#allocation21], %s177
      %s180 = sshll.u32 [#allocation20], 4
      %s181 = int_to_ptr.vmem [resolvable:$true] %s180
      %183 = dma.hbm_to_vmem [thread:$0]  %s23, 16, %s181, [#allocation21]
    $region97: #{image_encoder_forward.6} parent=1 // pred_fallthru
      _
    // Predicated region
    $region98: #{image_encoder_forward.6} parent=1 // pred_check
      _
    $region99: #{image_encoder_forward.6} parent=1 // pred_check_branch
      %185 = sbr.rel (0) target = $region101
    $region100: #{image_encoder_forward.6} parent=1 // pred_region
      _
    $region101: #{image_encoder_forward.6} parent=1 // pred_fallthru
      _
    // Predicated region
    $region102: #{image_encoder_forward.6} parent=1 // pred_check
      _
    $region103: #{image_encoder_forward.6} parent=1 // pred_check_branch
      %187 = sbr.rel (0) target = $region105
    $region104: #{image_encoder_forward.6} parent=1 // pred_region
      %s189 = ssub.s32 16, 16
      %190 = vsyncadd [#allocation21], %s189
      %s192 = sshll.u32 [#allocation22], 4
      %s193 = int_to_ptr.vmem [resolvable:$true] %s192
      %195 = dma.hbm_to_vmem [thread:$0]  %s25, 16, %s193, [#allocation21]
    $region105: #{image_encoder_forward.6} parent=1 // pred_fallthru
      _
    // Predicated region
    $region106: #{image_encoder_forward.6} parent=1 // pred_check
      _
    $region107: #{image_encoder_forward.6} parent=1 // pred_check_branch
      %197 = sbr.rel (0) target = $region109
    $region108: #{image_encoder_forward.6} parent=1 // pred_region
      %198 = dma.done [#allocation4], 16
    $region109: #{image_encoder_forward.6} parent=1 // pred_fallthru
      _
    // Predicated region
    $region110: #{image_encoder_forward.6} parent=1 // pred_check
      _
    $region111: #{image_encoder_forward.6} parent=1 // pred_check_branch
      %200 = sbr.rel (0) target = $region113
    $region112: #{image_encoder_forward.6} parent=1 // pred_region
      %201 = dma.done [#allocation6], 16
    $region113: #{image_encoder_forward.6} parent=1 // pred_fallthru
      _
    // Predicated region
    $region114: #{image_encoder_forward.6} parent=1 // pred_check
      _
    $region115: #{image_encoder_forward.6} parent=1 // pred_check_branch
      %203 = sbr.rel (0) target = $region117
    $region116: #{image_encoder_forward.6} parent=1 // pred_region
      %204 = dma.done [#allocation6], 16
    $region117: #{image_encoder_forward.6} parent=1 // pred_fallthru
      _
    // Predicated region
    $region118: #{image_encoder_forward.6} parent=1 // pred_check
      _
    $region119: #{image_encoder_forward.6} parent=1 // pred_check_branch
      %206 = sbr.rel (0) target = $region121
    $region120: #{image_encoder_forward.6} parent=1 // pred_region
      %207 = dma.done [#allocation9], 16
    $region121: #{image_encoder_forward.6} parent=1 // pred_fallthru
      _
    // Predicated region
    $region122: #{image_encoder_forward.6} parent=1 // pred_check
      _
    $region123: #{image_encoder_forward.6} parent=1 // pred_check_branch
      %209 = sbr.rel (0) target = $region125
    $region124: #{image_encoder_forward.6} parent=1 // pred_region
      %210 = dma.done [#allocation9], 16
    $region125: #{image_encoder_forward.6} parent=1 // pred_fallthru
      _
    // Predicated region
    $region126: #{image_encoder_forward.6} parent=1 // pred_check
      _
    $region127: #{image_encoder_forward.6} parent=1 // pred_check_branch
      %212 = sbr.rel (0) target = $region129
    $region128: #{image_encoder_forward.6} parent=1 // pred_region
      %213 = dma.done [#allocation12], 16
    $region129: #{image_encoder_forward.6} parent=1 // pred_fallthru
      _
    // Predicated region
    $region130: #{image_encoder_forward.6} parent=1 // pred_check
      _
    $region131: #{image_encoder_forward.6} parent=1 // pred_check_branch
      %215 = sbr.rel (0) target = $region133
    $region132: #{image_encoder_forward.6} parent=1 // pred_region
      %216 = dma.done [#allocation12], 16
    $region133: #{image_encoder_forward.6} parent=1 // pred_fallthru
      _
    // Predicated region
    $region134: #{image_encoder_forward.6} parent=1 // pred_check
      _
    $region135: #{image_encoder_forward.6} parent=1 // pred_check_branch
      %218 = sbr.rel (0) target = $region137
    $region136: #{image_encoder_forward.6} parent=1 // pred_region
      %219 = dma.done [#allocation15], 16
    $region137: #{image_encoder_forward.6} parent=1 // pred_fallthru
      _
    // Predicated region
    $region138: #{image_encoder_forward.6} parent=1 // pred_check
      _
    $region139: #{image_encoder_forward.6} parent=1 // pred_check_branch
      %221 = sbr.rel (0) target = $region141
    $region140: #{image_encoder_forward.6} parent=1 // pred_region
      %222 = dma.done [#allocation15], 16
    $region141: #{image_encoder_forward.6} parent=1 // pred_fallthru
      _
    // Predicated region
    $region142: #{image_encoder_forward.6} parent=1 // pred_check
      _
    $region143: #{image_encoder_forward.6} parent=1 // pred_check_branch
      %224 = sbr.rel (0) target = $region145
    $region144: #{image_encoder_forward.6} parent=1 // pred_region
      %225 = dma.done [#allocation18], 16
    $region145: #{image_encoder_forward.6} parent=1 // pred_fallthru
      _
    // Predicated region
    $region146: #{image_encoder_forward.6} parent=1 // pred_check
      _
    $region147: #{image_encoder_forward.6} parent=1 // pred_check_branch
      %227 = sbr.rel (0) target = $region149
    $region148: #{image_encoder_forward.6} parent=1 // pred_region
      %228 = dma.done [#allocation18], 16
    $region149: #{image_encoder_forward.6} parent=1 // pred_fallthru
      _
    // Predicated region
    $region150: #{image_encoder_forward.6} parent=1 // pred_check
      _
    $region151: #{image_encoder_forward.6} parent=1 // pred_check_branch
      %230 = sbr.rel (0) target = $region153
    $region152: #{image_encoder_forward.6} parent=1 // pred_region
      %231 = dma.done [#allocation21], 16
    $region153: #{image_encoder_forward.6} parent=1 // pred_fallthru
      _
    // Predicated region
    $region154: #{image_encoder_forward.6} parent=1 // pred_check
      _
    $region155: #{image_encoder_forward.6} parent=1 // pred_check_branch
      %233 = sbr.rel (0) target = $region157
    $region156: #{image_encoder_forward.6} parent=1 // pred_region
      %234 = dma.done [#allocation21], 16
    $region157: #{image_encoder_forward.6} parent=1 // pred_fallthru
      _
    %v236 = vld [vmem:[%s0] sm:$0xff]
    %v237 = vld [vmem:[%s0 + $0x8] sm:$0xff]
    %v238 = vld [vmem:[%s0 + $0x10] sm:$0xff]
    %v239 = vld [vmem:[%s0 + $0x18] sm:$0xff]
    %v240 = vld [vmem:[%s0 + $0x20] sm:$0xff]
    %v241 = vld [vmem:[%s0 + $0x28] sm:$0xff]
    %v242 = vld [vmem:[%s0 + $0x30] sm:$0xff]
    %v243 = vld [vmem:[%s0 + $0x38] sm:$0xff]
    %v244 = vld [vmem:[%s13] sm:$0xff]
    %v245 = vld [vmem:[%s13 + $0x8] sm:$0x3]
    %v246 = vld [vmem:[%s1] sm:$0x3f]
    %v247 = vpack.c.bf16 %v246, %v246
    %v248 = vld [vmem:[%s3] sm:$0xf]
    %v249 = vld [vmem:[%s3 + $0x4] sm:$0xf]
    %v250 = vld [vmem:[%s3 + $0x8] sm:$0xf]
    %v251 = vld [vmem:[#allocation3] sm:$0x1]
    %v253 = vlaneseq
    %v254 = vshrl.u32 %v253, 7
    %v255 = vsub.s32 0, %v254
    %v256 = vrot.slane %v251, %v255
    %v261 = vunpack.c.l.b16 %v248
    %v262 = vunpack.c.l.b16 %v249
    %v263 = vunpack.c.l.b16 %v250
    %v264 = vpack.c.b16 %v262, %v261
    %v265 = vpack.c.b16 %v263, %v263
    %vm267 = vcmask 195584
    %v269 = vsel %vm267, %v247, 0
    %vm271 = vcmask 1043456
    %v273 = vsel %vm271, %v265, 0
    %275 = vmatprep.subr.bf16.mxu0 0
    %276 = vmatpush1.bf16.msra.mxu0 0
    %277 = vmatprep.subr.bf16.mxu0 0
    %278 = vmatpush1.bf16.msra.mxu0 0
    %279 = vmatprep.subr.bf16.mxu0 0
    %280 = vmatpush1.bf16.msra.mxu0 0
    %281 = vmatprep.subr.bf16.mxu0 0
    %282 = vmatpush1.bf16.msra.mxu0 0
    %283 = vmatprep.subr.bf16.mxu0 0
    %284 = vmatpush1.bf16.msra.mxu0 0
    %285 = vmatprep.subr.bf16.mxu0 0
    %286 = vmatpush1.bf16.msra.mxu0 0
    %287 = vmatprep.subr.bf16.mxu0 0
    %288 = vmatpush1.bf16.msra.mxu0 %v273
    %289 = vmatprep.subr.bf16.mxu0 0
    %290 = vmatpush1.bf16.msra.mxu0 %v264
    %291 = vmatprep.subr.bf16.mxu0 0
    %292 = vmatpush2.bf16.msra.mxu0 0
    %293 = vmatprep.subr.bf16.mxu0 0
    %294 = vmatpush2.bf16.msra.mxu0 0
    %295 = vmatprep.subr.bf16.mxu0 0
    %296 = vmatpush2.bf16.msra.mxu0 0
    %297 = vmatprep.subr.bf16.mxu0 0
    %298 = vmatpush2.bf16.msra.mxu0 0
    %299 = vmatprep.subr.bf16.mxu0 0
    %300 = vmatpush2.bf16.msra.mxu0 0
    %301 = vmatprep.subr.bf16.mxu0 0
    %302 = vmatpush2.bf16.msra.mxu0 0
    %303 = vmatprep.subr.bf16.mxu0 0
    %304 = vmatpush2.bf16.msra.mxu0 0
    %305 = vmatprep.subr.bf16.mxu0 0
    %306 = vmatpush2.bf16.msra.mxu0 0
    %307 = vmatprep.mubr.bf16.mxu0 0
    %308 = vmatmul.mubr.bf16.gmra.mxu0 %v269
    %v309 = vpop.f32.mrf.mxu0
    %v310 = vadd.f32 %v256, %v309
    %v311 = vpop.f32.mrf.mxu0
    %v312 = vpop.f32.mrf.mxu0
    %v313 = vpop.f32.mrf.mxu0
    %314 = vdwg.mxu0
    %v315 = vpack.c.bf16 %v245, %v244
    %v316 = vld [vmem:[%s6] sm:$0xf]
    %v317 = vld [vmem:[%s6 + $0x4] sm:$0xf]
    %v318 = vld [vmem:[%s6 + $0x8] sm:$0xf]
    %v319 = vld [vmem:[%s6 + $0xc] sm:$0xf]
    %v320 = vld [vmem:[%s6 + $0x10] sm:$0xf]
    %v321 = vld [vmem:[%s6 + $0x14] sm:$0xf]
    %v322 = vld [vmem:[%s6 + $0x18] sm:$0xf]
    %v323 = vld [vmem:[%s6 + $0x1c] sm:$0xf]
    %v324 = vld [vmem:[%s6 + $0x20] sm:$0xf]
    %v325 = vld [vmem:[%s6 + $0x24] sm:$0xf]
    %v326 = vld [vmem:[%s6 + $0x28] sm:$0xf]
    %v327 = vld [vmem:[%s6 + $0x2c] sm:$0xf]
    %v328 = vld [vmem:[%s6 + $0x30] sm:$0xf]
    %v329 = vld [vmem:[%s6 + $0x34] sm:$0xf]
    %v330 = vld [vmem:[%s6 + $0x38] sm:$0xf]
    %v331 = vld [vmem:[%s6 + $0x3c] sm:$0xf]
    %v348 = vunpack.c.l.b16 %v316
    %v349 = vunpack.c.l.b16 %v317
    %v350 = vunpack.c.l.b16 %v318
    %v351 = vunpack.c.l.b16 %v319
    %v352 = vunpack.c.l.b16 %v320
    %v353 = vunpack.c.l.b16 %v321
    %v354 = vunpack.c.l.b16 %v322
    %v355 = vunpack.c.l.b16 %v323
    %v356 = vunpack.c.l.b16 %v324
    %v357 = vunpack.c.l.b16 %v325
    %v358 = vunpack.c.l.b16 %v326
    %v359 = vunpack.c.l.b16 %v327
    %v360 = vunpack.c.l.b16 %v328
    %v361 = vunpack.c.l.b16 %v329
    %v362 = vunpack.c.l.b16 %v330
    %v363 = vunpack.c.l.b16 %v331
    %v364 = vpack.c.b16 %v349, %v348
    %v365 = vpack.c.b16 %v351, %v350
    %v366 = vpack.c.b16 %v353, %v352
    %v367 = vpack.c.b16 %v355, %v354
    %v368 = vpack.c.b16 %v357, %v356
    %v369 = vpack.c.b16 %v359, %v358
    %v370 = vpack.c.b16 %v361, %v360
    %v371 = vpack.c.b16 %v363, %v362
    %380 = vmatprep.subr.bf16.mxu0 0
    %381 = vmatpush1.bf16.msra.mxu0 %v371
    %382 = vmatprep.subr.bf16.mxu0 0
    %383 = vmatpush1.bf16.msra.mxu0 %v370
    %384 = vmatprep.subr.bf16.mxu0 0
    %385 = vmatpush1.bf16.msra.mxu0 %v369
    %386 = vmatprep.subr.bf16.mxu0 0
    %387 = vmatpush1.bf16.msra.mxu0 %v368
    %388 = vmatprep.subr.bf16.mxu0 0
    %389 = vmatpush1.bf16.msra.mxu0 %v367
    %390 = vmatprep.subr.bf16.mxu0 0
    %391 = vmatpush1.bf16.msra.mxu0 %v366
    %392 = vmatprep.subr.bf16.mxu0 0
    %393 = vmatpush1.bf16.msra.mxu0 %v365
    %394 = vmatprep.subr.bf16.mxu0 0
    %395 = vmatpush1.bf16.msra.mxu0 %v364
    %396 = vmatprep.subr.bf16.mxu0 0
    %397 = vmatpush2.bf16.msra.mxu0 0
    %398 = vmatprep.subr.bf16.mxu0 0
    %399 = vmatpush2.bf16.msra.mxu0 0
    %400 = vmatprep.subr.bf16.mxu0 0
    %401 = vmatpush2.bf16.msra.mxu0 0
    %402 = vmatprep.subr.bf16.mxu0 0
    %403 = vmatpush2.bf16.msra.mxu0 0
    %404 = vmatprep.subr.bf16.mxu0 0
    %405 = vmatpush2.bf16.msra.mxu0 0
    %406 = vmatprep.subr.bf16.mxu0 0
    %407 = vmatpush2.bf16.msra.mxu0 0
    %408 = vmatprep.subr.bf16.mxu0 0
    %409 = vmatpush2.bf16.msra.mxu0 0
    %410 = vmatprep.subr.bf16.mxu0 0
    %411 = vmatpush2.bf16.msra.mxu0 0
    %412 = vmatprep.mubr.bf16.mxu0 0
    %413 = vmatmul.mubr.bf16.gmra.mxu0 %v315
    %v414 = vpop.f32.mrf.mxu0
    %v415 = vadd.f32 0.0, %v414
    %v416 = vpop.f32.mrf.mxu0
    %v417 = vpop.f32.mrf.mxu0
    %v418 = vadd.f32 0.0, %v417
    %v419 = vpop.f32.mrf.mxu0
    %420 = vdwg.mxu0
    %v421 = vld [vmem:[%s2] sm:$0xff]
    %v422 = vld [vmem:[%s2 + $0x8] sm:$0xff]
    %v423 = vld [vmem:[%s2 + $0x10] sm:$0xff]
    %v424 = vld [vmem:[%s2 + $0x18] sm:$0xff]
    %v425 = vld [vmem:[%s2 + $0x20] sm:$0xff]
    %v426 = vld [vmem:[%s2 + $0x28] sm:$0xff]
    %v427 = vld [vmem:[%s2 + $0x30] sm:$0xff]
    %v428 = vld [vmem:[%s2 + $0x38] sm:$0xff]
    %430 = vset.pattern.permute.xlu0 0
    %431 = vperm.xlu0 %430, %v421
    %v432 = vpop.permute.xlu0 %431
    %435 = vset.pattern.permute.xlu0 0
    %436 = vperm.xlu0 %435, %v422
    %v437 = vpop.permute.xlu0 %436
    %440 = vset.pattern.permute.xlu0 0
    %441 = vperm.xlu0 %440, %v423
    %v442 = vpop.permute.xlu0 %441
    %445 = vset.pattern.permute.xlu0 0
    %446 = vperm.xlu0 %445, %v424
    %v447 = vpop.permute.xlu0 %446
    %450 = vset.pattern.permute.xlu0 0
    %451 = vperm.xlu0 %450, %v425
    %v452 = vpop.permute.xlu0 %451
    %455 = vset.pattern.permute.xlu0 0
    %456 = vperm.xlu0 %455, %v426
    %v457 = vpop.permute.xlu0 %456
    %460 = vset.pattern.permute.xlu0 0
    %461 = vperm.xlu0 %460, %v427
    %v462 = vpop.permute.xlu0 %461
    %465 = vset.pattern.permute.xlu0 0
    %466 = vperm.xlu0 %465, %v428
    %v467 = vpop.permute.xlu0 %466
    %v469 = vmul.f32 %v236, %v432
    %v470 = vmul.f32 %v237, %v437
    %v471 = vmul.f32 %v238, %v442
    %v472 = vmul.f32 %v239, %v447
    %v473 = vmul.f32 %v240, %v452
    %v474 = vmul.f32 %v241, %v457
    %v475 = vmul.f32 %v242, %v462
    %v476 = vmul.f32 %v243, %v467
    %477 = vst [vmem:[#allocation2] sm:$0xff] %v469
    %478 = vst [vmem:[#allocation2 + $0x8] sm:$0xff] %v470
    %479 = vst [vmem:[#allocation2 + $0x10] sm:$0xff] %v471
    %480 = vst [vmem:[#allocation2 + $0x18] sm:$0xff] %v472
    %481 = vst [vmem:[#allocation2 + $0x20] sm:$0xff] %v473
    %482 = vst [vmem:[#allocation2 + $0x28] sm:$0xff] %v474
    %483 = vst [vmem:[#allocation2 + $0x30] sm:$0xff] %v475
    %484 = vst [vmem:[#allocation2 + $0x38] sm:$0xff] %v476
    %v485 = vpack.c.bf16 %v237, %v236
    %v486 = vpack.c.bf16 %v238, %v238
    %v487 = vpack.c.bf16 %v310, %v310
    %v488 = vld [vmem:[%s5] sm:$0xf]
    %v489 = vld [vmem:[%s5 + $0x4] sm:$0xf]
    %v490 = vld [vmem:[%s5 + $0x8] sm:$0xf]
    %v491 = vld [vmem:[%s5 + $0xc] sm:$0xf]
    %v492 = vld [vmem:[%s5 + $0x10] sm:$0xf]
    %v493 = vld [vmem:[%s5 + $0x14] sm:$0xf]
    %v494 = vld [vmem:[%s5 + $0x18] sm:$0xf]
    %v495 = vld [vmem:[%s5 + $0x1c] sm:$0xf]
    %v496 = vld [vmem:[%s5 + $0x20] sm:$0xf]
    %v497 = vld [vmem:[%s5 + $0x24] sm:$0xf]
    %v498 = vld [vmem:[%s5 + $0x28] sm:$0xf]
    %v499 = vld [vmem:[%s5 + $0x2c] sm:$0xf]
    %v500 = vld [vmem:[%s5 + $0x30] sm:$0xf]
    %v501 = vld [vmem:[%s5 + $0x34] sm:$0xf]
    %v502 = vld [vmem:[%s5 + $0x38] sm:$0xf]
    %v503 = vld [vmem:[%s5 + $0x3c] sm:$0xf]
    %v520 = vunpack.c.l.b16 %v488
    %v521 = vunpack.c.l.b16 %v489
    %v522 = vunpack.c.l.b16 %v490
    %v523 = vunpack.c.l.b16 %v491
    %v524 = vunpack.c.l.b16 %v492
    %v525 = vunpack.c.l.b16 %v493
    %v526 = vunpack.c.l.b16 %v494
    %v527 = vunpack.c.l.b16 %v495
    %v528 = vunpack.c.l.b16 %v496
    %v529 = vunpack.c.l.b16 %v497
    %v530 = vunpack.c.l.b16 %v498
    %v531 = vunpack.c.l.b16 %v499
    %v532 = vunpack.c.l.b16 %v500
    %v533 = vunpack.c.l.b16 %v501
    %v534 = vunpack.c.l.b16 %v502
    %v535 = vunpack.c.l.b16 %v503
    %v536 = vpack.c.b16 %v521, %v520
    %v537 = vpack.c.b16 %v523, %v522
    %v538 = vpack.c.b16 %v525, %v524
    %v539 = vpack.c.b16 %v527, %v526
    %v540 = vpack.c.b16 %v529, %v528
    %v541 = vpack.c.b16 %v531, %v530
    %v542 = vpack.c.b16 %v533, %v532
    %v543 = vpack.c.b16 %v535, %v534
    %552 = vmatprep.subr.bf16.mxu0 0
    %553 = vmatpush1.bf16.msra.mxu0 %v543
    %554 = vmatprep.subr.bf16.mxu0 0
    %555 = vmatpush1.bf16.msra.mxu0 %v542
    %556 = vmatprep.subr.bf16.mxu0 0
    %557 = vmatpush1.bf16.msra.mxu0 %v541
    %558 = vmatprep.subr.bf16.mxu0 0
    %559 = vmatpush1.bf16.msra.mxu0 %v540
    %560 = vmatprep.subr.bf16.mxu0 0
    %561 = vmatpush1.bf16.msra.mxu0 %v539
    %562 = vmatprep.subr.bf16.mxu0 0
    %563 = vmatpush1.bf16.msra.mxu0 %v538
    %564 = vmatprep.subr.bf16.mxu0 0
    %565 = vmatpush1.bf16.msra.mxu0 %v537
    %566 = vmatprep.subr.bf16.mxu0 0
    %567 = vmatpush1.bf16.msra.mxu0 %v536
    %568 = vmatprep.subr.bf16.mxu0 0
    %569 = vmatpush2.bf16.msra.mxu0 0
    %570 = vmatprep.subr.bf16.mxu0 0
    %571 = vmatpush2.bf16.msra.mxu0 0
    %572 = vmatprep.subr.bf16.mxu0 0
    %573 = vmatpush2.bf16.msra.mxu0 0
    %574 = vmatprep.subr.bf16.mxu0 0
    %575 = vmatpush2.bf16.msra.mxu0 0
    %576 = vmatprep.subr.bf16.mxu0 0
    %577 = vmatpush2.bf16.msra.mxu0 0
    %578 = vmatprep.subr.bf16.mxu0 0
    %579 = vmatpush2.bf16.msra.mxu0 0
    %580 = vmatprep.subr.bf16.mxu0 0
    %581 = vmatpush2.bf16.msra.mxu0 0
    %582 = vmatprep.subr.bf16.mxu0 0
    %583 = vmatpush2.bf16.msra.mxu0 0
    %584 = vmatprep.mubr.bf16.mxu0 0
    %585 = vmatmul.mubr.bf16.gmra.mxu0 %v487
    %v586 = vpop.f32.mrf.mxu0
    %v587 = vadd.f32 0.0, %v586
    %v588 = vpop.f32.mrf.mxu0
    %v589 = vpop.f32.mrf.mxu0
    %v590 = vpop.f32.mrf.mxu0
    %591 = vdwg.mxu0
    %v592 = vld [vmem:[%s6] sm:$0xf]
    %v593 = vld [vmem:[%s6 + $0x4] sm:$0xf]
    %v594 = vld [vmem:[%s6 + $0x8] sm:$0xf]
    %v595 = vld [vmem:[%s6 + $0xc] sm:$0xf]
    %v596 = vld [vmem:[%s6 + $0x10] sm:$0xf]
    %v597 = vld [vmem:[%s6 + $0x14] sm:$0xf]
    %v598 = vld [vmem:[%s6 + $0x18] sm:$0xf]
    %v599 = vld [vmem:[%s6 + $0x1c] sm:$0xf]
    %v600 = vld [vmem:[%s6 + $0x20] sm:$0xf]
    %v601 = vld [vmem:[%s6 + $0x24] sm:$0xf]
    %v602 = vld [vmem:[%s6 + $0x28] sm:$0xf]
    %v603 = vld [vmem:[%s6 + $0x2c] sm:$0xf]
    %v604 = vld [vmem:[%s6 + $0x30] sm:$0xf]
    %v605 = vld [vmem:[%s6 + $0x34] sm:$0xf]
    %v606 = vld [vmem:[%s6 + $0x38] sm:$0xf]
    %v607 = vld [vmem:[%s6 + $0x3c] sm:$0xf]
    %v624 = vunpack.c.l.b16 %v592
    %v625 = vunpack.c.l.b16 %v593
    %v626 = vunpack.c.l.b16 %v594
    %v627 = vunpack.c.l.b16 %v595
    %v628 = vunpack.c.l.b16 %v596
    %v629 = vunpack.c.l.b16 %v597
    %v630 = vunpack.c.l.b16 %v598
    %v631 = vunpack.c.l.b16 %v599
    %v632 = vunpack.c.l.b16 %v600
    %v633 = vunpack.c.l.b16 %v601
    %v634 = vunpack.c.l.b16 %v602
    %v635 = vunpack.c.l.b16 %v603
    %v636 = vunpack.c.l.b16 %v604
    %v637 = vunpack.c.l.b16 %v605
    %v638 = vunpack.c.l.b16 %v606
    %v639 = vunpack.c.l.b16 %v607
    %v640 = vpack.c.b16 %v625, %v624
    %v641 = vpack.c.b16 %v627, %v626
    %v642 = vpack.c.b16 %v629, %v628
    %v643 = vpack.c.b16 %v631, %v630
    %v644 = vpack.c.b16 %v633, %v632
    %v645 = vpack.c.b16 %v635, %v634
    %v646 = vpack.c.b16 %v637, %v636
    %v647 = vpack.c.b16 %v639, %v638
    %656 = vmatprep.subr.bf16.mxu0 0
    %657 = vmatpush1.bf16.msra.mxu0 %v647
    %658 = vmatprep.subr.bf16.mxu0 0
    %659 = vmatpush1.bf16.msra.mxu0 %v646
    %660 = vmatprep.subr.bf16.mxu0 0
    %661 = vmatpush1.bf16.msra.mxu0 %v645
    %662 = vmatprep.subr.bf16.mxu0 0
    %663 = vmatpush1.bf16.msra.mxu0 %v644
    %664 = vmatprep.subr.bf16.mxu0 0
    %665 = vmatpush1.bf16.msra.mxu0 %v643
    %666 = vmatprep.subr.bf16.mxu0 0
    %667 = vmatpush1.bf16.msra.mxu0 %v642
    %668 = vmatprep.subr.bf16.mxu0 0
    %669 = vmatpush1.bf16.msra.mxu0 %v641
    %670 = vmatprep.subr.bf16.mxu0 0
    %671 = vmatpush1.bf16.msra.mxu0 %v640
    %672 = vmatprep.subr.bf16.mxu0 0
    %673 = vmatpush2.bf16.msra.mxu0 0
    %674 = vmatprep.subr.bf16.mxu0 0
    %675 = vmatpush2.bf16.msra.mxu0 0
    %676 = vmatprep.subr.bf16.mxu0 0
    %677 = vmatpush2.bf16.msra.mxu0 0
    %678 = vmatprep.subr.bf16.mxu0 0
    %679 = vmatpush2.bf16.msra.mxu0 0
    %680 = vmatprep.subr.bf16.mxu0 0
    %681 = vmatpush2.bf16.msra.mxu0 0
    %682 = vmatprep.subr.bf16.mxu0 0
    %683 = vmatpush2.bf16.msra.mxu0 0
    %684 = vmatprep.subr.bf16.mxu0 0
    %685 = vmatpush2.bf16.msra.mxu0 0
    %686 = vmatprep.subr.bf16.mxu0 0
    %687 = vmatpush2.bf16.msra.mxu0 0
    %688 = vmatprep.mubr.bf16.mxu0 0
    %689 = vmatmul.mubr.bf16.gmra.mxu0 %v485
    %v690 = vpop.f32.mrf.mxu0
    %v691 = vadd.f32 0.0, %v690
    %v692 = vpop.f32.mrf.mxu0
    %v693 = vpop.f32.mrf.mxu0
    %v694 = vadd.f32 0.0, %v693
    %v695 = vpop.f32.mrf.mxu0
    %696 = vmatprep.mubr.bf16.mxu0 0
    %697 = vmatmul.mubr.bf16.gmra.mxu0 %v486
    %v698 = vpop.f32.mrf.mxu0
    %v699 = vadd.f32 0.0, %v698
    %v700 = vpop.f32.mrf.mxu0
    %v701 = vpop.f32.mrf.mxu0
    %v702 = vpop.f32.mrf.mxu0
    %703 = vdwg.mxu0
    %v704 = vpack.c.bf16 %v587, %v587
    %v705 = vpack.c.bf16 %v694, %v691
    %v706 = vpack.c.bf16 %v699, %v699
    %vm707 = vcmask 261120
    %v709 = vsel %vm707, %v704, 0
    %v712 = vsel %vm707, %v705, 0
    %v715 = vsel %vm707, %v706, 0
    %717 = vmatprep.subr.bf16.mxu0 0
    %718 = vmatpush1.bf16.xpose.msra.mxu0 0
    %719 = vmatprep.subr.bf16.mxu0 0
    %720 = vmatpush1.bf16.xpose.msra.mxu0 0
    %721 = vmatprep.subr.bf16.mxu0 0
    %722 = vmatpush1.bf16.xpose.msra.mxu0 0
    %723 = vmatprep.subr.bf16.mxu0 0
    %724 = vmatpush1.bf16.xpose.msra.mxu0 0
    %725 = vmatprep.subr.bf16.mxu0 0
    %726 = vmatpush1.bf16.xpose.msra.mxu0 0
    %727 = vmatprep.subr.bf16.mxu0 0
    %728 = vmatpush1.bf16.xpose.msra.mxu0 0
    %729 = vmatprep.subr.bf16.mxu0 0
    %730 = vmatpush1.bf16.xpose.msra.mxu0 %v715
    %731 = vmatprep.subr.bf16.mxu0 0
    %732 = vmatpush1.bf16.xpose.msra.mxu0 %v712
    %733 = vmatprep.subr.bf16.mxu0 0
    %734 = vmatpush2.bf16.xpose.msra.mxu0 0
    %735 = vmatprep.subr.bf16.mxu0 0
    %736 = vmatpush2.bf16.xpose.msra.mxu0 0
    %737 = vmatprep.subr.bf16.mxu0 0
    %738 = vmatpush2.bf16.xpose.msra.mxu0 0
    %739 = vmatprep.subr.bf16.mxu0 0
    %740 = vmatpush2.bf16.xpose.msra.mxu0 0
    %741 = vmatprep.subr.bf16.mxu0 0
    %742 = vmatpush2.bf16.xpose.msra.mxu0 0
    %743 = vmatprep.subr.bf16.mxu0 0
    %744 = vmatpush2.bf16.xpose.msra.mxu0 0
    %745 = vmatprep.subr.bf16.mxu0 0
    %746 = vmatpush2.bf16.xpose.msra.mxu0 0
    %747 = vmatprep.subr.bf16.mxu0 0
    %748 = vmatpush2.bf16.xpose.msra.mxu0 0
    %749 = vmatprep.mubr.bf16.mxu0 0
    %750 = vmatmul.mubr.bf16.gmra.mxu0 %v709
    %v751 = vpop.f32.mrf.mxu0
    %v752 = vadd.f32 0.0, %v751
    %v753 = vpop.f32.mrf.mxu0
    %v754 = vpop.f32.mrf.mxu0
    %v755 = vpop.f32.mrf.mxu0
    %756 = vdwg.mxu0
    %v757 = vpack.c.bf16 %v418, %v415
    %v759 = vsel %vm707, %v757, 0
    %761 = vmatprep.subr.bf16.mxu0 0
    %762 = vmatpush1.bf16.xpose.msra.mxu0 0
    %763 = vmatprep.subr.bf16.mxu0 0
    %764 = vmatpush1.bf16.xpose.msra.mxu0 0
    %765 = vmatprep.subr.bf16.mxu0 0
    %766 = vmatpush1.bf16.xpose.msra.mxu0 0
    %767 = vmatprep.subr.bf16.mxu0 0
    %768 = vmatpush1.bf16.xpose.msra.mxu0 0
    %769 = vmatprep.subr.bf16.mxu0 0
    %770 = vmatpush1.bf16.xpose.msra.mxu0 0
    %771 = vmatprep.subr.bf16.mxu0 0
    %772 = vmatpush1.bf16.xpose.msra.mxu0 0
    %773 = vmatprep.subr.bf16.mxu0 0
    %774 = vmatpush1.bf16.xpose.msra.mxu0 0
    %775 = vmatprep.subr.bf16.mxu0 0
    %776 = vmatpush1.bf16.xpose.msra.mxu0 %v759
    %777 = vmatprep.subr.bf16.mxu0 0
    %778 = vmatpush2.bf16.xpose.msra.mxu0 0
    %779 = vmatprep.subr.bf16.mxu0 0
    %780 = vmatpush2.bf16.xpose.msra.mxu0 0
    %781 = vmatprep.subr.bf16.mxu0 0
    %782 = vmatpush2.bf16.xpose.msra.mxu0 0
    %783 = vmatprep.subr.bf16.mxu0 0
    %784 = vmatpush2.bf16.xpose.msra.mxu0 0
    %785 = vmatprep.subr.bf16.mxu0 0
    %786 = vmatpush2.bf16.xpose.msra.mxu0 0
    %787 = vmatprep.subr.bf16.mxu0 0
    %788 = vmatpush2.bf16.xpose.msra.mxu0 0
    %789 = vmatprep.subr.bf16.mxu0 0
    %790 = vmatpush2.bf16.xpose.msra.mxu0 0
    %791 = vmatprep.subr.bf16.mxu0 0
    %792 = vmatpush2.bf16.xpose.msra.mxu0 0
    %793 = vmatprep.mubr.bf16.mxu0 0
    %794 = vmatmul.mubr.bf16.gmra.mxu0 %v709
    %v795 = vpop.f32.mrf.mxu0
    %v796 = vadd.f32 0.0, %v795
    %v797 = vpop.f32.mrf.mxu0
    %v798 = vpop.f32.mrf.mxu0
    %v799 = vpop.f32.mrf.mxu0
    %800 = vdwg.mxu0
    %vm801 = vcmask 133120
    %v802 = vsel %vm801, %v752, -inf
    %803 = vmax.xlane.f32.xlu0 %v802
    %v804 = vpop.xlane.xlu0 %803
    %vm805 = vcmask 75776
    %v806 = vsel %vm805, %v796, -inf
    %807 = vmax.xlane.f32.xlu0 %v806
    %v808 = vpop.xlane.xlu0 %807
    %v809 = vmax.f32 %v804, %v808
    %v810 = vsub.f32 %v752, %v809
    %v811 = vmul.f32 %v810, 1.442695
    %v812 = vpow.pop %v811
    %v813 = vsub.f32 %v796, %v809
    %v814 = vmul.f32 %v813, 1.442695
    %v815 = vpow.pop %v814
    %v816 = vsel %vm801, %v812, 0.0
    %817 = vadd.xlane.f32.xlu0 %v816
    %v818 = vpop.xlane.xlu0 %817
    %v819 = vsel %vm805, %v815, 0.0
    %820 = vadd.xlane.f32.xlu0 %v819
    %v821 = vpop.xlane.xlu0 %820
    %v822 = vadd.f32 %v818, %v821
    %v823 = vpack.c.bf16 %v812, %v812
    %v824 = vpack.c.bf16 %v815, %v815
    %vm825 = vcmask 80896
    %v827 = vsel %vm825, %v824, 0
    %vm829 = vcmask 1044480
    %v831 = vsel %vm829, %v315, 0
    %833 = vmatprep.subr.bf16.mxu0 0
    %834 = vmatpush1.bf16.msra.mxu0 0
    %835 = vmatprep.subr.bf16.mxu0 0
    %836 = vmatpush1.bf16.msra.mxu0 0
    %837 = vmatprep.subr.bf16.mxu0 0
    %838 = vmatpush1.bf16.msra.mxu0 0
    %839 = vmatprep.subr.bf16.mxu0 0
    %840 = vmatpush1.bf16.msra.mxu0 0
    %841 = vmatprep.subr.bf16.mxu0 0
    %842 = vmatpush1.bf16.msra.mxu0 0
    %843 = vmatprep.subr.bf16.mxu0 0
    %844 = vmatpush1.bf16.msra.mxu0 0
    %845 = vmatprep.subr.bf16.mxu0 0
    %846 = vmatpush1.bf16.msra.mxu0 0
    %847 = vmatprep.subr.bf16.mxu0 0
    %848 = vmatpush1.bf16.msra.mxu0 %v831
    %849 = vmatprep.subr.bf16.mxu0 0
    %850 = vmatpush2.bf16.msra.mxu0 0
    %851 = vmatprep.subr.bf16.mxu0 0
    %852 = vmatpush2.bf16.msra.mxu0 0
    %853 = vmatprep.subr.bf16.mxu0 0
    %854 = vmatpush2.bf16.msra.mxu0 0
    %855 = vmatprep.subr.bf16.mxu0 0
    %856 = vmatpush2.bf16.msra.mxu0 0
    %857 = vmatprep.subr.bf16.mxu0 0
    %858 = vmatpush2.bf16.msra.mxu0 0
    %859 = vmatprep.subr.bf16.mxu0 0
    %860 = vmatpush2.bf16.msra.mxu0 0
    %861 = vmatprep.subr.bf16.mxu0 0
    %862 = vmatpush2.bf16.msra.mxu0 0
    %863 = vmatprep.subr.bf16.mxu0 0
    %864 = vmatpush2.bf16.msra.mxu0 0
    %865 = vmatprep.mubr.bf16.mxu0 0
    %866 = vmatmul.mubr.bf16.gmra.mxu0 %v827
    %v867 = vpop.f32.mrf.mxu0
    %v868 = vadd.f32 0.0, %v867
    %v869 = vpop.f32.mrf.mxu0
    %v870 = vpop.f32.mrf.mxu0
    %v871 = vpop.f32.mrf.mxu0
    %872 = vdwg.mxu0
    %vm873 = vcmask 138240
    %v875 = vsel %vm873, %v823, 0
    %vm877 = vcmask 1040384
    %v878 = vsel 0, 4294967295, 65535
    %v879 = vsel %vm877, %v878, 0
    %v881 = vand.u32 %v486, %v879
    %883 = vmatprep.subr.bf16.mxu0 0
    %884 = vmatpush1.bf16.msra.mxu0 0
    %885 = vmatprep.subr.bf16.mxu0 0
    %886 = vmatpush1.bf16.msra.mxu0 0
    %887 = vmatprep.subr.bf16.mxu0 0
    %888 = vmatpush1.bf16.msra.mxu0 0
    %889 = vmatprep.subr.bf16.mxu0 0
    %890 = vmatpush1.bf16.msra.mxu0 0
    %891 = vmatprep.subr.bf16.mxu0 0
    %892 = vmatpush1.bf16.msra.mxu0 0
    %893 = vmatprep.subr.bf16.mxu0 0
    %894 = vmatpush1.bf16.msra.mxu0 0
    %895 = vmatprep.subr.bf16.mxu0 0
    %896 = vmatpush1.bf16.msra.mxu0 %v881
    %897 = vmatprep.subr.bf16.mxu0 0
    %898 = vmatpush1.bf16.msra.mxu0 %v485
    %899 = vmatprep.subr.bf16.mxu0 0
    %900 = vmatpush2.bf16.msra.mxu0 0
    %901 = vmatprep.subr.bf16.mxu0 0
    %902 = vmatpush2.bf16.msra.mxu0 0
    %903 = vmatprep.subr.bf16.mxu0 0
    %904 = vmatpush2.bf16.msra.mxu0 0
    %905 = vmatprep.subr.bf16.mxu0 0
    %906 = vmatpush2.bf16.msra.mxu0 0
    %907 = vmatprep.subr.bf16.mxu0 0
    %908 = vmatpush2.bf16.msra.mxu0 0
    %909 = vmatprep.subr.bf16.mxu0 0
    %910 = vmatpush2.bf16.msra.mxu0 0
    %911 = vmatprep.subr.bf16.mxu0 0
    %912 = vmatpush2.bf16.msra.mxu0 0
    %913 = vmatprep.subr.bf16.mxu0 0
    %914 = vmatpush2.bf16.msra.mxu0 0
    %915 = vmatprep.mubr.bf16.mxu0 0
    %916 = vmatmul.mubr.bf16.gmra.mxu0 %v875
    %v917 = vpop.f32.mrf.mxu0
    %v918 = vadd.f32 %v868, %v917
    %v919 = vpop.f32.mrf.mxu0
    %v920 = vpop.f32.mrf.mxu0
    %v921 = vpop.f32.mrf.mxu0
    %922 = vdwg.mxu0
    %v923 = vrcp.pop %v822
    %v924 = vmul.f32 %v918, %v923
    %v925 = vpack.c.bf16 %v924, %v924
    %v926 = vld [vmem:[%s7] sm:$0xf]
    %v927 = vld [vmem:[%s7 + $0x4] sm:$0xf]
    %v928 = vld [vmem:[%s7 + $0x8] sm:$0xf]
    %v929 = vld [vmem:[%s7 + $0xc] sm:$0xf]
    %v930 = vld [vmem:[%s7 + $0x10] sm:$0xf]
    %v931 = vld [vmem:[%s7 + $0x14] sm:$0xf]
    %v932 = vld [vmem:[%s7 + $0x18] sm:$0xf]
    %v933 = vld [vmem:[%s7 + $0x1c] sm:$0xf]
    %v934 = vld [vmem:[%s7 + $0x20] sm:$0xf]
    %v935 = vld [vmem:[%s7 + $0x24] sm:$0xf]
    %v936 = vld [vmem:[%s7 + $0x28] sm:$0xf]
    %v937 = vld [vmem:[%s7 + $0x2c] sm:$0xf]
    %v938 = vld [vmem:[%s7 + $0x30] sm:$0xf]
    %v939 = vld [vmem:[%s7 + $0x34] sm:$0xf]
    %v940 = vld [vmem:[%s7 + $0x38] sm:$0xf]
    %v941 = vld [vmem:[%s7 + $0x3c] sm:$0xf]
    %v958 = vunpack.c.l.b16 %v926
    %v959 = vunpack.c.l.b16 %v927
    %v960 = vunpack.c.l.b16 %v928
    %v961 = vunpack.c.l.b16 %v929
    %v962 = vunpack.c.l.b16 %v930
    %v963 = vunpack.c.l.b16 %v931
    %v964 = vunpack.c.l.b16 %v932
    %v965 = vunpack.c.l.b16 %v933
    %v966 = vunpack.c.l.b16 %v934
    %v967 = vunpack.c.l.b16 %v935
    %v968 = vunpack.c.l.b16 %v936
    %v969 = vunpack.c.l.b16 %v937
    %v970 = vunpack.c.l.b16 %v938
    %v971 = vunpack.c.l.b16 %v939
    %v972 = vunpack.c.l.b16 %v940
    %v973 = vunpack.c.l.b16 %v941
    %v974 = vpack.c.b16 %v959, %v958
    %v975 = vpack.c.b16 %v961, %v960
    %v976 = vpack.c.b16 %v963, %v962
    %v977 = vpack.c.b16 %v965, %v964
    %v978 = vpack.c.b16 %v967, %v966
    %v979 = vpack.c.b16 %v969, %v968
    %v980 = vpack.c.b16 %v971, %v970
    %v981 = vpack.c.b16 %v973, %v972
    %990 = vmatprep.subr.bf16.mxu0 0
    %991 = vmatpush1.bf16.msra.mxu0 %v981
    %992 = vmatprep.subr.bf16.mxu0 0
    %993 = vmatpush1.bf16.msra.mxu0 %v980
    %994 = vmatprep.subr.bf16.mxu0 0
    %995 = vmatpush1.bf16.msra.mxu0 %v979
    %996 = vmatprep.subr.bf16.mxu0 0
    %997 = vmatpush1.bf16.msra.mxu0 %v978
    %998 = vmatprep.subr.bf16.mxu0 0
    %999 = vmatpush1.bf16.msra.mxu0 %v977
    %1000 = vmatprep.subr.bf16.mxu0 0
    %1001 = vmatpush1.bf16.msra.mxu0 %v976
    %1002 = vmatprep.subr.bf16.mxu0 0
    %1003 = vmatpush1.bf16.msra.mxu0 %v975
    %1004 = vmatprep.subr.bf16.mxu0 0
    %1005 = vmatpush1.bf16.msra.mxu0 %v974
    %1006 = vmatprep.subr.bf16.mxu0 0
    %1007 = vmatpush2.bf16.msra.mxu0 0
    %1008 = vmatprep.subr.bf16.mxu0 0
    %1009 = vmatpush2.bf16.msra.mxu0 0
    %1010 = vmatprep.subr.bf16.mxu0 0
    %1011 = vmatpush2.bf16.msra.mxu0 0
    %1012 = vmatprep.subr.bf16.mxu0 0
    %1013 = vmatpush2.bf16.msra.mxu0 0
    %1014 = vmatprep.subr.bf16.mxu0 0
    %1015 = vmatpush2.bf16.msra.mxu0 0
    %1016 = vmatprep.subr.bf16.mxu0 0
    %1017 = vmatpush2.bf16.msra.mxu0 0
    %1018 = vmatprep.subr.bf16.mxu0 0
    %1019 = vmatpush2.bf16.msra.mxu0 0
    %1020 = vmatprep.subr.bf16.mxu0 0
    %1021 = vmatpush2.bf16.msra.mxu0 0
    %1022 = vmatprep.mubr.bf16.mxu0 0
    %1023 = vmatmul.mubr.bf16.gmra.mxu0 %v925
    %v1024 = vpop.f32.mrf.mxu0
    %v1025 = vadd.f32 0.0, %v1024
    %v1026 = vpop.f32.mrf.mxu0
    %v1027 = vpop.f32.mrf.mxu0
    %v1028 = vpop.f32.mrf.mxu0
    %1029 = vdwg.mxu0
    %v1030 = vld [vmem:[#allocation5] sm:$0x1]
    %v1031 = vld [vmem:[#allocation7] sm:$0x1]
    %v1032 = vlaneseq
    %v1033 = vand.u32 %v1032, 127
    %vm1034 = vcmp.lt.s32.totalorder %v1033, 32
    %v1035 = vsel %vm1034, 1, 0
    %vm1036 = vcmp.eq.s32.totalorder %v1035, 1
    %v1037 = vsel %vm1036, %v1025, 0.0
    %vm1038 = vcmask 1042432
    %v1039 = vsel %vm1038, %v1037, 0.0
    %1040 = vadd.xlane.f32.xlu0 %v1039
    %v1041 = vpop.xlane.xlu0 %1040
    %v1042 = vmul.f32 %v1041, 0.03125
    %v1043 = vsub.f32 %v1025, %v1042
    %v1044 = vsel %vm1036, %v1043, 0.0
    %v1045 = vmul.f32 %v1044, %v1044
    %v1046 = vsel %vm1038, %v1045, 0.0
    %1047 = vadd.xlane.f32.xlu0 %v1046
    %v1048 = vpop.xlane.xlu0 %1047
    %v1049 = vmul.f32 %v1048, 0.03125
    %v1050 = vadd.f32 %v1049, 1e-05
    %v1051 = vrsqrt.pop %v1050
    %v1052 = vmul.f32 %v1044, %v1051
    %v1054 = vlaneseq
    %v1055 = vshrl.u32 %v1054, 7
    %v1056 = vsub.s32 0, %v1055
    %v1057 = vrot.slane %v1030, %v1056
    %v1059 = vmul.f32 %v1052, %v1057
    %v1061 = vlaneseq
    %v1062 = vshrl.u32 %v1061, 7
    %v1063 = vsub.s32 0, %v1062
    %v1064 = vrot.slane %v1031, %v1063
    %v1066 = vadd.f32 %v1059, %v1064
    %v1067 = vpack.c.bf16 %v1066, %v1066
    %v1068 = vld [vmem:[%s10] sm:$0xf]
    %v1069 = vld [vmem:[%s10 + $0x4] sm:$0xf]
    %v1070 = vld [vmem:[%s10 + $0x8] sm:$0xf]
    %v1071 = vld [vmem:[%s10 + $0xc] sm:$0xf]
    %v1072 = vld [vmem:[%s10 + $0x10] sm:$0xf]
    %v1073 = vld [vmem:[%s10 + $0x14] sm:$0xf]
    %v1074 = vld [vmem:[%s10 + $0x18] sm:$0xf]
    %v1075 = vld [vmem:[%s10 + $0x1c] sm:$0xf]
    %v1076 = vld [vmem:[%s10 + $0x20] sm:$0xf]
    %v1077 = vld [vmem:[%s10 + $0x24] sm:$0xf]
    %v1078 = vld [vmem:[%s10 + $0x28] sm:$0xf]
    %v1079 = vld [vmem:[%s10 + $0x2c] sm:$0xf]
    %v1080 = vld [vmem:[%s10 + $0x30] sm:$0xf]
    %v1081 = vld [vmem:[%s10 + $0x34] sm:$0xf]
    %v1082 = vld [vmem:[%s10 + $0x38] sm:$0xf]
    %v1083 = vld [vmem:[%s10 + $0x3c] sm:$0xf]
    %v1100 = vunpack.c.l.b16 %v1068
    %v1101 = vunpack.c.l.b16 %v1069
    %v1102 = vunpack.c.l.b16 %v1070
    %v1103 = vunpack.c.l.b16 %v1071
    %v1104 = vunpack.c.l.b16 %v1072
    %v1105 = vunpack.c.l.b16 %v1073
    %v1106 = vunpack.c.l.b16 %v1074
    %v1107 = vunpack.c.l.b16 %v1075
    %v1108 = vunpack.c.l.b16 %v1076
    %v1109 = vunpack.c.l.b16 %v1077
    %v1110 = vunpack.c.l.b16 %v1078
    %v1111 = vunpack.c.l.b16 %v1079
    %v1112 = vunpack.c.l.b16 %v1080
    %v1113 = vunpack.c.l.b16 %v1081
    %v1114 = vunpack.c.l.b16 %v1082
    %v1115 = vunpack.c.l.b16 %v1083
    %v1116 = vpack.c.b16 %v1101, %v1100
    %v1117 = vpack.c.b16 %v1103, %v1102
    %v1118 = vpack.c.b16 %v1105, %v1104
    %v1119 = vpack.c.b16 %v1107, %v1106
    %v1120 = vpack.c.b16 %v1109, %v1108
    %v1121 = vpack.c.b16 %v1111, %v1110
    %v1122 = vpack.c.b16 %v1113, %v1112
    %v1123 = vpack.c.b16 %v1115, %v1114
    %1132 = vmatprep.subr.bf16.mxu0 0
    %1133 = vmatpush1.bf16.msra.mxu0 %v1123
    %1134 = vmatprep.subr.bf16.mxu0 0
    %1135 = vmatpush1.bf16.msra.mxu0 %v1122
    %1136 = vmatprep.subr.bf16.mxu0 0
    %1137 = vmatpush1.bf16.msra.mxu0 %v1121
    %1138 = vmatprep.subr.bf16.mxu0 0
    %1139 = vmatpush1.bf16.msra.mxu0 %v1120
    %1140 = vmatprep.subr.bf16.mxu0 0
    %1141 = vmatpush1.bf16.msra.mxu0 %v1119
    %1142 = vmatprep.subr.bf16.mxu0 0
    %1143 = vmatpush1.bf16.msra.mxu0 %v1118
    %1144 = vmatprep.subr.bf16.mxu0 0
    %1145 = vmatpush1.bf16.msra.mxu0 %v1117
    %1146 = vmatprep.subr.bf16.mxu0 0
    %1147 = vmatpush1.bf16.msra.mxu0 %v1116
    %1148 = vmatprep.subr.bf16.mxu0 0
    %1149 = vmatpush2.bf16.msra.mxu0 0
    %1150 = vmatprep.subr.bf16.mxu0 0
    %1151 = vmatpush2.bf16.msra.mxu0 0
    %1152 = vmatprep.subr.bf16.mxu0 0
    %1153 = vmatpush2.bf16.msra.mxu0 0
    %1154 = vmatprep.subr.bf16.mxu0 0
    %1155 = vmatpush2.bf16.msra.mxu0 0
    %1156 = vmatprep.subr.bf16.mxu0 0
    %1157 = vmatpush2.bf16.msra.mxu0 0
    %1158 = vmatprep.subr.bf16.mxu0 0
    %1159 = vmatpush2.bf16.msra.mxu0 0
    %1160 = vmatprep.subr.bf16.mxu0 0
    %1161 = vmatpush2.bf16.msra.mxu0 0
    %1162 = vmatprep.subr.bf16.mxu0 0
    %1163 = vmatpush2.bf16.msra.mxu0 0
    %1164 = vmatprep.mubr.bf16.mxu0 0
    %1165 = vmatmul.mubr.bf16.gmra.mxu0 %v1067
    %v1166 = vpop.f32.mrf.mxu0
    %v1167 = vadd.f32 0.0, %v1166
    %v1168 = vpop.f32.mrf.mxu0
    %v1169 = vpop.f32.mrf.mxu0
    %v1170 = vpop.f32.mrf.mxu0
    %1171 = vdwg.mxu0
    %1172 = vst [vmem:[%s26] sm:$0x7] %v1167
    %v1173 = vadd.f32 %v1025, %v310
    %v1174 = vld [vmem:[#allocation8] sm:$0x1]
    %v1175 = vld [vmem:[#allocation10] sm:$0x1]
    %v1176 = vsel %vm1036, %v1173, 0.0
    %v1177 = vsel %vm1038, %v1176, 0.0
    %1178 = vadd.xlane.f32.xlu0 %v1177
    %v1179 = vpop.xlane.xlu0 %1178
    %v1180 = vmul.f32 %v1179, 0.03125
    %v1181 = vsub.f32 %v1173, %v1180
    %v1182 = vsel %vm1036, %v1181, 0.0
    %v1183 = vmul.f32 %v1182, %v1182
    %v1184 = vsel %vm1038, %v1183, 0.0
    %1185 = vadd.xlane.f32.xlu0 %v1184
    %v1186 = vpop.xlane.xlu0 %1185
    %v1187 = vmul.f32 %v1186, 0.03125
    %v1188 = vadd.f32 %v1187, 1e-05
    %v1189 = vrsqrt.pop %v1188
    %v1190 = vmul.f32 %v1182, %v1189
    %v1192 = vlaneseq
    %v1193 = vshrl.u32 %v1192, 7
    %v1194 = vsub.s32 0, %v1193
    %v1195 = vrot.slane %v1174, %v1194
    %v1197 = vmul.f32 %v1190, %v1195
    %v1199 = vlaneseq
    %v1200 = vshrl.u32 %v1199, 7
    %v1201 = vsub.s32 0, %v1200
    %v1202 = vrot.slane %v1175, %v1201
    %v1204 = vadd.f32 %v1197, %v1202
    %1205 = vst [vmem:[#allocation2 + $0x11] sm:$0x7] %v1204
    %v1206 = vpack.c.bf16 %v241, %v240
    %v1207 = vpack.c.bf16 %v242, %v242
    %v1208 = vld [vmem:[%s5] sm:$0xf]
    %v1209 = vld [vmem:[%s5 + $0x4] sm:$0xf]
    %v1210 = vld [vmem:[%s5 + $0x8] sm:$0xf]
    %v1211 = vld [vmem:[%s5 + $0xc] sm:$0xf]
    %v1212 = vld [vmem:[%s5 + $0x10] sm:$0xf]
    %v1213 = vld [vmem:[%s5 + $0x14] sm:$0xf]
    %v1214 = vld [vmem:[%s5 + $0x18] sm:$0xf]
    %v1215 = vld [vmem:[%s5 + $0x1c] sm:$0xf]
    %v1216 = vld [vmem:[%s5 + $0x20] sm:$0xf]
    %v1217 = vld [vmem:[%s5 + $0x24] sm:$0xf]
    %v1218 = vld [vmem:[%s5 + $0x28] sm:$0xf]
    %v1219 = vld [vmem:[%s5 + $0x2c] sm:$0xf]
    %v1220 = vld [vmem:[%s5 + $0x30] sm:$0xf]
    %v1221 = vld [vmem:[%s5 + $0x34] sm:$0xf]
    %v1222 = vld [vmem:[%s5 + $0x38] sm:$0xf]
    %v1223 = vld [vmem:[%s5 + $0x3c] sm:$0xf]
    %v1225 = vshrl.u32 %v487, 16
    %v1227 = vrot.slane %v1225, 1
    %v1228 = vshll.u32 %v487, 16
    %v1230 = vrot.slane %v1228, 2
    %v1231 = vor.u32 %v1227, %v1230
    %v1249 = vunpack.c.l.b16 %v1208
    %v1250 = vunpack.c.l.b16 %v1209
    %v1251 = vunpack.c.l.b16 %v1210
    %v1252 = vunpack.c.l.b16 %v1211
    %v1253 = vunpack.c.l.b16 %v1212
    %v1254 = vunpack.c.l.b16 %v1213
    %v1255 = vunpack.c.l.b16 %v1214
    %v1256 = vunpack.c.l.b16 %v1215
    %v1257 = vunpack.c.l.b16 %v1216
    %v1258 = vunpack.c.l.b16 %v1217
    %v1259 = vunpack.c.l.b16 %v1218
    %v1260 = vunpack.c.l.b16 %v1219
    %v1261 = vunpack.c.l.b16 %v1220
    %v1262 = vunpack.c.l.b16 %v1221
    %v1263 = vunpack.c.l.b16 %v1222
    %v1264 = vunpack.c.l.b16 %v1223
    %v1265 = vpack.c.b16 %v1250, %v1249
    %v1266 = vpack.c.b16 %v1252, %v1251
    %v1267 = vpack.c.b16 %v1254, %v1253
    %v1268 = vpack.c.b16 %v1256, %v1255
    %v1269 = vpack.c.b16 %v1258, %v1257
    %v1270 = vpack.c.b16 %v1260, %v1259
    %v1271 = vpack.c.b16 %v1262, %v1261
    %v1272 = vpack.c.b16 %v1264, %v1263
    %1281 = vmatprep.subr.bf16.mxu0 0
    %1282 = vmatpush1.bf16.msra.mxu0 %v1272
    %1283 = vmatprep.subr.bf16.mxu0 0
    %1284 = vmatpush1.bf16.msra.mxu0 %v1271
    %1285 = vmatprep.subr.bf16.mxu0 0
    %1286 = vmatpush1.bf16.msra.mxu0 %v1270
    %1287 = vmatprep.subr.bf16.mxu0 0
    %1288 = vmatpush1.bf16.msra.mxu0 %v1269
    %1289 = vmatprep.subr.bf16.mxu0 0
    %1290 = vmatpush1.bf16.msra.mxu0 %v1268
    %1291 = vmatprep.subr.bf16.mxu0 0
    %1292 = vmatpush1.bf16.msra.mxu0 %v1267
    %1293 = vmatprep.subr.bf16.mxu0 0
    %1294 = vmatpush1.bf16.msra.mxu0 %v1266
    %1295 = vmatprep.subr.bf16.mxu0 0
    %1296 = vmatpush1.bf16.msra.mxu0 %v1265
    %1297 = vmatprep.subr.bf16.mxu0 0
    %1298 = vmatpush2.bf16.msra.mxu0 0
    %1299 = vmatprep.subr.bf16.mxu0 0
    %1300 = vmatpush2.bf16.msra.mxu0 0
    %1301 = vmatprep.subr.bf16.mxu0 0
    %1302 = vmatpush2.bf16.msra.mxu0 0
    %1303 = vmatprep.subr.bf16.mxu0 0
    %1304 = vmatpush2.bf16.msra.mxu0 0
    %1305 = vmatprep.subr.bf16.mxu0 0
    %1306 = vmatpush2.bf16.msra.mxu0 0
    %1307 = vmatprep.subr.bf16.mxu0 0
    %1308 = vmatpush2.bf16.msra.mxu0 0
    %1309 = vmatprep.subr.bf16.mxu0 0
    %1310 = vmatpush2.bf16.msra.mxu0 0
    %1311 = vmatprep.subr.bf16.mxu0 0
    %1312 = vmatpush2.bf16.msra.mxu0 0
    %1313 = vmatprep.mubr.bf16.mxu0 0
    %1314 = vmatmul.mubr.bf16.gmra.mxu0 %v1231
    %v1315 = vpop.f32.mrf.mxu0
    %v1316 = vadd.f32 0.0, %v1315
    %v1317 = vpop.f32.mrf.mxu0
    %v1318 = vpop.f32.mrf.mxu0
    %v1319 = vpop.f32.mrf.mxu0
    %1320 = vdwg.mxu0
    %v1321 = vld [vmem:[%s6] sm:$0xf]
    %v1322 = vld [vmem:[%s6 + $0x4] sm:$0xf]
    %v1323 = vld [vmem:[%s6 + $0x8] sm:$0xf]
    %v1324 = vld [vmem:[%s6 + $0xc] sm:$0xf]
    %v1325 = vld [vmem:[%s6 + $0x10] sm:$0xf]
    %v1326 = vld [vmem:[%s6 + $0x14] sm:$0xf]
    %v1327 = vld [vmem:[%s6 + $0x18] sm:$0xf]
    %v1328 = vld [vmem:[%s6 + $0x1c] sm:$0xf]
    %v1329 = vld [vmem:[%s6 + $0x20] sm:$0xf]
    %v1330 = vld [vmem:[%s6 + $0x24] sm:$0xf]
    %v1331 = vld [vmem:[%s6 + $0x28] sm:$0xf]
    %v1332 = vld [vmem:[%s6 + $0x2c] sm:$0xf]
    %v1333 = vld [vmem:[%s6 + $0x30] sm:$0xf]
    %v1334 = vld [vmem:[%s6 + $0x34] sm:$0xf]
    %v1335 = vld [vmem:[%s6 + $0x38] sm:$0xf]
    %v1336 = vld [vmem:[%s6 + $0x3c] sm:$0xf]
    %v1353 = vunpack.c.l.b16 %v1321
    %v1354 = vunpack.c.l.b16 %v1322
    %v1355 = vunpack.c.l.b16 %v1323
    %v1356 = vunpack.c.l.b16 %v1324
    %v1357 = vunpack.c.l.b16 %v1325
    %v1358 = vunpack.c.l.b16 %v1326
    %v1359 = vunpack.c.l.b16 %v1327
    %v1360 = vunpack.c.l.b16 %v1328
    %v1361 = vunpack.c.l.b16 %v1329
    %v1362 = vunpack.c.l.b16 %v1330
    %v1363 = vunpack.c.l.b16 %v1331
    %v1364 = vunpack.c.l.b16 %v1332
    %v1365 = vunpack.c.l.b16 %v1333
    %v1366 = vunpack.c.l.b16 %v1334
    %v1367 = vunpack.c.l.b16 %v1335
    %v1368 = vunpack.c.l.b16 %v1336
    %v1369 = vpack.c.b16 %v1354, %v1353
    %v1370 = vpack.c.b16 %v1356, %v1355
    %v1371 = vpack.c.b16 %v1358, %v1357
    %v1372 = vpack.c.b16 %v1360, %v1359
    %v1373 = vpack.c.b16 %v1362, %v1361
    %v1374 = vpack.c.b16 %v1364, %v1363
    %v1375 = vpack.c.b16 %v1366, %v1365
    %v1376 = vpack.c.b16 %v1368, %v1367
    %1385 = vmatprep.subr.bf16.mxu0 0
    %1386 = vmatpush1.bf16.msra.mxu0 %v1376
    %1387 = vmatprep.subr.bf16.mxu0 0
    %1388 = vmatpush1.bf16.msra.mxu0 %v1375
    %1389 = vmatprep.subr.bf16.mxu0 0
    %1390 = vmatpush1.bf16.msra.mxu0 %v1374
    %1391 = vmatprep.subr.bf16.mxu0 0
    %1392 = vmatpush1.bf16.msra.mxu0 %v1373
    %1393 = vmatprep.subr.bf16.mxu0 0
    %1394 = vmatpush1.bf16.msra.mxu0 %v1372
    %1395 = vmatprep.subr.bf16.mxu0 0
    %1396 = vmatpush1.bf16.msra.mxu0 %v1371
    %1397 = vmatprep.subr.bf16.mxu0 0
    %1398 = vmatpush1.bf16.msra.mxu0 %v1370
    %1399 = vmatprep.subr.bf16.mxu0 0
    %1400 = vmatpush1.bf16.msra.mxu0 %v1369
    %1401 = vmatprep.subr.bf16.mxu0 0
    %1402 = vmatpush2.bf16.msra.mxu0 0
    %1403 = vmatprep.subr.bf16.mxu0 0
    %1404 = vmatpush2.bf16.msra.mxu0 0
    %1405 = vmatprep.subr.bf16.mxu0 0
    %1406 = vmatpush2.bf16.msra.mxu0 0
    %1407 = vmatprep.subr.bf16.mxu0 0
    %1408 = vmatpush2.bf16.msra.mxu0 0
    %1409 = vmatprep.subr.bf16.mxu0 0
    %1410 = vmatpush2.bf16.msra.mxu0 0
    %1411 = vmatprep.subr.bf16.mxu0 0
    %1412 = vmatpush2.bf16.msra.mxu0 0
    %1413 = vmatprep.subr.bf16.mxu0 0
    %1414 = vmatpush2.bf16.msra.mxu0 0
    %1415 = vmatprep.subr.bf16.mxu0 0
    %1416 = vmatpush2.bf16.msra.mxu0 0
    %1417 = vmatprep.mubr.bf16.mxu0 0
    %1418 = vmatmul.mubr.bf16.gmra.mxu0 %v1206
    %v1419 = vpop.f32.mrf.mxu0
    %v1420 = vadd.f32 0.0, %v1419
    %v1421 = vpop.f32.mrf.mxu0
    %v1422 = vpop.f32.mrf.mxu0
    %v1423 = vadd.f32 0.0, %v1422
    %v1424 = vpop.f32.mrf.mxu0
    %1425 = vmatprep.mubr.bf16.mxu0 0
    %1426 = vmatmul.mubr.bf16.gmra.mxu0 %v1207
    %v1427 = vpop.f32.mrf.mxu0
    %v1428 = vadd.f32 0.0, %v1427
    %v1429 = vpop.f32.mrf.mxu0
    %v1430 = vpop.f32.mrf.mxu0
    %v1431 = vpop.f32.mrf.mxu0
    %1432 = vdwg.mxu0
    %v1433 = vpack.c.bf16 %v1316, %v1316
    %v1434 = vpack.c.bf16 %v1423, %v1420
    %v1435 = vpack.c.bf16 %v1428, %v1428
    %v1437 = vsel %vm707, %v1433, 0
    %v1440 = vsel %vm707, %v1434, 0
    %v1443 = vsel %vm707, %v1435, 0
    %1445 = vmatprep.subr.bf16.mxu0 0
    %1446 = vmatpush1.bf16.xpose.msra.mxu0 0
    %1447 = vmatprep.subr.bf16.mxu0 0
    %1448 = vmatpush1.bf16.xpose.msra.mxu0 0
    %1449 = vmatprep.subr.bf16.mxu0 0
    %1450 = vmatpush1.bf16.xpose.msra.mxu0 0
    %1451 = vmatprep.subr.bf16.mxu0 0
    %1452 = vmatpush1.bf16.xpose.msra.mxu0 0
    %1453 = vmatprep.subr.bf16.mxu0 0
    %1454 = vmatpush1.bf16.xpose.msra.mxu0 0
    %1455 = vmatprep.subr.bf16.mxu0 0
    %1456 = vmatpush1.bf16.xpose.msra.mxu0 0
    %1457 = vmatprep.subr.bf16.mxu0 0
    %1458 = vmatpush1.bf16.xpose.msra.mxu0 %v1443
    %1459 = vmatprep.subr.bf16.mxu0 0
    %1460 = vmatpush1.bf16.xpose.msra.mxu0 %v1440
    %1461 = vmatprep.subr.bf16.mxu0 0
    %1462 = vmatpush2.bf16.xpose.msra.mxu0 0
    %1463 = vmatprep.subr.bf16.mxu0 0
    %1464 = vmatpush2.bf16.xpose.msra.mxu0 0
    %1465 = vmatprep.subr.bf16.mxu0 0
    %1466 = vmatpush2.bf16.xpose.msra.mxu0 0
    %1467 = vmatprep.subr.bf16.mxu0 0
    %1468 = vmatpush2.bf16.xpose.msra.mxu0 0
    %1469 = vmatprep.subr.bf16.mxu0 0
    %1470 = vmatpush2.bf16.xpose.msra.mxu0 0
    %1471 = vmatprep.subr.bf16.mxu0 0
    %1472 = vmatpush2.bf16.xpose.msra.mxu0 0
    %1473 = vmatprep.subr.bf16.mxu0 0
    %1474 = vmatpush2.bf16.xpose.msra.mxu0 0
    %1475 = vmatprep.subr.bf16.mxu0 0
    %1476 = vmatpush2.bf16.xpose.msra.mxu0 0
    %1477 = vmatprep.mubr.bf16.mxu0 0
    %1478 = vmatmul.mubr.bf16.gmra.mxu0 %v1437
    %v1479 = vpop.f32.mrf.mxu0
    %v1480 = vadd.f32 0.0, %v1479
    %v1481 = vpop.f32.mrf.mxu0
    %v1482 = vpop.f32.mrf.mxu0
    %v1483 = vpop.f32.mrf.mxu0
    %1484 = vdwg.mxu0
    %1485 = vmatprep.subr.bf16.mxu0 0
    %1486 = vmatpush1.bf16.xpose.msra.mxu0 0
    %1487 = vmatprep.subr.bf16.mxu0 0
    %1488 = vmatpush1.bf16.xpose.msra.mxu0 0
    %1489 = vmatprep.subr.bf16.mxu0 0
    %1490 = vmatpush1.bf16.xpose.msra.mxu0 0
    %1491 = vmatprep.subr.bf16.mxu0 0
    %1492 = vmatpush1.bf16.xpose.msra.mxu0 0
    %1493 = vmatprep.subr.bf16.mxu0 0
    %1494 = vmatpush1.bf16.xpose.msra.mxu0 0
    %1495 = vmatprep.subr.bf16.mxu0 0
    %1496 = vmatpush1.bf16.xpose.msra.mxu0 0
    %1497 = vmatprep.subr.bf16.mxu0 0
    %1498 = vmatpush1.bf16.xpose.msra.mxu0 0
    %1499 = vmatprep.subr.bf16.mxu0 0
    %1500 = vmatpush1.bf16.xpose.msra.mxu0 %v759
    %1501 = vmatprep.subr.bf16.mxu0 0
    %1502 = vmatpush2.bf16.xpose.msra.mxu0 0
    %1503 = vmatprep.subr.bf16.mxu0 0
    %1504 = vmatpush2.bf16.xpose.msra.mxu0 0
    %1505 = vmatprep.subr.bf16.mxu0 0
    %1506 = vmatpush2.bf16.xpose.msra.mxu0 0
    %1507 = vmatprep.subr.bf16.mxu0 0
    %1508 = vmatpush2.bf16.xpose.msra.mxu0 0
    %1509 = vmatprep.subr.bf16.mxu0 0
    %1510 = vmatpush2.bf16.xpose.msra.mxu0 0
    %1511 = vmatprep.subr.bf16.mxu0 0
    %1512 = vmatpush2.bf16.xpose.msra.mxu0 0
    %1513 = vmatprep.subr.bf16.mxu0 0
    %1514 = vmatpush2.bf16.xpose.msra.mxu0 0
    %1515 = vmatprep.subr.bf16.mxu0 0
    %1516 = vmatpush2.bf16.xpose.msra.mxu0 0
    %1517 = vmatprep.mubr.bf16.mxu0 0
    %1518 = vmatmul.mubr.bf16.gmra.mxu0 %v1437
    %v1519 = vpop.f32.mrf.mxu0
    %v1520 = vadd.f32 0.0, %v1519
    %v1521 = vpop.f32.mrf.mxu0
    %v1522 = vpop.f32.mrf.mxu0
    %v1523 = vpop.f32.mrf.mxu0
    %1524 = vdwg.mxu0
    %v1525 = vsel %vm801, %v1480, -inf
    %1526 = vmax.xlane.f32.xlu0 %v1525
    %v1527 = vpop.xlane.xlu0 %1526
    %v1528 = vsel %vm805, %v1520, -inf
    %1529 = vmax.xlane.f32.xlu0 %v1528
    %v1530 = vpop.xlane.xlu0 %1529
    %v1531 = vmax.f32 %v1527, %v1530
    %v1532 = vsub.f32 %v1480, %v1531
    %v1533 = vmul.f32 %v1532, 1.442695
    %v1534 = vpow.pop %v1533
    %v1535 = vsub.f32 %v1520, %v1531
    %v1536 = vmul.f32 %v1535, 1.442695
    %v1537 = vpow.pop %v1536
    %v1538 = vsel %vm801, %v1534, 0.0
    %1539 = vadd.xlane.f32.xlu0 %v1538
    %v1540 = vpop.xlane.xlu0 %1539
    %v1541 = vsel %vm805, %v1537, 0.0
    %1542 = vadd.xlane.f32.xlu0 %v1541
    %v1543 = vpop.xlane.xlu0 %1542
    %v1544 = vadd.f32 %v1540, %v1543
    %v1545 = vpack.c.bf16 %v1534, %v1534
    %v1546 = vpack.c.bf16 %v1537, %v1537
    %v1548 = vsel %vm825, %v1546, 0
    %1550 = vmatprep.subr.bf16.mxu0 0
    %1551 = vmatpush1.bf16.msra.mxu0 0
    %1552 = vmatprep.subr.bf16.mxu0 0
    %1553 = vmatpush1.bf16.msra.mxu0 0
    %1554 = vmatprep.subr.bf16.mxu0 0
    %1555 = vmatpush1.bf16.msra.mxu0 0
    %1556 = vmatprep.subr.bf16.mxu0 0
    %1557 = vmatpush1.bf16.msra.mxu0 0
    %1558 = vmatprep.subr.bf16.mxu0 0
    %1559 = vmatpush1.bf16.msra.mxu0 0
    %1560 = vmatprep.subr.bf16.mxu0 0
    %1561 = vmatpush1.bf16.msra.mxu0 0
    %1562 = vmatprep.subr.bf16.mxu0 0
    %1563 = vmatpush1.bf16.msra.mxu0 0
    %1564 = vmatprep.subr.bf16.mxu0 0
    %1565 = vmatpush1.bf16.msra.mxu0 %v831
    %1566 = vmatprep.subr.bf16.mxu0 0
    %1567 = vmatpush2.bf16.msra.mxu0 0
    %1568 = vmatprep.subr.bf16.mxu0 0
    %1569 = vmatpush2.bf16.msra.mxu0 0
    %1570 = vmatprep.subr.bf16.mxu0 0
    %1571 = vmatpush2.bf16.msra.mxu0 0
    %1572 = vmatprep.subr.bf16.mxu0 0
    %1573 = vmatpush2.bf16.msra.mxu0 0
    %1574 = vmatprep.subr.bf16.mxu0 0
    %1575 = vmatpush2.bf16.msra.mxu0 0
    %1576 = vmatprep.subr.bf16.mxu0 0
    %1577 = vmatpush2.bf16.msra.mxu0 0
    %1578 = vmatprep.subr.bf16.mxu0 0
    %1579 = vmatpush2.bf16.msra.mxu0 0
    %1580 = vmatprep.subr.bf16.mxu0 0
    %1581 = vmatpush2.bf16.msra.mxu0 0
    %1582 = vmatprep.mubr.bf16.mxu0 0
    %1583 = vmatmul.mubr.bf16.gmra.mxu0 %v1548
    %v1584 = vpop.f32.mrf.mxu0
    %v1585 = vadd.f32 0.0, %v1584
    %v1586 = vpop.f32.mrf.mxu0
    %v1587 = vpop.f32.mrf.mxu0
    %v1588 = vpop.f32.mrf.mxu0
    %1589 = vdwg.mxu0
    %v1591 = vsel %vm873, %v1545, 0
    %v1594 = vand.u32 %v1207, %v879
    %1596 = vmatprep.subr.bf16.mxu0 0
    %1597 = vmatpush1.bf16.msra.mxu0 0
    %1598 = vmatprep.subr.bf16.mxu0 0
    %1599 = vmatpush1.bf16.msra.mxu0 0
    %1600 = vmatprep.subr.bf16.mxu0 0
    %1601 = vmatpush1.bf16.msra.mxu0 0
    %1602 = vmatprep.subr.bf16.mxu0 0
    %1603 = vmatpush1.bf16.msra.mxu0 0
    %1604 = vmatprep.subr.bf16.mxu0 0
    %1605 = vmatpush1.bf16.msra.mxu0 0
    %1606 = vmatprep.subr.bf16.mxu0 0
    %1607 = vmatpush1.bf16.msra.mxu0 0
    %1608 = vmatprep.subr.bf16.mxu0 0
    %1609 = vmatpush1.bf16.msra.mxu0 %v1594
    %1610 = vmatprep.subr.bf16.mxu0 0
    %1611 = vmatpush1.bf16.msra.mxu0 %v1206
    %1612 = vmatprep.subr.bf16.mxu0 0
    %1613 = vmatpush2.bf16.msra.mxu0 0
    %1614 = vmatprep.subr.bf16.mxu0 0
    %1615 = vmatpush2.bf16.msra.mxu0 0
    %1616 = vmatprep.subr.bf16.mxu0 0
    %1617 = vmatpush2.bf16.msra.mxu0 0
    %1618 = vmatprep.subr.bf16.mxu0 0
    %1619 = vmatpush2.bf16.msra.mxu0 0
    %1620 = vmatprep.subr.bf16.mxu0 0
    %1621 = vmatpush2.bf16.msra.mxu0 0
    %1622 = vmatprep.subr.bf16.mxu0 0
    %1623 = vmatpush2.bf16.msra.mxu0 0
    %1624 = vmatprep.subr.bf16.mxu0 0
    %1625 = vmatpush2.bf16.msra.mxu0 0
    %1626 = vmatprep.subr.bf16.mxu0 0
    %1627 = vmatpush2.bf16.msra.mxu0 0
    %1628 = vmatprep.mubr.bf16.mxu0 0
    %1629 = vmatmul.mubr.bf16.gmra.mxu0 %v1591
    %v1630 = vpop.f32.mrf.mxu0
    %v1631 = vadd.f32 %v1585, %v1630
    %v1632 = vpop.f32.mrf.mxu0
    %v1633 = vpop.f32.mrf.mxu0
    %v1634 = vpop.f32.mrf.mxu0
    %1635 = vdwg.mxu0
    %v1636 = vrcp.pop %v1544
    %v1637 = vmul.f32 %v1631, %v1636
    %v1638 = vpack.c.bf16 %v1637, %v1637
    %v1639 = vld [vmem:[%s7] sm:$0xf]
    %v1640 = vld [vmem:[%s7 + $0x4] sm:$0xf]
    %v1641 = vld [vmem:[%s7 + $0x8] sm:$0xf]
    %v1642 = vld [vmem:[%s7 + $0xc] sm:$0xf]
    %v1643 = vld [vmem:[%s7 + $0x10] sm:$0xf]
    %v1644 = vld [vmem:[%s7 + $0x14] sm:$0xf]
    %v1645 = vld [vmem:[%s7 + $0x18] sm:$0xf]
    %v1646 = vld [vmem:[%s7 + $0x1c] sm:$0xf]
    %v1647 = vld [vmem:[%s7 + $0x20] sm:$0xf]
    %v1648 = vld [vmem:[%s7 + $0x24] sm:$0xf]
    %v1649 = vld [vmem:[%s7 + $0x28] sm:$0xf]
    %v1650 = vld [vmem:[%s7 + $0x2c] sm:$0xf]
    %v1651 = vld [vmem:[%s7 + $0x30] sm:$0xf]
    %v1652 = vld [vmem:[%s7 + $0x34] sm:$0xf]
    %v1653 = vld [vmem:[%s7 + $0x38] sm:$0xf]
    %v1654 = vld [vmem:[%s7 + $0x3c] sm:$0xf]
    %v1671 = vunpack.c.l.b16 %v1639
    %v1672 = vunpack.c.l.b16 %v1640
    %v1673 = vunpack.c.l.b16 %v1641
    %v1674 = vunpack.c.l.b16 %v1642
    %v1675 = vunpack.c.l.b16 %v1643
    %v1676 = vunpack.c.l.b16 %v1644
    %v1677 = vunpack.c.l.b16 %v1645
    %v1678 = vunpack.c.l.b16 %v1646
    %v1679 = vunpack.c.l.b16 %v1647
    %v1680 = vunpack.c.l.b16 %v1648
    %v1681 = vunpack.c.l.b16 %v1649
    %v1682 = vunpack.c.l.b16 %v1650
    %v1683 = vunpack.c.l.b16 %v1651
    %v1684 = vunpack.c.l.b16 %v1652
    %v1685 = vunpack.c.l.b16 %v1653
    %v1686 = vunpack.c.l.b16 %v1654
    %v1687 = vpack.c.b16 %v1672, %v1671
    %v1688 = vpack.c.b16 %v1674, %v1673
    %v1689 = vpack.c.b16 %v1676, %v1675
    %v1690 = vpack.c.b16 %v1678, %v1677
    %v1691 = vpack.c.b16 %v1680, %v1679
    %v1692 = vpack.c.b16 %v1682, %v1681
    %v1693 = vpack.c.b16 %v1684, %v1683
    %v1694 = vpack.c.b16 %v1686, %v1685
    %1703 = vmatprep.subr.bf16.mxu0 0
    %1704 = vmatpush1.bf16.msra.mxu0 %v1694
    %1705 = vmatprep.subr.bf16.mxu0 0
    %1706 = vmatpush1.bf16.msra.mxu0 %v1693
    %1707 = vmatprep.subr.bf16.mxu0 0
    %1708 = vmatpush1.bf16.msra.mxu0 %v1692
    %1709 = vmatprep.subr.bf16.mxu0 0
    %1710 = vmatpush1.bf16.msra.mxu0 %v1691
    %1711 = vmatprep.subr.bf16.mxu0 0
    %1712 = vmatpush1.bf16.msra.mxu0 %v1690
    %1713 = vmatprep.subr.bf16.mxu0 0
    %1714 = vmatpush1.bf16.msra.mxu0 %v1689
    %1715 = vmatprep.subr.bf16.mxu0 0
    %1716 = vmatpush1.bf16.msra.mxu0 %v1688
    %1717 = vmatprep.subr.bf16.mxu0 0
    %1718 = vmatpush1.bf16.msra.mxu0 %v1687
    %1719 = vmatprep.subr.bf16.mxu0 0
    %1720 = vmatpush2.bf16.msra.mxu0 0
    %1721 = vmatprep.subr.bf16.mxu0 0
    %1722 = vmatpush2.bf16.msra.mxu0 0
    %1723 = vmatprep.subr.bf16.mxu0 0
    %1724 = vmatpush2.bf16.msra.mxu0 0
    %1725 = vmatprep.subr.bf16.mxu0 0
    %1726 = vmatpush2.bf16.msra.mxu0 0
    %1727 = vmatprep.subr.bf16.mxu0 0
    %1728 = vmatpush2.bf16.msra.mxu0 0
    %1729 = vmatprep.subr.bf16.mxu0 0
    %1730 = vmatpush2.bf16.msra.mxu0 0
    %1731 = vmatprep.subr.bf16.mxu0 0
    %1732 = vmatpush2.bf16.msra.mxu0 0
    %1733 = vmatprep.subr.bf16.mxu0 0
    %1734 = vmatpush2.bf16.msra.mxu0 0
    %1735 = vmatprep.mubr.bf16.mxu0 0
    %1736 = vmatmul.mubr.bf16.gmra.mxu0 %v1638
    %v1737 = vpop.f32.mrf.mxu0
    %v1738 = vadd.f32 0.0, %v1737
    %v1739 = vpop.f32.mrf.mxu0
    %v1740 = vpop.f32.mrf.mxu0
    %v1741 = vpop.f32.mrf.mxu0
    %1742 = vdwg.mxu0
    %v1743 = vld [vmem:[#allocation5] sm:$0x1]
    %v1744 = vld [vmem:[#allocation7] sm:$0x1]
    %v1745 = vsel %vm1036, %v1738, 0.0
    %v1746 = vsel %vm1038, %v1745, 0.0
    %1747 = vadd.xlane.f32.xlu0 %v1746
    %v1748 = vpop.xlane.xlu0 %1747
    %v1749 = vmul.f32 %v1748, 0.03125
    %v1750 = vsub.f32 %v1738, %v1749
    %v1751 = vsel %vm1036, %v1750, 0.0
    %v1752 = vmul.f32 %v1751, %v1751
    %v1753 = vsel %vm1038, %v1752, 0.0
    %1754 = vadd.xlane.f32.xlu0 %v1753
    %v1755 = vpop.xlane.xlu0 %1754
    %v1756 = vmul.f32 %v1755, 0.03125
    %v1757 = vadd.f32 %v1756, 1e-05
    %v1758 = vrsqrt.pop %v1757
    %v1759 = vmul.f32 %v1751, %v1758
    %v1761 = vlaneseq
    %v1762 = vshrl.u32 %v1761, 7
    %v1763 = vsub.s32 0, %v1762
    %v1764 = vrot.slane %v1743, %v1763
    %v1766 = vmul.f32 %v1759, %v1764
    %v1768 = vlaneseq
    %v1769 = vshrl.u32 %v1768, 7
    %v1770 = vsub.s32 0, %v1769
    %v1771 = vrot.slane %v1744, %v1770
    %v1773 = vadd.f32 %v1766, %v1771
    %v1774 = vpack.c.bf16 %v1773, %v1773
    %v1775 = vld [vmem:[%s10] sm:$0xf]
    %v1776 = vld [vmem:[%s10 + $0x4] sm:$0xf]
    %v1777 = vld [vmem:[%s10 + $0x8] sm:$0xf]
    %v1778 = vld [vmem:[%s10 + $0xc] sm:$0xf]
    %v1779 = vld [vmem:[%s10 + $0x10] sm:$0xf]
    %v1780 = vld [vmem:[%s10 + $0x14] sm:$0xf]
    %v1781 = vld [vmem:[%s10 + $0x18] sm:$0xf]
    %v1782 = vld [vmem:[%s10 + $0x1c] sm:$0xf]
    %v1783 = vld [vmem:[%s10 + $0x20] sm:$0xf]
    %v1784 = vld [vmem:[%s10 + $0x24] sm:$0xf]
    %v1785 = vld [vmem:[%s10 + $0x28] sm:$0xf]
    %v1786 = vld [vmem:[%s10 + $0x2c] sm:$0xf]
    %v1787 = vld [vmem:[%s10 + $0x30] sm:$0xf]
    %v1788 = vld [vmem:[%s10 + $0x34] sm:$0xf]
    %v1789 = vld [vmem:[%s10 + $0x38] sm:$0xf]
    %v1790 = vld [vmem:[%s10 + $0x3c] sm:$0xf]
    %v1807 = vunpack.c.l.b16 %v1775
    %v1808 = vunpack.c.l.b16 %v1776
    %v1809 = vunpack.c.l.b16 %v1777
    %v1810 = vunpack.c.l.b16 %v1778
    %v1811 = vunpack.c.l.b16 %v1779
    %v1812 = vunpack.c.l.b16 %v1780
    %v1813 = vunpack.c.l.b16 %v1781
    %v1814 = vunpack.c.l.b16 %v1782
    %v1815 = vunpack.c.l.b16 %v1783
    %v1816 = vunpack.c.l.b16 %v1784
    %v1817 = vunpack.c.l.b16 %v1785
    %v1818 = vunpack.c.l.b16 %v1786
    %v1819 = vunpack.c.l.b16 %v1787
    %v1820 = vunpack.c.l.b16 %v1788
    %v1821 = vunpack.c.l.b16 %v1789
    %v1822 = vunpack.c.l.b16 %v1790
    %v1823 = vpack.c.b16 %v1808, %v1807
    %v1824 = vpack.c.b16 %v1810, %v1809
    %v1825 = vpack.c.b16 %v1812, %v1811
    %v1826 = vpack.c.b16 %v1814, %v1813
    %v1827 = vpack.c.b16 %v1816, %v1815
    %v1828 = vpack.c.b16 %v1818, %v1817
    %v1829 = vpack.c.b16 %v1820, %v1819
    %v1830 = vpack.c.b16 %v1822, %v1821
    %1839 = vmatprep.subr.bf16.mxu0 0
    %1840 = vmatpush1.bf16.msra.mxu0 %v1830
    %1841 = vmatprep.subr.bf16.mxu0 0
    %1842 = vmatpush1.bf16.msra.mxu0 %v1829
    %1843 = vmatprep.subr.bf16.mxu0 0
    %1844 = vmatpush1.bf16.msra.mxu0 %v1828
    %1845 = vmatprep.subr.bf16.mxu0 0
    %1846 = vmatpush1.bf16.msra.mxu0 %v1827
    %1847 = vmatprep.subr.bf16.mxu0 0
    %1848 = vmatpush1.bf16.msra.mxu0 %v1826
    %1849 = vmatprep.subr.bf16.mxu0 0
    %1850 = vmatpush1.bf16.msra.mxu0 %v1825
    %1851 = vmatprep.subr.bf16.mxu0 0
    %1852 = vmatpush1.bf16.msra.mxu0 %v1824
    %1853 = vmatprep.subr.bf16.mxu0 0
    %1854 = vmatpush1.bf16.msra.mxu0 %v1823
    %1855 = vmatprep.subr.bf16.mxu0 0
    %1856 = vmatpush2.bf16.msra.mxu0 0
    %1857 = vmatprep.subr.bf16.mxu0 0
    %1858 = vmatpush2.bf16.msra.mxu0 0
    %1859 = vmatprep.subr.bf16.mxu0 0
    %1860 = vmatpush2.bf16.msra.mxu0 0
    %1861 = vmatprep.subr.bf16.mxu0 0
    %1862 = vmatpush2.bf16.msra.mxu0 0
    %1863 = vmatprep.subr.bf16.mxu0 0
    %1864 = vmatpush2.bf16.msra.mxu0 0
    %1865 = vmatprep.subr.bf16.mxu0 0
    %1866 = vmatpush2.bf16.msra.mxu0 0
    %1867 = vmatprep.subr.bf16.mxu0 0
    %1868 = vmatpush2.bf16.msra.mxu0 0
    %1869 = vmatprep.subr.bf16.mxu0 0
    %1870 = vmatpush2.bf16.msra.mxu0 0
    %1871 = vmatprep.mubr.bf16.mxu0 0
    %1872 = vmatmul.mubr.bf16.gmra.mxu0 %v1774
    %v1873 = vpop.f32.mrf.mxu0
    %v1874 = vadd.f32 0.0, %v1873
    %v1875 = vpop.f32.mrf.mxu0
    %v1876 = vpop.f32.mrf.mxu0
    %v1877 = vpop.f32.mrf.mxu0
    %1878 = vdwg.mxu0
    %1879 = vst [vmem:[%s26 + $0x3] sm:$0x7] %v1874
    %v1881 = vrot.slane %v310, 3
    %v1883 = vadd.f32 %v1738, %v1881
    %v1884 = vld [vmem:[#allocation8] sm:$0x1]
    %v1885 = vld [vmem:[#allocation10] sm:$0x1]
    %v1886 = vsel %vm1036, %v1883, 0.0
    %v1887 = vsel %vm1038, %v1886, 0.0
    %1888 = vadd.xlane.f32.xlu0 %v1887
    %v1889 = vpop.xlane.xlu0 %1888
    %v1890 = vmul.f32 %v1889, 0.03125
    %v1891 = vsub.f32 %v1883, %v1890
    %v1892 = vsel %vm1036, %v1891, 0.0
    %v1893 = vmul.f32 %v1892, %v1892
    %v1894 = vsel %vm1038, %v1893, 0.0
    %1895 = vadd.xlane.f32.xlu0 %v1894
    %v1896 = vpop.xlane.xlu0 %1895
    %v1897 = vmul.f32 %v1896, 0.03125
    %v1898 = vadd.f32 %v1897, 1e-05
    %v1899 = vrsqrt.pop %v1898
    %v1900 = vmul.f32 %v1892, %v1899
    %v1902 = vlaneseq
    %v1903 = vshrl.u32 %v1902, 7
    %v1904 = vsub.s32 0, %v1903
    %v1905 = vrot.slane %v1884, %v1904
    %v1907 = vmul.f32 %v1900, %v1905
    %v1909 = vlaneseq
    %v1910 = vshrl.u32 %v1909, 7
    %v1911 = vsub.s32 0, %v1910
    %v1912 = vrot.slane %v1885, %v1911
    %v1914 = vadd.f32 %v1907, %v1912
    %1915 = vst [vmem:[#allocation2 + $0x31] sm:$0x7] %v1914
    %v1916 = vld [vmem:[#allocation2] sm:$0xff]
    %v1917 = vld [vmem:[#allocation2 + $0x8] sm:$0xff]
    %v1918 = vld [vmem:[#allocation2 + $0x10] sm:$0xff]
    %v1919 = vld [vmem:[#allocation2 + $0x18] sm:$0xff]
    %v1920 = vld [vmem:[#allocation2 + $0x20] sm:$0xff]
    %v1921 = vld [vmem:[#allocation2 + $0x28] sm:$0xff]
    %v1922 = vld [vmem:[#allocation2 + $0x30] sm:$0xff]
    %v1923 = vld [vmem:[#allocation2 + $0x38] sm:$0xff]
    %v1924 = vld [vmem:[#allocation11] sm:$0x1]
    %v1925 = vld [vmem:[#allocation13] sm:$0x1]
    %v1926 = vsel %vm1036, %v1916, 0.0
    %v1927 = vsel %vm1036, %v1917, 0.0
    %v1928 = vsel %vm1036, %v1918, 0.0
    %v1929 = vsel %vm1036, %v1919, 0.0
    %v1930 = vsel %vm1036, %v1920, 0.0
    %v1931 = vsel %vm1036, %v1921, 0.0
    %v1932 = vsel %vm1036, %v1922, 0.0
    %v1933 = vsel %vm1036, %v1923, 0.0
    %1934 = vadd.xlane.f32.xlu0 %v1926
    %v1935 = vpop.xlane.xlu0 %1934
    %1936 = vadd.xlane.f32.xlu0 %v1927
    %v1937 = vpop.xlane.xlu0 %1936
    %1938 = vadd.xlane.f32.xlu0 %v1928
    %v1939 = vpop.xlane.xlu0 %1938
    %1940 = vadd.xlane.f32.xlu0 %v1929
    %v1941 = vpop.xlane.xlu0 %1940
    %1942 = vadd.xlane.f32.xlu0 %v1930
    %v1943 = vpop.xlane.xlu0 %1942
    %1944 = vadd.xlane.f32.xlu0 %v1931
    %v1945 = vpop.xlane.xlu0 %1944
    %1946 = vadd.xlane.f32.xlu0 %v1932
    %v1947 = vpop.xlane.xlu0 %1946
    %1948 = vadd.xlane.f32.xlu0 %v1933
    %v1949 = vpop.xlane.xlu0 %1948
    %v1950 = vmul.f32 %v1935, 0.03125
    %v1951 = vmul.f32 %v1937, 0.03125
    %v1952 = vmul.f32 %v1939, 0.03125
    %v1953 = vmul.f32 %v1941, 0.03125
    %v1954 = vmul.f32 %v1943, 0.03125
    %v1955 = vmul.f32 %v1945, 0.03125
    %v1956 = vmul.f32 %v1947, 0.03125
    %v1957 = vmul.f32 %v1949, 0.03125
    %v1958 = vsub.f32 %v1916, %v1950
    %v1959 = vsub.f32 %v1917, %v1951
    %v1960 = vsub.f32 %v1918, %v1952
    %v1961 = vsub.f32 %v1919, %v1953
    %v1962 = vsub.f32 %v1920, %v1954
    %v1963 = vsub.f32 %v1921, %v1955
    %v1964 = vsub.f32 %v1922, %v1956
    %v1965 = vsub.f32 %v1923, %v1957
    %v1966 = vsel %vm1036, %v1958, 0.0
    %v1967 = vsel %vm1036, %v1959, 0.0
    %v1968 = vsel %vm1036, %v1960, 0.0
    %v1969 = vsel %vm1036, %v1961, 0.0
    %v1970 = vsel %vm1036, %v1962, 0.0
    %v1971 = vsel %vm1036, %v1963, 0.0
    %v1972 = vsel %vm1036, %v1964, 0.0
    %v1973 = vsel %vm1036, %v1965, 0.0
    %v1974 = vmul.f32 %v1966, %v1966
    %v1975 = vmul.f32 %v1967, %v1967
    %v1976 = vmul.f32 %v1968, %v1968
    %v1977 = vmul.f32 %v1969, %v1969
    %v1978 = vmul.f32 %v1970, %v1970
    %v1979 = vmul.f32 %v1971, %v1971
    %v1980 = vmul.f32 %v1972, %v1972
    %v1981 = vmul.f32 %v1973, %v1973
    %1982 = vadd.xlane.f32.xlu0 %v1974
    %v1983 = vpop.xlane.xlu0 %1982
    %1984 = vadd.xlane.f32.xlu0 %v1975
    %v1985 = vpop.xlane.xlu0 %1984
    %1986 = vadd.xlane.f32.xlu0 %v1976
    %v1987 = vpop.xlane.xlu0 %1986
    %1988 = vadd.xlane.f32.xlu0 %v1977
    %v1989 = vpop.xlane.xlu0 %1988
    %1990 = vadd.xlane.f32.xlu0 %v1978
    %v1991 = vpop.xlane.xlu0 %1990
    %1992 = vadd.xlane.f32.xlu0 %v1979
    %v1993 = vpop.xlane.xlu0 %1992
    %1994 = vadd.xlane.f32.xlu0 %v1980
    %v1995 = vpop.xlane.xlu0 %1994
    %1996 = vadd.xlane.f32.xlu0 %v1981
    %v1997 = vpop.xlane.xlu0 %1996
    %v1998 = vmul.f32 %v1983, 0.03125
    %v1999 = vmul.f32 %v1985, 0.03125
    %v2000 = vmul.f32 %v1987, 0.03125
    %v2001 = vmul.f32 %v1989, 0.03125
    %v2002 = vmul.f32 %v1991, 0.03125
    %v2003 = vmul.f32 %v1993, 0.03125
    %v2004 = vmul.f32 %v1995, 0.03125
    %v2005 = vmul.f32 %v1997, 0.03125
    %v2006 = vadd.f32 %v1998, 1e-05
    %v2007 = vadd.f32 %v1999, 1e-05
    %v2008 = vadd.f32 %v2000, 1e-05
    %v2009 = vadd.f32 %v2001, 1e-05
    %v2010 = vadd.f32 %v2002, 1e-05
    %v2011 = vadd.f32 %v2003, 1e-05
    %v2012 = vadd.f32 %v2004, 1e-05
    %v2013 = vadd.f32 %v2005, 1e-05
    %v2014 = vrsqrt.pop %v2006
    %v2015 = vrsqrt.pop %v2007
    %v2016 = vrsqrt.pop %v2008
    %v2017 = vrsqrt.pop %v2009
    %v2018 = vrsqrt.pop %v2010
    %v2019 = vrsqrt.pop %v2011
    %v2020 = vrsqrt.pop %v2012
    %v2021 = vrsqrt.pop %v2013
    %v2022 = vmul.f32 %v1966, %v2014
    %v2023 = vmul.f32 %v1967, %v2015
    %v2024 = vmul.f32 %v1968, %v2016
    %v2025 = vmul.f32 %v1969, %v2017
    %v2026 = vmul.f32 %v1970, %v2018
    %v2027 = vmul.f32 %v1971, %v2019
    %v2028 = vmul.f32 %v1972, %v2020
    %v2029 = vmul.f32 %v1973, %v2021
    %v2031 = vlaneseq
    %v2032 = vshrl.u32 %v2031, 7
    %v2033 = vsub.s32 0, %v2032
    %v2034 = vrot.slane %v1924, %v2033
    %v2036 = vmul.f32 %v2022, %v2034
    %v2037 = vmul.f32 %v2023, %v2034
    %v2038 = vmul.f32 %v2024, %v2034
    %v2039 = vmul.f32 %v2025, %v2034
    %v2040 = vmul.f32 %v2026, %v2034
    %v2041 = vmul.f32 %v2027, %v2034
    %v2042 = vmul.f32 %v2028, %v2034
    %v2043 = vmul.f32 %v2029, %v2034
    %v2045 = vlaneseq
    %v2046 = vshrl.u32 %v2045, 7
    %v2047 = vsub.s32 0, %v2046
    %v2048 = vrot.slane %v1925, %v2047
    %v2050 = vadd.f32 %v2036, %v2048
    %v2051 = vadd.f32 %v2037, %v2048
    %v2052 = vadd.f32 %v2038, %v2048
    %v2053 = vadd.f32 %v2039, %v2048
    %v2054 = vadd.f32 %v2040, %v2048
    %v2055 = vadd.f32 %v2041, %v2048
    %v2056 = vadd.f32 %v2042, %v2048
    %v2057 = vadd.f32 %v2043, %v2048
    %v2058 = vpack.c.bf16 %v2051, %v2050
    %v2059 = vpack.c.bf16 %v2053, %v2052
    %v2060 = vpack.c.bf16 %v2055, %v2054
    %v2061 = vpack.c.bf16 %v2057, %v2056
    %v2062 = vld [vmem:[%s16] sm:$0xf]
    %v2063 = vld [vmem:[%s16 + $0x4] sm:$0xf]
    %v2064 = vld [vmem:[%s16 + $0x8] sm:$0xf]
    %v2065 = vld [vmem:[%s16 + $0xc] sm:$0xf]
    %v2066 = vld [vmem:[%s16 + $0x10] sm:$0xf]
    %v2067 = vld [vmem:[%s16 + $0x14] sm:$0xf]
    %v2068 = vld [vmem:[%s16 + $0x18] sm:$0xf]
    %v2069 = vld [vmem:[%s16 + $0x1c] sm:$0xf]
    %v2070 = vld [vmem:[%s16 + $0x20] sm:$0xf]
    %v2071 = vld [vmem:[%s16 + $0x24] sm:$0xf]
    %v2072 = vld [vmem:[%s16 + $0x28] sm:$0xf]
    %v2073 = vld [vmem:[%s16 + $0x2c] sm:$0xf]
    %v2074 = vld [vmem:[%s16 + $0x30] sm:$0xf]
    %v2075 = vld [vmem:[%s16 + $0x34] sm:$0xf]
    %v2076 = vld [vmem:[%s16 + $0x38] sm:$0xf]
    %v2077 = vld [vmem:[%s16 + $0x3c] sm:$0xf]
    %v2078 = vld [vmem:[#allocation14] sm:$0x1]
    %v2080 = vlaneseq
    %v2081 = vshrl.u32 %v2080, 7
    %v2082 = vsub.s32 0, %v2081
    %v2083 = vrot.slane %v2078, %v2082
    %v2101 = vunpack.c.l.b16 %v2062
    %v2102 = vunpack.c.l.b16 %v2063
    %v2103 = vunpack.c.l.b16 %v2064
    %v2104 = vunpack.c.l.b16 %v2065
    %v2105 = vunpack.c.l.b16 %v2066
    %v2106 = vunpack.c.l.b16 %v2067
    %v2107 = vunpack.c.l.b16 %v2068
    %v2108 = vunpack.c.l.b16 %v2069
    %v2109 = vunpack.c.l.b16 %v2070
    %v2110 = vunpack.c.l.b16 %v2071
    %v2111 = vunpack.c.l.b16 %v2072
    %v2112 = vunpack.c.l.b16 %v2073
    %v2113 = vunpack.c.l.b16 %v2074
    %v2114 = vunpack.c.l.b16 %v2075
    %v2115 = vunpack.c.l.b16 %v2076
    %v2116 = vunpack.c.l.b16 %v2077
    %v2117 = vpack.c.b16 %v2102, %v2101
    %v2118 = vpack.c.b16 %v2104, %v2103
    %v2119 = vpack.c.b16 %v2106, %v2105
    %v2120 = vpack.c.b16 %v2108, %v2107
    %v2121 = vpack.c.b16 %v2110, %v2109
    %v2122 = vpack.c.b16 %v2112, %v2111
    %v2123 = vpack.c.b16 %v2114, %v2113
    %v2124 = vpack.c.b16 %v2116, %v2115
    %2133 = vmatprep.subr.bf16.mxu0 0
    %2134 = vmatpush1.bf16.msra.mxu0 %v2124
    %2135 = vmatprep.subr.bf16.mxu0 0
    %2136 = vmatpush1.bf16.msra.mxu0 %v2123
    %2137 = vmatprep.subr.bf16.mxu0 0
    %2138 = vmatpush1.bf16.msra.mxu0 %v2122
    %2139 = vmatprep.subr.bf16.mxu0 0
    %2140 = vmatpush1.bf16.msra.mxu0 %v2121
    %2141 = vmatprep.subr.bf16.mxu0 0
    %2142 = vmatpush1.bf16.msra.mxu0 %v2120
    %2143 = vmatprep.subr.bf16.mxu0 0
    %2144 = vmatpush1.bf16.msra.mxu0 %v2119
    %2145 = vmatprep.subr.bf16.mxu0 0
    %2146 = vmatpush1.bf16.msra.mxu0 %v2118
    %2147 = vmatprep.subr.bf16.mxu0 0
    %2148 = vmatpush1.bf16.msra.mxu0 %v2117
    %2149 = vmatprep.subr.bf16.mxu0 0
    %2150 = vmatpush2.bf16.msra.mxu0 0
    %2151 = vmatprep.subr.bf16.mxu0 0
    %2152 = vmatpush2.bf16.msra.mxu0 0
    %2153 = vmatprep.subr.bf16.mxu0 0
    %2154 = vmatpush2.bf16.msra.mxu0 0
    %2155 = vmatprep.subr.bf16.mxu0 0
    %2156 = vmatpush2.bf16.msra.mxu0 0
    %2157 = vmatprep.subr.bf16.mxu0 0
    %2158 = vmatpush2.bf16.msra.mxu0 0
    %2159 = vmatprep.subr.bf16.mxu0 0
    %2160 = vmatpush2.bf16.msra.mxu0 0
    %2161 = vmatprep.subr.bf16.mxu0 0
    %2162 = vmatpush2.bf16.msra.mxu0 0
    %2163 = vmatprep.subr.bf16.mxu0 0
    %2164 = vmatpush2.bf16.msra.mxu0 0
    %2165 = vmatprep.mubr.bf16.mxu0 0
    %2166 = vmatmul.mubr.bf16.gmra.mxu0 %v2058
    %v2167 = vpop.f32.mrf.mxu0
    %v2168 = vadd.f32 %v2083, %v2167
    %v2169 = vpop.f32.mrf.mxu0
    %v2170 = vpop.f32.mrf.mxu0
    %v2171 = vadd.f32 %v2083, %v2170
    %v2172 = vpop.f32.mrf.mxu0
    %2173 = vmatprep.mubr.bf16.mxu0 0
    %2174 = vmatmul.mubr.bf16.gmra.mxu0 %v2059
    %v2175 = vpop.f32.mrf.mxu0
    %v2176 = vadd.f32 %v2083, %v2175
    %v2177 = vpop.f32.mrf.mxu0
    %v2178 = vpop.f32.mrf.mxu0
    %v2179 = vadd.f32 %v2083, %v2178
    %v2180 = vpop.f32.mrf.mxu0
    %2181 = vmatprep.mubr.bf16.mxu0 0
    %2182 = vmatmul.mubr.bf16.gmra.mxu0 %v2060
    %v2183 = vpop.f32.mrf.mxu0
    %v2184 = vadd.f32 %v2083, %v2183
    %v2185 = vpop.f32.mrf.mxu0
    %v2186 = vpop.f32.mrf.mxu0
    %v2187 = vadd.f32 %v2083, %v2186
    %v2188 = vpop.f32.mrf.mxu0
    %2189 = vmatprep.mubr.bf16.mxu0 0
    %2190 = vmatmul.mubr.bf16.gmra.mxu0 %v2061
    %v2191 = vpop.f32.mrf.mxu0
    %v2192 = vadd.f32 %v2083, %v2191
    %v2193 = vpop.f32.mrf.mxu0
    %v2194 = vpop.f32.mrf.mxu0
    %v2195 = vadd.f32 %v2083, %v2194
    %v2196 = vpop.f32.mrf.mxu0
    %2197 = vdwg.mxu0
    %vm2198 = vcmp.lt.s32.totalorder %v1033, 20
    %v2199 = vpack.c.bf16 %v2171, %v2168
    %v2200 = vpack.c.bf16 %v2179, %v2176
    %2203 = vrot.lane.b32.xlu0 %v2199, 96
    %v2204 = vpop.permute.xlu0 %2203
    %2205 = vrot.lane.b32.xlu0 %v2200, 96
    %v2206 = vpop.permute.xlu0 %2205
    %vm2207 = vcmask 130048
    %v2209 = vsel %vm2207, %v2199, 0
    %v2212 = vsel %vm2207, %v2200, 0
    %v2215 = vsel %vm2207, %v2204, 0
    %v2218 = vsel %vm2207, %v2206, 0
    %2220 = vmatprep.subr.bf16.mxu0 0
    %2221 = vmatpush1.bf16.xpose.msra.mxu0 0
    %2222 = vmatprep.subr.bf16.mxu0 0
    %2223 = vmatpush1.bf16.xpose.msra.mxu0 0
    %2224 = vmatprep.subr.bf16.mxu0 0
    %2225 = vmatpush1.bf16.xpose.msra.mxu0 0
    %2226 = vmatprep.subr.bf16.mxu0 0
    %2227 = vmatpush1.bf16.xpose.msra.mxu0 0
    %2228 = vmatprep.subr.bf16.mxu0 0
    %2229 = vmatpush1.bf16.xpose.msra.mxu0 0
    %2230 = vmatprep.subr.bf16.mxu0 0
    %2231 = vmatpush1.bf16.xpose.msra.mxu0 0
    %2232 = vmatprep.subr.bf16.mxu0 0
    %2233 = vmatpush1.bf16.xpose.msra.mxu0 %v2218
    %2234 = vmatprep.subr.bf16.mxu0 0
    %2235 = vmatpush1.bf16.xpose.msra.mxu0 %v2215
    %2236 = vmatprep.subr.bf16.mxu0 0
    %2237 = vmatpush2.bf16.xpose.msra.mxu0 0
    %2238 = vmatprep.subr.bf16.mxu0 0
    %2239 = vmatpush2.bf16.xpose.msra.mxu0 0
    %2240 = vmatprep.subr.bf16.mxu0 0
    %2241 = vmatpush2.bf16.xpose.msra.mxu0 0
    %2242 = vmatprep.subr.bf16.mxu0 0
    %2243 = vmatpush2.bf16.xpose.msra.mxu0 0
    %2244 = vmatprep.subr.bf16.mxu0 0
    %2245 = vmatpush2.bf16.xpose.msra.mxu0 0
    %2246 = vmatprep.subr.bf16.mxu0 0
    %2247 = vmatpush2.bf16.xpose.msra.mxu0 0
    %2248 = vmatprep.subr.bf16.mxu0 0
    %2249 = vmatpush2.bf16.xpose.msra.mxu0 0
    %2250 = vmatprep.subr.bf16.mxu0 0
    %2251 = vmatpush2.bf16.xpose.msra.mxu0 0
    %2252 = vmatprep.mubr.bf16.mxu0 0
    %2253 = vmatmul.mubr.bf16.gmra.mxu0 %v2209
    %v2254 = vpop.f32.mrf.mxu0
    %v2255 = vadd.f32 0.0, %v2254
    %v2256 = vpop.f32.mrf.mxu0
    %v2257 = vpop.f32.mrf.mxu0
    %v2258 = vadd.f32 0.0, %v2257
    %v2259 = vpop.f32.mrf.mxu0
    %2260 = vmatprep.mubr.bf16.mxu0 0
    %2261 = vmatmul.mubr.bf16.gmra.mxu0 %v2212
    %v2262 = vpop.f32.mrf.mxu0
    %v2263 = vadd.f32 0.0, %v2262
    %v2264 = vpop.f32.mrf.mxu0
    %v2265 = vpop.f32.mrf.mxu0
    %v2266 = vadd.f32 0.0, %v2265
    %v2267 = vpop.f32.mrf.mxu0
    %2268 = vdwg.mxu0
    %v2269 = vsel %vm2198, 1, 0
    %vm2270 = vcmp.eq.s32.totalorder %v2269, 1
    %v2271 = vsel %vm2270, %v2255, -1e+30
    %v2272 = vsel %vm2270, %v2258, -1e+30
    %v2273 = vsel %vm2270, %v2263, -1e+30
    %v2274 = vsel %vm2270, %v2266, -1e+30
    %v2275 = vsel %vm707, %v2271, -inf
    %2276 = vmax.xlane.f32.xlu0 %v2275
    %v2277 = vpop.xlane.xlu0 %2276
    %v2278 = vsel %vm707, %v2272, -inf
    %2279 = vmax.xlane.f32.xlu0 %v2278
    %v2280 = vpop.xlane.xlu0 %2279
    %v2281 = vsel %vm707, %v2273, -inf
    %2282 = vmax.xlane.f32.xlu0 %v2281
    %v2283 = vpop.xlane.xlu0 %2282
    %v2284 = vsel %vm707, %v2274, -inf
    %2285 = vmax.xlane.f32.xlu0 %v2284
    %v2286 = vpop.xlane.xlu0 %2285
    %v2287 = vsub.f32 %v2271, %v2277
    %v2288 = vsub.f32 %v2272, %v2280
    %v2289 = vsub.f32 %v2273, %v2283
    %v2290 = vsub.f32 %v2274, %v2286
    %v2291 = vmul.f32 %v2287, 1.442695
    %v2292 = vpow.pop %v2291
    %v2293 = vmul.f32 %v2288, 1.442695
    %v2294 = vpow.pop %v2293
    %v2295 = vmul.f32 %v2289, 1.442695
    %v2296 = vpow.pop %v2295
    %v2297 = vmul.f32 %v2290, 1.442695
    %v2298 = vpow.pop %v2297
    %v2299 = vsel %vm707, %v2292, 0.0
    %2300 = vadd.xlane.f32.xlu0 %v2299
    %v2301 = vpop.xlane.xlu0 %2300
    %v2302 = vsel %vm707, %v2294, 0.0
    %2303 = vadd.xlane.f32.xlu0 %v2302
    %v2304 = vpop.xlane.xlu0 %2303
    %v2305 = vsel %vm707, %v2296, 0.0
    %2306 = vadd.xlane.f32.xlu0 %v2305
    %v2307 = vpop.xlane.xlu0 %2306
    %v2308 = vsel %vm707, %v2298, 0.0
    %2309 = vadd.xlane.f32.xlu0 %v2308
    %v2310 = vpop.xlane.xlu0 %2309
    %v2311 = vpack.c.bf16 %v2294, %v2292
    %v2312 = vpack.c.bf16 %v2298, %v2296
    %2313 = vrot.lane.b32.xlu0 %v2199, 64
    %v2314 = vpop.permute.xlu0 %2313
    %2315 = vrot.lane.b32.xlu0 %v2200, 64
    %v2316 = vpop.permute.xlu0 %2315
    %v2320 = vsel %vm707, %v2311, 0
    %v2323 = vsel %vm707, %v2312, 0
    %2325 = vmatprep.subr.bf16.mxu0 0
    %2326 = vmatpush1.bf16.msra.mxu0 0
    %2327 = vmatprep.subr.bf16.mxu0 0
    %2328 = vmatpush1.bf16.msra.mxu0 0
    %2329 = vmatprep.subr.bf16.mxu0 0
    %2330 = vmatpush1.bf16.msra.mxu0 0
    %2331 = vmatprep.subr.bf16.mxu0 0
    %2332 = vmatpush1.bf16.msra.mxu0 0
    %2333 = vmatprep.subr.bf16.mxu0 0
    %2334 = vmatpush1.bf16.msra.mxu0 0
    %2335 = vmatprep.subr.bf16.mxu0 0
    %2336 = vmatpush1.bf16.msra.mxu0 0
    %2337 = vmatprep.subr.bf16.mxu0 0
    %2338 = vmatpush1.bf16.msra.mxu0 %v2316
    %2339 = vmatprep.subr.bf16.mxu0 0
    %2340 = vmatpush1.bf16.msra.mxu0 %v2314
    %2341 = vmatprep.subr.bf16.mxu0 0
    %2342 = vmatpush2.bf16.msra.mxu0 0
    %2343 = vmatprep.subr.bf16.mxu0 0
    %2344 = vmatpush2.bf16.msra.mxu0 0
    %2345 = vmatprep.subr.bf16.mxu0 0
    %2346 = vmatpush2.bf16.msra.mxu0 0
    %2347 = vmatprep.subr.bf16.mxu0 0
    %2348 = vmatpush2.bf16.msra.mxu0 0
    %2349 = vmatprep.subr.bf16.mxu0 0
    %2350 = vmatpush2.bf16.msra.mxu0 0
    %2351 = vmatprep.subr.bf16.mxu0 0
    %2352 = vmatpush2.bf16.msra.mxu0 0
    %2353 = vmatprep.subr.bf16.mxu0 0
    %2354 = vmatpush2.bf16.msra.mxu0 0
    %2355 = vmatprep.subr.bf16.mxu0 0
    %2356 = vmatpush2.bf16.msra.mxu0 0
    %2357 = vmatprep.mubr.bf16.mxu0 0
    %2358 = vmatmul.mubr.bf16.gmra.mxu0 %v2320
    %v2359 = vpop.f32.mrf.mxu0
    %v2360 = vadd.f32 0.0, %v2359
    %v2361 = vpop.f32.mrf.mxu0
    %v2362 = vpop.f32.mrf.mxu0
    %v2363 = vadd.f32 0.0, %v2362
    %v2364 = vpop.f32.mrf.mxu0
    %2365 = vmatprep.mubr.bf16.mxu0 0
    %2366 = vmatmul.mubr.bf16.gmra.mxu0 %v2323
    %v2367 = vpop.f32.mrf.mxu0
    %v2368 = vadd.f32 0.0, %v2367
    %v2369 = vpop.f32.mrf.mxu0
    %v2370 = vpop.f32.mrf.mxu0
    %v2371 = vadd.f32 0.0, %v2370
    %v2372 = vpop.f32.mrf.mxu0
    %2373 = vdwg.mxu0
    %v2374 = vrcp.pop %v2301
    %v2375 = vrcp.pop %v2304
    %v2376 = vrcp.pop %v2307
    %v2377 = vrcp.pop %v2310
    %v2378 = vmul.f32 %v2360, %v2374
    %v2379 = vmul.f32 %v2363, %v2375
    %v2380 = vmul.f32 %v2368, %v2376
    %v2381 = vmul.f32 %v2371, %v2377
    %2382 = vrot.lane.b32.xlu0 %v2199, 112
    %v2383 = vpop.permute.xlu0 %2382
    %2384 = vrot.lane.b32.xlu0 %v2200, 112
    %v2385 = vpop.permute.xlu0 %2384
    %2386 = vrot.lane.b32.xlu0 %v2199, 80
    %v2387 = vpop.permute.xlu0 %2386
    %2388 = vrot.lane.b32.xlu0 %v2200, 80
    %v2389 = vpop.permute.xlu0 %2388
    %v2391 = vsel %vm2207, %v2383, 0
    %v2394 = vsel %vm2207, %v2385, 0
    %v2397 = vsel %vm2207, %v2387, 0
    %v2400 = vsel %vm2207, %v2389, 0
    %2402 = vmatprep.subr.bf16.mxu0 0
    %2403 = vmatpush1.bf16.xpose.msra.mxu0 0
    %2404 = vmatprep.subr.bf16.mxu0 0
    %2405 = vmatpush1.bf16.xpose.msra.mxu0 0
    %2406 = vmatprep.subr.bf16.mxu0 0
    %2407 = vmatpush1.bf16.xpose.msra.mxu0 0
    %2408 = vmatprep.subr.bf16.mxu0 0
    %2409 = vmatpush1.bf16.xpose.msra.mxu0 0
    %2410 = vmatprep.subr.bf16.mxu0 0
    %2411 = vmatpush1.bf16.xpose.msra.mxu0 0
    %2412 = vmatprep.subr.bf16.mxu0 0
    %2413 = vmatpush1.bf16.xpose.msra.mxu0 0
    %2414 = vmatprep.subr.bf16.mxu0 0
    %2415 = vmatpush1.bf16.xpose.msra.mxu0 %v2400
    %2416 = vmatprep.subr.bf16.mxu0 0
    %2417 = vmatpush1.bf16.xpose.msra.mxu0 %v2397
    %2418 = vmatprep.subr.bf16.mxu0 0
    %2419 = vmatpush2.bf16.xpose.msra.mxu0 0
    %2420 = vmatprep.subr.bf16.mxu0 0
    %2421 = vmatpush2.bf16.xpose.msra.mxu0 0
    %2422 = vmatprep.subr.bf16.mxu0 0
    %2423 = vmatpush2.bf16.xpose.msra.mxu0 0
    %2424 = vmatprep.subr.bf16.mxu0 0
    %2425 = vmatpush2.bf16.xpose.msra.mxu0 0
    %2426 = vmatprep.subr.bf16.mxu0 0
    %2427 = vmatpush2.bf16.xpose.msra.mxu0 0
    %2428 = vmatprep.subr.bf16.mxu0 0
    %2429 = vmatpush2.bf16.xpose.msra.mxu0 0
    %2430 = vmatprep.subr.bf16.mxu0 0
    %2431 = vmatpush2.bf16.xpose.msra.mxu0 0
    %2432 = vmatprep.subr.bf16.mxu0 0
    %2433 = vmatpush2.bf16.xpose.msra.mxu0 0
    %2434 = vmatprep.mubr.bf16.mxu0 0
    %2435 = vmatmul.mubr.bf16.gmra.mxu0 %v2391
    %v2436 = vpop.f32.mrf.mxu0
    %v2437 = vadd.f32 0.0, %v2436
    %v2438 = vpop.f32.mrf.mxu0
    %v2439 = vpop.f32.mrf.mxu0
    %v2440 = vadd.f32 0.0, %v2439
    %v2441 = vpop.f32.mrf.mxu0
    %2442 = vmatprep.mubr.bf16.mxu0 0
    %2443 = vmatmul.mubr.bf16.gmra.mxu0 %v2394
    %v2444 = vpop.f32.mrf.mxu0
    %v2445 = vadd.f32 0.0, %v2444
    %v2446 = vpop.f32.mrf.mxu0
    %v2447 = vpop.f32.mrf.mxu0
    %v2448 = vadd.f32 0.0, %v2447
    %v2449 = vpop.f32.mrf.mxu0
    %2450 = vdwg.mxu0
    %v2451 = vsel %vm2270, %v2437, -1e+30
    %v2452 = vsel %vm2270, %v2440, -1e+30
    %v2453 = vsel %vm2270, %v2445, -1e+30
    %v2454 = vsel %vm2270, %v2448, -1e+30
    %v2455 = vsel %vm707, %v2451, -inf
    %2456 = vmax.xlane.f32.xlu0 %v2455
    %v2457 = vpop.xlane.xlu0 %2456
    %v2458 = vsel %vm707, %v2452, -inf
    %2459 = vmax.xlane.f32.xlu0 %v2458
    %v2460 = vpop.xlane.xlu0 %2459
    %v2461 = vsel %vm707, %v2453, -inf
    %2462 = vmax.xlane.f32.xlu0 %v2461
    %v2463 = vpop.xlane.xlu0 %2462
    %v2464 = vsel %vm707, %v2454, -inf
    %2465 = vmax.xlane.f32.xlu0 %v2464
    %v2466 = vpop.xlane.xlu0 %2465
    %v2467 = vsub.f32 %v2451, %v2457
    %v2468 = vsub.f32 %v2452, %v2460
    %v2469 = vsub.f32 %v2453, %v2463
    %v2470 = vsub.f32 %v2454, %v2466
    %v2471 = vmul.f32 %v2467, 1.442695
    %v2472 = vpow.pop %v2471
    %v2473 = vmul.f32 %v2468, 1.442695
    %v2474 = vpow.pop %v2473
    %v2475 = vmul.f32 %v2469, 1.442695
    %v2476 = vpow.pop %v2475
    %v2477 = vmul.f32 %v2470, 1.442695
    %v2478 = vpow.pop %v2477
    %v2479 = vsel %vm707, %v2472, 0.0
    %2480 = vadd.xlane.f32.xlu0 %v2479
    %v2481 = vpop.xlane.xlu0 %2480
    %v2482 = vsel %vm707, %v2474, 0.0
    %2483 = vadd.xlane.f32.xlu0 %v2482
    %v2484 = vpop.xlane.xlu0 %2483
    %v2485 = vsel %vm707, %v2476, 0.0
    %2486 = vadd.xlane.f32.xlu0 %v2485
    %v2487 = vpop.xlane.xlu0 %2486
    %v2488 = vsel %vm707, %v2478, 0.0
    %2489 = vadd.xlane.f32.xlu0 %v2488
    %v2490 = vpop.xlane.xlu0 %2489
    %v2491 = vpack.c.bf16 %v2474, %v2472
    %v2492 = vpack.c.bf16 %v2478, %v2476
    %v2494 = vsel %vm707, %v2491, 0
    %v2497 = vsel %vm707, %v2492, 0
    %2499 = vmatprep.subr.bf16.mxu0 0
    %2500 = vmatpush1.bf16.msra.mxu0 0
    %2501 = vmatprep.subr.bf16.mxu0 0
    %2502 = vmatpush1.bf16.msra.mxu0 0
    %2503 = vmatprep.subr.bf16.mxu0 0
    %2504 = vmatpush1.bf16.msra.mxu0 0
    %2505 = vmatprep.subr.bf16.mxu0 0
    %2506 = vmatpush1.bf16.msra.mxu0 0
    %2507 = vmatprep.subr.bf16.mxu0 0
    %2508 = vmatpush1.bf16.msra.mxu0 0
    %2509 = vmatprep.subr.bf16.mxu0 0
    %2510 = vmatpush1.bf16.msra.mxu0 0
    %2511 = vmatprep.subr.bf16.mxu0 0
    %2512 = vmatpush1.bf16.msra.mxu0 %v2316
    %2513 = vmatprep.subr.bf16.mxu0 0
    %2514 = vmatpush1.bf16.msra.mxu0 %v2314
    %2515 = vmatprep.subr.bf16.mxu0 0
    %2516 = vmatpush2.bf16.msra.mxu0 0
    %2517 = vmatprep.subr.bf16.mxu0 0
    %2518 = vmatpush2.bf16.msra.mxu0 0
    %2519 = vmatprep.subr.bf16.mxu0 0
    %2520 = vmatpush2.bf16.msra.mxu0 0
    %2521 = vmatprep.subr.bf16.mxu0 0
    %2522 = vmatpush2.bf16.msra.mxu0 0
    %2523 = vmatprep.subr.bf16.mxu0 0
    %2524 = vmatpush2.bf16.msra.mxu0 0
    %2525 = vmatprep.subr.bf16.mxu0 0
    %2526 = vmatpush2.bf16.msra.mxu0 0
    %2527 = vmatprep.subr.bf16.mxu0 0
    %2528 = vmatpush2.bf16.msra.mxu0 0
    %2529 = vmatprep.subr.bf16.mxu0 0
    %2530 = vmatpush2.bf16.msra.mxu0 0
    %2531 = vmatprep.mubr.bf16.mxu0 0
    %2532 = vmatmul.mubr.bf16.gmra.mxu0 %v2494
    %v2533 = vpop.f32.mrf.mxu0
    %v2534 = vadd.f32 0.0, %v2533
    %v2535 = vpop.f32.mrf.mxu0
    %v2536 = vpop.f32.mrf.mxu0
    %v2537 = vadd.f32 0.0, %v2536
    %v2538 = vpop.f32.mrf.mxu0
    %2539 = vmatprep.mubr.bf16.mxu0 0
    %2540 = vmatmul.mubr.bf16.gmra.mxu0 %v2497
    %v2541 = vpop.f32.mrf.mxu0
    %v2542 = vadd.f32 0.0, %v2541
    %v2543 = vpop.f32.mrf.mxu0
    %v2544 = vpop.f32.mrf.mxu0
    %v2545 = vadd.f32 0.0, %v2544
    %v2546 = vpop.f32.mrf.mxu0
    %2547 = vdwg.mxu0
    %v2548 = vrcp.pop %v2481
    %v2549 = vrcp.pop %v2484
    %v2550 = vrcp.pop %v2487
    %v2551 = vrcp.pop %v2490
    %v2552 = vmul.f32 %v2534, %v2548
    %v2553 = vmul.f32 %v2537, %v2549
    %v2554 = vmul.f32 %v2542, %v2550
    %v2555 = vmul.f32 %v2545, %v2551
    %vm2556 = vcmp.ge.s32.totalorder %v1033, 16
    %v2557 = vsel %vm2556, %v2552, %v2378
    %v2558 = vsel %vm2556, %v2553, %v2379
    %v2559 = vsel %vm2556, %v2554, %v2380
    %v2560 = vsel %vm2556, %v2555, %v2381
    %v2561 = vpack.c.bf16 %v2187, %v2184
    %v2562 = vpack.c.bf16 %v2195, %v2192
    %2565 = vrot.lane.b32.xlu0 %v2561, 96
    %v2566 = vpop.permute.xlu0 %2565
    %2567 = vrot.lane.b32.xlu0 %v2562, 96
    %v2568 = vpop.permute.xlu0 %2567
    %v2570 = vsel %vm2207, %v2561, 0
    %v2573 = vsel %vm2207, %v2562, 0
    %v2576 = vsel %vm2207, %v2566, 0
    %v2579 = vsel %vm2207, %v2568, 0
    %2581 = vmatprep.subr.bf16.mxu0 0
    %2582 = vmatpush1.bf16.xpose.msra.mxu0 0
    %2583 = vmatprep.subr.bf16.mxu0 0
    %2584 = vmatpush1.bf16.xpose.msra.mxu0 0
    %2585 = vmatprep.subr.bf16.mxu0 0
    %2586 = vmatpush1.bf16.xpose.msra.mxu0 0
    %2587 = vmatprep.subr.bf16.mxu0 0
    %2588 = vmatpush1.bf16.xpose.msra.mxu0 0
    %2589 = vmatprep.subr.bf16.mxu0 0
    %2590 = vmatpush1.bf16.xpose.msra.mxu0 0
    %2591 = vmatprep.subr.bf16.mxu0 0
    %2592 = vmatpush1.bf16.xpose.msra.mxu0 0
    %2593 = vmatprep.subr.bf16.mxu0 0
    %2594 = vmatpush1.bf16.xpose.msra.mxu0 %v2579
    %2595 = vmatprep.subr.bf16.mxu0 0
    %2596 = vmatpush1.bf16.xpose.msra.mxu0 %v2576
    %2597 = vmatprep.subr.bf16.mxu0 0
    %2598 = vmatpush2.bf16.xpose.msra.mxu0 0
    %2599 = vmatprep.subr.bf16.mxu0 0
    %2600 = vmatpush2.bf16.xpose.msra.mxu0 0
    %2601 = vmatprep.subr.bf16.mxu0 0
    %2602 = vmatpush2.bf16.xpose.msra.mxu0 0
    %2603 = vmatprep.subr.bf16.mxu0 0
    %2604 = vmatpush2.bf16.xpose.msra.mxu0 0
    %2605 = vmatprep.subr.bf16.mxu0 0
    %2606 = vmatpush2.bf16.xpose.msra.mxu0 0
    %2607 = vmatprep.subr.bf16.mxu0 0
    %2608 = vmatpush2.bf16.xpose.msra.mxu0 0
    %2609 = vmatprep.subr.bf16.mxu0 0
    %2610 = vmatpush2.bf16.xpose.msra.mxu0 0
    %2611 = vmatprep.subr.bf16.mxu0 0
    %2612 = vmatpush2.bf16.xpose.msra.mxu0 0
    %2613 = vmatprep.mubr.bf16.mxu0 0
    %2614 = vmatmul.mubr.bf16.gmra.mxu0 %v2570
    %v2615 = vpop.f32.mrf.mxu0
    %v2616 = vadd.f32 0.0, %v2615
    %v2617 = vpop.f32.mrf.mxu0
    %v2618 = vpop.f32.mrf.mxu0
    %v2619 = vadd.f32 0.0, %v2618
    %v2620 = vpop.f32.mrf.mxu0
    %2621 = vmatprep.mubr.bf16.mxu0 0
    %2622 = vmatmul.mubr.bf16.gmra.mxu0 %v2573
    %v2623 = vpop.f32.mrf.mxu0
    %v2624 = vadd.f32 0.0, %v2623
    %v2625 = vpop.f32.mrf.mxu0
    %v2626 = vpop.f32.mrf.mxu0
    %v2627 = vadd.f32 0.0, %v2626
    %v2628 = vpop.f32.mrf.mxu0
    %2629 = vdwg.mxu0
    %v2630 = vsel %vm2270, %v2616, -1e+30
    %v2631 = vsel %vm2270, %v2619, -1e+30
    %v2632 = vsel %vm2270, %v2624, -1e+30
    %v2633 = vsel %vm2270, %v2627, -1e+30
    %v2634 = vsel %vm707, %v2630, -inf
    %2635 = vmax.xlane.f32.xlu0 %v2634
    %v2636 = vpop.xlane.xlu0 %2635
    %v2637 = vsel %vm707, %v2631, -inf
    %2638 = vmax.xlane.f32.xlu0 %v2637
    %v2639 = vpop.xlane.xlu0 %2638
    %v2640 = vsel %vm707, %v2632, -inf
    %2641 = vmax.xlane.f32.xlu0 %v2640
    %v2642 = vpop.xlane.xlu0 %2641
    %v2643 = vsel %vm707, %v2633, -inf
    %2644 = vmax.xlane.f32.xlu0 %v2643
    %v2645 = vpop.xlane.xlu0 %2644
    %v2646 = vsub.f32 %v2630, %v2636
    %v2647 = vsub.f32 %v2631, %v2639
    %v2648 = vsub.f32 %v2632, %v2642
    %v2649 = vsub.f32 %v2633, %v2645
    %v2650 = vmul.f32 %v2646, 1.442695
    %v2651 = vpow.pop %v2650
    %v2652 = vmul.f32 %v2647, 1.442695
    %v2653 = vpow.pop %v2652
    %v2654 = vmul.f32 %v2648, 1.442695
    %v2655 = vpow.pop %v2654
    %v2656 = vmul.f32 %v2649, 1.442695
    %v2657 = vpow.pop %v2656
    %v2658 = vsel %vm707, %v2651, 0.0
    %2659 = vadd.xlane.f32.xlu0 %v2658
    %v2660 = vpop.xlane.xlu0 %2659
    %v2661 = vsel %vm707, %v2653, 0.0
    %2662 = vadd.xlane.f32.xlu0 %v2661
    %v2663 = vpop.xlane.xlu0 %2662
    %v2664 = vsel %vm707, %v2655, 0.0
    %2665 = vadd.xlane.f32.xlu0 %v2664
    %v2666 = vpop.xlane.xlu0 %2665
    %v2667 = vsel %vm707, %v2657, 0.0
    %2668 = vadd.xlane.f32.xlu0 %v2667
    %v2669 = vpop.xlane.xlu0 %2668
    %v2670 = vpack.c.bf16 %v2653, %v2651
    %v2671 = vpack.c.bf16 %v2657, %v2655
    %2672 = vrot.lane.b32.xlu0 %v2561, 64
    %v2673 = vpop.permute.xlu0 %2672
    %2674 = vrot.lane.b32.xlu0 %v2562, 64
    %v2675 = vpop.permute.xlu0 %2674
    %v2679 = vsel %vm707, %v2670, 0
    %v2682 = vsel %vm707, %v2671, 0
    %2684 = vmatprep.subr.bf16.mxu0 0
    %2685 = vmatpush1.bf16.msra.mxu0 0
    %2686 = vmatprep.subr.bf16.mxu0 0
    %2687 = vmatpush1.bf16.msra.mxu0 0
    %2688 = vmatprep.subr.bf16.mxu0 0
    %2689 = vmatpush1.bf16.msra.mxu0 0
    %2690 = vmatprep.subr.bf16.mxu0 0
    %2691 = vmatpush1.bf16.msra.mxu0 0
    %2692 = vmatprep.subr.bf16.mxu0 0
    %2693 = vmatpush1.bf16.msra.mxu0 0
    %2694 = vmatprep.subr.bf16.mxu0 0
    %2695 = vmatpush1.bf16.msra.mxu0 0
    %2696 = vmatprep.subr.bf16.mxu0 0
    %2697 = vmatpush1.bf16.msra.mxu0 %v2675
    %2698 = vmatprep.subr.bf16.mxu0 0
    %2699 = vmatpush1.bf16.msra.mxu0 %v2673
    %2700 = vmatprep.subr.bf16.mxu0 0
    %2701 = vmatpush2.bf16.msra.mxu0 0
    %2702 = vmatprep.subr.bf16.mxu0 0
    %2703 = vmatpush2.bf16.msra.mxu0 0
    %2704 = vmatprep.subr.bf16.mxu0 0
    %2705 = vmatpush2.bf16.msra.mxu0 0
    %2706 = vmatprep.subr.bf16.mxu0 0
    %2707 = vmatpush2.bf16.msra.mxu0 0
    %2708 = vmatprep.subr.bf16.mxu0 0
    %2709 = vmatpush2.bf16.msra.mxu0 0
    %2710 = vmatprep.subr.bf16.mxu0 0
    %2711 = vmatpush2.bf16.msra.mxu0 0
    %2712 = vmatprep.subr.bf16.mxu0 0
    %2713 = vmatpush2.bf16.msra.mxu0 0
    %2714 = vmatprep.subr.bf16.mxu0 0
    %2715 = vmatpush2.bf16.msra.mxu0 0
    %2716 = vmatprep.mubr.bf16.mxu0 0
    %2717 = vmatmul.mubr.bf16.gmra.mxu0 %v2679
    %v2718 = vpop.f32.mrf.mxu0
    %v2719 = vadd.f32 0.0, %v2718
    %v2720 = vpop.f32.mrf.mxu0
    %v2721 = vpop.f32.mrf.mxu0
    %v2722 = vadd.f32 0.0, %v2721
    %v2723 = vpop.f32.mrf.mxu0
    %2724 = vmatprep.mubr.bf16.mxu0 0
    %2725 = vmatmul.mubr.bf16.gmra.mxu0 %v2682
    %v2726 = vpop.f32.mrf.mxu0
    %v2727 = vadd.f32 0.0, %v2726
    %v2728 = vpop.f32.mrf.mxu0
    %v2729 = vpop.f32.mrf.mxu0
    %v2730 = vadd.f32 0.0, %v2729
    %v2731 = vpop.f32.mrf.mxu0
    %2732 = vdwg.mxu0
    %v2733 = vrcp.pop %v2660
    %v2734 = vrcp.pop %v2663
    %v2735 = vrcp.pop %v2666
    %v2736 = vrcp.pop %v2669
    %v2737 = vmul.f32 %v2719, %v2733
    %v2738 = vmul.f32 %v2722, %v2734
    %v2739 = vmul.f32 %v2727, %v2735
    %v2740 = vmul.f32 %v2730, %v2736
    %2741 = vrot.lane.b32.xlu0 %v2561, 112
    %v2742 = vpop.permute.xlu0 %2741
    %2743 = vrot.lane.b32.xlu0 %v2562, 112
    %v2744 = vpop.permute.xlu0 %2743
    %2745 = vrot.lane.b32.xlu0 %v2561, 80
    %v2746 = vpop.permute.xlu0 %2745
    %2747 = vrot.lane.b32.xlu0 %v2562, 80
    %v2748 = vpop.permute.xlu0 %2747
    %v2750 = vsel %vm2207, %v2742, 0
    %v2753 = vsel %vm2207, %v2744, 0
    %v2756 = vsel %vm2207, %v2746, 0
    %v2759 = vsel %vm2207, %v2748, 0
    %2761 = vmatprep.subr.bf16.mxu0 0
    %2762 = vmatpush1.bf16.xpose.msra.mxu0 0
    %2763 = vmatprep.subr.bf16.mxu0 0
    %2764 = vmatpush1.bf16.xpose.msra.mxu0 0
    %2765 = vmatprep.subr.bf16.mxu0 0
    %2766 = vmatpush1.bf16.xpose.msra.mxu0 0
    %2767 = vmatprep.subr.bf16.mxu0 0
    %2768 = vmatpush1.bf16.xpose.msra.mxu0 0
    %2769 = vmatprep.subr.bf16.mxu0 0
    %2770 = vmatpush1.bf16.xpose.msra.mxu0 0
    %2771 = vmatprep.subr.bf16.mxu0 0
    %2772 = vmatpush1.bf16.xpose.msra.mxu0 0
    %2773 = vmatprep.subr.bf16.mxu0 0
    %2774 = vmatpush1.bf16.xpose.msra.mxu0 %v2759
    %2775 = vmatprep.subr.bf16.mxu0 0
    %2776 = vmatpush1.bf16.xpose.msra.mxu0 %v2756
    %2777 = vmatprep.subr.bf16.mxu0 0
    %2778 = vmatpush2.bf16.xpose.msra.mxu0 0
    %2779 = vmatprep.subr.bf16.mxu0 0
    %2780 = vmatpush2.bf16.xpose.msra.mxu0 0
    %2781 = vmatprep.subr.bf16.mxu0 0
    %2782 = vmatpush2.bf16.xpose.msra.mxu0 0
    %2783 = vmatprep.subr.bf16.mxu0 0
    %2784 = vmatpush2.bf16.xpose.msra.mxu0 0
    %2785 = vmatprep.subr.bf16.mxu0 0
    %2786 = vmatpush2.bf16.xpose.msra.mxu0 0
    %2787 = vmatprep.subr.bf16.mxu0 0
    %2788 = vmatpush2.bf16.xpose.msra.mxu0 0
    %2789 = vmatprep.subr.bf16.mxu0 0
    %2790 = vmatpush2.bf16.xpose.msra.mxu0 0
    %2791 = vmatprep.subr.bf16.mxu0 0
    %2792 = vmatpush2.bf16.xpose.msra.mxu0 0
    %2793 = vmatprep.mubr.bf16.mxu0 0
    %2794 = vmatmul.mubr.bf16.gmra.mxu0 %v2750
    %v2795 = vpop.f32.mrf.mxu0
    %v2796 = vadd.f32 0.0, %v2795
    %v2797 = vpop.f32.mrf.mxu0
    %v2798 = vpop.f32.mrf.mxu0
    %v2799 = vadd.f32 0.0, %v2798
    %v2800 = vpop.f32.mrf.mxu0
    %2801 = vmatprep.mubr.bf16.mxu0 0
    %2802 = vmatmul.mubr.bf16.gmra.mxu0 %v2753
    %v2803 = vpop.f32.mrf.mxu0
    %v2804 = vadd.f32 0.0, %v2803
    %v2805 = vpop.f32.mrf.mxu0
    %v2806 = vpop.f32.mrf.mxu0
    %v2807 = vadd.f32 0.0, %v2806
    %v2808 = vpop.f32.mrf.mxu0
    %2809 = vdwg.mxu0
    %v2810 = vsel %vm2270, %v2796, -1e+30
    %v2811 = vsel %vm2270, %v2799, -1e+30
    %v2812 = vsel %vm2270, %v2804, -1e+30
    %v2813 = vsel %vm2270, %v2807, -1e+30
    %v2814 = vsel %vm707, %v2810, -inf
    %2815 = vmax.xlane.f32.xlu0 %v2814
    %v2816 = vpop.xlane.xlu0 %2815
    %v2817 = vsel %vm707, %v2811, -inf
    %2818 = vmax.xlane.f32.xlu0 %v2817
    %v2819 = vpop.xlane.xlu0 %2818
    %v2820 = vsel %vm707, %v2812, -inf
    %2821 = vmax.xlane.f32.xlu0 %v2820
    %v2822 = vpop.xlane.xlu0 %2821
    %v2823 = vsel %vm707, %v2813, -inf
    %2824 = vmax.xlane.f32.xlu0 %v2823
    %v2825 = vpop.xlane.xlu0 %2824
    %v2826 = vsub.f32 %v2810, %v2816
    %v2827 = vsub.f32 %v2811, %v2819
    %v2828 = vsub.f32 %v2812, %v2822
    %v2829 = vsub.f32 %v2813, %v2825
    %v2830 = vmul.f32 %v2826, 1.442695
    %v2831 = vpow.pop %v2830
    %v2832 = vmul.f32 %v2827, 1.442695
    %v2833 = vpow.pop %v2832
    %v2834 = vmul.f32 %v2828, 1.442695
    %v2835 = vpow.pop %v2834
    %v2836 = vmul.f32 %v2829, 1.442695
    %v2837 = vpow.pop %v2836
    %v2838 = vsel %vm707, %v2831, 0.0
    %2839 = vadd.xlane.f32.xlu0 %v2838
    %v2840 = vpop.xlane.xlu0 %2839
    %v2841 = vsel %vm707, %v2833, 0.0
    %2842 = vadd.xlane.f32.xlu0 %v2841
    %v2843 = vpop.xlane.xlu0 %2842
    %v2844 = vsel %vm707, %v2835, 0.0
    %2845 = vadd.xlane.f32.xlu0 %v2844
    %v2846 = vpop.xlane.xlu0 %2845
    %v2847 = vsel %vm707, %v2837, 0.0
    %2848 = vadd.xlane.f32.xlu0 %v2847
    %v2849 = vpop.xlane.xlu0 %2848
    %v2850 = vpack.c.bf16 %v2833, %v2831
    %v2851 = vpack.c.bf16 %v2837, %v2835
    %v2853 = vsel %vm707, %v2850, 0
    %v2856 = vsel %vm707, %v2851, 0
    %2858 = vmatprep.subr.bf16.mxu0 0
    %2859 = vmatpush1.bf16.msra.mxu0 0
    %2860 = vmatprep.subr.bf16.mxu0 0
    %2861 = vmatpush1.bf16.msra.mxu0 0
    %2862 = vmatprep.subr.bf16.mxu0 0
    %2863 = vmatpush1.bf16.msra.mxu0 0
    %2864 = vmatprep.subr.bf16.mxu0 0
    %2865 = vmatpush1.bf16.msra.mxu0 0
    %2866 = vmatprep.subr.bf16.mxu0 0
    %2867 = vmatpush1.bf16.msra.mxu0 0
    %2868 = vmatprep.subr.bf16.mxu0 0
    %2869 = vmatpush1.bf16.msra.mxu0 0
    %2870 = vmatprep.subr.bf16.mxu0 0
    %2871 = vmatpush1.bf16.msra.mxu0 %v2675
    %2872 = vmatprep.subr.bf16.mxu0 0
    %2873 = vmatpush1.bf16.msra.mxu0 %v2673
    %2874 = vmatprep.subr.bf16.mxu0 0
    %2875 = vmatpush2.bf16.msra.mxu0 0
    %2876 = vmatprep.subr.bf16.mxu0 0
    %2877 = vmatpush2.bf16.msra.mxu0 0
    %2878 = vmatprep.subr.bf16.mxu0 0
    %2879 = vmatpush2.bf16.msra.mxu0 0
    %2880 = vmatprep.subr.bf16.mxu0 0
    %2881 = vmatpush2.bf16.msra.mxu0 0
    %2882 = vmatprep.subr.bf16.mxu0 0
    %2883 = vmatpush2.bf16.msra.mxu0 0
    %2884 = vmatprep.subr.bf16.mxu0 0
    %2885 = vmatpush2.bf16.msra.mxu0 0
    %2886 = vmatprep.subr.bf16.mxu0 0
    %2887 = vmatpush2.bf16.msra.mxu0 0
    %2888 = vmatprep.subr.bf16.mxu0 0
    %2889 = vmatpush2.bf16.msra.mxu0 0
    %2890 = vmatprep.mubr.bf16.mxu0 0
    %2891 = vmatmul.mubr.bf16.gmra.mxu0 %v2853
    %v2892 = vpop.f32.mrf.mxu0
    %v2893 = vadd.f32 0.0, %v2892
    %v2894 = vpop.f32.mrf.mxu0
    %v2895 = vpop.f32.mrf.mxu0
    %v2896 = vadd.f32 0.0, %v2895
    %v2897 = vpop.f32.mrf.mxu0
    %2898 = vmatprep.mubr.bf16.mxu0 0
    %2899 = vmatmul.mubr.bf16.gmra.mxu0 %v2856
    %v2900 = vpop.f32.mrf.mxu0
    %v2901 = vadd.f32 0.0, %v2900
    %v2902 = vpop.f32.mrf.mxu0
    %v2903 = vpop.f32.mrf.mxu0
    %v2904 = vadd.f32 0.0, %v2903
    %v2905 = vpop.f32.mrf.mxu0
    %2906 = vdwg.mxu0
    %v2907 = vrcp.pop %v2840
    %v2908 = vrcp.pop %v2843
    %v2909 = vrcp.pop %v2846
    %v2910 = vrcp.pop %v2849
    %v2911 = vmul.f32 %v2893, %v2907
    %v2912 = vmul.f32 %v2896, %v2908
    %v2913 = vmul.f32 %v2901, %v2909
    %v2914 = vmul.f32 %v2904, %v2910
    %v2915 = vsel %vm2556, %v2911, %v2737
    %v2916 = vsel %vm2556, %v2912, %v2738
    %v2917 = vsel %vm2556, %v2913, %v2739
    %v2918 = vsel %vm2556, %v2914, %v2740
    %v2919 = vpack.c.bf16 %v2558, %v2557
    %v2920 = vpack.c.bf16 %v2560, %v2559
    %v2921 = vpack.c.bf16 %v2916, %v2915
    %v2922 = vpack.c.bf16 %v2918, %v2917
    %v2923 = vld [vmem:[%s18] sm:$0xf]
    %v2924 = vld [vmem:[%s18 + $0x4] sm:$0xf]
    %v2925 = vld [vmem:[%s18 + $0x8] sm:$0xf]
    %v2926 = vld [vmem:[%s18 + $0xc] sm:$0xf]
    %v2931 = vunpack.c.l.b16 %v2923
    %v2932 = vunpack.c.l.b16 %v2924
    %v2933 = vunpack.c.l.b16 %v2925
    %v2934 = vunpack.c.l.b16 %v2926
    %v2935 = vpack.c.b16 %v2932, %v2931
    %v2936 = vpack.c.b16 %v2934, %v2933
    %v2940 = vsel %vm707, %v2919, 0
    %v2943 = vsel %vm707, %v2920, 0
    %v2946 = vsel %vm707, %v2921, 0
    %v2949 = vsel %vm707, %v2922, 0
    %2951 = vmatprep.subr.bf16.mxu0 0
    %2952 = vmatpush1.bf16.msra.mxu0 0
    %2953 = vmatprep.subr.bf16.mxu0 0
    %2954 = vmatpush1.bf16.msra.mxu0 0
    %2955 = vmatprep.subr.bf16.mxu0 0
    %2956 = vmatpush1.bf16.msra.mxu0 0
    %2957 = vmatprep.subr.bf16.mxu0 0
    %2958 = vmatpush1.bf16.msra.mxu0 0
    %2959 = vmatprep.subr.bf16.mxu0 0
    %2960 = vmatpush1.bf16.msra.mxu0 0
    %2961 = vmatprep.subr.bf16.mxu0 0
    %2962 = vmatpush1.bf16.msra.mxu0 0
    %2963 = vmatprep.subr.bf16.mxu0 0
    %2964 = vmatpush1.bf16.msra.mxu0 %v2936
    %2965 = vmatprep.subr.bf16.mxu0 0
    %2966 = vmatpush1.bf16.msra.mxu0 %v2935
    %2967 = vmatprep.subr.bf16.mxu0 0
    %2968 = vmatpush2.bf16.msra.mxu0 0
    %2969 = vmatprep.subr.bf16.mxu0 0
    %2970 = vmatpush2.bf16.msra.mxu0 0
    %2971 = vmatprep.subr.bf16.mxu0 0
    %2972 = vmatpush2.bf16.msra.mxu0 0
    %2973 = vmatprep.subr.bf16.mxu0 0
    %2974 = vmatpush2.bf16.msra.mxu0 0
    %2975 = vmatprep.subr.bf16.mxu0 0
    %2976 = vmatpush2.bf16.msra.mxu0 0
    %2977 = vmatprep.subr.bf16.mxu0 0
    %2978 = vmatpush2.bf16.msra.mxu0 0
    %2979 = vmatprep.subr.bf16.mxu0 0
    %2980 = vmatpush2.bf16.msra.mxu0 0
    %2981 = vmatprep.subr.bf16.mxu0 0
    %2982 = vmatpush2.bf16.msra.mxu0 0
    %2983 = vmatprep.mubr.bf16.mxu0 0
    %2984 = vmatmul.mubr.bf16.gmra.mxu0 %v2940
    %v2985 = vpop.f32.mrf.mxu0
    %v2986 = vadd.f32 0.0, %v2985
    %v2987 = vpop.f32.mrf.mxu0
    %v2988 = vpop.f32.mrf.mxu0
    %v2989 = vadd.f32 0.0, %v2988
    %v2990 = vpop.f32.mrf.mxu0
    %2991 = vmatprep.mubr.bf16.mxu0 0
    %2992 = vmatmul.mubr.bf16.gmra.mxu0 %v2943
    %v2993 = vpop.f32.mrf.mxu0
    %v2994 = vadd.f32 0.0, %v2993
    %v2995 = vpop.f32.mrf.mxu0
    %v2996 = vpop.f32.mrf.mxu0
    %v2997 = vadd.f32 0.0, %v2996
    %v2998 = vpop.f32.mrf.mxu0
    %2999 = vmatprep.mubr.bf16.mxu0 0
    %3000 = vmatmul.mubr.bf16.gmra.mxu0 %v2946
    %v3001 = vpop.f32.mrf.mxu0
    %v3002 = vadd.f32 0.0, %v3001
    %v3003 = vpop.f32.mrf.mxu0
    %v3004 = vpop.f32.mrf.mxu0
    %v3005 = vadd.f32 0.0, %v3004
    %v3006 = vpop.f32.mrf.mxu0
    %3007 = vmatprep.mubr.bf16.mxu0 0
    %3008 = vmatmul.mubr.bf16.gmra.mxu0 %v2949
    %v3009 = vpop.f32.mrf.mxu0
    %v3010 = vadd.f32 0.0, %v3009
    %v3011 = vpop.f32.mrf.mxu0
    %v3012 = vpop.f32.mrf.mxu0
    %v3013 = vadd.f32 0.0, %v3012
    %v3014 = vpop.f32.mrf.mxu0
    %3015 = vdwg.mxu0
    %v3016 = vadd.f32 %v1916, %v2986
    %v3017 = vadd.f32 %v1917, %v2989
    %v3018 = vadd.f32 %v1918, %v2994
    %v3019 = vadd.f32 %v1919, %v2997
    %v3020 = vadd.f32 %v1920, %v3002
    %v3021 = vadd.f32 %v1921, %v3005
    %v3022 = vadd.f32 %v1922, %v3010
    %v3023 = vadd.f32 %v1923, %v3013
    %v3024 = vld [vmem:[#allocation16] sm:$0x1]
    %v3026 = vlaneseq
    %v3027 = vshrl.u32 %v3026, 7
    %v3028 = vsub.s32 0, %v3027
    %v3029 = vrot.slane %v3024, %v3028
    %v3031 = vadd.f32 %v3016, %v3029
    %v3032 = vadd.f32 %v3017, %v3029
    %v3033 = vadd.f32 %v3018, %v3029
    %v3034 = vadd.f32 %v3019, %v3029
    %v3035 = vadd.f32 %v3020, %v3029
    %v3036 = vadd.f32 %v3021, %v3029
    %v3037 = vadd.f32 %v3022, %v3029
    %v3038 = vadd.f32 %v3023, %v3029
    %v3039 = vld [vmem:[#allocation17] sm:$0x1]
    %v3040 = vld [vmem:[#allocation19] sm:$0x1]
    %v3041 = vsel %vm1036, %v3031, 0.0
    %v3042 = vsel %vm1036, %v3032, 0.0
    %v3043 = vsel %vm1036, %v3033, 0.0
    %v3044 = vsel %vm1036, %v3034, 0.0
    %v3045 = vsel %vm1036, %v3035, 0.0
    %v3046 = vsel %vm1036, %v3036, 0.0
    %v3047 = vsel %vm1036, %v3037, 0.0
    %v3048 = vsel %vm1036, %v3038, 0.0
    %3049 = vadd.xlane.f32.xlu0 %v3041
    %v3050 = vpop.xlane.xlu0 %3049
    %3051 = vadd.xlane.f32.xlu0 %v3042
    %v3052 = vpop.xlane.xlu0 %3051
    %3053 = vadd.xlane.f32.xlu0 %v3043
    %v3054 = vpop.xlane.xlu0 %3053
    %3055 = vadd.xlane.f32.xlu0 %v3044
    %v3056 = vpop.xlane.xlu0 %3055
    %3057 = vadd.xlane.f32.xlu0 %v3045
    %v3058 = vpop.xlane.xlu0 %3057
    %3059 = vadd.xlane.f32.xlu0 %v3046
    %v3060 = vpop.xlane.xlu0 %3059
    %3061 = vadd.xlane.f32.xlu0 %v3047
    %v3062 = vpop.xlane.xlu0 %3061
    %3063 = vadd.xlane.f32.xlu0 %v3048
    %v3064 = vpop.xlane.xlu0 %3063
    %v3065 = vmul.f32 %v3050, 0.03125
    %v3066 = vmul.f32 %v3052, 0.03125
    %v3067 = vmul.f32 %v3054, 0.03125
    %v3068 = vmul.f32 %v3056, 0.03125
    %v3069 = vmul.f32 %v3058, 0.03125
    %v3070 = vmul.f32 %v3060, 0.03125
    %v3071 = vmul.f32 %v3062, 0.03125
    %v3072 = vmul.f32 %v3064, 0.03125
    %v3073 = vsub.f32 %v3031, %v3065
    %v3074 = vsub.f32 %v3032, %v3066
    %v3075 = vsub.f32 %v3033, %v3067
    %v3076 = vsub.f32 %v3034, %v3068
    %v3077 = vsub.f32 %v3035, %v3069
    %v3078 = vsub.f32 %v3036, %v3070
    %v3079 = vsub.f32 %v3037, %v3071
    %v3080 = vsub.f32 %v3038, %v3072
    %v3081 = vsel %vm1036, %v3073, 0.0
    %v3082 = vsel %vm1036, %v3074, 0.0
    %v3083 = vsel %vm1036, %v3075, 0.0
    %v3084 = vsel %vm1036, %v3076, 0.0
    %v3085 = vsel %vm1036, %v3077, 0.0
    %v3086 = vsel %vm1036, %v3078, 0.0
    %v3087 = vsel %vm1036, %v3079, 0.0
    %v3088 = vsel %vm1036, %v3080, 0.0
    %v3089 = vmul.f32 %v3081, %v3081
    %v3090 = vmul.f32 %v3082, %v3082
    %v3091 = vmul.f32 %v3083, %v3083
    %v3092 = vmul.f32 %v3084, %v3084
    %v3093 = vmul.f32 %v3085, %v3085
    %v3094 = vmul.f32 %v3086, %v3086
    %v3095 = vmul.f32 %v3087, %v3087
    %v3096 = vmul.f32 %v3088, %v3088
    %3097 = vadd.xlane.f32.xlu0 %v3089
    %v3098 = vpop.xlane.xlu0 %3097
    %3099 = vadd.xlane.f32.xlu0 %v3090
    %v3100 = vpop.xlane.xlu0 %3099
    %3101 = vadd.xlane.f32.xlu0 %v3091
    %v3102 = vpop.xlane.xlu0 %3101
    %3103 = vadd.xlane.f32.xlu0 %v3092
    %v3104 = vpop.xlane.xlu0 %3103
    %3105 = vadd.xlane.f32.xlu0 %v3093
    %v3106 = vpop.xlane.xlu0 %3105
    %3107 = vadd.xlane.f32.xlu0 %v3094
    %v3108 = vpop.xlane.xlu0 %3107
    %3109 = vadd.xlane.f32.xlu0 %v3095
    %v3110 = vpop.xlane.xlu0 %3109
    %3111 = vadd.xlane.f32.xlu0 %v3096
    %v3112 = vpop.xlane.xlu0 %3111
    %v3113 = vmul.f32 %v3098, 0.03125
    %v3114 = vmul.f32 %v3100, 0.03125
    %v3115 = vmul.f32 %v3102, 0.03125
    %v3116 = vmul.f32 %v3104, 0.03125
    %v3117 = vmul.f32 %v3106, 0.03125
    %v3118 = vmul.f32 %v3108, 0.03125
    %v3119 = vmul.f32 %v3110, 0.03125
    %v3120 = vmul.f32 %v3112, 0.03125
    %v3121 = vadd.f32 %v3113, 1e-05
    %v3122 = vadd.f32 %v3114, 1e-05
    %v3123 = vadd.f32 %v3115, 1e-05
    %v3124 = vadd.f32 %v3116, 1e-05
    %v3125 = vadd.f32 %v3117, 1e-05
    %v3126 = vadd.f32 %v3118, 1e-05
    %v3127 = vadd.f32 %v3119, 1e-05
    %v3128 = vadd.f32 %v3120, 1e-05
    %v3129 = vrsqrt.pop %v3121
    %v3130 = vrsqrt.pop %v3122
    %v3131 = vrsqrt.pop %v3123
    %v3132 = vrsqrt.pop %v3124
    %v3133 = vrsqrt.pop %v3125
    %v3134 = vrsqrt.pop %v3126
    %v3135 = vrsqrt.pop %v3127
    %v3136 = vrsqrt.pop %v3128
    %v3137 = vmul.f32 %v3081, %v3129
    %v3138 = vmul.f32 %v3082, %v3130
    %v3139 = vmul.f32 %v3083, %v3131
    %v3140 = vmul.f32 %v3084, %v3132
    %v3141 = vmul.f32 %v3085, %v3133
    %v3142 = vmul.f32 %v3086, %v3134
    %v3143 = vmul.f32 %v3087, %v3135
    %v3144 = vmul.f32 %v3088, %v3136
    %v3146 = vlaneseq
    %v3147 = vshrl.u32 %v3146, 7
    %v3148 = vsub.s32 0, %v3147
    %v3149 = vrot.slane %v3039, %v3148
    %v3151 = vmul.f32 %v3137, %v3149
    %v3152 = vmul.f32 %v3138, %v3149
    %v3153 = vmul.f32 %v3139, %v3149
    %v3154 = vmul.f32 %v3140, %v3149
    %v3155 = vmul.f32 %v3141, %v3149
    %v3156 = vmul.f32 %v3142, %v3149
    %v3157 = vmul.f32 %v3143, %v3149
    %v3158 = vmul.f32 %v3144, %v3149
    %v3160 = vlaneseq
    %v3161 = vshrl.u32 %v3160, 7
    %v3162 = vsub.s32 0, %v3161
    %v3163 = vrot.slane %v3040, %v3162
    %v3165 = vadd.f32 %v3151, %v3163
    %v3166 = vadd.f32 %v3152, %v3163
    %v3167 = vadd.f32 %v3153, %v3163
    %v3168 = vadd.f32 %v3154, %v3163
    %v3169 = vadd.f32 %v3155, %v3163
    %v3170 = vadd.f32 %v3156, %v3163
    %v3171 = vadd.f32 %v3157, %v3163
    %v3172 = vadd.f32 %v3158, %v3163
    %v3173 = vpack.c.bf16 %v3166, %v3165
    %v3174 = vpack.c.bf16 %v3168, %v3167
    %v3175 = vpack.c.bf16 %v3170, %v3169
    %v3176 = vpack.c.bf16 %v3172, %v3171
    %v3177 = vld [vmem:[%s22] sm:$0xf]
    %v3178 = vld [vmem:[%s22 + $0x4] sm:$0xf]
    %v3179 = vld [vmem:[%s22 + $0x8] sm:$0xf]
    %v3180 = vld [vmem:[%s22 + $0xc] sm:$0xf]
    %v3181 = vld [vmem:[%s22 + $0x10] sm:$0xf]
    %v3182 = vld [vmem:[%s22 + $0x14] sm:$0xf]
    %v3183 = vld [vmem:[%s22 + $0x18] sm:$0xf]
    %v3184 = vld [vmem:[%s22 + $0x1c] sm:$0xf]
    %v3185 = vld [vmem:[%s22 + $0x20] sm:$0xf]
    %v3186 = vld [vmem:[%s22 + $0x24] sm:$0xf]
    %v3187 = vld [vmem:[%s22 + $0x28] sm:$0xf]
    %v3188 = vld [vmem:[%s22 + $0x2c] sm:$0xf]
    %v3189 = vld [vmem:[%s22 + $0x30] sm:$0xf]
    %v3190 = vld [vmem:[%s22 + $0x34] sm:$0xf]
    %v3191 = vld [vmem:[%s22 + $0x38] sm:$0xf]
    %v3192 = vld [vmem:[%s22 + $0x3c] sm:$0xf]
    %v3193 = vld [vmem:[#allocation20] sm:$0x1]
    %v3195 = vlaneseq
    %v3196 = vshrl.u32 %v3195, 7
    %v3197 = vsub.s32 0, %v3196
    %v3198 = vrot.slane %v3193, %v3197
    %v3216 = vunpack.c.l.b16 %v3177
    %v3217 = vunpack.c.l.b16 %v3178
    %v3218 = vunpack.c.l.b16 %v3179
    %v3219 = vunpack.c.l.b16 %v3180
    %v3220 = vunpack.c.l.b16 %v3181
    %v3221 = vunpack.c.l.b16 %v3182
    %v3222 = vunpack.c.l.b16 %v3183
    %v3223 = vunpack.c.l.b16 %v3184
    %v3224 = vunpack.c.l.b16 %v3185
    %v3225 = vunpack.c.l.b16 %v3186
    %v3226 = vunpack.c.l.b16 %v3187
    %v3227 = vunpack.c.l.b16 %v3188
    %v3228 = vunpack.c.l.b16 %v3189
    %v3229 = vunpack.c.l.b16 %v3190
    %v3230 = vunpack.c.l.b16 %v3191
    %v3231 = vunpack.c.l.b16 %v3192
    %v3232 = vpack.c.b16 %v3217, %v3216
    %v3233 = vpack.c.b16 %v3219, %v3218
    %v3234 = vpack.c.b16 %v3221, %v3220
    %v3235 = vpack.c.b16 %v3223, %v3222
    %v3236 = vpack.c.b16 %v3225, %v3224
    %v3237 = vpack.c.b16 %v3227, %v3226
    %v3238 = vpack.c.b16 %v3229, %v3228
    %v3239 = vpack.c.b16 %v3231, %v3230
    %3248 = vmatprep.subr.bf16.mxu0 0
    %3249 = vmatpush1.bf16.msra.mxu0 %v3239
    %3250 = vmatprep.subr.bf16.mxu0 0
    %3251 = vmatpush1.bf16.msra.mxu0 %v3238
    %3252 = vmatprep.subr.bf16.mxu0 0
    %3253 = vmatpush1.bf16.msra.mxu0 %v3237
    %3254 = vmatprep.subr.bf16.mxu0 0
    %3255 = vmatpush1.bf16.msra.mxu0 %v3236
    %3256 = vmatprep.subr.bf16.mxu0 0
    %3257 = vmatpush1.bf16.msra.mxu0 %v3235
    %3258 = vmatprep.subr.bf16.mxu0 0
    %3259 = vmatpush1.bf16.msra.mxu0 %v3234
    %3260 = vmatprep.subr.bf16.mxu0 0
    %3261 = vmatpush1.bf16.msra.mxu0 %v3233
    %3262 = vmatprep.subr.bf16.mxu0 0
    %3263 = vmatpush1.bf16.msra.mxu0 %v3232
    %3264 = vmatprep.subr.bf16.mxu0 0
    %3265 = vmatpush2.bf16.msra.mxu0 0
    %3266 = vmatprep.subr.bf16.mxu0 0
    %3267 = vmatpush2.bf16.msra.mxu0 0
    %3268 = vmatprep.subr.bf16.mxu0 0
    %3269 = vmatpush2.bf16.msra.mxu0 0
    %3270 = vmatprep.subr.bf16.mxu0 0
    %3271 = vmatpush2.bf16.msra.mxu0 0
    %3272 = vmatprep.subr.bf16.mxu0 0
    %3273 = vmatpush2.bf16.msra.mxu0 0
    %3274 = vmatprep.subr.bf16.mxu0 0
    %3275 = vmatpush2.bf16.msra.mxu0 0
    %3276 = vmatprep.subr.bf16.mxu0 0
    %3277 = vmatpush2.bf16.msra.mxu0 0
    %3278 = vmatprep.subr.bf16.mxu0 0
    %3279 = vmatpush2.bf16.msra.mxu0 0
    %3280 = vmatprep.mubr.bf16.mxu0 0
    %3281 = vmatmul.mubr.bf16.gmra.mxu0 %v3173
    %v3282 = vpop.f32.mrf.mxu0
    %v3283 = vadd.f32 %v3198, %v3282
    %v3284 = vpop.f32.mrf.mxu0
    %v3285 = vpop.f32.mrf.mxu0
    %v3286 = vadd.f32 %v3198, %v3285
    %v3287 = vpop.f32.mrf.mxu0
    %3288 = vmatprep.mubr.bf16.mxu0 0
    %3289 = vmatmul.mubr.bf16.gmra.mxu0 %v3174
    %v3290 = vpop.f32.mrf.mxu0
    %v3291 = vadd.f32 %v3198, %v3290
    %v3292 = vpop.f32.mrf.mxu0
    %v3293 = vpop.f32.mrf.mxu0
    %v3294 = vadd.f32 %v3198, %v3293
    %v3295 = vpop.f32.mrf.mxu0
    %3296 = vmatprep.mubr.bf16.mxu0 0
    %3297 = vmatmul.mubr.bf16.gmra.mxu0 %v3175
    %v3298 = vpop.f32.mrf.mxu0
    %v3299 = vadd.f32 %v3198, %v3298
    %v3300 = vpop.f32.mrf.mxu0
    %v3301 = vpop.f32.mrf.mxu0
    %v3302 = vadd.f32 %v3198, %v3301
    %v3303 = vpop.f32.mrf.mxu0
    %3304 = vmatprep.mubr.bf16.mxu0 0
    %3305 = vmatmul.mubr.bf16.gmra.mxu0 %v3176
    %v3306 = vpop.f32.mrf.mxu0
    %v3307 = vadd.f32 %v3198, %v3306
    %v3308 = vpop.f32.mrf.mxu0
    %v3309 = vpop.f32.mrf.mxu0
    %v3310 = vadd.f32 %v3198, %v3309
    %v3311 = vpop.f32.mrf.mxu0
    %3312 = vdwg.mxu0
    %v3313 = vmul.f32 %v3283, -1.702
    %v3314 = vmul.f32 %v3286, -1.702
    %v3315 = vmul.f32 %v3291, -1.702
    %v3316 = vmul.f32 %v3294, -1.702
    %v3317 = vmul.f32 %v3299, -1.702
    %v3318 = vmul.f32 %v3302, -1.702
    %v3319 = vmul.f32 %v3307, -1.702
    %v3320 = vmul.f32 %v3310, -1.702
    %v3321 = vmul.f32 %v3313, 1.442695
    %v3322 = vpow.pop %v3321
    %v3323 = vmul.f32 %v3314, 1.442695
    %v3324 = vpow.pop %v3323
    %v3325 = vmul.f32 %v3315, 1.442695
    %v3326 = vpow.pop %v3325
    %v3327 = vmul.f32 %v3316, 1.442695
    %v3328 = vpow.pop %v3327
    %v3329 = vmul.f32 %v3317, 1.442695
    %v3330 = vpow.pop %v3329
    %v3331 = vmul.f32 %v3318, 1.442695
    %v3332 = vpow.pop %v3331
    %v3333 = vmul.f32 %v3319, 1.442695
    %v3334 = vpow.pop %v3333
    %v3335 = vmul.f32 %v3320, 1.442695
    %v3336 = vpow.pop %v3335
    %v3337 = vadd.f32 %v3322, 1.0
    %v3338 = vadd.f32 %v3324, 1.0
    %v3339 = vadd.f32 %v3326, 1.0
    %v3340 = vadd.f32 %v3328, 1.0
    %v3341 = vadd.f32 %v3330, 1.0
    %v3342 = vadd.f32 %v3332, 1.0
    %v3343 = vadd.f32 %v3334, 1.0
    %v3344 = vadd.f32 %v3336, 1.0
    %v3345 = vrcp.pop %v3337
    %v3346 = vrcp.pop %v3338
    %v3347 = vrcp.pop %v3339
    %v3348 = vrcp.pop %v3340
    %v3349 = vrcp.pop %v3341
    %v3350 = vrcp.pop %v3342
    %v3351 = vrcp.pop %v3343
    %v3352 = vrcp.pop %v3344
    %v3353 = vmul.f32 %v3283, %v3345
    %v3354 = vmul.f32 %v3286, %v3346
    %v3355 = vmul.f32 %v3291, %v3347
    %v3356 = vmul.f32 %v3294, %v3348
    %v3357 = vmul.f32 %v3299, %v3349
    %v3358 = vmul.f32 %v3302, %v3350
    %v3359 = vmul.f32 %v3307, %v3351
    %v3360 = vmul.f32 %v3310, %v3352
    %v3361 = vpack.c.bf16 %v3354, %v3353
    %v3362 = vpack.c.bf16 %v3356, %v3355
    %v3363 = vpack.c.bf16 %v3358, %v3357
    %v3364 = vpack.c.bf16 %v3360, %v3359
    %v3365 = vld [vmem:[%s24] sm:$0xf]
    %v3366 = vld [vmem:[%s24 + $0x4] sm:$0xf]
    %v3367 = vld [vmem:[%s24 + $0x8] sm:$0xf]
    %v3368 = vld [vmem:[%s24 + $0xc] sm:$0xf]
    %v3369 = vld [vmem:[%s24 + $0x10] sm:$0xf]
    %v3370 = vld [vmem:[%s24 + $0x14] sm:$0xf]
    %v3371 = vld [vmem:[%s24 + $0x18] sm:$0xf]
    %v3372 = vld [vmem:[%s24 + $0x1c] sm:$0xf]
    %v3373 = vld [vmem:[%s24 + $0x20] sm:$0xf]
    %v3374 = vld [vmem:[%s24 + $0x24] sm:$0xf]
    %v3375 = vld [vmem:[%s24 + $0x28] sm:$0xf]
    %v3376 = vld [vmem:[%s24 + $0x2c] sm:$0xf]
    %v3377 = vld [vmem:[%s24 + $0x30] sm:$0xf]
    %v3378 = vld [vmem:[%s24 + $0x34] sm:$0xf]
    %v3379 = vld [vmem:[%s24 + $0x38] sm:$0xf]
    %v3380 = vld [vmem:[%s24 + $0x3c] sm:$0xf]
    %v3381 = vld [vmem:[#allocation22] sm:$0x1]
    %v3383 = vlaneseq
    %v3384 = vshrl.u32 %v3383, 7
    %v3385 = vsub.s32 0, %v3384
    %v3386 = vrot.slane %v3381, %v3385
    %v3404 = vunpack.c.l.b16 %v3365
    %v3405 = vunpack.c.l.b16 %v3366
    %v3406 = vunpack.c.l.b16 %v3367
    %v3407 = vunpack.c.l.b16 %v3368
    %v3408 = vunpack.c.l.b16 %v3369
    %v3409 = vunpack.c.l.b16 %v3370
    %v3410 = vunpack.c.l.b16 %v3371
    %v3411 = vunpack.c.l.b16 %v3372
    %v3412 = vunpack.c.l.b16 %v3373
    %v3413 = vunpack.c.l.b16 %v3374
    %v3414 = vunpack.c.l.b16 %v3375
    %v3415 = vunpack.c.l.b16 %v3376
    %v3416 = vunpack.c.l.b16 %v3377
    %v3417 = vunpack.c.l.b16 %v3378
    %v3418 = vunpack.c.l.b16 %v3379
    %v3419 = vunpack.c.l.b16 %v3380
    %v3420 = vpack.c.b16 %v3405, %v3404
    %v3421 = vpack.c.b16 %v3407, %v3406
    %v3422 = vpack.c.b16 %v3409, %v3408
    %v3423 = vpack.c.b16 %v3411, %v3410
    %v3424 = vpack.c.b16 %v3413, %v3412
    %v3425 = vpack.c.b16 %v3415, %v3414
    %v3426 = vpack.c.b16 %v3417, %v3416
    %v3427 = vpack.c.b16 %v3419, %v3418
    %3436 = vmatprep.subr.bf16.mxu0 0
    %3437 = vmatpush1.bf16.msra.mxu0 %v3427
    %3438 = vmatprep.subr.bf16.mxu0 0
    %3439 = vmatpush1.bf16.msra.mxu0 %v3426
    %3440 = vmatprep.subr.bf16.mxu0 0
    %3441 = vmatpush1.bf16.msra.mxu0 %v3425
    %3442 = vmatprep.subr.bf16.mxu0 0
    %3443 = vmatpush1.bf16.msra.mxu0 %v3424
    %3444 = vmatprep.subr.bf16.mxu0 0
    %3445 = vmatpush1.bf16.msra.mxu0 %v3423
    %3446 = vmatprep.subr.bf16.mxu0 0
    %3447 = vmatpush1.bf16.msra.mxu0 %v3422
    %3448 = vmatprep.subr.bf16.mxu0 0
    %3449 = vmatpush1.bf16.msra.mxu0 %v3421
    %3450 = vmatprep.subr.bf16.mxu0 0
    %3451 = vmatpush1.bf16.msra.mxu0 %v3420
    %3452 = vmatprep.subr.bf16.mxu0 0
    %3453 = vmatpush2.bf16.msra.mxu0 0
    %3454 = vmatprep.subr.bf16.mxu0 0
    %3455 = vmatpush2.bf16.msra.mxu0 0
    %3456 = vmatprep.subr.bf16.mxu0 0
    %3457 = vmatpush2.bf16.msra.mxu0 0
    %3458 = vmatprep.subr.bf16.mxu0 0
    %3459 = vmatpush2.bf16.msra.mxu0 0
    %3460 = vmatprep.subr.bf16.mxu0 0
    %3461 = vmatpush2.bf16.msra.mxu0 0
    %3462 = vmatprep.subr.bf16.mxu0 0
    %3463 = vmatpush2.bf16.msra.mxu0 0
    %3464 = vmatprep.subr.bf16.mxu0 0
    %3465 = vmatpush2.bf16.msra.mxu0 0
    %3466 = vmatprep.subr.bf16.mxu0 0
    %3467 = vmatpush2.bf16.msra.mxu0 0
    %3468 = vmatprep.mubr.bf16.mxu0 0
    %3469 = vmatmul.mubr.bf16.gmra.mxu0 %v3361
    %v3470 = vpop.f32.mrf.mxu0
    %v3471 = vadd.f32 %v3386, %v3470
    %v3472 = vpop.f32.mrf.mxu0
    %v3473 = vpop.f32.mrf.mxu0
    %v3474 = vadd.f32 %v3386, %v3473
    %v3475 = vpop.f32.mrf.mxu0
    %3476 = vmatprep.mubr.bf16.mxu0 0
    %3477 = vmatmul.mubr.bf16.gmra.mxu0 %v3362
    %v3478 = vpop.f32.mrf.mxu0
    %v3479 = vadd.f32 %v3386, %v3478
    %v3480 = vpop.f32.mrf.mxu0
    %v3481 = vpop.f32.mrf.mxu0
    %v3482 = vadd.f32 %v3386, %v3481
    %v3483 = vpop.f32.mrf.mxu0
    %3484 = vmatprep.mubr.bf16.mxu0 0
    %3485 = vmatmul.mubr.bf16.gmra.mxu0 %v3363
    %v3486 = vpop.f32.mrf.mxu0
    %v3487 = vadd.f32 %v3386, %v3486
    %v3488 = vpop.f32.mrf.mxu0
    %v3489 = vpop.f32.mrf.mxu0
    %v3490 = vadd.f32 %v3386, %v3489
    %v3491 = vpop.f32.mrf.mxu0
    %3492 = vmatprep.mubr.bf16.mxu0 0
    %3493 = vmatmul.mubr.bf16.gmra.mxu0 %v3364
    %v3494 = vpop.f32.mrf.mxu0
    %v3495 = vadd.f32 %v3386, %v3494
    %v3496 = vpop.f32.mrf.mxu0
    %v3497 = vpop.f32.mrf.mxu0
    %v3498 = vadd.f32 %v3386, %v3497
    %v3499 = vpop.f32.mrf.mxu0
    %3500 = vdwg.mxu0
    %v3501 = vadd.f32 %v3031, %v3471
    %v3502 = vadd.f32 %v3032, %v3474
    %v3503 = vadd.f32 %v3033, %v3479
    %v3504 = vadd.f32 %v3034, %v3482
    %v3505 = vadd.f32 %v3035, %v3487
    %v3506 = vadd.f32 %v3036, %v3490
    %v3507 = vadd.f32 %v3037, %v3495
    %v3508 = vadd.f32 %v3038, %v3498
    %3509 = vst [vmem:[%s27] sm:$0xff] %v3501
    %3510 = vst [vmem:[%s27 + $0x8] sm:$0xff] %v3502
    %3511 = vst [vmem:[%s27 + $0x10] sm:$0xff] %v3503
    %3512 = vst [vmem:[%s27 + $0x18] sm:$0xff] %v3504
    %3513 = vst [vmem:[%s27 + $0x20] sm:$0xff] %v3505
    %3514 = vst [vmem:[%s27 + $0x28] sm:$0xff] %v3506
    %3515 = vst [vmem:[%s27 + $0x30] sm:$0xff] %v3507
    %3516 = vst [vmem:[%s27 + $0x38] sm:$0xff] %v3508
    // Predicated region
    $region158: #{image_encoder_forward.6} parent=1 // pred_check
      _
    $region159: #{image_encoder_forward.6} parent=1 // pred_check_branch
      %3518 = sbr.rel (0) target = $region161
    $region160: #{image_encoder_forward.6} parent=1 // pred_region
      _
    $region161: #{image_encoder_forward.6} parent=1 // pred_fallthru
      _
    // Predicated region
    $region162: #{image_encoder_forward.6} parent=1 // pred_check
      _
    $region163: #{image_encoder_forward.6} parent=1 // pred_check_branch
      %3520 = sbr.rel (0) target = $region165
    $region164: #{image_encoder_forward.6} parent=1 // pred_region
      _
    $region165: #{image_encoder_forward.6} parent=1 // pred_fallthru
      _
    // Predicated region
    $region166: #{image_encoder_forward.6} parent=1 // pred_check
      _
    $region167: #{image_encoder_forward.6} parent=1 // pred_check_branch
      %3522 = sbr.rel (0) target = $region169
    $region168: #{image_encoder_forward.6} parent=1 // pred_region
      _
    $region169: #{image_encoder_forward.6} parent=1 // pred_fallthru
      _
    // Predicated region
    $region170: #{image_encoder_forward.6} parent=1 // pred_check
      _
    $region171: #{image_encoder_forward.6} parent=1 // pred_check_branch
      %3524 = sbr.rel (0) target = $region173
    $region172: #{image_encoder_forward.6} parent=1 // pred_region
      _
    $region173: #{image_encoder_forward.6} parent=1 // pred_fallthru
      _
    %3525 = vsyncpa [#allocation4], 1
    %3526 = vsyncpa [#allocation6], 1
    %3527 = vsyncpa [#allocation9], 1
    %3528 = vsyncpa [#allocation12], 1
    %3529 = vsyncpa [#allocation15], 1
    %3530 = vsyncpa [#allocation18], 1
    %3531 = vsyncpa [#allocation21], 1

// kernel: image_encoder_forward.7
$region0: #{image_encoder_forward.7}
  #allocation0 [shape = 'u32[]', space=smem, size = 0x4, offset = 0x4, fixed_abs, tag = 'smem constant byte address 0x4 - core index']
  #allocation1 [shape = 'u32[144,128]{1,0:T(1,128)}', space=vmem, size = 0x12000, scoped, tag = 'internal scratch']
  #allocation2 [shape = 'f32[64,128]{1,0:T(8,128)}', space=vmem, size = 0x8000, scoped, tag = 'scratch operand']
  %s0 = inlined_call_operand.smem [shape: u32[31], index: -1, kind: input, shape index: {}]
  %s1 = sld [smem:[%s0]]
  %s2 = scalar_lea.smem %s0, 1
  %s3 = sld [smem:[%s2]]
  %s4 = scalar_lea.smem %s0, 2
  %s5 = sld [smem:[%s4]]
  %s6 = scalar_lea.smem %s0, 3
  %s7 = sld [smem:[%s6]]
  %s8 = scalar_lea.smem %s0, 4
  %s9 = sld [smem:[%s8]]
  %s10 = scalar_lea.smem %s0, 5
  %s11 = sld [smem:[%s10]]
  %s12 = scalar_lea.smem %s0, 6
  %s13 = sld [smem:[%s12]]
  %s14 = scalar_lea.smem %s0, 7
  %s15 = sld [smem:[%s14]]
  %s16 = scalar_lea.smem %s0, 8
  %s17 = sld [smem:[%s16]]
  %s18 = scalar_lea.smem %s0, 9
  %s19 = sld [smem:[%s18]]
  %s20 = scalar_lea.smem %s0, 10
  %s21 = sld [smem:[%s20]]
  %s22 = scalar_lea.smem %s0, 11
  %s23 = sld [smem:[%s22]]
  %s24 = scalar_lea.smem %s0, 12
  %s25 = sld [smem:[%s24]]
  %s26 = scalar_lea.smem %s0, 13
  %s27 = sld [smem:[%s26]]
  %s28 = scalar_lea.smem %s0, 14
  %s29 = sld [smem:[%s28]]
  %s30 = scalar_lea.smem %s0, 15
  %s31 = sld [smem:[%s30]]
  %s32 = scalar_lea.smem %s0, 16
  %s33 = sld [smem:[%s32]]
  %s34 = scalar_lea.smem %s0, 17
  %s35 = sld [smem:[%s34]]
  %s36 = scalar_lea.smem %s0, 18
  %s37 = sld [smem:[%s36]]
  %s38 = scalar_lea.smem %s0, 19
  %s39 = sld [smem:[%s38]]
  %s40 = scalar_lea.smem %s0, 20
  %s41 = sld [smem:[%s40]]
  %s42 = scalar_lea.smem %s0, 21
  %s43 = sld [smem:[%s42]]
  %s44 = scalar_lea.smem %s0, 22
  %s45 = sld [smem:[%s44]]
  %s46 = scalar_lea.smem %s0, 23
  %s47 = sld [smem:[%s46]]
  %s48 = scalar_lea.smem %s0, 24
  %s49 = sld [smem:[%s48]]
  %s50 = scalar_lea.smem %s0, 25
  %s51 = sld [smem:[%s50]]
  %s52 = scalar_lea.smem %s0, 26
  %s53 = sld [smem:[%s52]]
  %s54 = scalar_lea.smem %s0, 27
  %s55 = sld [smem:[%s54]]
  %s56 = scalar_lea.smem %s0, 28
  %s57 = sld [smem:[%s56]]
  %s58 = scalar_lea.smem %s0, 29
  %s59 = sld [smem:[%s58]]
  %s60 = scalar_lea.smem %s0, 30
  %s61 = sld [smem:[%s60]]
  %62 = xla_tuple %s59, %s61
  %s63 = sld [smem:[#allocation0]]
  $region134: #{image_encoder_forward.7} parent=0
    _
  %s65 = ssub.s32 1, %s63
  %s66 = scalar_select 0, %s65, %s63
  $region1: #{image_encoder_forward.7} parent=0
    #allocation3 [shape = 'u8[1024]{0}', space=vmem, size = 0x400, scoped, tag = 'output window, operand 1, single buffered']
    #allocation4 [shape = 's32[1]{0}', space=sflag, size = 0x4, scoped, tag = 'scoped memory for image_encoder_forward.7']
    %67 = vsyncpa [#allocation4], 0
    // Predicated region
    $region2: #{image_encoder_forward.7} parent=1 // pred_check
      _
    $region3: #{image_encoder_forward.7} parent=1 // pred_check_branch
      %69 = sbr.rel (0) target = $region5
    $region4: #{image_encoder_forward.7} parent=1 // pred_region
      _
    $region5: #{image_encoder_forward.7} parent=1 // pred_fallthru
      _
    // Predicated region
    $region6: #{image_encoder_forward.7} parent=1 // pred_check
      _
    $region7: #{image_encoder_forward.7} parent=1 // pred_check_branch
      %71 = sbr.rel (0) target = $region9
    $region8: #{image_encoder_forward.7} parent=1 // pred_region
      _
    $region9: #{image_encoder_forward.7} parent=1 // pred_fallthru
      _
    // Predicated region
    $region10: #{image_encoder_forward.7} parent=1 // pred_check
      _
    $region11: #{image_encoder_forward.7} parent=1 // pred_check_branch
      %73 = sbr.rel (0) target = $region13
    $region12: #{image_encoder_forward.7} parent=1 // pred_region
      _
    $region13: #{image_encoder_forward.7} parent=1 // pred_fallthru
      _
    // Predicated region
    $region14: #{image_encoder_forward.7} parent=1 // pred_check
      _
    $region15: #{image_encoder_forward.7} parent=1 // pred_check_branch
      %75 = sbr.rel (0) target = $region17
    $region16: #{image_encoder_forward.7} parent=1 // pred_region
      _
    $region17: #{image_encoder_forward.7} parent=1 // pred_fallthru
      _
    // Predicated region
    $region18: #{image_encoder_forward.7} parent=1 // pred_check
      _
    $region19: #{image_encoder_forward.7} parent=1 // pred_check_branch
      %77 = sbr.rel (0) target = $region21
    $region20: #{image_encoder_forward.7} parent=1 // pred_region
      _
    $region21: #{image_encoder_forward.7} parent=1 // pred_fallthru
      _
    // Predicated region
    $region22: #{image_encoder_forward.7} parent=1 // pred_check
      _
    $region23: #{image_encoder_forward.7} parent=1 // pred_check_branch
      %79 = sbr.rel (0) target = $region25
    $region24: #{image_encoder_forward.7} parent=1 // pred_region
      _
    $region25: #{image_encoder_forward.7} parent=1 // pred_fallthru
      _
    // Predicated region
    $region26: #{image_encoder_forward.7} parent=1 // pred_check
      _
    $region27: #{image_encoder_forward.7} parent=1 // pred_check_branch
      %81 = sbr.rel (0) target = $region29
    $region28: #{image_encoder_forward.7} parent=1 // pred_region
      _
    $region29: #{image_encoder_forward.7} parent=1 // pred_fallthru
      _
    // Predicated region
    $region30: #{image_encoder_forward.7} parent=1 // pred_check
      _
    $region31: #{image_encoder_forward.7} parent=1 // pred_check_branch
      %83 = sbr.rel (0) target = $region33
    $region32: #{image_encoder_forward.7} parent=1 // pred_region
      _
    $region33: #{image_encoder_forward.7} parent=1 // pred_fallthru
      _
    // Predicated region
    $region34: #{image_encoder_forward.7} parent=1 // pred_check
      _
    $region35: #{image_encoder_forward.7} parent=1 // pred_check_branch
      %85 = sbr.rel (0) target = $region37
    $region36: #{image_encoder_forward.7} parent=1 // pred_region
      _
    $region37: #{image_encoder_forward.7} parent=1 // pred_fallthru
      _
    // Predicated region
    $region38: #{image_encoder_forward.7} parent=1 // pred_check
      _
    $region39: #{image_encoder_forward.7} parent=1 // pred_check_branch
      %87 = sbr.rel (0) target = $region41
    $region40: #{image_encoder_forward.7} parent=1 // pred_region
      _
    $region41: #{image_encoder_forward.7} parent=1 // pred_fallthru
      _
    // Predicated region
    $region42: #{image_encoder_forward.7} parent=1 // pred_check
      _
    $region43: #{image_encoder_forward.7} parent=1 // pred_check_branch
      %89 = sbr.rel (0) target = $region45
    $region44: #{image_encoder_forward.7} parent=1 // pred_region
      _
    $region45: #{image_encoder_forward.7} parent=1 // pred_fallthru
      _
    // Predicated region
    $region46: #{image_encoder_forward.7} parent=1 // pred_check
      _
    $region47: #{image_encoder_forward.7} parent=1 // pred_check_branch
      %91 = sbr.rel (0) target = $region49
    $region48: #{image_encoder_forward.7} parent=1 // pred_region
      _
    $region49: #{image_encoder_forward.7} parent=1 // pred_fallthru
      _
    // Predicated region
    $region50: #{image_encoder_forward.7} parent=1 // pred_check
      _
    $region51: #{image_encoder_forward.7} parent=1 // pred_check_branch
      %93 = sbr.rel (0) target = $region53
    $region52: #{image_encoder_forward.7} parent=1 // pred_region
      _
    $region53: #{image_encoder_forward.7} parent=1 // pred_fallthru
      _
    // Predicated region
    $region54: #{image_encoder_forward.7} parent=1 // pred_check
      _
    $region55: #{image_encoder_forward.7} parent=1 // pred_check_branch
      %95 = sbr.rel (0) target = $region57
    $region56: #{image_encoder_forward.7} parent=1 // pred_region
      _
    $region57: #{image_encoder_forward.7} parent=1 // pred_fallthru
      _
    // Predicated region
    $region58: #{image_encoder_forward.7} parent=1 // pred_check
      _
    $region59: #{image_encoder_forward.7} parent=1 // pred_check_branch
      %97 = sbr.rel (0) target = $region61
    $region60: #{image_encoder_forward.7} parent=1 // pred_region
      _
    $region61: #{image_encoder_forward.7} parent=1 // pred_fallthru
      _
    // Predicated region
    $region62: #{image_encoder_forward.7} parent=1 // pred_check
      _
    $region63: #{image_encoder_forward.7} parent=1 // pred_check_branch
      %99 = sbr.rel (0) target = $region65
    $region64: #{image_encoder_forward.7} parent=1 // pred_region
      _
    $region65: #{image_encoder_forward.7} parent=1 // pred_fallthru
      _
    // Predicated region
    $region66: #{image_encoder_forward.7} parent=1 // pred_check
      _
    $region67: #{image_encoder_forward.7} parent=1 // pred_check_branch
      %101 = sbr.rel (0) target = $region69
    $region68: #{image_encoder_forward.7} parent=1 // pred_region
      _
    $region69: #{image_encoder_forward.7} parent=1 // pred_fallthru
      _
    // Predicated region
    $region70: #{image_encoder_forward.7} parent=1 // pred_check
      _
    $region71: #{image_encoder_forward.7} parent=1 // pred_check_branch
      %103 = sbr.rel (0) target = $region73
    $region72: #{image_encoder_forward.7} parent=1 // pred_region
      _
    $region73: #{image_encoder_forward.7} parent=1 // pred_fallthru
      _
    // Predicated region
    $region74: #{image_encoder_forward.7} parent=1 // pred_check
      _
    $region75: #{image_encoder_forward.7} parent=1 // pred_check_branch
      %105 = sbr.rel (0) target = $region77
    $region76: #{image_encoder_forward.7} parent=1 // pred_region
      _
    $region77: #{image_encoder_forward.7} parent=1 // pred_fallthru
      _
    // Predicated region
    $region78: #{image_encoder_forward.7} parent=1 // pred_check
      _
    $region79: #{image_encoder_forward.7} parent=1 // pred_check_branch
      %107 = sbr.rel (0) target = $region81
    $region80: #{image_encoder_forward.7} parent=1 // pred_region
      _
    $region81: #{image_encoder_forward.7} parent=1 // pred_fallthru
      _
    // Predicated region
    $region82: #{image_encoder_forward.7} parent=1 // pred_check
      _
    $region83: #{image_encoder_forward.7} parent=1 // pred_check_branch
      %109 = sbr.rel (0) target = $region85
    $region84: #{image_encoder_forward.7} parent=1 // pred_region
      _
    $region85: #{image_encoder_forward.7} parent=1 // pred_fallthru
      _
    // Predicated region
    $region86: #{image_encoder_forward.7} parent=1 // pred_check
      _
    $region87: #{image_encoder_forward.7} parent=1 // pred_check_branch
      %111 = sbr.rel (0) target = $region89
    $region88: #{image_encoder_forward.7} parent=1 // pred_region
      _
    $region89: #{image_encoder_forward.7} parent=1 // pred_fallthru
      _
    // Predicated region
    $region90: #{image_encoder_forward.7} parent=1 // pred_check
      _
    $region91: #{image_encoder_forward.7} parent=1 // pred_check_branch
      %113 = sbr.rel (0) target = $region93
    $region92: #{image_encoder_forward.7} parent=1 // pred_region
      _
    $region93: #{image_encoder_forward.7} parent=1 // pred_fallthru
      _
    // Predicated region
    $region94: #{image_encoder_forward.7} parent=1 // pred_check
      _
    $region95: #{image_encoder_forward.7} parent=1 // pred_check_branch
      %115 = sbr.rel (0) target = $region97
    $region96: #{image_encoder_forward.7} parent=1 // pred_region
      _
    $region97: #{image_encoder_forward.7} parent=1 // pred_fallthru
      _
    // Predicated region
    $region98: #{image_encoder_forward.7} parent=1 // pred_check
      _
    $region99: #{image_encoder_forward.7} parent=1 // pred_check_branch
      %117 = sbr.rel (0) target = $region101
    $region100: #{image_encoder_forward.7} parent=1 // pred_region
      _
    $region101: #{image_encoder_forward.7} parent=1 // pred_fallthru
      _
    // Predicated region
    $region102: #{image_encoder_forward.7} parent=1 // pred_check
      _
    $region103: #{image_encoder_forward.7} parent=1 // pred_check_branch
      %119 = sbr.rel (0) target = $region105
    $region104: #{image_encoder_forward.7} parent=1 // pred_region
      _
    $region105: #{image_encoder_forward.7} parent=1 // pred_fallthru
      _
    // Predicated region
    $region106: #{image_encoder_forward.7} parent=1 // pred_check
      _
    $region107: #{image_encoder_forward.7} parent=1 // pred_check_branch
      %121 = sbr.rel (0) target = $region109
    $region108: #{image_encoder_forward.7} parent=1 // pred_region
      _
    $region109: #{image_encoder_forward.7} parent=1 // pred_fallthru
      _
    // Predicated region
    $region110: #{image_encoder_forward.7} parent=1 // pred_check
      _
    $region111: #{image_encoder_forward.7} parent=1 // pred_check_branch
      %123 = sbr.rel (0) target = $region113
    $region112: #{image_encoder_forward.7} parent=1 // pred_region
      _
    $region113: #{image_encoder_forward.7} parent=1 // pred_fallthru
      _
    // Predicated region
    $region114: #{image_encoder_forward.7} parent=1 // pred_check
      _
    $region115: #{image_encoder_forward.7} parent=1 // pred_check_branch
      %125 = sbr.rel (0) target = $region117
    $region116: #{image_encoder_forward.7} parent=1 // pred_region
      _
    $region117: #{image_encoder_forward.7} parent=1 // pred_fallthru
      _
    %v127 = vld [vmem:[%s1] sm:$0xff]
    %v128 = vld [vmem:[%s1 + $0x8] sm:$0xff]
    %v129 = vld [vmem:[%s1 + $0x10] sm:$0xff]
    %v130 = vld [vmem:[%s1 + $0x18] sm:$0xff]
    %v131 = vld [vmem:[%s1 + $0x20] sm:$0xff]
    %v132 = vld [vmem:[%s1 + $0x28] sm:$0xff]
    %v133 = vld [vmem:[%s1 + $0x30] sm:$0xff]
    %v134 = vld [vmem:[%s1 + $0x38] sm:$0xff]
    %v135 = vld [vmem:[%s27] sm:$0xff]
    %v136 = vld [vmem:[%s27 + $0x8] sm:$0x3]
    %v137 = vld [vmem:[%s3] sm:$0x3f]
    %v138 = vpack.c.bf16 %v137, %v137
    %v139 = vld [vmem:[%s7] sm:$0xf]
    %v140 = vld [vmem:[%s7 + $0x4] sm:$0xf]
    %v141 = vld [vmem:[%s7 + $0x8] sm:$0xf]
    %v142 = vld [vmem:[%s9] sm:$0x1]
    %v144 = vlaneseq
    %v145 = vshrl.u32 %v144, 7
    %v146 = vsub.s32 0, %v145
    %v147 = vrot.slane %v142, %v146
    %v152 = vunpack.c.l.b16 %v139
    %v153 = vunpack.c.l.b16 %v140
    %v154 = vunpack.c.l.b16 %v141
    %v155 = vpack.c.b16 %v153, %v152
    %v156 = vpack.c.b16 %v154, %v154
    %vm158 = vcmask 195584
    %v160 = vsel %vm158, %v138, 0
    %vm162 = vcmask 1043456
    %v164 = vsel %vm162, %v156, 0
    %166 = vmatprep.subr.bf16.mxu0 0
    %167 = vmatpush1.bf16.msra.mxu0 0
    %168 = vmatprep.subr.bf16.mxu0 0
    %169 = vmatpush1.bf16.msra.mxu0 0
    %170 = vmatprep.subr.bf16.mxu0 0
    %171 = vmatpush1.bf16.msra.mxu0 0
    %172 = vmatprep.subr.bf16.mxu0 0
    %173 = vmatpush1.bf16.msra.mxu0 0
    %174 = vmatprep.subr.bf16.mxu0 0
    %175 = vmatpush1.bf16.msra.mxu0 0
    %176 = vmatprep.subr.bf16.mxu0 0
    %177 = vmatpush1.bf16.msra.mxu0 0
    %178 = vmatprep.subr.bf16.mxu0 0
    %179 = vmatpush1.bf16.msra.mxu0 %v164
    %180 = vmatprep.subr.bf16.mxu0 0
    %181 = vmatpush1.bf16.msra.mxu0 %v155
    %182 = vmatprep.subr.bf16.mxu0 0
    %183 = vmatpush2.bf16.msra.mxu0 0
    %184 = vmatprep.subr.bf16.mxu0 0
    %185 = vmatpush2.bf16.msra.mxu0 0
    %186 = vmatprep.subr.bf16.mxu0 0
    %187 = vmatpush2.bf16.msra.mxu0 0
    %188 = vmatprep.subr.bf16.mxu0 0
    %189 = vmatpush2.bf16.msra.mxu0 0
    %190 = vmatprep.subr.bf16.mxu0 0
    %191 = vmatpush2.bf16.msra.mxu0 0
    %192 = vmatprep.subr.bf16.mxu0 0
    %193 = vmatpush2.bf16.msra.mxu0 0
    %194 = vmatprep.subr.bf16.mxu0 0
    %195 = vmatpush2.bf16.msra.mxu0 0
    %196 = vmatprep.subr.bf16.mxu0 0
    %197 = vmatpush2.bf16.msra.mxu0 0
    %198 = vmatprep.mubr.bf16.mxu0 0
    %199 = vmatmul.mubr.bf16.gmra.mxu0 %v160
    %v200 = vpop.f32.mrf.mxu0
    %v201 = vadd.f32 %v147, %v200
    %v202 = vpop.f32.mrf.mxu0
    %v203 = vpop.f32.mrf.mxu0
    %v204 = vpop.f32.mrf.mxu0
    %205 = vdwg.mxu0
    %v206 = vpack.c.bf16 %v136, %v135
    %v207 = vld [vmem:[%s13] sm:$0xf]
    %v208 = vld [vmem:[%s13 + $0x4] sm:$0xf]
    %v209 = vld [vmem:[%s13 + $0x8] sm:$0xf]
    %v210 = vld [vmem:[%s13 + $0xc] sm:$0xf]
    %v211 = vld [vmem:[%s13 + $0x10] sm:$0xf]
    %v212 = vld [vmem:[%s13 + $0x14] sm:$0xf]
    %v213 = vld [vmem:[%s13 + $0x18] sm:$0xf]
    %v214 = vld [vmem:[%s13 + $0x1c] sm:$0xf]
    %v215 = vld [vmem:[%s13 + $0x20] sm:$0xf]
    %v216 = vld [vmem:[%s13 + $0x24] sm:$0xf]
    %v217 = vld [vmem:[%s13 + $0x28] sm:$0xf]
    %v218 = vld [vmem:[%s13 + $0x2c] sm:$0xf]
    %v219 = vld [vmem:[%s13 + $0x30] sm:$0xf]
    %v220 = vld [vmem:[%s13 + $0x34] sm:$0xf]
    %v221 = vld [vmem:[%s13 + $0x38] sm:$0xf]
    %v222 = vld [vmem:[%s13 + $0x3c] sm:$0xf]
    %v239 = vunpack.c.l.b16 %v207
    %v240 = vunpack.c.l.b16 %v208
    %v241 = vunpack.c.l.b16 %v209
    %v242 = vunpack.c.l.b16 %v210
    %v243 = vunpack.c.l.b16 %v211
    %v244 = vunpack.c.l.b16 %v212
    %v245 = vunpack.c.l.b16 %v213
    %v246 = vunpack.c.l.b16 %v214
    %v247 = vunpack.c.l.b16 %v215
    %v248 = vunpack.c.l.b16 %v216
    %v249 = vunpack.c.l.b16 %v217
    %v250 = vunpack.c.l.b16 %v218
    %v251 = vunpack.c.l.b16 %v219
    %v252 = vunpack.c.l.b16 %v220
    %v253 = vunpack.c.l.b16 %v221
    %v254 = vunpack.c.l.b16 %v222
    %v255 = vpack.c.b16 %v240, %v239
    %v256 = vpack.c.b16 %v242, %v241
    %v257 = vpack.c.b16 %v244, %v243
    %v258 = vpack.c.b16 %v246, %v245
    %v259 = vpack.c.b16 %v248, %v247
    %v260 = vpack.c.b16 %v250, %v249
    %v261 = vpack.c.b16 %v252, %v251
    %v262 = vpack.c.b16 %v254, %v253
    %271 = vmatprep.subr.bf16.mxu0 0
    %272 = vmatpush1.bf16.msra.mxu0 %v262
    %273 = vmatprep.subr.bf16.mxu0 0
    %274 = vmatpush1.bf16.msra.mxu0 %v261
    %275 = vmatprep.subr.bf16.mxu0 0
    %276 = vmatpush1.bf16.msra.mxu0 %v260
    %277 = vmatprep.subr.bf16.mxu0 0
    %278 = vmatpush1.bf16.msra.mxu0 %v259
    %279 = vmatprep.subr.bf16.mxu0 0
    %280 = vmatpush1.bf16.msra.mxu0 %v258
    %281 = vmatprep.subr.bf16.mxu0 0
    %282 = vmatpush1.bf16.msra.mxu0 %v257
    %283 = vmatprep.subr.bf16.mxu0 0
    %284 = vmatpush1.bf16.msra.mxu0 %v256
    %285 = vmatprep.subr.bf16.mxu0 0
    %286 = vmatpush1.bf16.msra.mxu0 %v255
    %287 = vmatprep.subr.bf16.mxu0 0
    %288 = vmatpush2.bf16.msra.mxu0 0
    %289 = vmatprep.subr.bf16.mxu0 0
    %290 = vmatpush2.bf16.msra.mxu0 0
    %291 = vmatprep.subr.bf16.mxu0 0
    %292 = vmatpush2.bf16.msra.mxu0 0
    %293 = vmatprep.subr.bf16.mxu0 0
    %294 = vmatpush2.bf16.msra.mxu0 0
    %295 = vmatprep.subr.bf16.mxu0 0
    %296 = vmatpush2.bf16.msra.mxu0 0
    %297 = vmatprep.subr.bf16.mxu0 0
    %298 = vmatpush2.bf16.msra.mxu0 0
    %299 = vmatprep.subr.bf16.mxu0 0
    %300 = vmatpush2.bf16.msra.mxu0 0
    %301 = vmatprep.subr.bf16.mxu0 0
    %302 = vmatpush2.bf16.msra.mxu0 0
    %303 = vmatprep.mubr.bf16.mxu0 0
    %304 = vmatmul.mubr.bf16.gmra.mxu0 %v206
    %v305 = vpop.f32.mrf.mxu0
    %v306 = vadd.f32 0.0, %v305
    %v307 = vpop.f32.mrf.mxu0
    %v308 = vpop.f32.mrf.mxu0
    %v309 = vadd.f32 0.0, %v308
    %v310 = vpop.f32.mrf.mxu0
    %311 = vdwg.mxu0
    %v312 = vld [vmem:[%s5] sm:$0xff]
    %v313 = vld [vmem:[%s5 + $0x8] sm:$0xff]
    %v314 = vld [vmem:[%s5 + $0x10] sm:$0xff]
    %v315 = vld [vmem:[%s5 + $0x18] sm:$0xff]
    %v316 = vld [vmem:[%s5 + $0x20] sm:$0xff]
    %v317 = vld [vmem:[%s5 + $0x28] sm:$0xff]
    %v318 = vld [vmem:[%s5 + $0x30] sm:$0xff]
    %v319 = vld [vmem:[%s5 + $0x38] sm:$0xff]
    %321 = vset.pattern.permute.xlu0 0
    %322 = vperm.xlu0 %321, %v312
    %v323 = vpop.permute.xlu0 %322
    %326 = vset.pattern.permute.xlu0 0
    %327 = vperm.xlu0 %326, %v313
    %v328 = vpop.permute.xlu0 %327
    %331 = vset.pattern.permute.xlu0 0
    %332 = vperm.xlu0 %331, %v314
    %v333 = vpop.permute.xlu0 %332
    %336 = vset.pattern.permute.xlu0 0
    %337 = vperm.xlu0 %336, %v315
    %v338 = vpop.permute.xlu0 %337
    %341 = vset.pattern.permute.xlu0 0
    %342 = vperm.xlu0 %341, %v316
    %v343 = vpop.permute.xlu0 %342
    %346 = vset.pattern.permute.xlu0 0
    %347 = vperm.xlu0 %346, %v317
    %v348 = vpop.permute.xlu0 %347
    %351 = vset.pattern.permute.xlu0 0
    %352 = vperm.xlu0 %351, %v318
    %v353 = vpop.permute.xlu0 %352
    %356 = vset.pattern.permute.xlu0 0
    %357 = vperm.xlu0 %356, %v319
    %v358 = vpop.permute.xlu0 %357
    %v360 = vmul.f32 %v127, %v323
    %v361 = vmul.f32 %v128, %v328
    %v362 = vmul.f32 %v129, %v333
    %v363 = vmul.f32 %v130, %v338
    %v364 = vmul.f32 %v131, %v343
    %v365 = vmul.f32 %v132, %v348
    %v366 = vmul.f32 %v133, %v353
    %v367 = vmul.f32 %v134, %v358
    %368 = vst [vmem:[#allocation2] sm:$0xff] %v360
    %369 = vst [vmem:[#allocation2 + $0x8] sm:$0xff] %v361
    %370 = vst [vmem:[#allocation2 + $0x10] sm:$0xff] %v362
    %371 = vst [vmem:[#allocation2 + $0x18] sm:$0xff] %v363
    %372 = vst [vmem:[#allocation2 + $0x20] sm:$0xff] %v364
    %373 = vst [vmem:[#allocation2 + $0x28] sm:$0xff] %v365
    %374 = vst [vmem:[#allocation2 + $0x30] sm:$0xff] %v366
    %375 = vst [vmem:[#allocation2 + $0x38] sm:$0xff] %v367
    %v376 = vpack.c.bf16 %v128, %v127
    %v377 = vpack.c.bf16 %v129, %v129
    %v378 = vpack.c.bf16 %v201, %v201
    %v379 = vld [vmem:[%s11] sm:$0xf]
    %v380 = vld [vmem:[%s11 + $0x4] sm:$0xf]
    %v381 = vld [vmem:[%s11 + $0x8] sm:$0xf]
    %v382 = vld [vmem:[%s11 + $0xc] sm:$0xf]
    %v383 = vld [vmem:[%s11 + $0x10] sm:$0xf]
    %v384 = vld [vmem:[%s11 + $0x14] sm:$0xf]
    %v385 = vld [vmem:[%s11 + $0x18] sm:$0xf]
    %v386 = vld [vmem:[%s11 + $0x1c] sm:$0xf]
    %v387 = vld [vmem:[%s11 + $0x20] sm:$0xf]
    %v388 = vld [vmem:[%s11 + $0x24] sm:$0xf]
    %v389 = vld [vmem:[%s11 + $0x28] sm:$0xf]
    %v390 = vld [vmem:[%s11 + $0x2c] sm:$0xf]
    %v391 = vld [vmem:[%s11 + $0x30] sm:$0xf]
    %v392 = vld [vmem:[%s11 + $0x34] sm:$0xf]
    %v393 = vld [vmem:[%s11 + $0x38] sm:$0xf]
    %v394 = vld [vmem:[%s11 + $0x3c] sm:$0xf]
    %v411 = vunpack.c.l.b16 %v379
    %v412 = vunpack.c.l.b16 %v380
    %v413 = vunpack.c.l.b16 %v381
    %v414 = vunpack.c.l.b16 %v382
    %v415 = vunpack.c.l.b16 %v383
    %v416 = vunpack.c.l.b16 %v384
    %v417 = vunpack.c.l.b16 %v385
    %v418 = vunpack.c.l.b16 %v386
    %v419 = vunpack.c.l.b16 %v387
    %v420 = vunpack.c.l.b16 %v388
    %v421 = vunpack.c.l.b16 %v389
    %v422 = vunpack.c.l.b16 %v390
    %v423 = vunpack.c.l.b16 %v391
    %v424 = vunpack.c.l.b16 %v392
    %v425 = vunpack.c.l.b16 %v393
    %v426 = vunpack.c.l.b16 %v394
    %v427 = vpack.c.b16 %v412, %v411
    %v428 = vpack.c.b16 %v414, %v413
    %v429 = vpack.c.b16 %v416, %v415
    %v430 = vpack.c.b16 %v418, %v417
    %v431 = vpack.c.b16 %v420, %v419
    %v432 = vpack.c.b16 %v422, %v421
    %v433 = vpack.c.b16 %v424, %v423
    %v434 = vpack.c.b16 %v426, %v425
    %443 = vmatprep.subr.bf16.mxu0 0
    %444 = vmatpush1.bf16.msra.mxu0 %v434
    %445 = vmatprep.subr.bf16.mxu0 0
    %446 = vmatpush1.bf16.msra.mxu0 %v433
    %447 = vmatprep.subr.bf16.mxu0 0
    %448 = vmatpush1.bf16.msra.mxu0 %v432
    %449 = vmatprep.subr.bf16.mxu0 0
    %450 = vmatpush1.bf16.msra.mxu0 %v431
    %451 = vmatprep.subr.bf16.mxu0 0
    %452 = vmatpush1.bf16.msra.mxu0 %v430
    %453 = vmatprep.subr.bf16.mxu0 0
    %454 = vmatpush1.bf16.msra.mxu0 %v429
    %455 = vmatprep.subr.bf16.mxu0 0
    %456 = vmatpush1.bf16.msra.mxu0 %v428
    %457 = vmatprep.subr.bf16.mxu0 0
    %458 = vmatpush1.bf16.msra.mxu0 %v427
    %459 = vmatprep.subr.bf16.mxu0 0
    %460 = vmatpush2.bf16.msra.mxu0 0
    %461 = vmatprep.subr.bf16.mxu0 0
    %462 = vmatpush2.bf16.msra.mxu0 0
    %463 = vmatprep.subr.bf16.mxu0 0
    %464 = vmatpush2.bf16.msra.mxu0 0
    %465 = vmatprep.subr.bf16.mxu0 0
    %466 = vmatpush2.bf16.msra.mxu0 0
    %467 = vmatprep.subr.bf16.mxu0 0
    %468 = vmatpush2.bf16.msra.mxu0 0
    %469 = vmatprep.subr.bf16.mxu0 0
    %470 = vmatpush2.bf16.msra.mxu0 0
    %471 = vmatprep.subr.bf16.mxu0 0
    %472 = vmatpush2.bf16.msra.mxu0 0
    %473 = vmatprep.subr.bf16.mxu0 0
    %474 = vmatpush2.bf16.msra.mxu0 0
    %475 = vmatprep.mubr.bf16.mxu0 0
    %476 = vmatmul.mubr.bf16.gmra.mxu0 %v378
    %v477 = vpop.f32.mrf.mxu0
    %v478 = vadd.f32 0.0, %v477
    %v479 = vpop.f32.mrf.mxu0
    %v480 = vpop.f32.mrf.mxu0
    %v481 = vpop.f32.mrf.mxu0
    %482 = vdwg.mxu0
    %v483 = vld [vmem:[%s13] sm:$0xf]
    %v484 = vld [vmem:[%s13 + $0x4] sm:$0xf]
    %v485 = vld [vmem:[%s13 + $0x8] sm:$0xf]
    %v486 = vld [vmem:[%s13 + $0xc] sm:$0xf]
    %v487 = vld [vmem:[%s13 + $0x10] sm:$0xf]
    %v488 = vld [vmem:[%s13 + $0x14] sm:$0xf]
    %v489 = vld [vmem:[%s13 + $0x18] sm:$0xf]
    %v490 = vld [vmem:[%s13 + $0x1c] sm:$0xf]
    %v491 = vld [vmem:[%s13 + $0x20] sm:$0xf]
    %v492 = vld [vmem:[%s13 + $0x24] sm:$0xf]
    %v493 = vld [vmem:[%s13 + $0x28] sm:$0xf]
    %v494 = vld [vmem:[%s13 + $0x2c] sm:$0xf]
    %v495 = vld [vmem:[%s13 + $0x30] sm:$0xf]
    %v496 = vld [vmem:[%s13 + $0x34] sm:$0xf]
    %v497 = vld [vmem:[%s13 + $0x38] sm:$0xf]
    %v498 = vld [vmem:[%s13 + $0x3c] sm:$0xf]
    %v515 = vunpack.c.l.b16 %v483
    %v516 = vunpack.c.l.b16 %v484
    %v517 = vunpack.c.l.b16 %v485
    %v518 = vunpack.c.l.b16 %v486
    %v519 = vunpack.c.l.b16 %v487
    %v520 = vunpack.c.l.b16 %v488
    %v521 = vunpack.c.l.b16 %v489
    %v522 = vunpack.c.l.b16 %v490
    %v523 = vunpack.c.l.b16 %v491
    %v524 = vunpack.c.l.b16 %v492
    %v525 = vunpack.c.l.b16 %v493
    %v526 = vunpack.c.l.b16 %v494
    %v527 = vunpack.c.l.b16 %v495
    %v528 = vunpack.c.l.b16 %v496
    %v529 = vunpack.c.l.b16 %v497
    %v530 = vunpack.c.l.b16 %v498
    %v531 = vpack.c.b16 %v516, %v515
    %v532 = vpack.c.b16 %v518, %v517
    %v533 = vpack.c.b16 %v520, %v519
    %v534 = vpack.c.b16 %v522, %v521
    %v535 = vpack.c.b16 %v524, %v523
    %v536 = vpack.c.b16 %v526, %v525
    %v537 = vpack.c.b16 %v528, %v527
    %v538 = vpack.c.b16 %v530, %v529
    %547 = vmatprep.subr.bf16.mxu0 0
    %548 = vmatpush1.bf16.msra.mxu0 %v538
    %549 = vmatprep.subr.bf16.mxu0 0
    %550 = vmatpush1.bf16.msra.mxu0 %v537
    %551 = vmatprep.subr.bf16.mxu0 0
    %552 = vmatpush1.bf16.msra.mxu0 %v536
    %553 = vmatprep.subr.bf16.mxu0 0
    %554 = vmatpush1.bf16.msra.mxu0 %v535
    %555 = vmatprep.subr.bf16.mxu0 0
    %556 = vmatpush1.bf16.msra.mxu0 %v534
    %557 = vmatprep.subr.bf16.mxu0 0
    %558 = vmatpush1.bf16.msra.mxu0 %v533
    %559 = vmatprep.subr.bf16.mxu0 0
    %560 = vmatpush1.bf16.msra.mxu0 %v532
    %561 = vmatprep.subr.bf16.mxu0 0
    %562 = vmatpush1.bf16.msra.mxu0 %v531
    %563 = vmatprep.subr.bf16.mxu0 0
    %564 = vmatpush2.bf16.msra.mxu0 0
    %565 = vmatprep.subr.bf16.mxu0 0
    %566 = vmatpush2.bf16.msra.mxu0 0
    %567 = vmatprep.subr.bf16.mxu0 0
    %568 = vmatpush2.bf16.msra.mxu0 0
    %569 = vmatprep.subr.bf16.mxu0 0
    %570 = vmatpush2.bf16.msra.mxu0 0
    %571 = vmatprep.subr.bf16.mxu0 0
    %572 = vmatpush2.bf16.msra.mxu0 0
    %573 = vmatprep.subr.bf16.mxu0 0
    %574 = vmatpush2.bf16.msra.mxu0 0
    %575 = vmatprep.subr.bf16.mxu0 0
    %576 = vmatpush2.bf16.msra.mxu0 0
    %577 = vmatprep.subr.bf16.mxu0 0
    %578 = vmatpush2.bf16.msra.mxu0 0
    %579 = vmatprep.mubr.bf16.mxu0 0
    %580 = vmatmul.mubr.bf16.gmra.mxu0 %v376
    %v581 = vpop.f32.mrf.mxu0
    %v582 = vadd.f32 0.0, %v581
    %v583 = vpop.f32.mrf.mxu0
    %v584 = vpop.f32.mrf.mxu0
    %v585 = vadd.f32 0.0, %v584
    %v586 = vpop.f32.mrf.mxu0
    %587 = vmatprep.mubr.bf16.mxu0 0
    %588 = vmatmul.mubr.bf16.gmra.mxu0 %v377
    %v589 = vpop.f32.mrf.mxu0
    %v590 = vadd.f32 0.0, %v589
    %v591 = vpop.f32.mrf.mxu0
    %v592 = vpop.f32.mrf.mxu0
    %v593 = vpop.f32.mrf.mxu0
    %594 = vdwg.mxu0
    %v595 = vpack.c.bf16 %v478, %v478
    %v596 = vpack.c.bf16 %v585, %v582
    %v597 = vpack.c.bf16 %v590, %v590
    %vm598 = vcmask 261120
    %v600 = vsel %vm598, %v595, 0
    %v603 = vsel %vm598, %v596, 0
    %v606 = vsel %vm598, %v597, 0
    %608 = vmatprep.subr.bf16.mxu0 0
    %609 = vmatpush1.bf16.xpose.msra.mxu0 0
    %610 = vmatprep.subr.bf16.mxu0 0
    %611 = vmatpush1.bf16.xpose.msra.mxu0 0
    %612 = vmatprep.subr.bf16.mxu0 0
    %613 = vmatpush1.bf16.xpose.msra.mxu0 0
    %614 = vmatprep.subr.bf16.mxu0 0
    %615 = vmatpush1.bf16.xpose.msra.mxu0 0
    %616 = vmatprep.subr.bf16.mxu0 0
    %617 = vmatpush1.bf16.xpose.msra.mxu0 0
    %618 = vmatprep.subr.bf16.mxu0 0
    %619 = vmatpush1.bf16.xpose.msra.mxu0 0
    %620 = vmatprep.subr.bf16.mxu0 0
    %621 = vmatpush1.bf16.xpose.msra.mxu0 %v606
    %622 = vmatprep.subr.bf16.mxu0 0
    %623 = vmatpush1.bf16.xpose.msra.mxu0 %v603
    %624 = vmatprep.subr.bf16.mxu0 0
    %625 = vmatpush2.bf16.xpose.msra.mxu0 0
    %626 = vmatprep.subr.bf16.mxu0 0
    %627 = vmatpush2.bf16.xpose.msra.mxu0 0
    %628 = vmatprep.subr.bf16.mxu0 0
    %629 = vmatpush2.bf16.xpose.msra.mxu0 0
    %630 = vmatprep.subr.bf16.mxu0 0
    %631 = vmatpush2.bf16.xpose.msra.mxu0 0
    %632 = vmatprep.subr.bf16.mxu0 0
    %633 = vmatpush2.bf16.xpose.msra.mxu0 0
    %634 = vmatprep.subr.bf16.mxu0 0
    %635 = vmatpush2.bf16.xpose.msra.mxu0 0
    %636 = vmatprep.subr.bf16.mxu0 0
    %637 = vmatpush2.bf16.xpose.msra.mxu0 0
    %638 = vmatprep.subr.bf16.mxu0 0
    %639 = vmatpush2.bf16.xpose.msra.mxu0 0
    %640 = vmatprep.mubr.bf16.mxu0 0
    %641 = vmatmul.mubr.bf16.gmra.mxu0 %v600
    %v642 = vpop.f32.mrf.mxu0
    %v643 = vadd.f32 0.0, %v642
    %v644 = vpop.f32.mrf.mxu0
    %v645 = vpop.f32.mrf.mxu0
    %v646 = vpop.f32.mrf.mxu0
    %647 = vdwg.mxu0
    %v648 = vpack.c.bf16 %v309, %v306
    %v650 = vsel %vm598, %v648, 0
    %652 = vmatprep.subr.bf16.mxu0 0
    %653 = vmatpush1.bf16.xpose.msra.mxu0 0
    %654 = vmatprep.subr.bf16.mxu0 0
    %655 = vmatpush1.bf16.xpose.msra.mxu0 0
    %656 = vmatprep.subr.bf16.mxu0 0
    %657 = vmatpush1.bf16.xpose.msra.mxu0 0
    %658 = vmatprep.subr.bf16.mxu0 0
    %659 = vmatpush1.bf16.xpose.msra.mxu0 0
    %660 = vmatprep.subr.bf16.mxu0 0
    %661 = vmatpush1.bf16.xpose.msra.mxu0 0
    %662 = vmatprep.subr.bf16.mxu0 0
    %663 = vmatpush1.bf16.xpose.msra.mxu0 0
    %664 = vmatprep.subr.bf16.mxu0 0
    %665 = vmatpush1.bf16.xpose.msra.mxu0 0
    %666 = vmatprep.subr.bf16.mxu0 0
    %667 = vmatpush1.bf16.xpose.msra.mxu0 %v650
    %668 = vmatprep.subr.bf16.mxu0 0
    %669 = vmatpush2.bf16.xpose.msra.mxu0 0
    %670 = vmatprep.subr.bf16.mxu0 0
    %671 = vmatpush2.bf16.xpose.msra.mxu0 0
    %672 = vmatprep.subr.bf16.mxu0 0
    %673 = vmatpush2.bf16.xpose.msra.mxu0 0
    %674 = vmatprep.subr.bf16.mxu0 0
    %675 = vmatpush2.bf16.xpose.msra.mxu0 0
    %676 = vmatprep.subr.bf16.mxu0 0
    %677 = vmatpush2.bf16.xpose.msra.mxu0 0
    %678 = vmatprep.subr.bf16.mxu0 0
    %679 = vmatpush2.bf16.xpose.msra.mxu0 0
    %680 = vmatprep.subr.bf16.mxu0 0
    %681 = vmatpush2.bf16.xpose.msra.mxu0 0
    %682 = vmatprep.subr.bf16.mxu0 0
    %683 = vmatpush2.bf16.xpose.msra.mxu0 0
    %684 = vmatprep.mubr.bf16.mxu0 0
    %685 = vmatmul.mubr.bf16.gmra.mxu0 %v600
    %v686 = vpop.f32.mrf.mxu0
    %v687 = vadd.f32 0.0, %v686
    %v688 = vpop.f32.mrf.mxu0
    %v689 = vpop.f32.mrf.mxu0
    %v690 = vpop.f32.mrf.mxu0
    %691 = vdwg.mxu0
    %vm692 = vcmask 133120
    %v693 = vsel %vm692, %v643, -inf
    %694 = vmax.xlane.f32.xlu0 %v693
    %v695 = vpop.xlane.xlu0 %694
    %vm696 = vcmask 75776
    %v697 = vsel %vm696, %v687, -inf
    %698 = vmax.xlane.f32.xlu0 %v697
    %v699 = vpop.xlane.xlu0 %698
    %v700 = vmax.f32 %v695, %v699
    %v701 = vsub.f32 %v643, %v700
    %v702 = vmul.f32 %v701, 1.442695
    %v703 = vpow.pop %v702
    %v704 = vsub.f32 %v687, %v700
    %v705 = vmul.f32 %v704, 1.442695
    %v706 = vpow.pop %v705
    %v707 = vsel %vm692, %v703, 0.0
    %708 = vadd.xlane.f32.xlu0 %v707
    %v709 = vpop.xlane.xlu0 %708
    %v710 = vsel %vm696, %v706, 0.0
    %711 = vadd.xlane.f32.xlu0 %v710
    %v712 = vpop.xlane.xlu0 %711
    %v713 = vadd.f32 %v709, %v712
    %v714 = vpack.c.bf16 %v703, %v703
    %v715 = vpack.c.bf16 %v706, %v706
    %vm716 = vcmask 80896
    %v718 = vsel %vm716, %v715, 0
    %vm720 = vcmask 1044480
    %v722 = vsel %vm720, %v206, 0
    %724 = vmatprep.subr.bf16.mxu0 0
    %725 = vmatpush1.bf16.msra.mxu0 0
    %726 = vmatprep.subr.bf16.mxu0 0
    %727 = vmatpush1.bf16.msra.mxu0 0
    %728 = vmatprep.subr.bf16.mxu0 0
    %729 = vmatpush1.bf16.msra.mxu0 0
    %730 = vmatprep.subr.bf16.mxu0 0
    %731 = vmatpush1.bf16.msra.mxu0 0
    %732 = vmatprep.subr.bf16.mxu0 0
    %733 = vmatpush1.bf16.msra.mxu0 0
    %734 = vmatprep.subr.bf16.mxu0 0
    %735 = vmatpush1.bf16.msra.mxu0 0
    %736 = vmatprep.subr.bf16.mxu0 0
    %737 = vmatpush1.bf16.msra.mxu0 0
    %738 = vmatprep.subr.bf16.mxu0 0
    %739 = vmatpush1.bf16.msra.mxu0 %v722
    %740 = vmatprep.subr.bf16.mxu0 0
    %741 = vmatpush2.bf16.msra.mxu0 0
    %742 = vmatprep.subr.bf16.mxu0 0
    %743 = vmatpush2.bf16.msra.mxu0 0
    %744 = vmatprep.subr.bf16.mxu0 0
    %745 = vmatpush2.bf16.msra.mxu0 0
    %746 = vmatprep.subr.bf16.mxu0 0
    %747 = vmatpush2.bf16.msra.mxu0 0
    %748 = vmatprep.subr.bf16.mxu0 0
    %749 = vmatpush2.bf16.msra.mxu0 0
    %750 = vmatprep.subr.bf16.mxu0 0
    %751 = vmatpush2.bf16.msra.mxu0 0
    %752 = vmatprep.subr.bf16.mxu0 0
    %753 = vmatpush2.bf16.msra.mxu0 0
    %754 = vmatprep.subr.bf16.mxu0 0
    %755 = vmatpush2.bf16.msra.mxu0 0
    %756 = vmatprep.mubr.bf16.mxu0 0
    %757 = vmatmul.mubr.bf16.gmra.mxu0 %v718
    %v758 = vpop.f32.mrf.mxu0
    %v759 = vadd.f32 0.0, %v758
    %v760 = vpop.f32.mrf.mxu0
    %v761 = vpop.f32.mrf.mxu0
    %v762 = vpop.f32.mrf.mxu0
    %763 = vdwg.mxu0
    %vm764 = vcmask 138240
    %v766 = vsel %vm764, %v714, 0
    %vm768 = vcmask 1040384
    %v769 = vsel 0, 4294967295, 65535
    %v770 = vsel %vm768, %v769, 0
    %v772 = vand.u32 %v377, %v770
    %774 = vmatprep.subr.bf16.mxu0 0
    %775 = vmatpush1.bf16.msra.mxu0 0
    %776 = vmatprep.subr.bf16.mxu0 0
    %777 = vmatpush1.bf16.msra.mxu0 0
    %778 = vmatprep.subr.bf16.mxu0 0
    %779 = vmatpush1.bf16.msra.mxu0 0
    %780 = vmatprep.subr.bf16.mxu0 0
    %781 = vmatpush1.bf16.msra.mxu0 0
    %782 = vmatprep.subr.bf16.mxu0 0
    %783 = vmatpush1.bf16.msra.mxu0 0
    %784 = vmatprep.subr.bf16.mxu0 0
    %785 = vmatpush1.bf16.msra.mxu0 0
    %786 = vmatprep.subr.bf16.mxu0 0
    %787 = vmatpush1.bf16.msra.mxu0 %v772
    %788 = vmatprep.subr.bf16.mxu0 0
    %789 = vmatpush1.bf16.msra.mxu0 %v376
    %790 = vmatprep.subr.bf16.mxu0 0
    %791 = vmatpush2.bf16.msra.mxu0 0
    %792 = vmatprep.subr.bf16.mxu0 0
    %793 = vmatpush2.bf16.msra.mxu0 0
    %794 = vmatprep.subr.bf16.mxu0 0
    %795 = vmatpush2.bf16.msra.mxu0 0
    %796 = vmatprep.subr.bf16.mxu0 0
    %797 = vmatpush2.bf16.msra.mxu0 0
    %798 = vmatprep.subr.bf16.mxu0 0
    %799 = vmatpush2.bf16.msra.mxu0 0
    %800 = vmatprep.subr.bf16.mxu0 0
    %801 = vmatpush2.bf16.msra.mxu0 0
    %802 = vmatprep.subr.bf16.mxu0 0
    %803 = vmatpush2.bf16.msra.mxu0 0
    %804 = vmatprep.subr.bf16.mxu0 0
    %805 = vmatpush2.bf16.msra.mxu0 0
    %806 = vmatprep.mubr.bf16.mxu0 0
    %807 = vmatmul.mubr.bf16.gmra.mxu0 %v766
    %v808 = vpop.f32.mrf.mxu0
    %v809 = vadd.f32 %v759, %v808
    %v810 = vpop.f32.mrf.mxu0
    %v811 = vpop.f32.mrf.mxu0
    %v812 = vpop.f32.mrf.mxu0
    %813 = vdwg.mxu0
    %v814 = vrcp.pop %v713
    %v815 = vmul.f32 %v809, %v814
    %v816 = vpack.c.bf16 %v815, %v815
    %v817 = vld [vmem:[%s15] sm:$0xf]
    %v818 = vld [vmem:[%s15 + $0x4] sm:$0xf]
    %v819 = vld [vmem:[%s15 + $0x8] sm:$0xf]
    %v820 = vld [vmem:[%s15 + $0xc] sm:$0xf]
    %v821 = vld [vmem:[%s15 + $0x10] sm:$0xf]
    %v822 = vld [vmem:[%s15 + $0x14] sm:$0xf]
    %v823 = vld [vmem:[%s15 + $0x18] sm:$0xf]
    %v824 = vld [vmem:[%s15 + $0x1c] sm:$0xf]
    %v825 = vld [vmem:[%s15 + $0x20] sm:$0xf]
    %v826 = vld [vmem:[%s15 + $0x24] sm:$0xf]
    %v827 = vld [vmem:[%s15 + $0x28] sm:$0xf]
    %v828 = vld [vmem:[%s15 + $0x2c] sm:$0xf]
    %v829 = vld [vmem:[%s15 + $0x30] sm:$0xf]
    %v830 = vld [vmem:[%s15 + $0x34] sm:$0xf]
    %v831 = vld [vmem:[%s15 + $0x38] sm:$0xf]
    %v832 = vld [vmem:[%s15 + $0x3c] sm:$0xf]
    %v849 = vunpack.c.l.b16 %v817
    %v850 = vunpack.c.l.b16 %v818
    %v851 = vunpack.c.l.b16 %v819
    %v852 = vunpack.c.l.b16 %v820
    %v853 = vunpack.c.l.b16 %v821
    %v854 = vunpack.c.l.b16 %v822
    %v855 = vunpack.c.l.b16 %v823
    %v856 = vunpack.c.l.b16 %v824
    %v857 = vunpack.c.l.b16 %v825
    %v858 = vunpack.c.l.b16 %v826
    %v859 = vunpack.c.l.b16 %v827
    %v860 = vunpack.c.l.b16 %v828
    %v861 = vunpack.c.l.b16 %v829
    %v862 = vunpack.c.l.b16 %v830
    %v863 = vunpack.c.l.b16 %v831
    %v864 = vunpack.c.l.b16 %v832
    %v865 = vpack.c.b16 %v850, %v849
    %v866 = vpack.c.b16 %v852, %v851
    %v867 = vpack.c.b16 %v854, %v853
    %v868 = vpack.c.b16 %v856, %v855
    %v869 = vpack.c.b16 %v858, %v857
    %v870 = vpack.c.b16 %v860, %v859
    %v871 = vpack.c.b16 %v862, %v861
    %v872 = vpack.c.b16 %v864, %v863
    %881 = vmatprep.subr.bf16.mxu0 0
    %882 = vmatpush1.bf16.msra.mxu0 %v872
    %883 = vmatprep.subr.bf16.mxu0 0
    %884 = vmatpush1.bf16.msra.mxu0 %v871
    %885 = vmatprep.subr.bf16.mxu0 0
    %886 = vmatpush1.bf16.msra.mxu0 %v870
    %887 = vmatprep.subr.bf16.mxu0 0
    %888 = vmatpush1.bf16.msra.mxu0 %v869
    %889 = vmatprep.subr.bf16.mxu0 0
    %890 = vmatpush1.bf16.msra.mxu0 %v868
    %891 = vmatprep.subr.bf16.mxu0 0
    %892 = vmatpush1.bf16.msra.mxu0 %v867
    %893 = vmatprep.subr.bf16.mxu0 0
    %894 = vmatpush1.bf16.msra.mxu0 %v866
    %895 = vmatprep.subr.bf16.mxu0 0
    %896 = vmatpush1.bf16.msra.mxu0 %v865
    %897 = vmatprep.subr.bf16.mxu0 0
    %898 = vmatpush2.bf16.msra.mxu0 0
    %899 = vmatprep.subr.bf16.mxu0 0
    %900 = vmatpush2.bf16.msra.mxu0 0
    %901 = vmatprep.subr.bf16.mxu0 0
    %902 = vmatpush2.bf16.msra.mxu0 0
    %903 = vmatprep.subr.bf16.mxu0 0
    %904 = vmatpush2.bf16.msra.mxu0 0
    %905 = vmatprep.subr.bf16.mxu0 0
    %906 = vmatpush2.bf16.msra.mxu0 0
    %907 = vmatprep.subr.bf16.mxu0 0
    %908 = vmatpush2.bf16.msra.mxu0 0
    %909 = vmatprep.subr.bf16.mxu0 0
    %910 = vmatpush2.bf16.msra.mxu0 0
    %911 = vmatprep.subr.bf16.mxu0 0
    %912 = vmatpush2.bf16.msra.mxu0 0
    %913 = vmatprep.mubr.bf16.mxu0 0
    %914 = vmatmul.mubr.bf16.gmra.mxu0 %v816
    %v915 = vpop.f32.mrf.mxu0
    %v916 = vadd.f32 0.0, %v915
    %v917 = vpop.f32.mrf.mxu0
    %v918 = vpop.f32.mrf.mxu0
    %v919 = vpop.f32.mrf.mxu0
    %920 = vdwg.mxu0
    %v921 = vld [vmem:[%s17] sm:$0x1]
    %v922 = vld [vmem:[%s19] sm:$0x1]
    %v923 = vlaneseq
    %v924 = vand.u32 %v923, 127
    %vm925 = vcmp.lt.s32.totalorder %v924, 32
    %v926 = vsel %vm925, 1, 0
    %vm927 = vcmp.eq.s32.totalorder %v926, 1
    %v928 = vsel %vm927, %v916, 0.0
    %vm929 = vcmask 1042432
    %v930 = vsel %vm929, %v928, 0.0
    %931 = vadd.xlane.f32.xlu0 %v930
    %v932 = vpop.xlane.xlu0 %931
    %v933 = vmul.f32 %v932, 0.03125
    %v934 = vsub.f32 %v916, %v933
    %v935 = vsel %vm927, %v934, 0.0
    %v936 = vmul.f32 %v935, %v935
    %v937 = vsel %vm929, %v936, 0.0
    %938 = vadd.xlane.f32.xlu0 %v937
    %v939 = vpop.xlane.xlu0 %938
    %v940 = vmul.f32 %v939, 0.03125
    %v941 = vadd.f32 %v940, 1e-05
    %v942 = vrsqrt.pop %v941
    %v943 = vmul.f32 %v935, %v942
    %v945 = vlaneseq
    %v946 = vshrl.u32 %v945, 7
    %v947 = vsub.s32 0, %v946
    %v948 = vrot.slane %v921, %v947
    %v950 = vmul.f32 %v943, %v948
    %v952 = vlaneseq
    %v953 = vshrl.u32 %v952, 7
    %v954 = vsub.s32 0, %v953
    %v955 = vrot.slane %v922, %v954
    %v957 = vadd.f32 %v950, %v955
    %v958 = vpack.c.bf16 %v957, %v957
    %v959 = vld [vmem:[%s21] sm:$0xf]
    %v960 = vld [vmem:[%s21 + $0x4] sm:$0xf]
    %v961 = vld [vmem:[%s21 + $0x8] sm:$0xf]
    %v962 = vld [vmem:[%s21 + $0xc] sm:$0xf]
    %v963 = vld [vmem:[%s21 + $0x10] sm:$0xf]
    %v964 = vld [vmem:[%s21 + $0x14] sm:$0xf]
    %v965 = vld [vmem:[%s21 + $0x18] sm:$0xf]
    %v966 = vld [vmem:[%s21 + $0x1c] sm:$0xf]
    %v967 = vld [vmem:[%s21 + $0x20] sm:$0xf]
    %v968 = vld [vmem:[%s21 + $0x24] sm:$0xf]
    %v969 = vld [vmem:[%s21 + $0x28] sm:$0xf]
    %v970 = vld [vmem:[%s21 + $0x2c] sm:$0xf]
    %v971 = vld [vmem:[%s21 + $0x30] sm:$0xf]
    %v972 = vld [vmem:[%s21 + $0x34] sm:$0xf]
    %v973 = vld [vmem:[%s21 + $0x38] sm:$0xf]
    %v974 = vld [vmem:[%s21 + $0x3c] sm:$0xf]
    %v991 = vunpack.c.l.b16 %v959
    %v992 = vunpack.c.l.b16 %v960
    %v993 = vunpack.c.l.b16 %v961
    %v994 = vunpack.c.l.b16 %v962
    %v995 = vunpack.c.l.b16 %v963
    %v996 = vunpack.c.l.b16 %v964
    %v997 = vunpack.c.l.b16 %v965
    %v998 = vunpack.c.l.b16 %v966
    %v999 = vunpack.c.l.b16 %v967
    %v1000 = vunpack.c.l.b16 %v968
    %v1001 = vunpack.c.l.b16 %v969
    %v1002 = vunpack.c.l.b16 %v970
    %v1003 = vunpack.c.l.b16 %v971
    %v1004 = vunpack.c.l.b16 %v972
    %v1005 = vunpack.c.l.b16 %v973
    %v1006 = vunpack.c.l.b16 %v974
    %v1007 = vpack.c.b16 %v992, %v991
    %v1008 = vpack.c.b16 %v994, %v993
    %v1009 = vpack.c.b16 %v996, %v995
    %v1010 = vpack.c.b16 %v998, %v997
    %v1011 = vpack.c.b16 %v1000, %v999
    %v1012 = vpack.c.b16 %v1002, %v1001
    %v1013 = vpack.c.b16 %v1004, %v1003
    %v1014 = vpack.c.b16 %v1006, %v1005
    %1023 = vmatprep.subr.bf16.mxu0 0
    %1024 = vmatpush1.bf16.msra.mxu0 %v1014
    %1025 = vmatprep.subr.bf16.mxu0 0
    %1026 = vmatpush1.bf16.msra.mxu0 %v1013
    %1027 = vmatprep.subr.bf16.mxu0 0
    %1028 = vmatpush1.bf16.msra.mxu0 %v1012
    %1029 = vmatprep.subr.bf16.mxu0 0
    %1030 = vmatpush1.bf16.msra.mxu0 %v1011
    %1031 = vmatprep.subr.bf16.mxu0 0
    %1032 = vmatpush1.bf16.msra.mxu0 %v1010
    %1033 = vmatprep.subr.bf16.mxu0 0
    %1034 = vmatpush1.bf16.msra.mxu0 %v1009
    %1035 = vmatprep.subr.bf16.mxu0 0
    %1036 = vmatpush1.bf16.msra.mxu0 %v1008
    %1037 = vmatprep.subr.bf16.mxu0 0
    %1038 = vmatpush1.bf16.msra.mxu0 %v1007
    %1039 = vmatprep.subr.bf16.mxu0 0
    %1040 = vmatpush2.bf16.msra.mxu0 0
    %1041 = vmatprep.subr.bf16.mxu0 0
    %1042 = vmatpush2.bf16.msra.mxu0 0
    %1043 = vmatprep.subr.bf16.mxu0 0
    %1044 = vmatpush2.bf16.msra.mxu0 0
    %1045 = vmatprep.subr.bf16.mxu0 0
    %1046 = vmatpush2.bf16.msra.mxu0 0
    %1047 = vmatprep.subr.bf16.mxu0 0
    %1048 = vmatpush2.bf16.msra.mxu0 0
    %1049 = vmatprep.subr.bf16.mxu0 0
    %1050 = vmatpush2.bf16.msra.mxu0 0
    %1051 = vmatprep.subr.bf16.mxu0 0
    %1052 = vmatpush2.bf16.msra.mxu0 0
    %1053 = vmatprep.subr.bf16.mxu0 0
    %1054 = vmatpush2.bf16.msra.mxu0 0
    %1055 = vmatprep.mubr.bf16.mxu0 0
    %1056 = vmatmul.mubr.bf16.gmra.mxu0 %v958
    %v1057 = vpop.f32.mrf.mxu0
    %v1058 = vadd.f32 0.0, %v1057
    %v1059 = vpop.f32.mrf.mxu0
    %v1060 = vpop.f32.mrf.mxu0
    %v1061 = vpop.f32.mrf.mxu0
    %1062 = vdwg.mxu0
    %1063 = vst [vmem:[%s59] sm:$0x7] %v1058
    %v1064 = vadd.f32 %v916, %v201
    %v1065 = vld [vmem:[%s23] sm:$0x1]
    %v1066 = vld [vmem:[%s25] sm:$0x1]
    %v1067 = vsel %vm927, %v1064, 0.0
    %v1068 = vsel %vm929, %v1067, 0.0
    %1069 = vadd.xlane.f32.xlu0 %v1068
    %v1070 = vpop.xlane.xlu0 %1069
    %v1071 = vmul.f32 %v1070, 0.03125
    %v1072 = vsub.f32 %v1064, %v1071
    %v1073 = vsel %vm927, %v1072, 0.0
    %v1074 = vmul.f32 %v1073, %v1073
    %v1075 = vsel %vm929, %v1074, 0.0
    %1076 = vadd.xlane.f32.xlu0 %v1075
    %v1077 = vpop.xlane.xlu0 %1076
    %v1078 = vmul.f32 %v1077, 0.03125
    %v1079 = vadd.f32 %v1078, 1e-05
    %v1080 = vrsqrt.pop %v1079
    %v1081 = vmul.f32 %v1073, %v1080
    %v1083 = vlaneseq
    %v1084 = vshrl.u32 %v1083, 7
    %v1085 = vsub.s32 0, %v1084
    %v1086 = vrot.slane %v1065, %v1085
    %v1088 = vmul.f32 %v1081, %v1086
    %v1090 = vlaneseq
    %v1091 = vshrl.u32 %v1090, 7
    %v1092 = vsub.s32 0, %v1091
    %v1093 = vrot.slane %v1066, %v1092
    %v1095 = vadd.f32 %v1088, %v1093
    %1096 = vst [vmem:[#allocation2 + $0x11] sm:$0x7] %v1095
    %v1097 = vpack.c.bf16 %v132, %v131
    %v1098 = vpack.c.bf16 %v133, %v133
    %v1099 = vld [vmem:[%s11] sm:$0xf]
    %v1100 = vld [vmem:[%s11 + $0x4] sm:$0xf]
    %v1101 = vld [vmem:[%s11 + $0x8] sm:$0xf]
    %v1102 = vld [vmem:[%s11 + $0xc] sm:$0xf]
    %v1103 = vld [vmem:[%s11 + $0x10] sm:$0xf]
    %v1104 = vld [vmem:[%s11 + $0x14] sm:$0xf]
    %v1105 = vld [vmem:[%s11 + $0x18] sm:$0xf]
    %v1106 = vld [vmem:[%s11 + $0x1c] sm:$0xf]
    %v1107 = vld [vmem:[%s11 + $0x20] sm:$0xf]
    %v1108 = vld [vmem:[%s11 + $0x24] sm:$0xf]
    %v1109 = vld [vmem:[%s11 + $0x28] sm:$0xf]
    %v1110 = vld [vmem:[%s11 + $0x2c] sm:$0xf]
    %v1111 = vld [vmem:[%s11 + $0x30] sm:$0xf]
    %v1112 = vld [vmem:[%s11 + $0x34] sm:$0xf]
    %v1113 = vld [vmem:[%s11 + $0x38] sm:$0xf]
    %v1114 = vld [vmem:[%s11 + $0x3c] sm:$0xf]
    %v1116 = vshrl.u32 %v378, 16
    %v1118 = vrot.slane %v1116, 1
    %v1119 = vshll.u32 %v378, 16
    %v1121 = vrot.slane %v1119, 2
    %v1122 = vor.u32 %v1118, %v1121
    %v1140 = vunpack.c.l.b16 %v1099
    %v1141 = vunpack.c.l.b16 %v1100
    %v1142 = vunpack.c.l.b16 %v1101
    %v1143 = vunpack.c.l.b16 %v1102
    %v1144 = vunpack.c.l.b16 %v1103
    %v1145 = vunpack.c.l.b16 %v1104
    %v1146 = vunpack.c.l.b16 %v1105
    %v1147 = vunpack.c.l.b16 %v1106
    %v1148 = vunpack.c.l.b16 %v1107
    %v1149 = vunpack.c.l.b16 %v1108
    %v1150 = vunpack.c.l.b16 %v1109
    %v1151 = vunpack.c.l.b16 %v1110
    %v1152 = vunpack.c.l.b16 %v1111
    %v1153 = vunpack.c.l.b16 %v1112
    %v1154 = vunpack.c.l.b16 %v1113
    %v1155 = vunpack.c.l.b16 %v1114
    %v1156 = vpack.c.b16 %v1141, %v1140
    %v1157 = vpack.c.b16 %v1143, %v1142
    %v1158 = vpack.c.b16 %v1145, %v1144
    %v1159 = vpack.c.b16 %v1147, %v1146
    %v1160 = vpack.c.b16 %v1149, %v1148
    %v1161 = vpack.c.b16 %v1151, %v1150
    %v1162 = vpack.c.b16 %v1153, %v1152
    %v1163 = vpack.c.b16 %v1155, %v1154
    %1172 = vmatprep.subr.bf16.mxu0 0
    %1173 = vmatpush1.bf16.msra.mxu0 %v1163
    %1174 = vmatprep.subr.bf16.mxu0 0
    %1175 = vmatpush1.bf16.msra.mxu0 %v1162
    %1176 = vmatprep.subr.bf16.mxu0 0
    %1177 = vmatpush1.bf16.msra.mxu0 %v1161
    %1178 = vmatprep.subr.bf16.mxu0 0
    %1179 = vmatpush1.bf16.msra.mxu0 %v1160
    %1180 = vmatprep.subr.bf16.mxu0 0
    %1181 = vmatpush1.bf16.msra.mxu0 %v1159
    %1182 = vmatprep.subr.bf16.mxu0 0
    %1183 = vmatpush1.bf16.msra.mxu0 %v1158
    %1184 = vmatprep.subr.bf16.mxu0 0
    %1185 = vmatpush1.bf16.msra.mxu0 %v1157
    %1186 = vmatprep.subr.bf16.mxu0 0
    %1187 = vmatpush1.bf16.msra.mxu0 %v1156
    %1188 = vmatprep.subr.bf16.mxu0 0
    %1189 = vmatpush2.bf16.msra.mxu0 0
    %1190 = vmatprep.subr.bf16.mxu0 0
    %1191 = vmatpush2.bf16.msra.mxu0 0
    %1192 = vmatprep.subr.bf16.mxu0 0
    %1193 = vmatpush2.bf16.msra.mxu0 0
    %1194 = vmatprep.subr.bf16.mxu0 0
    %1195 = vmatpush2.bf16.msra.mxu0 0
    %1196 = vmatprep.subr.bf16.mxu0 0
    %1197 = vmatpush2.bf16.msra.mxu0 0
    %1198 = vmatprep.subr.bf16.mxu0 0
    %1199 = vmatpush2.bf16.msra.mxu0 0
    %1200 = vmatprep.subr.bf16.mxu0 0
    %1201 = vmatpush2.bf16.msra.mxu0 0
    %1202 = vmatprep.subr.bf16.mxu0 0
    %1203 = vmatpush2.bf16.msra.mxu0 0
    %1204 = vmatprep.mubr.bf16.mxu0 0
    %1205 = vmatmul.mubr.bf16.gmra.mxu0 %v1122
    %v1206 = vpop.f32.mrf.mxu0
    %v1207 = vadd.f32 0.0, %v1206
    %v1208 = vpop.f32.mrf.mxu0
    %v1209 = vpop.f32.mrf.mxu0
    %v1210 = vpop.f32.mrf.mxu0
    %1211 = vdwg.mxu0
    %v1212 = vld [vmem:[%s13] sm:$0xf]
    %v1213 = vld [vmem:[%s13 + $0x4] sm:$0xf]
    %v1214 = vld [vmem:[%s13 + $0x8] sm:$0xf]
    %v1215 = vld [vmem:[%s13 + $0xc] sm:$0xf]
    %v1216 = vld [vmem:[%s13 + $0x10] sm:$0xf]
    %v1217 = vld [vmem:[%s13 + $0x14] sm:$0xf]
    %v1218 = vld [vmem:[%s13 + $0x18] sm:$0xf]
    %v1219 = vld [vmem:[%s13 + $0x1c] sm:$0xf]
    %v1220 = vld [vmem:[%s13 + $0x20] sm:$0xf]
    %v1221 = vld [vmem:[%s13 + $0x24] sm:$0xf]
    %v1222 = vld [vmem:[%s13 + $0x28] sm:$0xf]
    %v1223 = vld [vmem:[%s13 + $0x2c] sm:$0xf]
    %v1224 = vld [vmem:[%s13 + $0x30] sm:$0xf]
    %v1225 = vld [vmem:[%s13 + $0x34] sm:$0xf]
    %v1226 = vld [vmem:[%s13 + $0x38] sm:$0xf]
    %v1227 = vld [vmem:[%s13 + $0x3c] sm:$0xf]
    %v1244 = vunpack.c.l.b16 %v1212
    %v1245 = vunpack.c.l.b16 %v1213
    %v1246 = vunpack.c.l.b16 %v1214
    %v1247 = vunpack.c.l.b16 %v1215
    %v1248 = vunpack.c.l.b16 %v1216
    %v1249 = vunpack.c.l.b16 %v1217
    %v1250 = vunpack.c.l.b16 %v1218
    %v1251 = vunpack.c.l.b16 %v1219
    %v1252 = vunpack.c.l.b16 %v1220
    %v1253 = vunpack.c.l.b16 %v1221
    %v1254 = vunpack.c.l.b16 %v1222
    %v1255 = vunpack.c.l.b16 %v1223
    %v1256 = vunpack.c.l.b16 %v1224
    %v1257 = vunpack.c.l.b16 %v1225
    %v1258 = vunpack.c.l.b16 %v1226
    %v1259 = vunpack.c.l.b16 %v1227
    %v1260 = vpack.c.b16 %v1245, %v1244
    %v1261 = vpack.c.b16 %v1247, %v1246
    %v1262 = vpack.c.b16 %v1249, %v1248
    %v1263 = vpack.c.b16 %v1251, %v1250
    %v1264 = vpack.c.b16 %v1253, %v1252
    %v1265 = vpack.c.b16 %v1255, %v1254
    %v1266 = vpack.c.b16 %v1257, %v1256
    %v1267 = vpack.c.b16 %v1259, %v1258
    %1276 = vmatprep.subr.bf16.mxu0 0
    %1277 = vmatpush1.bf16.msra.mxu0 %v1267
    %1278 = vmatprep.subr.bf16.mxu0 0
    %1279 = vmatpush1.bf16.msra.mxu0 %v1266
    %1280 = vmatprep.subr.bf16.mxu0 0
    %1281 = vmatpush1.bf16.msra.mxu0 %v1265
    %1282 = vmatprep.subr.bf16.mxu0 0
    %1283 = vmatpush1.bf16.msra.mxu0 %v1264
    %1284 = vmatprep.subr.bf16.mxu0 0
    %1285 = vmatpush1.bf16.msra.mxu0 %v1263
    %1286 = vmatprep.subr.bf16.mxu0 0
    %1287 = vmatpush1.bf16.msra.mxu0 %v1262
    %1288 = vmatprep.subr.bf16.mxu0 0
    %1289 = vmatpush1.bf16.msra.mxu0 %v1261
    %1290 = vmatprep.subr.bf16.mxu0 0
    %1291 = vmatpush1.bf16.msra.mxu0 %v1260
    %1292 = vmatprep.subr.bf16.mxu0 0
    %1293 = vmatpush2.bf16.msra.mxu0 0
    %1294 = vmatprep.subr.bf16.mxu0 0
    %1295 = vmatpush2.bf16.msra.mxu0 0
    %1296 = vmatprep.subr.bf16.mxu0 0
    %1297 = vmatpush2.bf16.msra.mxu0 0
    %1298 = vmatprep.subr.bf16.mxu0 0
    %1299 = vmatpush2.bf16.msra.mxu0 0
    %1300 = vmatprep.subr.bf16.mxu0 0
    %1301 = vmatpush2.bf16.msra.mxu0 0
    %1302 = vmatprep.subr.bf16.mxu0 0
    %1303 = vmatpush2.bf16.msra.mxu0 0
    %1304 = vmatprep.subr.bf16.mxu0 0
    %1305 = vmatpush2.bf16.msra.mxu0 0
    %1306 = vmatprep.subr.bf16.mxu0 0
    %1307 = vmatpush2.bf16.msra.mxu0 0
    %1308 = vmatprep.mubr.bf16.mxu0 0
    %1309 = vmatmul.mubr.bf16.gmra.mxu0 %v1097
    %v1310 = vpop.f32.mrf.mxu0
    %v1311 = vadd.f32 0.0, %v1310
    %v1312 = vpop.f32.mrf.mxu0
    %v1313 = vpop.f32.mrf.mxu0
    %v1314 = vadd.f32 0.0, %v1313
    %v1315 = vpop.f32.mrf.mxu0
    %1316 = vmatprep.mubr.bf16.mxu0 0
    %1317 = vmatmul.mubr.bf16.gmra.mxu0 %v1098
    %v1318 = vpop.f32.mrf.mxu0
    %v1319 = vadd.f32 0.0, %v1318
    %v1320 = vpop.f32.mrf.mxu0
    %v1321 = vpop.f32.mrf.mxu0
    %v1322 = vpop.f32.mrf.mxu0
    %1323 = vdwg.mxu0
    %v1324 = vpack.c.bf16 %v1207, %v1207
    %v1325 = vpack.c.bf16 %v1314, %v1311
    %v1326 = vpack.c.bf16 %v1319, %v1319
    %v1328 = vsel %vm598, %v1324, 0
    %v1331 = vsel %vm598, %v1325, 0
    %v1334 = vsel %vm598, %v1326, 0
    %1336 = vmatprep.subr.bf16.mxu0 0
    %1337 = vmatpush1.bf16.xpose.msra.mxu0 0
    %1338 = vmatprep.subr.bf16.mxu0 0
    %1339 = vmatpush1.bf16.xpose.msra.mxu0 0
    %1340 = vmatprep.subr.bf16.mxu0 0
    %1341 = vmatpush1.bf16.xpose.msra.mxu0 0
    %1342 = vmatprep.subr.bf16.mxu0 0
    %1343 = vmatpush1.bf16.xpose.msra.mxu0 0
    %1344 = vmatprep.subr.bf16.mxu0 0
    %1345 = vmatpush1.bf16.xpose.msra.mxu0 0
    %1346 = vmatprep.subr.bf16.mxu0 0
    %1347 = vmatpush1.bf16.xpose.msra.mxu0 0
    %1348 = vmatprep.subr.bf16.mxu0 0
    %1349 = vmatpush1.bf16.xpose.msra.mxu0 %v1334
    %1350 = vmatprep.subr.bf16.mxu0 0
    %1351 = vmatpush1.bf16.xpose.msra.mxu0 %v1331
    %1352 = vmatprep.subr.bf16.mxu0 0
    %1353 = vmatpush2.bf16.xpose.msra.mxu0 0
    %1354 = vmatprep.subr.bf16.mxu0 0
    %1355 = vmatpush2.bf16.xpose.msra.mxu0 0
    %1356 = vmatprep.subr.bf16.mxu0 0
    %1357 = vmatpush2.bf16.xpose.msra.mxu0 0
    %1358 = vmatprep.subr.bf16.mxu0 0
    %1359 = vmatpush2.bf16.xpose.msra.mxu0 0
    %1360 = vmatprep.subr.bf16.mxu0 0
    %1361 = vmatpush2.bf16.xpose.msra.mxu0 0
    %1362 = vmatprep.subr.bf16.mxu0 0
    %1363 = vmatpush2.bf16.xpose.msra.mxu0 0
    %1364 = vmatprep.subr.bf16.mxu0 0
    %1365 = vmatpush2.bf16.xpose.msra.mxu0 0
    %1366 = vmatprep.subr.bf16.mxu0 0
    %1367 = vmatpush2.bf16.xpose.msra.mxu0 0
    %1368 = vmatprep.mubr.bf16.mxu0 0
    %1369 = vmatmul.mubr.bf16.gmra.mxu0 %v1328
    %v1370 = vpop.f32.mrf.mxu0
    %v1371 = vadd.f32 0.0, %v1370
    %v1372 = vpop.f32.mrf.mxu0
    %v1373 = vpop.f32.mrf.mxu0
    %v1374 = vpop.f32.mrf.mxu0
    %1375 = vdwg.mxu0
    %1376 = vmatprep.subr.bf16.mxu0 0
    %1377 = vmatpush1.bf16.xpose.msra.mxu0 0
    %1378 = vmatprep.subr.bf16.mxu0 0
    %1379 = vmatpush1.bf16.xpose.msra.mxu0 0
    %1380 = vmatprep.subr.bf16.mxu0 0
    %1381 = vmatpush1.bf16.xpose.msra.mxu0 0
    %1382 = vmatprep.subr.bf16.mxu0 0
    %1383 = vmatpush1.bf16.xpose.msra.mxu0 0
    %1384 = vmatprep.subr.bf16.mxu0 0
    %1385 = vmatpush1.bf16.xpose.msra.mxu0 0
    %1386 = vmatprep.subr.bf16.mxu0 0
    %1387 = vmatpush1.bf16.xpose.msra.mxu0 0
    %1388 = vmatprep.subr.bf16.mxu0 0
    %1389 = vmatpush1.bf16.xpose.msra.mxu0 0
    %1390 = vmatprep.subr.bf16.mxu0 0
    %1391 = vmatpush1.bf16.xpose.msra.mxu0 %v650
    %1392 = vmatprep.subr.bf16.mxu0 0
    %1393 = vmatpush2.bf16.xpose.msra.mxu0 0
    %1394 = vmatprep.subr.bf16.mxu0 0
    %1395 = vmatpush2.bf16.xpose.msra.mxu0 0
    %1396 = vmatprep.subr.bf16.mxu0 0
    %1397 = vmatpush2.bf16.xpose.msra.mxu0 0
    %1398 = vmatprep.subr.bf16.mxu0 0
    %1399 = vmatpush2.bf16.xpose.msra.mxu0 0
    %1400 = vmatprep.subr.bf16.mxu0 0
    %1401 = vmatpush2.bf16.xpose.msra.mxu0 0
    %1402 = vmatprep.subr.bf16.mxu0 0
    %1403 = vmatpush2.bf16.xpose.msra.mxu0 0
    %1404 = vmatprep.subr.bf16.mxu0 0
    %1405 = vmatpush2.bf16.xpose.msra.mxu0 0
    %1406 = vmatprep.subr.bf16.mxu0 0
    %1407 = vmatpush2.bf16.xpose.msra.mxu0 0
    %1408 = vmatprep.mubr.bf16.mxu0 0
    %1409 = vmatmul.mubr.bf16.gmra.mxu0 %v1328
    %v1410 = vpop.f32.mrf.mxu0
    %v1411 = vadd.f32 0.0, %v1410
    %v1412 = vpop.f32.mrf.mxu0
    %v1413 = vpop.f32.mrf.mxu0
    %v1414 = vpop.f32.mrf.mxu0
    %1415 = vdwg.mxu0
    %v1416 = vsel %vm692, %v1371, -inf
    %1417 = vmax.xlane.f32.xlu0 %v1416
    %v1418 = vpop.xlane.xlu0 %1417
    %v1419 = vsel %vm696, %v1411, -inf
    %1420 = vmax.xlane.f32.xlu0 %v1419
    %v1421 = vpop.xlane.xlu0 %1420
    %v1422 = vmax.f32 %v1418, %v1421
    %v1423 = vsub.f32 %v1371, %v1422
    %v1424 = vmul.f32 %v1423, 1.442695
    %v1425 = vpow.pop %v1424
    %v1426 = vsub.f32 %v1411, %v1422
    %v1427 = vmul.f32 %v1426, 1.442695
    %v1428 = vpow.pop %v1427
    %v1429 = vsel %vm692, %v1425, 0.0
    %1430 = vadd.xlane.f32.xlu0 %v1429
    %v1431 = vpop.xlane.xlu0 %1430
    %v1432 = vsel %vm696, %v1428, 0.0
    %1433 = vadd.xlane.f32.xlu0 %v1432
    %v1434 = vpop.xlane.xlu0 %1433
    %v1435 = vadd.f32 %v1431, %v1434
    %v1436 = vpack.c.bf16 %v1425, %v1425
    %v1437 = vpack.c.bf16 %v1428, %v1428
    %v1439 = vsel %vm716, %v1437, 0
    %1441 = vmatprep.subr.bf16.mxu0 0
    %1442 = vmatpush1.bf16.msra.mxu0 0
    %1443 = vmatprep.subr.bf16.mxu0 0
    %1444 = vmatpush1.bf16.msra.mxu0 0
    %1445 = vmatprep.subr.bf16.mxu0 0
    %1446 = vmatpush1.bf16.msra.mxu0 0
    %1447 = vmatprep.subr.bf16.mxu0 0
    %1448 = vmatpush1.bf16.msra.mxu0 0
    %1449 = vmatprep.subr.bf16.mxu0 0
    %1450 = vmatpush1.bf16.msra.mxu0 0
    %1451 = vmatprep.subr.bf16.mxu0 0
    %1452 = vmatpush1.bf16.msra.mxu0 0
    %1453 = vmatprep.subr.bf16.mxu0 0
    %1454 = vmatpush1.bf16.msra.mxu0 0
    %1455 = vmatprep.subr.bf16.mxu0 0
    %1456 = vmatpush1.bf16.msra.mxu0 %v722
    %1457 = vmatprep.subr.bf16.mxu0 0
    %1458 = vmatpush2.bf16.msra.mxu0 0
    %1459 = vmatprep.subr.bf16.mxu0 0
    %1460 = vmatpush2.bf16.msra.mxu0 0
    %1461 = vmatprep.subr.bf16.mxu0 0
    %1462 = vmatpush2.bf16.msra.mxu0 0
    %1463 = vmatprep.subr.bf16.mxu0 0
    %1464 = vmatpush2.bf16.msra.mxu0 0
    %1465 = vmatprep.subr.bf16.mxu0 0
    %1466 = vmatpush2.bf16.msra.mxu0 0
    %1467 = vmatprep.subr.bf16.mxu0 0
    %1468 = vmatpush2.bf16.msra.mxu0 0
    %1469 = vmatprep.subr.bf16.mxu0 0
    %1470 = vmatpush2.bf16.msra.mxu0 0
    %1471 = vmatprep.subr.bf16.mxu0 0
    %1472 = vmatpush2.bf16.msra.mxu0 0
    %1473 = vmatprep.mubr.bf16.mxu0 0
    %1474 = vmatmul.mubr.bf16.gmra.mxu0 %v1439
    %v1475 = vpop.f32.mrf.mxu0
    %v1476 = vadd.f32 0.0, %v1475
    %v1477 = vpop.f32.mrf.mxu0
    %v1478 = vpop.f32.mrf.mxu0
    %v1479 = vpop.f32.mrf.mxu0
    %1480 = vdwg.mxu0
    %v1482 = vsel %vm764, %v1436, 0
    %v1485 = vand.u32 %v1098, %v770
    %1487 = vmatprep.subr.bf16.mxu0 0
    %1488 = vmatpush1.bf16.msra.mxu0 0
    %1489 = vmatprep.subr.bf16.mxu0 0
    %1490 = vmatpush1.bf16.msra.mxu0 0
    %1491 = vmatprep.subr.bf16.mxu0 0
    %1492 = vmatpush1.bf16.msra.mxu0 0
    %1493 = vmatprep.subr.bf16.mxu0 0
    %1494 = vmatpush1.bf16.msra.mxu0 0
    %1495 = vmatprep.subr.bf16.mxu0 0
    %1496 = vmatpush1.bf16.msra.mxu0 0
    %1497 = vmatprep.subr.bf16.mxu0 0
    %1498 = vmatpush1.bf16.msra.mxu0 0
    %1499 = vmatprep.subr.bf16.mxu0 0
    %1500 = vmatpush1.bf16.msra.mxu0 %v1485
    %1501 = vmatprep.subr.bf16.mxu0 0
    %1502 = vmatpush1.bf16.msra.mxu0 %v1097
    %1503 = vmatprep.subr.bf16.mxu0 0
    %1504 = vmatpush2.bf16.msra.mxu0 0
    %1505 = vmatprep.subr.bf16.mxu0 0
    %1506 = vmatpush2.bf16.msra.mxu0 0
    %1507 = vmatprep.subr.bf16.mxu0 0
    %1508 = vmatpush2.bf16.msra.mxu0 0
    %1509 = vmatprep.subr.bf16.mxu0 0
    %1510 = vmatpush2.bf16.msra.mxu0 0
    %1511 = vmatprep.subr.bf16.mxu0 0
    %1512 = vmatpush2.bf16.msra.mxu0 0
    %1513 = vmatprep.subr.bf16.mxu0 0
    %1514 = vmatpush2.bf16.msra.mxu0 0
    %1515 = vmatprep.subr.bf16.mxu0 0
    %1516 = vmatpush2.bf16.msra.mxu0 0
    %1517 = vmatprep.subr.bf16.mxu0 0
    %1518 = vmatpush2.bf16.msra.mxu0 0
    %1519 = vmatprep.mubr.bf16.mxu0 0
    %1520 = vmatmul.mubr.bf16.gmra.mxu0 %v1482
    %v1521 = vpop.f32.mrf.mxu0
    %v1522 = vadd.f32 %v1476, %v1521
    %v1523 = vpop.f32.mrf.mxu0
    %v1524 = vpop.f32.mrf.mxu0
    %v1525 = vpop.f32.mrf.mxu0
    %1526 = vdwg.mxu0
    %v1527 = vrcp.pop %v1435
    %v1528 = vmul.f32 %v1522, %v1527
    %v1529 = vpack.c.bf16 %v1528, %v1528
    %v1530 = vld [vmem:[%s15] sm:$0xf]
    %v1531 = vld [vmem:[%s15 + $0x4] sm:$0xf]
    %v1532 = vld [vmem:[%s15 + $0x8] sm:$0xf]
    %v1533 = vld [vmem:[%s15 + $0xc] sm:$0xf]
    %v1534 = vld [vmem:[%s15 + $0x10] sm:$0xf]
    %v1535 = vld [vmem:[%s15 + $0x14] sm:$0xf]
    %v1536 = vld [vmem:[%s15 + $0x18] sm:$0xf]
    %v1537 = vld [vmem:[%s15 + $0x1c] sm:$0xf]
    %v1538 = vld [vmem:[%s15 + $0x20] sm:$0xf]
    %v1539 = vld [vmem:[%s15 + $0x24] sm:$0xf]
    %v1540 = vld [vmem:[%s15 + $0x28] sm:$0xf]
    %v1541 = vld [vmem:[%s15 + $0x2c] sm:$0xf]
    %v1542 = vld [vmem:[%s15 + $0x30] sm:$0xf]
    %v1543 = vld [vmem:[%s15 + $0x34] sm:$0xf]
    %v1544 = vld [vmem:[%s15 + $0x38] sm:$0xf]
    %v1545 = vld [vmem:[%s15 + $0x3c] sm:$0xf]
    %v1562 = vunpack.c.l.b16 %v1530
    %v1563 = vunpack.c.l.b16 %v1531
    %v1564 = vunpack.c.l.b16 %v1532
    %v1565 = vunpack.c.l.b16 %v1533
    %v1566 = vunpack.c.l.b16 %v1534
    %v1567 = vunpack.c.l.b16 %v1535
    %v1568 = vunpack.c.l.b16 %v1536
    %v1569 = vunpack.c.l.b16 %v1537
    %v1570 = vunpack.c.l.b16 %v1538
    %v1571 = vunpack.c.l.b16 %v1539
    %v1572 = vunpack.c.l.b16 %v1540
    %v1573 = vunpack.c.l.b16 %v1541
    %v1574 = vunpack.c.l.b16 %v1542
    %v1575 = vunpack.c.l.b16 %v1543
    %v1576 = vunpack.c.l.b16 %v1544
    %v1577 = vunpack.c.l.b16 %v1545
    %v1578 = vpack.c.b16 %v1563, %v1562
    %v1579 = vpack.c.b16 %v1565, %v1564
    %v1580 = vpack.c.b16 %v1567, %v1566
    %v1581 = vpack.c.b16 %v1569, %v1568
    %v1582 = vpack.c.b16 %v1571, %v1570
    %v1583 = vpack.c.b16 %v1573, %v1572
    %v1584 = vpack.c.b16 %v1575, %v1574
    %v1585 = vpack.c.b16 %v1577, %v1576
    %1594 = vmatprep.subr.bf16.mxu0 0
    %1595 = vmatpush1.bf16.msra.mxu0 %v1585
    %1596 = vmatprep.subr.bf16.mxu0 0
    %1597 = vmatpush1.bf16.msra.mxu0 %v1584
    %1598 = vmatprep.subr.bf16.mxu0 0
    %1599 = vmatpush1.bf16.msra.mxu0 %v1583
    %1600 = vmatprep.subr.bf16.mxu0 0
    %1601 = vmatpush1.bf16.msra.mxu0 %v1582
    %1602 = vmatprep.subr.bf16.mxu0 0
    %1603 = vmatpush1.bf16.msra.mxu0 %v1581
    %1604 = vmatprep.subr.bf16.mxu0 0
    %1605 = vmatpush1.bf16.msra.mxu0 %v1580
    %1606 = vmatprep.subr.bf16.mxu0 0
    %1607 = vmatpush1.bf16.msra.mxu0 %v1579
    %1608 = vmatprep.subr.bf16.mxu0 0
    %1609 = vmatpush1.bf16.msra.mxu0 %v1578
    %1610 = vmatprep.subr.bf16.mxu0 0
    %1611 = vmatpush2.bf16.msra.mxu0 0
    %1612 = vmatprep.subr.bf16.mxu0 0
    %1613 = vmatpush2.bf16.msra.mxu0 0
    %1614 = vmatprep.subr.bf16.mxu0 0
    %1615 = vmatpush2.bf16.msra.mxu0 0
    %1616 = vmatprep.subr.bf16.mxu0 0
    %1617 = vmatpush2.bf16.msra.mxu0 0
    %1618 = vmatprep.subr.bf16.mxu0 0
    %1619 = vmatpush2.bf16.msra.mxu0 0
    %1620 = vmatprep.subr.bf16.mxu0 0
    %1621 = vmatpush2.bf16.msra.mxu0 0
    %1622 = vmatprep.subr.bf16.mxu0 0
    %1623 = vmatpush2.bf16.msra.mxu0 0
    %1624 = vmatprep.subr.bf16.mxu0 0
    %1625 = vmatpush2.bf16.msra.mxu0 0
    %1626 = vmatprep.mubr.bf16.mxu0 0
    %1627 = vmatmul.mubr.bf16.gmra.mxu0 %v1529
    %v1628 = vpop.f32.mrf.mxu0
    %v1629 = vadd.f32 0.0, %v1628
    %v1630 = vpop.f32.mrf.mxu0
    %v1631 = vpop.f32.mrf.mxu0
    %v1632 = vpop.f32.mrf.mxu0
    %1633 = vdwg.mxu0
    %v1634 = vld [vmem:[%s17] sm:$0x1]
    %v1635 = vld [vmem:[%s19] sm:$0x1]
    %v1636 = vsel %vm927, %v1629, 0.0
    %v1637 = vsel %vm929, %v1636, 0.0
    %1638 = vadd.xlane.f32.xlu0 %v1637
    %v1639 = vpop.xlane.xlu0 %1638
    %v1640 = vmul.f32 %v1639, 0.03125
    %v1641 = vsub.f32 %v1629, %v1640
    %v1642 = vsel %vm927, %v1641, 0.0
    %v1643 = vmul.f32 %v1642, %v1642
    %v1644 = vsel %vm929, %v1643, 0.0
    %1645 = vadd.xlane.f32.xlu0 %v1644
    %v1646 = vpop.xlane.xlu0 %1645
    %v1647 = vmul.f32 %v1646, 0.03125
    %v1648 = vadd.f32 %v1647, 1e-05
    %v1649 = vrsqrt.pop %v1648
    %v1650 = vmul.f32 %v1642, %v1649
    %v1652 = vlaneseq
    %v1653 = vshrl.u32 %v1652, 7
    %v1654 = vsub.s32 0, %v1653
    %v1655 = vrot.slane %v1634, %v1654
    %v1657 = vmul.f32 %v1650, %v1655
    %v1659 = vlaneseq
    %v1660 = vshrl.u32 %v1659, 7
    %v1661 = vsub.s32 0, %v1660
    %v1662 = vrot.slane %v1635, %v1661
    %v1664 = vadd.f32 %v1657, %v1662
    %v1665 = vpack.c.bf16 %v1664, %v1664
    %v1666 = vld [vmem:[%s21] sm:$0xf]
    %v1667 = vld [vmem:[%s21 + $0x4] sm:$0xf]
    %v1668 = vld [vmem:[%s21 + $0x8] sm:$0xf]
    %v1669 = vld [vmem:[%s21 + $0xc] sm:$0xf]
    %v1670 = vld [vmem:[%s21 + $0x10] sm:$0xf]
    %v1671 = vld [vmem:[%s21 + $0x14] sm:$0xf]
    %v1672 = vld [vmem:[%s21 + $0x18] sm:$0xf]
    %v1673 = vld [vmem:[%s21 + $0x1c] sm:$0xf]
    %v1674 = vld [vmem:[%s21 + $0x20] sm:$0xf]
    %v1675 = vld [vmem:[%s21 + $0x24] sm:$0xf]
    %v1676 = vld [vmem:[%s21 + $0x28] sm:$0xf]
    %v1677 = vld [vmem:[%s21 + $0x2c] sm:$0xf]
    %v1678 = vld [vmem:[%s21 + $0x30] sm:$0xf]
    %v1679 = vld [vmem:[%s21 + $0x34] sm:$0xf]
    %v1680 = vld [vmem:[%s21 + $0x38] sm:$0xf]
    %v1681 = vld [vmem:[%s21 + $0x3c] sm:$0xf]
    %v1698 = vunpack.c.l.b16 %v1666
    %v1699 = vunpack.c.l.b16 %v1667
    %v1700 = vunpack.c.l.b16 %v1668
    %v1701 = vunpack.c.l.b16 %v1669
    %v1702 = vunpack.c.l.b16 %v1670
    %v1703 = vunpack.c.l.b16 %v1671
    %v1704 = vunpack.c.l.b16 %v1672
    %v1705 = vunpack.c.l.b16 %v1673
    %v1706 = vunpack.c.l.b16 %v1674
    %v1707 = vunpack.c.l.b16 %v1675
    %v1708 = vunpack.c.l.b16 %v1676
    %v1709 = vunpack.c.l.b16 %v1677
    %v1710 = vunpack.c.l.b16 %v1678
    %v1711 = vunpack.c.l.b16 %v1679
    %v1712 = vunpack.c.l.b16 %v1680
    %v1713 = vunpack.c.l.b16 %v1681
    %v1714 = vpack.c.b16 %v1699, %v1698
    %v1715 = vpack.c.b16 %v1701, %v1700
    %v1716 = vpack.c.b16 %v1703, %v1702
    %v1717 = vpack.c.b16 %v1705, %v1704
    %v1718 = vpack.c.b16 %v1707, %v1706
    %v1719 = vpack.c.b16 %v1709, %v1708
    %v1720 = vpack.c.b16 %v1711, %v1710
    %v1721 = vpack.c.b16 %v1713, %v1712
    %1730 = vmatprep.subr.bf16.mxu0 0
    %1731 = vmatpush1.bf16.msra.mxu0 %v1721
    %1732 = vmatprep.subr.bf16.mxu0 0
    %1733 = vmatpush1.bf16.msra.mxu0 %v1720
    %1734 = vmatprep.subr.bf16.mxu0 0
    %1735 = vmatpush1.bf16.msra.mxu0 %v1719
    %1736 = vmatprep.subr.bf16.mxu0 0
    %1737 = vmatpush1.bf16.msra.mxu0 %v1718
    %1738 = vmatprep.subr.bf16.mxu0 0
    %1739 = vmatpush1.bf16.msra.mxu0 %v1717
    %1740 = vmatprep.subr.bf16.mxu0 0
    %1741 = vmatpush1.bf16.msra.mxu0 %v1716
    %1742 = vmatprep.subr.bf16.mxu0 0
    %1743 = vmatpush1.bf16.msra.mxu0 %v1715
    %1744 = vmatprep.subr.bf16.mxu0 0
    %1745 = vmatpush1.bf16.msra.mxu0 %v1714
    %1746 = vmatprep.subr.bf16.mxu0 0
    %1747 = vmatpush2.bf16.msra.mxu0 0
    %1748 = vmatprep.subr.bf16.mxu0 0
    %1749 = vmatpush2.bf16.msra.mxu0 0
    %1750 = vmatprep.subr.bf16.mxu0 0
    %1751 = vmatpush2.bf16.msra.mxu0 0
    %1752 = vmatprep.subr.bf16.mxu0 0
    %1753 = vmatpush2.bf16.msra.mxu0 0
    %1754 = vmatprep.subr.bf16.mxu0 0
    %1755 = vmatpush2.bf16.msra.mxu0 0
    %1756 = vmatprep.subr.bf16.mxu0 0
    %1757 = vmatpush2.bf16.msra.mxu0 0
    %1758 = vmatprep.subr.bf16.mxu0 0
    %1759 = vmatpush2.bf16.msra.mxu0 0
    %1760 = vmatprep.subr.bf16.mxu0 0
    %1761 = vmatpush2.bf16.msra.mxu0 0
    %1762 = vmatprep.mubr.bf16.mxu0 0
    %1763 = vmatmul.mubr.bf16.gmra.mxu0 %v1665
    %v1764 = vpop.f32.mrf.mxu0
    %v1765 = vadd.f32 0.0, %v1764
    %v1766 = vpop.f32.mrf.mxu0
    %v1767 = vpop.f32.mrf.mxu0
    %v1768 = vpop.f32.mrf.mxu0
    %1769 = vdwg.mxu0
    %1770 = vst [vmem:[%s59 + $0x3] sm:$0x7] %v1765
    %v1772 = vrot.slane %v201, 3
    %v1774 = vadd.f32 %v1629, %v1772
    %v1775 = vld [vmem:[%s23] sm:$0x1]
    %v1776 = vld [vmem:[%s25] sm:$0x1]
    %v1777 = vsel %vm927, %v1774, 0.0
    %v1778 = vsel %vm929, %v1777, 0.0
    %1779 = vadd.xlane.f32.xlu0 %v1778
    %v1780 = vpop.xlane.xlu0 %1779
    %v1781 = vmul.f32 %v1780, 0.03125
    %v1782 = vsub.f32 %v1774, %v1781
    %v1783 = vsel %vm927, %v1782, 0.0
    %v1784 = vmul.f32 %v1783, %v1783
    %v1785 = vsel %vm929, %v1784, 0.0
    %1786 = vadd.xlane.f32.xlu0 %v1785
    %v1787 = vpop.xlane.xlu0 %1786
    %v1788 = vmul.f32 %v1787, 0.03125
    %v1789 = vadd.f32 %v1788, 1e-05
    %v1790 = vrsqrt.pop %v1789
    %v1791 = vmul.f32 %v1783, %v1790
    %v1793 = vlaneseq
    %v1794 = vshrl.u32 %v1793, 7
    %v1795 = vsub.s32 0, %v1794
    %v1796 = vrot.slane %v1775, %v1795
    %v1798 = vmul.f32 %v1791, %v1796
    %v1800 = vlaneseq
    %v1801 = vshrl.u32 %v1800, 7
    %v1802 = vsub.s32 0, %v1801
    %v1803 = vrot.slane %v1776, %v1802
    %v1805 = vadd.f32 %v1798, %v1803
    %1806 = vst [vmem:[#allocation2 + $0x31] sm:$0x7] %v1805
    %v1807 = vld [vmem:[#allocation2] sm:$0xff]
    %v1808 = vld [vmem:[#allocation2 + $0x8] sm:$0xff]
    %v1809 = vld [vmem:[#allocation2 + $0x10] sm:$0xff]
    %v1810 = vld [vmem:[#allocation2 + $0x18] sm:$0xff]
    %v1811 = vld [vmem:[#allocation2 + $0x20] sm:$0xff]
    %v1812 = vld [vmem:[#allocation2 + $0x28] sm:$0xff]
    %v1813 = vld [vmem:[#allocation2 + $0x30] sm:$0xff]
    %v1814 = vld [vmem:[#allocation2 + $0x38] sm:$0xff]
    %v1815 = vld [vmem:[%s29] sm:$0x1]
    %v1816 = vld [vmem:[%s31] sm:$0x1]
    %v1817 = vsel %vm927, %v1807, 0.0
    %v1818 = vsel %vm927, %v1808, 0.0
    %v1819 = vsel %vm927, %v1809, 0.0
    %v1820 = vsel %vm927, %v1810, 0.0
    %v1821 = vsel %vm927, %v1811, 0.0
    %v1822 = vsel %vm927, %v1812, 0.0
    %v1823 = vsel %vm927, %v1813, 0.0
    %v1824 = vsel %vm927, %v1814, 0.0
    %1825 = vadd.xlane.f32.xlu0 %v1817
    %v1826 = vpop.xlane.xlu0 %1825
    %1827 = vadd.xlane.f32.xlu0 %v1818
    %v1828 = vpop.xlane.xlu0 %1827
    %1829 = vadd.xlane.f32.xlu0 %v1819
    %v1830 = vpop.xlane.xlu0 %1829
    %1831 = vadd.xlane.f32.xlu0 %v1820
    %v1832 = vpop.xlane.xlu0 %1831
    %1833 = vadd.xlane.f32.xlu0 %v1821
    %v1834 = vpop.xlane.xlu0 %1833
    %1835 = vadd.xlane.f32.xlu0 %v1822
    %v1836 = vpop.xlane.xlu0 %1835
    %1837 = vadd.xlane.f32.xlu0 %v1823
    %v1838 = vpop.xlane.xlu0 %1837
    %1839 = vadd.xlane.f32.xlu0 %v1824
    %v1840 = vpop.xlane.xlu0 %1839
    %v1841 = vmul.f32 %v1826, 0.03125
    %v1842 = vmul.f32 %v1828, 0.03125
    %v1843 = vmul.f32 %v1830, 0.03125
    %v1844 = vmul.f32 %v1832, 0.03125
    %v1845 = vmul.f32 %v1834, 0.03125
    %v1846 = vmul.f32 %v1836, 0.03125
    %v1847 = vmul.f32 %v1838, 0.03125
    %v1848 = vmul.f32 %v1840, 0.03125
    %v1849 = vsub.f32 %v1807, %v1841
    %v1850 = vsub.f32 %v1808, %v1842
    %v1851 = vsub.f32 %v1809, %v1843
    %v1852 = vsub.f32 %v1810, %v1844
    %v1853 = vsub.f32 %v1811, %v1845
    %v1854 = vsub.f32 %v1812, %v1846
    %v1855 = vsub.f32 %v1813, %v1847
    %v1856 = vsub.f32 %v1814, %v1848
    %v1857 = vsel %vm927, %v1849, 0.0
    %v1858 = vsel %vm927, %v1850, 0.0
    %v1859 = vsel %vm927, %v1851, 0.0
    %v1860 = vsel %vm927, %v1852, 0.0
    %v1861 = vsel %vm927, %v1853, 0.0
    %v1862 = vsel %vm927, %v1854, 0.0
    %v1863 = vsel %vm927, %v1855, 0.0
    %v1864 = vsel %vm927, %v1856, 0.0
    %v1865 = vmul.f32 %v1857, %v1857
    %v1866 = vmul.f32 %v1858, %v1858
    %v1867 = vmul.f32 %v1859, %v1859
    %v1868 = vmul.f32 %v1860, %v1860
    %v1869 = vmul.f32 %v1861, %v1861
    %v1870 = vmul.f32 %v1862, %v1862
    %v1871 = vmul.f32 %v1863, %v1863
    %v1872 = vmul.f32 %v1864, %v1864
    %1873 = vadd.xlane.f32.xlu0 %v1865
    %v1874 = vpop.xlane.xlu0 %1873
    %1875 = vadd.xlane.f32.xlu0 %v1866
    %v1876 = vpop.xlane.xlu0 %1875
    %1877 = vadd.xlane.f32.xlu0 %v1867
    %v1878 = vpop.xlane.xlu0 %1877
    %1879 = vadd.xlane.f32.xlu0 %v1868
    %v1880 = vpop.xlane.xlu0 %1879
    %1881 = vadd.xlane.f32.xlu0 %v1869
    %v1882 = vpop.xlane.xlu0 %1881
    %1883 = vadd.xlane.f32.xlu0 %v1870
    %v1884 = vpop.xlane.xlu0 %1883
    %1885 = vadd.xlane.f32.xlu0 %v1871
    %v1886 = vpop.xlane.xlu0 %1885
    %1887 = vadd.xlane.f32.xlu0 %v1872
    %v1888 = vpop.xlane.xlu0 %1887
    %v1889 = vmul.f32 %v1874, 0.03125
    %v1890 = vmul.f32 %v1876, 0.03125
    %v1891 = vmul.f32 %v1878, 0.03125
    %v1892 = vmul.f32 %v1880, 0.03125
    %v1893 = vmul.f32 %v1882, 0.03125
    %v1894 = vmul.f32 %v1884, 0.03125
    %v1895 = vmul.f32 %v1886, 0.03125
    %v1896 = vmul.f32 %v1888, 0.03125
    %v1897 = vadd.f32 %v1889, 1e-05
    %v1898 = vadd.f32 %v1890, 1e-05
    %v1899 = vadd.f32 %v1891, 1e-05
    %v1900 = vadd.f32 %v1892, 1e-05
    %v1901 = vadd.f32 %v1893, 1e-05
    %v1902 = vadd.f32 %v1894, 1e-05
    %v1903 = vadd.f32 %v1895, 1e-05
    %v1904 = vadd.f32 %v1896, 1e-05
    %v1905 = vrsqrt.pop %v1897
    %v1906 = vrsqrt.pop %v1898
    %v1907 = vrsqrt.pop %v1899
    %v1908 = vrsqrt.pop %v1900
    %v1909 = vrsqrt.pop %v1901
    %v1910 = vrsqrt.pop %v1902
    %v1911 = vrsqrt.pop %v1903
    %v1912 = vrsqrt.pop %v1904
    %v1913 = vmul.f32 %v1857, %v1905
    %v1914 = vmul.f32 %v1858, %v1906
    %v1915 = vmul.f32 %v1859, %v1907
    %v1916 = vmul.f32 %v1860, %v1908
    %v1917 = vmul.f32 %v1861, %v1909
    %v1918 = vmul.f32 %v1862, %v1910
    %v1919 = vmul.f32 %v1863, %v1911
    %v1920 = vmul.f32 %v1864, %v1912
    %v1922 = vlaneseq
    %v1923 = vshrl.u32 %v1922, 7
    %v1924 = vsub.s32 0, %v1923
    %v1925 = vrot.slane %v1815, %v1924
    %v1927 = vmul.f32 %v1913, %v1925
    %v1928 = vmul.f32 %v1914, %v1925
    %v1929 = vmul.f32 %v1915, %v1925
    %v1930 = vmul.f32 %v1916, %v1925
    %v1931 = vmul.f32 %v1917, %v1925
    %v1932 = vmul.f32 %v1918, %v1925
    %v1933 = vmul.f32 %v1919, %v1925
    %v1934 = vmul.f32 %v1920, %v1925
    %v1936 = vlaneseq
    %v1937 = vshrl.u32 %v1936, 7
    %v1938 = vsub.s32 0, %v1937
    %v1939 = vrot.slane %v1816, %v1938
    %v1941 = vadd.f32 %v1927, %v1939
    %v1942 = vadd.f32 %v1928, %v1939
    %v1943 = vadd.f32 %v1929, %v1939
    %v1944 = vadd.f32 %v1930, %v1939
    %v1945 = vadd.f32 %v1931, %v1939
    %v1946 = vadd.f32 %v1932, %v1939
    %v1947 = vadd.f32 %v1933, %v1939
    %v1948 = vadd.f32 %v1934, %v1939
    %v1949 = vpack.c.bf16 %v1942, %v1941
    %v1950 = vpack.c.bf16 %v1944, %v1943
    %v1951 = vpack.c.bf16 %v1946, %v1945
    %v1952 = vpack.c.bf16 %v1948, %v1947
    %v1953 = vld [vmem:[%s33] sm:$0xf]
    %v1954 = vld [vmem:[%s33 + $0x4] sm:$0xf]
    %v1955 = vld [vmem:[%s33 + $0x8] sm:$0xf]
    %v1956 = vld [vmem:[%s33 + $0xc] sm:$0xf]
    %v1957 = vld [vmem:[%s33 + $0x10] sm:$0xf]
    %v1958 = vld [vmem:[%s33 + $0x14] sm:$0xf]
    %v1959 = vld [vmem:[%s33 + $0x18] sm:$0xf]
    %v1960 = vld [vmem:[%s33 + $0x1c] sm:$0xf]
    %v1961 = vld [vmem:[%s33 + $0x20] sm:$0xf]
    %v1962 = vld [vmem:[%s33 + $0x24] sm:$0xf]
    %v1963 = vld [vmem:[%s33 + $0x28] sm:$0xf]
    %v1964 = vld [vmem:[%s33 + $0x2c] sm:$0xf]
    %v1965 = vld [vmem:[%s33 + $0x30] sm:$0xf]
    %v1966 = vld [vmem:[%s33 + $0x34] sm:$0xf]
    %v1967 = vld [vmem:[%s33 + $0x38] sm:$0xf]
    %v1968 = vld [vmem:[%s33 + $0x3c] sm:$0xf]
    %v1969 = vld [vmem:[%s35] sm:$0x1]
    %v1971 = vlaneseq
    %v1972 = vshrl.u32 %v1971, 7
    %v1973 = vsub.s32 0, %v1972
    %v1974 = vrot.slane %v1969, %v1973
    %v1992 = vunpack.c.l.b16 %v1953
    %v1993 = vunpack.c.l.b16 %v1954
    %v1994 = vunpack.c.l.b16 %v1955
    %v1995 = vunpack.c.l.b16 %v1956
    %v1996 = vunpack.c.l.b16 %v1957
    %v1997 = vunpack.c.l.b16 %v1958
    %v1998 = vunpack.c.l.b16 %v1959
    %v1999 = vunpack.c.l.b16 %v1960
    %v2000 = vunpack.c.l.b16 %v1961
    %v2001 = vunpack.c.l.b16 %v1962
    %v2002 = vunpack.c.l.b16 %v1963
    %v2003 = vunpack.c.l.b16 %v1964
    %v2004 = vunpack.c.l.b16 %v1965
    %v2005 = vunpack.c.l.b16 %v1966
    %v2006 = vunpack.c.l.b16 %v1967
    %v2007 = vunpack.c.l.b16 %v1968
    %v2008 = vpack.c.b16 %v1993, %v1992
    %v2009 = vpack.c.b16 %v1995, %v1994
    %v2010 = vpack.c.b16 %v1997, %v1996
    %v2011 = vpack.c.b16 %v1999, %v1998
    %v2012 = vpack.c.b16 %v2001, %v2000
    %v2013 = vpack.c.b16 %v2003, %v2002
    %v2014 = vpack.c.b16 %v2005, %v2004
    %v2015 = vpack.c.b16 %v2007, %v2006
    %2024 = vmatprep.subr.bf16.mxu0 0
    %2025 = vmatpush1.bf16.msra.mxu0 %v2015
    %2026 = vmatprep.subr.bf16.mxu0 0
    %2027 = vmatpush1.bf16.msra.mxu0 %v2014
    %2028 = vmatprep.subr.bf16.mxu0 0
    %2029 = vmatpush1.bf16.msra.mxu0 %v2013
    %2030 = vmatprep.subr.bf16.mxu0 0
    %2031 = vmatpush1.bf16.msra.mxu0 %v2012
    %2032 = vmatprep.subr.bf16.mxu0 0
    %2033 = vmatpush1.bf16.msra.mxu0 %v2011
    %2034 = vmatprep.subr.bf16.mxu0 0
    %2035 = vmatpush1.bf16.msra.mxu0 %v2010
    %2036 = vmatprep.subr.bf16.mxu0 0
    %2037 = vmatpush1.bf16.msra.mxu0 %v2009
    %2038 = vmatprep.subr.bf16.mxu0 0
    %2039 = vmatpush1.bf16.msra.mxu0 %v2008
    %2040 = vmatprep.subr.bf16.mxu0 0
    %2041 = vmatpush2.bf16.msra.mxu0 0
    %2042 = vmatprep.subr.bf16.mxu0 0
    %2043 = vmatpush2.bf16.msra.mxu0 0
    %2044 = vmatprep.subr.bf16.mxu0 0
    %2045 = vmatpush2.bf16.msra.mxu0 0
    %2046 = vmatprep.subr.bf16.mxu0 0
    %2047 = vmatpush2.bf16.msra.mxu0 0
    %2048 = vmatprep.subr.bf16.mxu0 0
    %2049 = vmatpush2.bf16.msra.mxu0 0
    %2050 = vmatprep.subr.bf16.mxu0 0
    %2051 = vmatpush2.bf16.msra.mxu0 0
    %2052 = vmatprep.subr.bf16.mxu0 0
    %2053 = vmatpush2.bf16.msra.mxu0 0
    %2054 = vmatprep.subr.bf16.mxu0 0
    %2055 = vmatpush2.bf16.msra.mxu0 0
    %2056 = vmatprep.mubr.bf16.mxu0 0
    %2057 = vmatmul.mubr.bf16.gmra.mxu0 %v1949
    %v2058 = vpop.f32.mrf.mxu0
    %v2059 = vadd.f32 %v1974, %v2058
    %v2060 = vpop.f32.mrf.mxu0
    %v2061 = vpop.f32.mrf.mxu0
    %v2062 = vadd.f32 %v1974, %v2061
    %v2063 = vpop.f32.mrf.mxu0
    %2064 = vmatprep.mubr.bf16.mxu0 0
    %2065 = vmatmul.mubr.bf16.gmra.mxu0 %v1950
    %v2066 = vpop.f32.mrf.mxu0
    %v2067 = vadd.f32 %v1974, %v2066
    %v2068 = vpop.f32.mrf.mxu0
    %v2069 = vpop.f32.mrf.mxu0
    %v2070 = vadd.f32 %v1974, %v2069
    %v2071 = vpop.f32.mrf.mxu0
    %2072 = vmatprep.mubr.bf16.mxu0 0
    %2073 = vmatmul.mubr.bf16.gmra.mxu0 %v1951
    %v2074 = vpop.f32.mrf.mxu0
    %v2075 = vadd.f32 %v1974, %v2074
    %v2076 = vpop.f32.mrf.mxu0
    %v2077 = vpop.f32.mrf.mxu0
    %v2078 = vadd.f32 %v1974, %v2077
    %v2079 = vpop.f32.mrf.mxu0
    %2080 = vmatprep.mubr.bf16.mxu0 0
    %2081 = vmatmul.mubr.bf16.gmra.mxu0 %v1952
    %v2082 = vpop.f32.mrf.mxu0
    %v2083 = vadd.f32 %v1974, %v2082
    %v2084 = vpop.f32.mrf.mxu0
    %v2085 = vpop.f32.mrf.mxu0
    %v2086 = vadd.f32 %v1974, %v2085
    %v2087 = vpop.f32.mrf.mxu0
    %2088 = vdwg.mxu0
    %vm2089 = vcmp.lt.s32.totalorder %v924, 20
    %v2090 = vpack.c.bf16 %v2062, %v2059
    %v2091 = vpack.c.bf16 %v2070, %v2067
    %2094 = vrot.lane.b32.xlu0 %v2090, 96
    %v2095 = vpop.permute.xlu0 %2094
    %2096 = vrot.lane.b32.xlu0 %v2091, 96
    %v2097 = vpop.permute.xlu0 %2096
    %vm2098 = vcmask 130048
    %v2100 = vsel %vm2098, %v2090, 0
    %v2103 = vsel %vm2098, %v2091, 0
    %v2106 = vsel %vm2098, %v2095, 0
    %v2109 = vsel %vm2098, %v2097, 0
    %2111 = vmatprep.subr.bf16.mxu0 0
    %2112 = vmatpush1.bf16.xpose.msra.mxu0 0
    %2113 = vmatprep.subr.bf16.mxu0 0
    %2114 = vmatpush1.bf16.xpose.msra.mxu0 0
    %2115 = vmatprep.subr.bf16.mxu0 0
    %2116 = vmatpush1.bf16.xpose.msra.mxu0 0
    %2117 = vmatprep.subr.bf16.mxu0 0
    %2118 = vmatpush1.bf16.xpose.msra.mxu0 0
    %2119 = vmatprep.subr.bf16.mxu0 0
    %2120 = vmatpush1.bf16.xpose.msra.mxu0 0
    %2121 = vmatprep.subr.bf16.mxu0 0
    %2122 = vmatpush1.bf16.xpose.msra.mxu0 0
    %2123 = vmatprep.subr.bf16.mxu0 0
    %2124 = vmatpush1.bf16.xpose.msra.mxu0 %v2109
    %2125 = vmatprep.subr.bf16.mxu0 0
    %2126 = vmatpush1.bf16.xpose.msra.mxu0 %v2106
    %2127 = vmatprep.subr.bf16.mxu0 0
    %2128 = vmatpush2.bf16.xpose.msra.mxu0 0
    %2129 = vmatprep.subr.bf16.mxu0 0
    %2130 = vmatpush2.bf16.xpose.msra.mxu0 0
    %2131 = vmatprep.subr.bf16.mxu0 0
    %2132 = vmatpush2.bf16.xpose.msra.mxu0 0
    %2133 = vmatprep.subr.bf16.mxu0 0
    %2134 = vmatpush2.bf16.xpose.msra.mxu0 0
    %2135 = vmatprep.subr.bf16.mxu0 0
    %2136 = vmatpush2.bf16.xpose.msra.mxu0 0
    %2137 = vmatprep.subr.bf16.mxu0 0
    %2138 = vmatpush2.bf16.xpose.msra.mxu0 0
    %2139 = vmatprep.subr.bf16.mxu0 0
    %2140 = vmatpush2.bf16.xpose.msra.mxu0 0
    %2141 = vmatprep.subr.bf16.mxu0 0
    %2142 = vmatpush2.bf16.xpose.msra.mxu0 0
    %2143 = vmatprep.mubr.bf16.mxu0 0
    %2144 = vmatmul.mubr.bf16.gmra.mxu0 %v2100
    %v2145 = vpop.f32.mrf.mxu0
    %v2146 = vadd.f32 0.0, %v2145
    %v2147 = vpop.f32.mrf.mxu0
    %v2148 = vpop.f32.mrf.mxu0
    %v2149 = vadd.f32 0.0, %v2148
    %v2150 = vpop.f32.mrf.mxu0
    %2151 = vmatprep.mubr.bf16.mxu0 0
    %2152 = vmatmul.mubr.bf16.gmra.mxu0 %v2103
    %v2153 = vpop.f32.mrf.mxu0
    %v2154 = vadd.f32 0.0, %v2153
    %v2155 = vpop.f32.mrf.mxu0
    %v2156 = vpop.f32.mrf.mxu0
    %v2157 = vadd.f32 0.0, %v2156
    %v2158 = vpop.f32.mrf.mxu0
    %2159 = vdwg.mxu0
    %v2160 = vsel %vm2089, 1, 0
    %vm2161 = vcmp.eq.s32.totalorder %v2160, 1
    %v2162 = vsel %vm2161, %v2146, -1e+30
    %v2163 = vsel %vm2161, %v2149, -1e+30
    %v2164 = vsel %vm2161, %v2154, -1e+30
    %v2165 = vsel %vm2161, %v2157, -1e+30
    %v2166 = vsel %vm598, %v2162, -inf
    %2167 = vmax.xlane.f32.xlu0 %v2166
    %v2168 = vpop.xlane.xlu0 %2167
    %v2169 = vsel %vm598, %v2163, -inf
    %2170 = vmax.xlane.f32.xlu0 %v2169
    %v2171 = vpop.xlane.xlu0 %2170
    %v2172 = vsel %vm598, %v2164, -inf
    %2173 = vmax.xlane.f32.xlu0 %v2172
    %v2174 = vpop.xlane.xlu0 %2173
    %v2175 = vsel %vm598, %v2165, -inf
    %2176 = vmax.xlane.f32.xlu0 %v2175
    %v2177 = vpop.xlane.xlu0 %2176
    %v2178 = vsub.f32 %v2162, %v2168
    %v2179 = vsub.f32 %v2163, %v2171
    %v2180 = vsub.f32 %v2164, %v2174
    %v2181 = vsub.f32 %v2165, %v2177
    %v2182 = vmul.f32 %v2178, 1.442695
    %v2183 = vpow.pop %v2182
    %v2184 = vmul.f32 %v2179, 1.442695
    %v2185 = vpow.pop %v2184
    %v2186 = vmul.f32 %v2180, 1.442695
    %v2187 = vpow.pop %v2186
    %v2188 = vmul.f32 %v2181, 1.442695
    %v2189 = vpow.pop %v2188
    %v2190 = vsel %vm598, %v2183, 0.0
    %2191 = vadd.xlane.f32.xlu0 %v2190
    %v2192 = vpop.xlane.xlu0 %2191
    %v2193 = vsel %vm598, %v2185, 0.0
    %2194 = vadd.xlane.f32.xlu0 %v2193
    %v2195 = vpop.xlane.xlu0 %2194
    %v2196 = vsel %vm598, %v2187, 0.0
    %2197 = vadd.xlane.f32.xlu0 %v2196
    %v2198 = vpop.xlane.xlu0 %2197
    %v2199 = vsel %vm598, %v2189, 0.0
    %2200 = vadd.xlane.f32.xlu0 %v2199
    %v2201 = vpop.xlane.xlu0 %2200
    %v2202 = vpack.c.bf16 %v2185, %v2183
    %v2203 = vpack.c.bf16 %v2189, %v2187
    %2204 = vrot.lane.b32.xlu0 %v2090, 64
    %v2205 = vpop.permute.xlu0 %2204
    %2206 = vrot.lane.b32.xlu0 %v2091, 64
    %v2207 = vpop.permute.xlu0 %2206
    %v2211 = vsel %vm598, %v2202, 0
    %v2214 = vsel %vm598, %v2203, 0
    %2216 = vmatprep.subr.bf16.mxu0 0
    %2217 = vmatpush1.bf16.msra.mxu0 0
    %2218 = vmatprep.subr.bf16.mxu0 0
    %2219 = vmatpush1.bf16.msra.mxu0 0
    %2220 = vmatprep.subr.bf16.mxu0 0
    %2221 = vmatpush1.bf16.msra.mxu0 0
    %2222 = vmatprep.subr.bf16.mxu0 0
    %2223 = vmatpush1.bf16.msra.mxu0 0
    %2224 = vmatprep.subr.bf16.mxu0 0
    %2225 = vmatpush1.bf16.msra.mxu0 0
    %2226 = vmatprep.subr.bf16.mxu0 0
    %2227 = vmatpush1.bf16.msra.mxu0 0
    %2228 = vmatprep.subr.bf16.mxu0 0
    %2229 = vmatpush1.bf16.msra.mxu0 %v2207
    %2230 = vmatprep.subr.bf16.mxu0 0
    %2231 = vmatpush1.bf16.msra.mxu0 %v2205
    %2232 = vmatprep.subr.bf16.mxu0 0
    %2233 = vmatpush2.bf16.msra.mxu0 0
    %2234 = vmatprep.subr.bf16.mxu0 0
    %2235 = vmatpush2.bf16.msra.mxu0 0
    %2236 = vmatprep.subr.bf16.mxu0 0
    %2237 = vmatpush2.bf16.msra.mxu0 0
    %2238 = vmatprep.subr.bf16.mxu0 0
    %2239 = vmatpush2.bf16.msra.mxu0 0
    %2240 = vmatprep.subr.bf16.mxu0 0
    %2241 = vmatpush2.bf16.msra.mxu0 0
    %2242 = vmatprep.subr.bf16.mxu0 0
    %2243 = vmatpush2.bf16.msra.mxu0 0
    %2244 = vmatprep.subr.bf16.mxu0 0
    %2245 = vmatpush2.bf16.msra.mxu0 0
    %2246 = vmatprep.subr.bf16.mxu0 0
    %2247 = vmatpush2.bf16.msra.mxu0 0
    %2248 = vmatprep.mubr.bf16.mxu0 0
    %2249 = vmatmul.mubr.bf16.gmra.mxu0 %v2211
    %v2250 = vpop.f32.mrf.mxu0
    %v2251 = vadd.f32 0.0, %v2250
    %v2252 = vpop.f32.mrf.mxu0
    %v2253 = vpop.f32.mrf.mxu0
    %v2254 = vadd.f32 0.0, %v2253
    %v2255 = vpop.f32.mrf.mxu0
    %2256 = vmatprep.mubr.bf16.mxu0 0
    %2257 = vmatmul.mubr.bf16.gmra.mxu0 %v2214
    %v2258 = vpop.f32.mrf.mxu0
    %v2259 = vadd.f32 0.0, %v2258
    %v2260 = vpop.f32.mrf.mxu0
    %v2261 = vpop.f32.mrf.mxu0
    %v2262 = vadd.f32 0.0, %v2261
    %v2263 = vpop.f32.mrf.mxu0
    %2264 = vdwg.mxu0
    %v2265 = vrcp.pop %v2192
    %v2266 = vrcp.pop %v2195
    %v2267 = vrcp.pop %v2198
    %v2268 = vrcp.pop %v2201
    %v2269 = vmul.f32 %v2251, %v2265
    %v2270 = vmul.f32 %v2254, %v2266
    %v2271 = vmul.f32 %v2259, %v2267
    %v2272 = vmul.f32 %v2262, %v2268
    %2273 = vrot.lane.b32.xlu0 %v2090, 112
    %v2274 = vpop.permute.xlu0 %2273
    %2275 = vrot.lane.b32.xlu0 %v2091, 112
    %v2276 = vpop.permute.xlu0 %2275
    %2277 = vrot.lane.b32.xlu0 %v2090, 80
    %v2278 = vpop.permute.xlu0 %2277
    %2279 = vrot.lane.b32.xlu0 %v2091, 80
    %v2280 = vpop.permute.xlu0 %2279
    %v2282 = vsel %vm2098, %v2274, 0
    %v2285 = vsel %vm2098, %v2276, 0
    %v2288 = vsel %vm2098, %v2278, 0
    %v2291 = vsel %vm2098, %v2280, 0
    %2293 = vmatprep.subr.bf16.mxu0 0
    %2294 = vmatpush1.bf16.xpose.msra.mxu0 0
    %2295 = vmatprep.subr.bf16.mxu0 0
    %2296 = vmatpush1.bf16.xpose.msra.mxu0 0
    %2297 = vmatprep.subr.bf16.mxu0 0
    %2298 = vmatpush1.bf16.xpose.msra.mxu0 0
    %2299 = vmatprep.subr.bf16.mxu0 0
    %2300 = vmatpush1.bf16.xpose.msra.mxu0 0
    %2301 = vmatprep.subr.bf16.mxu0 0
    %2302 = vmatpush1.bf16.xpose.msra.mxu0 0
    %2303 = vmatprep.subr.bf16.mxu0 0
    %2304 = vmatpush1.bf16.xpose.msra.mxu0 0
    %2305 = vmatprep.subr.bf16.mxu0 0
    %2306 = vmatpush1.bf16.xpose.msra.mxu0 %v2291
    %2307 = vmatprep.subr.bf16.mxu0 0
    %2308 = vmatpush1.bf16.xpose.msra.mxu0 %v2288
    %2309 = vmatprep.subr.bf16.mxu0 0
    %2310 = vmatpush2.bf16.xpose.msra.mxu0 0
    %2311 = vmatprep.subr.bf16.mxu0 0
    %2312 = vmatpush2.bf16.xpose.msra.mxu0 0
    %2313 = vmatprep.subr.bf16.mxu0 0
    %2314 = vmatpush2.bf16.xpose.msra.mxu0 0
    %2315 = vmatprep.subr.bf16.mxu0 0
    %2316 = vmatpush2.bf16.xpose.msra.mxu0 0
    %2317 = vmatprep.subr.bf16.mxu0 0
    %2318 = vmatpush2.bf16.xpose.msra.mxu0 0
    %2319 = vmatprep.subr.bf16.mxu0 0
    %2320 = vmatpush2.bf16.xpose.msra.mxu0 0
    %2321 = vmatprep.subr.bf16.mxu0 0
    %2322 = vmatpush2.bf16.xpose.msra.mxu0 0
    %2323 = vmatprep.subr.bf16.mxu0 0
    %2324 = vmatpush2.bf16.xpose.msra.mxu0 0
    %2325 = vmatprep.mubr.bf16.mxu0 0
    %2326 = vmatmul.mubr.bf16.gmra.mxu0 %v2282
    %v2327 = vpop.f32.mrf.mxu0
    %v2328 = vadd.f32 0.0, %v2327
    %v2329 = vpop.f32.mrf.mxu0
    %v2330 = vpop.f32.mrf.mxu0
    %v2331 = vadd.f32 0.0, %v2330
    %v2332 = vpop.f32.mrf.mxu0
    %2333 = vmatprep.mubr.bf16.mxu0 0
    %2334 = vmatmul.mubr.bf16.gmra.mxu0 %v2285
    %v2335 = vpop.f32.mrf.mxu0
    %v2336 = vadd.f32 0.0, %v2335
    %v2337 = vpop.f32.mrf.mxu0
    %v2338 = vpop.f32.mrf.mxu0
    %v2339 = vadd.f32 0.0, %v2338
    %v2340 = vpop.f32.mrf.mxu0
    %2341 = vdwg.mxu0
    %v2342 = vsel %vm2161, %v2328, -1e+30
    %v2343 = vsel %vm2161, %v2331, -1e+30
    %v2344 = vsel %vm2161, %v2336, -1e+30
    %v2345 = vsel %vm2161, %v2339, -1e+30
    %v2346 = vsel %vm598, %v2342, -inf
    %2347 = vmax.xlane.f32.xlu0 %v2346
    %v2348 = vpop.xlane.xlu0 %2347
    %v2349 = vsel %vm598, %v2343, -inf
    %2350 = vmax.xlane.f32.xlu0 %v2349
    %v2351 = vpop.xlane.xlu0 %2350
    %v2352 = vsel %vm598, %v2344, -inf
    %2353 = vmax.xlane.f32.xlu0 %v2352
    %v2354 = vpop.xlane.xlu0 %2353
    %v2355 = vsel %vm598, %v2345, -inf
    %2356 = vmax.xlane.f32.xlu0 %v2355
    %v2357 = vpop.xlane.xlu0 %2356
    %v2358 = vsub.f32 %v2342, %v2348
    %v2359 = vsub.f32 %v2343, %v2351
    %v2360 = vsub.f32 %v2344, %v2354
    %v2361 = vsub.f32 %v2345, %v2357
    %v2362 = vmul.f32 %v2358, 1.442695
    %v2363 = vpow.pop %v2362
    %v2364 = vmul.f32 %v2359, 1.442695
    %v2365 = vpow.pop %v2364
    %v2366 = vmul.f32 %v2360, 1.442695
    %v2367 = vpow.pop %v2366
    %v2368 = vmul.f32 %v2361, 1.442695
    %v2369 = vpow.pop %v2368
    %v2370 = vsel %vm598, %v2363, 0.0
    %2371 = vadd.xlane.f32.xlu0 %v2370
    %v2372 = vpop.xlane.xlu0 %2371
    %v2373 = vsel %vm598, %v2365, 0.0
    %2374 = vadd.xlane.f32.xlu0 %v2373
    %v2375 = vpop.xlane.xlu0 %2374
    %v2376 = vsel %vm598, %v2367, 0.0
    %2377 = vadd.xlane.f32.xlu0 %v2376
    %v2378 = vpop.xlane.xlu0 %2377
    %v2379 = vsel %vm598, %v2369, 0.0
    %2380 = vadd.xlane.f32.xlu0 %v2379
    %v2381 = vpop.xlane.xlu0 %2380
    %v2382 = vpack.c.bf16 %v2365, %v2363
    %v2383 = vpack.c.bf16 %v2369, %v2367
    %v2385 = vsel %vm598, %v2382, 0
    %v2388 = vsel %vm598, %v2383, 0
    %2390 = vmatprep.subr.bf16.mxu0 0
    %2391 = vmatpush1.bf16.msra.mxu0 0
    %2392 = vmatprep.subr.bf16.mxu0 0
    %2393 = vmatpush1.bf16.msra.mxu0 0
    %2394 = vmatprep.subr.bf16.mxu0 0
    %2395 = vmatpush1.bf16.msra.mxu0 0
    %2396 = vmatprep.subr.bf16.mxu0 0
    %2397 = vmatpush1.bf16.msra.mxu0 0
    %2398 = vmatprep.subr.bf16.mxu0 0
    %2399 = vmatpush1.bf16.msra.mxu0 0
    %2400 = vmatprep.subr.bf16.mxu0 0
    %2401 = vmatpush1.bf16.msra.mxu0 0
    %2402 = vmatprep.subr.bf16.mxu0 0
    %2403 = vmatpush1.bf16.msra.mxu0 %v2207
    %2404 = vmatprep.subr.bf16.mxu0 0
    %2405 = vmatpush1.bf16.msra.mxu0 %v2205
    %2406 = vmatprep.subr.bf16.mxu0 0
    %2407 = vmatpush2.bf16.msra.mxu0 0
    %2408 = vmatprep.subr.bf16.mxu0 0
    %2409 = vmatpush2.bf16.msra.mxu0 0
    %2410 = vmatprep.subr.bf16.mxu0 0
    %2411 = vmatpush2.bf16.msra.mxu0 0
    %2412 = vmatprep.subr.bf16.mxu0 0
    %2413 = vmatpush2.bf16.msra.mxu0 0
    %2414 = vmatprep.subr.bf16.mxu0 0
    %2415 = vmatpush2.bf16.msra.mxu0 0
    %2416 = vmatprep.subr.bf16.mxu0 0
    %2417 = vmatpush2.bf16.msra.mxu0 0
    %2418 = vmatprep.subr.bf16.mxu0 0
    %2419 = vmatpush2.bf16.msra.mxu0 0
    %2420 = vmatprep.subr.bf16.mxu0 0
    %2421 = vmatpush2.bf16.msra.mxu0 0
    %2422 = vmatprep.mubr.bf16.mxu0 0
    %2423 = vmatmul.mubr.bf16.gmra.mxu0 %v2385
    %v2424 = vpop.f32.mrf.mxu0
    %v2425 = vadd.f32 0.0, %v2424
    %v2426 = vpop.f32.mrf.mxu0
    %v2427 = vpop.f32.mrf.mxu0
    %v2428 = vadd.f32 0.0, %v2427
    %v2429 = vpop.f32.mrf.mxu0
    %2430 = vmatprep.mubr.bf16.mxu0 0
    %2431 = vmatmul.mubr.bf16.gmra.mxu0 %v2388
    %v2432 = vpop.f32.mrf.mxu0
    %v2433 = vadd.f32 0.0, %v2432
    %v2434 = vpop.f32.mrf.mxu0
    %v2435 = vpop.f32.mrf.mxu0
    %v2436 = vadd.f32 0.0, %v2435
    %v2437 = vpop.f32.mrf.mxu0
    %2438 = vdwg.mxu0
    %v2439 = vrcp.pop %v2372
    %v2440 = vrcp.pop %v2375
    %v2441 = vrcp.pop %v2378
    %v2442 = vrcp.pop %v2381
    %v2443 = vmul.f32 %v2425, %v2439
    %v2444 = vmul.f32 %v2428, %v2440
    %v2445 = vmul.f32 %v2433, %v2441
    %v2446 = vmul.f32 %v2436, %v2442
    %vm2447 = vcmp.ge.s32.totalorder %v924, 16
    %v2448 = vsel %vm2447, %v2443, %v2269
    %v2449 = vsel %vm2447, %v2444, %v2270
    %v2450 = vsel %vm2447, %v2445, %v2271
    %v2451 = vsel %vm2447, %v2446, %v2272
    %v2452 = vpack.c.bf16 %v2078, %v2075
    %v2453 = vpack.c.bf16 %v2086, %v2083
    %2456 = vrot.lane.b32.xlu0 %v2452, 96
    %v2457 = vpop.permute.xlu0 %2456
    %2458 = vrot.lane.b32.xlu0 %v2453, 96
    %v2459 = vpop.permute.xlu0 %2458
    %v2461 = vsel %vm2098, %v2452, 0
    %v2464 = vsel %vm2098, %v2453, 0
    %v2467 = vsel %vm2098, %v2457, 0
    %v2470 = vsel %vm2098, %v2459, 0
    %2472 = vmatprep.subr.bf16.mxu0 0
    %2473 = vmatpush1.bf16.xpose.msra.mxu0 0
    %2474 = vmatprep.subr.bf16.mxu0 0
    %2475 = vmatpush1.bf16.xpose.msra.mxu0 0
    %2476 = vmatprep.subr.bf16.mxu0 0
    %2477 = vmatpush1.bf16.xpose.msra.mxu0 0
    %2478 = vmatprep.subr.bf16.mxu0 0
    %2479 = vmatpush1.bf16.xpose.msra.mxu0 0
    %2480 = vmatprep.subr.bf16.mxu0 0
    %2481 = vmatpush1.bf16.xpose.msra.mxu0 0
    %2482 = vmatprep.subr.bf16.mxu0 0
    %2483 = vmatpush1.bf16.xpose.msra.mxu0 0
    %2484 = vmatprep.subr.bf16.mxu0 0
    %2485 = vmatpush1.bf16.xpose.msra.mxu0 %v2470
    %2486 = vmatprep.subr.bf16.mxu0 0
    %2487 = vmatpush1.bf16.xpose.msra.mxu0 %v2467
    %2488 = vmatprep.subr.bf16.mxu0 0
    %2489 = vmatpush2.bf16.xpose.msra.mxu0 0
    %2490 = vmatprep.subr.bf16.mxu0 0
    %2491 = vmatpush2.bf16.xpose.msra.mxu0 0
    %2492 = vmatprep.subr.bf16.mxu0 0
    %2493 = vmatpush2.bf16.xpose.msra.mxu0 0
    %2494 = vmatprep.subr.bf16.mxu0 0
    %2495 = vmatpush2.bf16.xpose.msra.mxu0 0
    %2496 = vmatprep.subr.bf16.mxu0 0
    %2497 = vmatpush2.bf16.xpose.msra.mxu0 0
    %2498 = vmatprep.subr.bf16.mxu0 0
    %2499 = vmatpush2.bf16.xpose.msra.mxu0 0
    %2500 = vmatprep.subr.bf16.mxu0 0
    %2501 = vmatpush2.bf16.xpose.msra.mxu0 0
    %2502 = vmatprep.subr.bf16.mxu0 0
    %2503 = vmatpush2.bf16.xpose.msra.mxu0 0
    %2504 = vmatprep.mubr.bf16.mxu0 0
    %2505 = vmatmul.mubr.bf16.gmra.mxu0 %v2461
    %v2506 = vpop.f32.mrf.mxu0
    %v2507 = vadd.f32 0.0, %v2506
    %v2508 = vpop.f32.mrf.mxu0
    %v2509 = vpop.f32.mrf.mxu0
    %v2510 = vadd.f32 0.0, %v2509
    %v2511 = vpop.f32.mrf.mxu0
    %2512 = vmatprep.mubr.bf16.mxu0 0
    %2513 = vmatmul.mubr.bf16.gmra.mxu0 %v2464
    %v2514 = vpop.f32.mrf.mxu0
    %v2515 = vadd.f32 0.0, %v2514
    %v2516 = vpop.f32.mrf.mxu0
    %v2517 = vpop.f32.mrf.mxu0
    %v2518 = vadd.f32 0.0, %v2517
    %v2519 = vpop.f32.mrf.mxu0
    %2520 = vdwg.mxu0
    %v2521 = vsel %vm2161, %v2507, -1e+30
    %v2522 = vsel %vm2161, %v2510, -1e+30
    %v2523 = vsel %vm2161, %v2515, -1e+30
    %v2524 = vsel %vm2161, %v2518, -1e+30
    %v2525 = vsel %vm598, %v2521, -inf
    %2526 = vmax.xlane.f32.xlu0 %v2525
    %v2527 = vpop.xlane.xlu0 %2526
    %v2528 = vsel %vm598, %v2522, -inf
    %2529 = vmax.xlane.f32.xlu0 %v2528
    %v2530 = vpop.xlane.xlu0 %2529
    %v2531 = vsel %vm598, %v2523, -inf
    %2532 = vmax.xlane.f32.xlu0 %v2531
    %v2533 = vpop.xlane.xlu0 %2532
    %v2534 = vsel %vm598, %v2524, -inf
    %2535 = vmax.xlane.f32.xlu0 %v2534
    %v2536 = vpop.xlane.xlu0 %2535
    %v2537 = vsub.f32 %v2521, %v2527
    %v2538 = vsub.f32 %v2522, %v2530
    %v2539 = vsub.f32 %v2523, %v2533
    %v2540 = vsub.f32 %v2524, %v2536
    %v2541 = vmul.f32 %v2537, 1.442695
    %v2542 = vpow.pop %v2541
    %v2543 = vmul.f32 %v2538, 1.442695
    %v2544 = vpow.pop %v2543
    %v2545 = vmul.f32 %v2539, 1.442695
    %v2546 = vpow.pop %v2545
    %v2547 = vmul.f32 %v2540, 1.442695
    %v2548 = vpow.pop %v2547
    %v2549 = vsel %vm598, %v2542, 0.0
    %2550 = vadd.xlane.f32.xlu0 %v2549
    %v2551 = vpop.xlane.xlu0 %2550
    %v2552 = vsel %vm598, %v2544, 0.0
    %2553 = vadd.xlane.f32.xlu0 %v2552
    %v2554 = vpop.xlane.xlu0 %2553
    %v2555 = vsel %vm598, %v2546, 0.0
    %2556 = vadd.xlane.f32.xlu0 %v2555
    %v2557 = vpop.xlane.xlu0 %2556
    %v2558 = vsel %vm598, %v2548, 0.0
    %2559 = vadd.xlane.f32.xlu0 %v2558
    %v2560 = vpop.xlane.xlu0 %2559
    %v2561 = vpack.c.bf16 %v2544, %v2542
    %v2562 = vpack.c.bf16 %v2548, %v2546
    %2563 = vrot.lane.b32.xlu0 %v2452, 64
    %v2564 = vpop.permute.xlu0 %2563
    %2565 = vrot.lane.b32.xlu0 %v2453, 64
    %v2566 = vpop.permute.xlu0 %2565
    %v2570 = vsel %vm598, %v2561, 0
    %v2573 = vsel %vm598, %v2562, 0
    %2575 = vmatprep.subr.bf16.mxu0 0
    %2576 = vmatpush1.bf16.msra.mxu0 0
    %2577 = vmatprep.subr.bf16.mxu0 0
    %2578 = vmatpush1.bf16.msra.mxu0 0
    %2579 = vmatprep.subr.bf16.mxu0 0
    %2580 = vmatpush1.bf16.msra.mxu0 0
    %2581 = vmatprep.subr.bf16.mxu0 0
    %2582 = vmatpush1.bf16.msra.mxu0 0
    %2583 = vmatprep.subr.bf16.mxu0 0
    %2584 = vmatpush1.bf16.msra.mxu0 0
    %2585 = vmatprep.subr.bf16.mxu0 0
    %2586 = vmatpush1.bf16.msra.mxu0 0
    %2587 = vmatprep.subr.bf16.mxu0 0
    %2588 = vmatpush1.bf16.msra.mxu0 %v2566
    %2589 = vmatprep.subr.bf16.mxu0 0
    %2590 = vmatpush1.bf16.msra.mxu0 %v2564
    %2591 = vmatprep.subr.bf16.mxu0 0
    %2592 = vmatpush2.bf16.msra.mxu0 0
    %2593 = vmatprep.subr.bf16.mxu0 0
    %2594 = vmatpush2.bf16.msra.mxu0 0
    %2595 = vmatprep.subr.bf16.mxu0 0
    %2596 = vmatpush2.bf16.msra.mxu0 0
    %2597 = vmatprep.subr.bf16.mxu0 0
    %2598 = vmatpush2.bf16.msra.mxu0 0
    %2599 = vmatprep.subr.bf16.mxu0 0
    %2600 = vmatpush2.bf16.msra.mxu0 0
    %2601 = vmatprep.subr.bf16.mxu0 0
    %2602 = vmatpush2.bf16.msra.mxu0 0
    %2603 = vmatprep.subr.bf16.mxu0 0
    %2604 = vmatpush2.bf16.msra.mxu0 0
    %2605 = vmatprep.subr.bf16.mxu0 0
    %2606 = vmatpush2.bf16.msra.mxu0 0
    %2607 = vmatprep.mubr.bf16.mxu0 0
    %2608 = vmatmul.mubr.bf16.gmra.mxu0 %v2570
    %v2609 = vpop.f32.mrf.mxu0
    %v2610 = vadd.f32 0.0, %v2609
    %v2611 = vpop.f32.mrf.mxu0
    %v2612 = vpop.f32.mrf.mxu0
    %v2613 = vadd.f32 0.0, %v2612
    %v2614 = vpop.f32.mrf.mxu0
    %2615 = vmatprep.mubr.bf16.mxu0 0
    %2616 = vmatmul.mubr.bf16.gmra.mxu0 %v2573
    %v2617 = vpop.f32.mrf.mxu0
    %v2618 = vadd.f32 0.0, %v2617
    %v2619 = vpop.f32.mrf.mxu0
    %v2620 = vpop.f32.mrf.mxu0
    %v2621 = vadd.f32 0.0, %v2620
    %v2622 = vpop.f32.mrf.mxu0
    %2623 = vdwg.mxu0
    %v2624 = vrcp.pop %v2551
    %v2625 = vrcp.pop %v2554
    %v2626 = vrcp.pop %v2557
    %v2627 = vrcp.pop %v2560
    %v2628 = vmul.f32 %v2610, %v2624
    %v2629 = vmul.f32 %v2613, %v2625
    %v2630 = vmul.f32 %v2618, %v2626
    %v2631 = vmul.f32 %v2621, %v2627
    %2632 = vrot.lane.b32.xlu0 %v2452, 112
    %v2633 = vpop.permute.xlu0 %2632
    %2634 = vrot.lane.b32.xlu0 %v2453, 112
    %v2635 = vpop.permute.xlu0 %2634
    %2636 = vrot.lane.b32.xlu0 %v2452, 80
    %v2637 = vpop.permute.xlu0 %2636
    %2638 = vrot.lane.b32.xlu0 %v2453, 80
    %v2639 = vpop.permute.xlu0 %2638
    %v2641 = vsel %vm2098, %v2633, 0
    %v2644 = vsel %vm2098, %v2635, 0
    %v2647 = vsel %vm2098, %v2637, 0
    %v2650 = vsel %vm2098, %v2639, 0
    %2652 = vmatprep.subr.bf16.mxu0 0
    %2653 = vmatpush1.bf16.xpose.msra.mxu0 0
    %2654 = vmatprep.subr.bf16.mxu0 0
    %2655 = vmatpush1.bf16.xpose.msra.mxu0 0
    %2656 = vmatprep.subr.bf16.mxu0 0
    %2657 = vmatpush1.bf16.xpose.msra.mxu0 0
    %2658 = vmatprep.subr.bf16.mxu0 0
    %2659 = vmatpush1.bf16.xpose.msra.mxu0 0
    %2660 = vmatprep.subr.bf16.mxu0 0
    %2661 = vmatpush1.bf16.xpose.msra.mxu0 0
    %2662 = vmatprep.subr.bf16.mxu0 0
    %2663 = vmatpush1.bf16.xpose.msra.mxu0 0
    %2664 = vmatprep.subr.bf16.mxu0 0
    %2665 = vmatpush1.bf16.xpose.msra.mxu0 %v2650
    %2666 = vmatprep.subr.bf16.mxu0 0
    %2667 = vmatpush1.bf16.xpose.msra.mxu0 %v2647
    %2668 = vmatprep.subr.bf16.mxu0 0
    %2669 = vmatpush2.bf16.xpose.msra.mxu0 0
    %2670 = vmatprep.subr.bf16.mxu0 0
    %2671 = vmatpush2.bf16.xpose.msra.mxu0 0
    %2672 = vmatprep.subr.bf16.mxu0 0
    %2673 = vmatpush2.bf16.xpose.msra.mxu0 0
    %2674 = vmatprep.subr.bf16.mxu0 0
    %2675 = vmatpush2.bf16.xpose.msra.mxu0 0
    %2676 = vmatprep.subr.bf16.mxu0 0
    %2677 = vmatpush2.bf16.xpose.msra.mxu0 0
    %2678 = vmatprep.subr.bf16.mxu0 0
    %2679 = vmatpush2.bf16.xpose.msra.mxu0 0
    %2680 = vmatprep.subr.bf16.mxu0 0
    %2681 = vmatpush2.bf16.xpose.msra.mxu0 0
    %2682 = vmatprep.subr.bf16.mxu0 0
    %2683 = vmatpush2.bf16.xpose.msra.mxu0 0
    %2684 = vmatprep.mubr.bf16.mxu0 0
    %2685 = vmatmul.mubr.bf16.gmra.mxu0 %v2641
    %v2686 = vpop.f32.mrf.mxu0
    %v2687 = vadd.f32 0.0, %v2686
    %v2688 = vpop.f32.mrf.mxu0
    %v2689 = vpop.f32.mrf.mxu0
    %v2690 = vadd.f32 0.0, %v2689
    %v2691 = vpop.f32.mrf.mxu0
    %2692 = vmatprep.mubr.bf16.mxu0 0
    %2693 = vmatmul.mubr.bf16.gmra.mxu0 %v2644
    %v2694 = vpop.f32.mrf.mxu0
    %v2695 = vadd.f32 0.0, %v2694
    %v2696 = vpop.f32.mrf.mxu0
    %v2697 = vpop.f32.mrf.mxu0
    %v2698 = vadd.f32 0.0, %v2697
    %v2699 = vpop.f32.mrf.mxu0
    %2700 = vdwg.mxu0
    %v2701 = vsel %vm2161, %v2687, -1e+30
    %v2702 = vsel %vm2161, %v2690, -1e+30
    %v2703 = vsel %vm2161, %v2695, -1e+30
    %v2704 = vsel %vm2161, %v2698, -1e+30
    %v2705 = vsel %vm598, %v2701, -inf
    %2706 = vmax.xlane.f32.xlu0 %v2705
    %v2707 = vpop.xlane.xlu0 %2706
    %v2708 = vsel %vm598, %v2702, -inf
    %2709 = vmax.xlane.f32.xlu0 %v2708
    %v2710 = vpop.xlane.xlu0 %2709
    %v2711 = vsel %vm598, %v2703, -inf
    %2712 = vmax.xlane.f32.xlu0 %v2711
    %v2713 = vpop.xlane.xlu0 %2712
    %v2714 = vsel %vm598, %v2704, -inf
    %2715 = vmax.xlane.f32.xlu0 %v2714
    %v2716 = vpop.xlane.xlu0 %2715
    %v2717 = vsub.f32 %v2701, %v2707
    %v2718 = vsub.f32 %v2702, %v2710
    %v2719 = vsub.f32 %v2703, %v2713
    %v2720 = vsub.f32 %v2704, %v2716
    %v2721 = vmul.f32 %v2717, 1.442695
    %v2722 = vpow.pop %v2721
    %v2723 = vmul.f32 %v2718, 1.442695
    %v2724 = vpow.pop %v2723
    %v2725 = vmul.f32 %v2719, 1.442695
    %v2726 = vpow.pop %v2725
    %v2727 = vmul.f32 %v2720, 1.442695
    %v2728 = vpow.pop %v2727
    %v2729 = vsel %vm598, %v2722, 0.0
    %2730 = vadd.xlane.f32.xlu0 %v2729
    %v2731 = vpop.xlane.xlu0 %2730
    %v2732 = vsel %vm598, %v2724, 0.0
    %2733 = vadd.xlane.f32.xlu0 %v2732
    %v2734 = vpop.xlane.xlu0 %2733
    %v2735 = vsel %vm598, %v2726, 0.0
    %2736 = vadd.xlane.f32.xlu0 %v2735
    %v2737 = vpop.xlane.xlu0 %2736
    %v2738 = vsel %vm598, %v2728, 0.0
    %2739 = vadd.xlane.f32.xlu0 %v2738
    %v2740 = vpop.xlane.xlu0 %2739
    %v2741 = vpack.c.bf16 %v2724, %v2722
    %v2742 = vpack.c.bf16 %v2728, %v2726
    %v2744 = vsel %vm598, %v2741, 0
    %v2747 = vsel %vm598, %v2742, 0
    %2749 = vmatprep.subr.bf16.mxu0 0
    %2750 = vmatpush1.bf16.msra.mxu0 0
    %2751 = vmatprep.subr.bf16.mxu0 0
    %2752 = vmatpush1.bf16.msra.mxu0 0
    %2753 = vmatprep.subr.bf16.mxu0 0
    %2754 = vmatpush1.bf16.msra.mxu0 0
    %2755 = vmatprep.subr.bf16.mxu0 0
    %2756 = vmatpush1.bf16.msra.mxu0 0
    %2757 = vmatprep.subr.bf16.mxu0 0
    %2758 = vmatpush1.bf16.msra.mxu0 0
    %2759 = vmatprep.subr.bf16.mxu0 0
    %2760 = vmatpush1.bf16.msra.mxu0 0
    %2761 = vmatprep.subr.bf16.mxu0 0
    %2762 = vmatpush1.bf16.msra.mxu0 %v2566
    %2763 = vmatprep.subr.bf16.mxu0 0
    %2764 = vmatpush1.bf16.msra.mxu0 %v2564
    %2765 = vmatprep.subr.bf16.mxu0 0
    %2766 = vmatpush2.bf16.msra.mxu0 0
    %2767 = vmatprep.subr.bf16.mxu0 0
    %2768 = vmatpush2.bf16.msra.mxu0 0
    %2769 = vmatprep.subr.bf16.mxu0 0
    %2770 = vmatpush2.bf16.msra.mxu0 0
    %2771 = vmatprep.subr.bf16.mxu0 0
    %2772 = vmatpush2.bf16.msra.mxu0 0
    %2773 = vmatprep.subr.bf16.mxu0 0
    %2774 = vmatpush2.bf16.msra.mxu0 0
    %2775 = vmatprep.subr.bf16.mxu0 0
    %2776 = vmatpush2.bf16.msra.mxu0 0
    %2777 = vmatprep.subr.bf16.mxu0 0
    %2778 = vmatpush2.bf16.msra.mxu0 0
    %2779 = vmatprep.subr.bf16.mxu0 0
    %2780 = vmatpush2.bf16.msra.mxu0 0
    %2781 = vmatprep.mubr.bf16.mxu0 0
    %2782 = vmatmul.mubr.bf16.gmra.mxu0 %v2744
    %v2783 = vpop.f32.mrf.mxu0
    %v2784 = vadd.f32 0.0, %v2783
    %v2785 = vpop.f32.mrf.mxu0
    %v2786 = vpop.f32.mrf.mxu0
    %v2787 = vadd.f32 0.0, %v2786
    %v2788 = vpop.f32.mrf.mxu0
    %2789 = vmatprep.mubr.bf16.mxu0 0
    %2790 = vmatmul.mubr.bf16.gmra.mxu0 %v2747
    %v2791 = vpop.f32.mrf.mxu0
    %v2792 = vadd.f32 0.0, %v2791
    %v2793 = vpop.f32.mrf.mxu0
    %v2794 = vpop.f32.mrf.mxu0
    %v2795 = vadd.f32 0.0, %v2794
    %v2796 = vpop.f32.mrf.mxu0
    %2797 = vdwg.mxu0
    %v2798 = vrcp.pop %v2731
    %v2799 = vrcp.pop %v2734
    %v2800 = vrcp.pop %v2737
    %v2801 = vrcp.pop %v2740
    %v2802 = vmul.f32 %v2784, %v2798
    %v2803 = vmul.f32 %v2787, %v2799
    %v2804 = vmul.f32 %v2792, %v2800
    %v2805 = vmul.f32 %v2795, %v2801
    %v2806 = vsel %vm2447, %v2802, %v2628
    %v2807 = vsel %vm2447, %v2803, %v2629
    %v2808 = vsel %vm2447, %v2804, %v2630
    %v2809 = vsel %vm2447, %v2805, %v2631
    %v2810 = vpack.c.bf16 %v2449, %v2448
    %v2811 = vpack.c.bf16 %v2451, %v2450
    %v2812 = vpack.c.bf16 %v2807, %v2806
    %v2813 = vpack.c.bf16 %v2809, %v2808
    %v2814 = vld [vmem:[%s37] sm:$0xf]
    %v2815 = vld [vmem:[%s37 + $0x4] sm:$0xf]
    %v2816 = vld [vmem:[%s37 + $0x8] sm:$0xf]
    %v2817 = vld [vmem:[%s37 + $0xc] sm:$0xf]
    %v2822 = vunpack.c.l.b16 %v2814
    %v2823 = vunpack.c.l.b16 %v2815
    %v2824 = vunpack.c.l.b16 %v2816
    %v2825 = vunpack.c.l.b16 %v2817
    %v2826 = vpack.c.b16 %v2823, %v2822
    %v2827 = vpack.c.b16 %v2825, %v2824
    %v2831 = vsel %vm598, %v2810, 0
    %v2834 = vsel %vm598, %v2811, 0
    %v2837 = vsel %vm598, %v2812, 0
    %v2840 = vsel %vm598, %v2813, 0
    %2842 = vmatprep.subr.bf16.mxu0 0
    %2843 = vmatpush1.bf16.msra.mxu0 0
    %2844 = vmatprep.subr.bf16.mxu0 0
    %2845 = vmatpush1.bf16.msra.mxu0 0
    %2846 = vmatprep.subr.bf16.mxu0 0
    %2847 = vmatpush1.bf16.msra.mxu0 0
    %2848 = vmatprep.subr.bf16.mxu0 0
    %2849 = vmatpush1.bf16.msra.mxu0 0
    %2850 = vmatprep.subr.bf16.mxu0 0
    %2851 = vmatpush1.bf16.msra.mxu0 0
    %2852 = vmatprep.subr.bf16.mxu0 0
    %2853 = vmatpush1.bf16.msra.mxu0 0
    %2854 = vmatprep.subr.bf16.mxu0 0
    %2855 = vmatpush1.bf16.msra.mxu0 %v2827
    %2856 = vmatprep.subr.bf16.mxu0 0
    %2857 = vmatpush1.bf16.msra.mxu0 %v2826
    %2858 = vmatprep.subr.bf16.mxu0 0
    %2859 = vmatpush2.bf16.msra.mxu0 0
    %2860 = vmatprep.subr.bf16.mxu0 0
    %2861 = vmatpush2.bf16.msra.mxu0 0
    %2862 = vmatprep.subr.bf16.mxu0 0
    %2863 = vmatpush2.bf16.msra.mxu0 0
    %2864 = vmatprep.subr.bf16.mxu0 0
    %2865 = vmatpush2.bf16.msra.mxu0 0
    %2866 = vmatprep.subr.bf16.mxu0 0
    %2867 = vmatpush2.bf16.msra.mxu0 0
    %2868 = vmatprep.subr.bf16.mxu0 0
    %2869 = vmatpush2.bf16.msra.mxu0 0
    %2870 = vmatprep.subr.bf16.mxu0 0
    %2871 = vmatpush2.bf16.msra.mxu0 0
    %2872 = vmatprep.subr.bf16.mxu0 0
    %2873 = vmatpush2.bf16.msra.mxu0 0
    %2874 = vmatprep.mubr.bf16.mxu0 0
    %2875 = vmatmul.mubr.bf16.gmra.mxu0 %v2831
    %v2876 = vpop.f32.mrf.mxu0
    %v2877 = vadd.f32 0.0, %v2876
    %v2878 = vpop.f32.mrf.mxu0
    %v2879 = vpop.f32.mrf.mxu0
    %v2880 = vadd.f32 0.0, %v2879
    %v2881 = vpop.f32.mrf.mxu0
    %2882 = vmatprep.mubr.bf16.mxu0 0
    %2883 = vmatmul.mubr.bf16.gmra.mxu0 %v2834
    %v2884 = vpop.f32.mrf.mxu0
    %v2885 = vadd.f32 0.0, %v2884
    %v2886 = vpop.f32.mrf.mxu0
    %v2887 = vpop.f32.mrf.mxu0
    %v2888 = vadd.f32 0.0, %v2887
    %v2889 = vpop.f32.mrf.mxu0
    %2890 = vmatprep.mubr.bf16.mxu0 0
    %2891 = vmatmul.mubr.bf16.gmra.mxu0 %v2837
    %v2892 = vpop.f32.mrf.mxu0
    %v2893 = vadd.f32 0.0, %v2892
    %v2894 = vpop.f32.mrf.mxu0
    %v2895 = vpop.f32.mrf.mxu0
    %v2896 = vadd.f32 0.0, %v2895
    %v2897 = vpop.f32.mrf.mxu0
    %2898 = vmatprep.mubr.bf16.mxu0 0
    %2899 = vmatmul.mubr.bf16.gmra.mxu0 %v2840
    %v2900 = vpop.f32.mrf.mxu0
    %v2901 = vadd.f32 0.0, %v2900
    %v2902 = vpop.f32.mrf.mxu0
    %v2903 = vpop.f32.mrf.mxu0
    %v2904 = vadd.f32 0.0, %v2903
    %v2905 = vpop.f32.mrf.mxu0
    %2906 = vdwg.mxu0
    %v2907 = vadd.f32 %v1807, %v2877
    %v2908 = vadd.f32 %v1808, %v2880
    %v2909 = vadd.f32 %v1809, %v2885
    %v2910 = vadd.f32 %v1810, %v2888
    %v2911 = vadd.f32 %v1811, %v2893
    %v2912 = vadd.f32 %v1812, %v2896
    %v2913 = vadd.f32 %v1813, %v2901
    %v2914 = vadd.f32 %v1814, %v2904
    %v2915 = vld [vmem:[%s39] sm:$0x1]
    %v2917 = vlaneseq
    %v2918 = vshrl.u32 %v2917, 7
    %v2919 = vsub.s32 0, %v2918
    %v2920 = vrot.slane %v2915, %v2919
    %v2922 = vadd.f32 %v2907, %v2920
    %v2923 = vadd.f32 %v2908, %v2920
    %v2924 = vadd.f32 %v2909, %v2920
    %v2925 = vadd.f32 %v2910, %v2920
    %v2926 = vadd.f32 %v2911, %v2920
    %v2927 = vadd.f32 %v2912, %v2920
    %v2928 = vadd.f32 %v2913, %v2920
    %v2929 = vadd.f32 %v2914, %v2920
    %v2930 = vld [vmem:[%s41] sm:$0x1]
    %v2931 = vld [vmem:[%s43] sm:$0x1]
    %v2932 = vsel %vm927, %v2922, 0.0
    %v2933 = vsel %vm927, %v2923, 0.0
    %v2934 = vsel %vm927, %v2924, 0.0
    %v2935 = vsel %vm927, %v2925, 0.0
    %v2936 = vsel %vm927, %v2926, 0.0
    %v2937 = vsel %vm927, %v2927, 0.0
    %v2938 = vsel %vm927, %v2928, 0.0
    %v2939 = vsel %vm927, %v2929, 0.0
    %2940 = vadd.xlane.f32.xlu0 %v2932
    %v2941 = vpop.xlane.xlu0 %2940
    %2942 = vadd.xlane.f32.xlu0 %v2933
    %v2943 = vpop.xlane.xlu0 %2942
    %2944 = vadd.xlane.f32.xlu0 %v2934
    %v2945 = vpop.xlane.xlu0 %2944
    %2946 = vadd.xlane.f32.xlu0 %v2935
    %v2947 = vpop.xlane.xlu0 %2946
    %2948 = vadd.xlane.f32.xlu0 %v2936
    %v2949 = vpop.xlane.xlu0 %2948
    %2950 = vadd.xlane.f32.xlu0 %v2937
    %v2951 = vpop.xlane.xlu0 %2950
    %2952 = vadd.xlane.f32.xlu0 %v2938
    %v2953 = vpop.xlane.xlu0 %2952
    %2954 = vadd.xlane.f32.xlu0 %v2939
    %v2955 = vpop.xlane.xlu0 %2954
    %v2956 = vmul.f32 %v2941, 0.03125
    %v2957 = vmul.f32 %v2943, 0.03125
    %v2958 = vmul.f32 %v2945, 0.03125
    %v2959 = vmul.f32 %v2947, 0.03125
    %v2960 = vmul.f32 %v2949, 0.03125
    %v2961 = vmul.f32 %v2951, 0.03125
    %v2962 = vmul.f32 %v2953, 0.03125
    %v2963 = vmul.f32 %v2955, 0.03125
    %v2964 = vsub.f32 %v2922, %v2956
    %v2965 = vsub.f32 %v2923, %v2957
    %v2966 = vsub.f32 %v2924, %v2958
    %v2967 = vsub.f32 %v2925, %v2959
    %v2968 = vsub.f32 %v2926, %v2960
    %v2969 = vsub.f32 %v2927, %v2961
    %v2970 = vsub.f32 %v2928, %v2962
    %v2971 = vsub.f32 %v2929, %v2963
    %v2972 = vsel %vm927, %v2964, 0.0
    %v2973 = vsel %vm927, %v2965, 0.0
    %v2974 = vsel %vm927, %v2966, 0.0
    %v2975 = vsel %vm927, %v2967, 0.0
    %v2976 = vsel %vm927, %v2968, 0.0
    %v2977 = vsel %vm927, %v2969, 0.0
    %v2978 = vsel %vm927, %v2970, 0.0
    %v2979 = vsel %vm927, %v2971, 0.0
    %v2980 = vmul.f32 %v2972, %v2972
    %v2981 = vmul.f32 %v2973, %v2973
    %v2982 = vmul.f32 %v2974, %v2974
    %v2983 = vmul.f32 %v2975, %v2975
    %v2984 = vmul.f32 %v2976, %v2976
    %v2985 = vmul.f32 %v2977, %v2977
    %v2986 = vmul.f32 %v2978, %v2978
    %v2987 = vmul.f32 %v2979, %v2979
    %2988 = vadd.xlane.f32.xlu0 %v2980
    %v2989 = vpop.xlane.xlu0 %2988
    %2990 = vadd.xlane.f32.xlu0 %v2981
    %v2991 = vpop.xlane.xlu0 %2990
    %2992 = vadd.xlane.f32.xlu0 %v2982
    %v2993 = vpop.xlane.xlu0 %2992
    %2994 = vadd.xlane.f32.xlu0 %v2983
    %v2995 = vpop.xlane.xlu0 %2994
    %2996 = vadd.xlane.f32.xlu0 %v2984
    %v2997 = vpop.xlane.xlu0 %2996
    %2998 = vadd.xlane.f32.xlu0 %v2985
    %v2999 = vpop.xlane.xlu0 %2998
    %3000 = vadd.xlane.f32.xlu0 %v2986
    %v3001 = vpop.xlane.xlu0 %3000
    %3002 = vadd.xlane.f32.xlu0 %v2987
    %v3003 = vpop.xlane.xlu0 %3002
    %v3004 = vmul.f32 %v2989, 0.03125
    %v3005 = vmul.f32 %v2991, 0.03125
    %v3006 = vmul.f32 %v2993, 0.03125
    %v3007 = vmul.f32 %v2995, 0.03125
    %v3008 = vmul.f32 %v2997, 0.03125
    %v3009 = vmul.f32 %v2999, 0.03125
    %v3010 = vmul.f32 %v3001, 0.03125
    %v3011 = vmul.f32 %v3003, 0.03125
    %v3012 = vadd.f32 %v3004, 1e-05
    %v3013 = vadd.f32 %v3005, 1e-05
    %v3014 = vadd.f32 %v3006, 1e-05
    %v3015 = vadd.f32 %v3007, 1e-05
    %v3016 = vadd.f32 %v3008, 1e-05
    %v3017 = vadd.f32 %v3009, 1e-05
    %v3018 = vadd.f32 %v3010, 1e-05
    %v3019 = vadd.f32 %v3011, 1e-05
    %v3020 = vrsqrt.pop %v3012
    %v3021 = vrsqrt.pop %v3013
    %v3022 = vrsqrt.pop %v3014
    %v3023 = vrsqrt.pop %v3015
    %v3024 = vrsqrt.pop %v3016
    %v3025 = vrsqrt.pop %v3017
    %v3026 = vrsqrt.pop %v3018
    %v3027 = vrsqrt.pop %v3019
    %v3028 = vmul.f32 %v2972, %v3020
    %v3029 = vmul.f32 %v2973, %v3021
    %v3030 = vmul.f32 %v2974, %v3022
    %v3031 = vmul.f32 %v2975, %v3023
    %v3032 = vmul.f32 %v2976, %v3024
    %v3033 = vmul.f32 %v2977, %v3025
    %v3034 = vmul.f32 %v2978, %v3026
    %v3035 = vmul.f32 %v2979, %v3027
    %v3037 = vlaneseq
    %v3038 = vshrl.u32 %v3037, 7
    %v3039 = vsub.s32 0, %v3038
    %v3040 = vrot.slane %v2930, %v3039
    %v3042 = vmul.f32 %v3028, %v3040
    %v3043 = vmul.f32 %v3029, %v3040
    %v3044 = vmul.f32 %v3030, %v3040
    %v3045 = vmul.f32 %v3031, %v3040
    %v3046 = vmul.f32 %v3032, %v3040
    %v3047 = vmul.f32 %v3033, %v3040
    %v3048 = vmul.f32 %v3034, %v3040
    %v3049 = vmul.f32 %v3035, %v3040
    %v3051 = vlaneseq
    %v3052 = vshrl.u32 %v3051, 7
    %v3053 = vsub.s32 0, %v3052
    %v3054 = vrot.slane %v2931, %v3053
    %v3056 = vadd.f32 %v3042, %v3054
    %v3057 = vadd.f32 %v3043, %v3054
    %v3058 = vadd.f32 %v3044, %v3054
    %v3059 = vadd.f32 %v3045, %v3054
    %v3060 = vadd.f32 %v3046, %v3054
    %v3061 = vadd.f32 %v3047, %v3054
    %v3062 = vadd.f32 %v3048, %v3054
    %v3063 = vadd.f32 %v3049, %v3054
    %v3064 = vpack.c.bf16 %v3057, %v3056
    %v3065 = vpack.c.bf16 %v3059, %v3058
    %v3066 = vpack.c.bf16 %v3061, %v3060
    %v3067 = vpack.c.bf16 %v3063, %v3062
    %v3068 = vld [vmem:[%s45] sm:$0xf]
    %v3069 = vld [vmem:[%s45 + $0x4] sm:$0xf]
    %v3070 = vld [vmem:[%s45 + $0x8] sm:$0xf]
    %v3071 = vld [vmem:[%s45 + $0xc] sm:$0xf]
    %v3072 = vld [vmem:[%s45 + $0x10] sm:$0xf]
    %v3073 = vld [vmem:[%s45 + $0x14] sm:$0xf]
    %v3074 = vld [vmem:[%s45 + $0x18] sm:$0xf]
    %v3075 = vld [vmem:[%s45 + $0x1c] sm:$0xf]
    %v3076 = vld [vmem:[%s45 + $0x20] sm:$0xf]
    %v3077 = vld [vmem:[%s45 + $0x24] sm:$0xf]
    %v3078 = vld [vmem:[%s45 + $0x28] sm:$0xf]
    %v3079 = vld [vmem:[%s45 + $0x2c] sm:$0xf]
    %v3080 = vld [vmem:[%s45 + $0x30] sm:$0xf]
    %v3081 = vld [vmem:[%s45 + $0x34] sm:$0xf]
    %v3082 = vld [vmem:[%s45 + $0x38] sm:$0xf]
    %v3083 = vld [vmem:[%s45 + $0x3c] sm:$0xf]
    %v3084 = vld [vmem:[%s47] sm:$0x1]
    %v3086 = vlaneseq
    %v3087 = vshrl.u32 %v3086, 7
    %v3088 = vsub.s32 0, %v3087
    %v3089 = vrot.slane %v3084, %v3088
    %v3107 = vunpack.c.l.b16 %v3068
    %v3108 = vunpack.c.l.b16 %v3069
    %v3109 = vunpack.c.l.b16 %v3070
    %v3110 = vunpack.c.l.b16 %v3071
    %v3111 = vunpack.c.l.b16 %v3072
    %v3112 = vunpack.c.l.b16 %v3073
    %v3113 = vunpack.c.l.b16 %v3074
    %v3114 = vunpack.c.l.b16 %v3075
    %v3115 = vunpack.c.l.b16 %v3076
    %v3116 = vunpack.c.l.b16 %v3077
    %v3117 = vunpack.c.l.b16 %v3078
    %v3118 = vunpack.c.l.b16 %v3079
    %v3119 = vunpack.c.l.b16 %v3080
    %v3120 = vunpack.c.l.b16 %v3081
    %v3121 = vunpack.c.l.b16 %v3082
    %v3122 = vunpack.c.l.b16 %v3083
    %v3123 = vpack.c.b16 %v3108, %v3107
    %v3124 = vpack.c.b16 %v3110, %v3109
    %v3125 = vpack.c.b16 %v3112, %v3111
    %v3126 = vpack.c.b16 %v3114, %v3113
    %v3127 = vpack.c.b16 %v3116, %v3115
    %v3128 = vpack.c.b16 %v3118, %v3117
    %v3129 = vpack.c.b16 %v3120, %v3119
    %v3130 = vpack.c.b16 %v3122, %v3121
    %3139 = vmatprep.subr.bf16.mxu0 0
    %3140 = vmatpush1.bf16.msra.mxu0 %v3130
    %3141 = vmatprep.subr.bf16.mxu0 0
    %3142 = vmatpush1.bf16.msra.mxu0 %v3129
    %3143 = vmatprep.subr.bf16.mxu0 0
    %3144 = vmatpush1.bf16.msra.mxu0 %v3128
    %3145 = vmatprep.subr.bf16.mxu0 0
    %3146 = vmatpush1.bf16.msra.mxu0 %v3127
    %3147 = vmatprep.subr.bf16.mxu0 0
    %3148 = vmatpush1.bf16.msra.mxu0 %v3126
    %3149 = vmatprep.subr.bf16.mxu0 0
    %3150 = vmatpush1.bf16.msra.mxu0 %v3125
    %3151 = vmatprep.subr.bf16.mxu0 0
    %3152 = vmatpush1.bf16.msra.mxu0 %v3124
    %3153 = vmatprep.subr.bf16.mxu0 0
    %3154 = vmatpush1.bf16.msra.mxu0 %v3123
    %3155 = vmatprep.subr.bf16.mxu0 0
    %3156 = vmatpush2.bf16.msra.mxu0 0
    %3157 = vmatprep.subr.bf16.mxu0 0
    %3158 = vmatpush2.bf16.msra.mxu0 0
    %3159 = vmatprep.subr.bf16.mxu0 0
    %3160 = vmatpush2.bf16.msra.mxu0 0
    %3161 = vmatprep.subr.bf16.mxu0 0
    %3162 = vmatpush2.bf16.msra.mxu0 0
    %3163 = vmatprep.subr.bf16.mxu0 0
    %3164 = vmatpush2.bf16.msra.mxu0 0
    %3165 = vmatprep.subr.bf16.mxu0 0
    %3166 = vmatpush2.bf16.msra.mxu0 0
    %3167 = vmatprep.subr.bf16.mxu0 0
    %3168 = vmatpush2.bf16.msra.mxu0 0
    %3169 = vmatprep.subr.bf16.mxu0 0
    %3170 = vmatpush2.bf16.msra.mxu0 0
    %3171 = vmatprep.mubr.bf16.mxu0 0
    %3172 = vmatmul.mubr.bf16.gmra.mxu0 %v3064
    %v3173 = vpop.f32.mrf.mxu0
    %v3174 = vadd.f32 %v3089, %v3173
    %v3175 = vpop.f32.mrf.mxu0
    %v3176 = vpop.f32.mrf.mxu0
    %v3177 = vadd.f32 %v3089, %v3176
    %v3178 = vpop.f32.mrf.mxu0
    %3179 = vmatprep.mubr.bf16.mxu0 0
    %3180 = vmatmul.mubr.bf16.gmra.mxu0 %v3065
    %v3181 = vpop.f32.mrf.mxu0
    %v3182 = vadd.f32 %v3089, %v3181
    %v3183 = vpop.f32.mrf.mxu0
    %v3184 = vpop.f32.mrf.mxu0
    %v3185 = vadd.f32 %v3089, %v3184
    %v3186 = vpop.f32.mrf.mxu0
    %3187 = vmatprep.mubr.bf16.mxu0 0
    %3188 = vmatmul.mubr.bf16.gmra.mxu0 %v3066
    %v3189 = vpop.f32.mrf.mxu0
    %v3190 = vadd.f32 %v3089, %v3189
    %v3191 = vpop.f32.mrf.mxu0
    %v3192 = vpop.f32.mrf.mxu0
    %v3193 = vadd.f32 %v3089, %v3192
    %v3194 = vpop.f32.mrf.mxu0
    %3195 = vmatprep.mubr.bf16.mxu0 0
    %3196 = vmatmul.mubr.bf16.gmra.mxu0 %v3067
    %v3197 = vpop.f32.mrf.mxu0
    %v3198 = vadd.f32 %v3089, %v3197
    %v3199 = vpop.f32.mrf.mxu0
    %v3200 = vpop.f32.mrf.mxu0
    %v3201 = vadd.f32 %v3089, %v3200
    %v3202 = vpop.f32.mrf.mxu0
    %3203 = vdwg.mxu0
    %v3204 = vmul.f32 %v3174, -1.702
    %v3205 = vmul.f32 %v3177, -1.702
    %v3206 = vmul.f32 %v3182, -1.702
    %v3207 = vmul.f32 %v3185, -1.702
    %v3208 = vmul.f32 %v3190, -1.702
    %v3209 = vmul.f32 %v3193, -1.702
    %v3210 = vmul.f32 %v3198, -1.702
    %v3211 = vmul.f32 %v3201, -1.702
    %v3212 = vmul.f32 %v3204, 1.442695
    %v3213 = vpow.pop %v3212
    %v3214 = vmul.f32 %v3205, 1.442695
    %v3215 = vpow.pop %v3214
    %v3216 = vmul.f32 %v3206, 1.442695
    %v3217 = vpow.pop %v3216
    %v3218 = vmul.f32 %v3207, 1.442695
    %v3219 = vpow.pop %v3218
    %v3220 = vmul.f32 %v3208, 1.442695
    %v3221 = vpow.pop %v3220
    %v3222 = vmul.f32 %v3209, 1.442695
    %v3223 = vpow.pop %v3222
    %v3224 = vmul.f32 %v3210, 1.442695
    %v3225 = vpow.pop %v3224
    %v3226 = vmul.f32 %v3211, 1.442695
    %v3227 = vpow.pop %v3226
    %v3228 = vadd.f32 %v3213, 1.0
    %v3229 = vadd.f32 %v3215, 1.0
    %v3230 = vadd.f32 %v3217, 1.0
    %v3231 = vadd.f32 %v3219, 1.0
    %v3232 = vadd.f32 %v3221, 1.0
    %v3233 = vadd.f32 %v3223, 1.0
    %v3234 = vadd.f32 %v3225, 1.0
    %v3235 = vadd.f32 %v3227, 1.0
    %v3236 = vrcp.pop %v3228
    %v3237 = vrcp.pop %v3229
    %v3238 = vrcp.pop %v3230
    %v3239 = vrcp.pop %v3231
    %v3240 = vrcp.pop %v3232
    %v3241 = vrcp.pop %v3233
    %v3242 = vrcp.pop %v3234
    %v3243 = vrcp.pop %v3235
    %v3244 = vmul.f32 %v3174, %v3236
    %v3245 = vmul.f32 %v3177, %v3237
    %v3246 = vmul.f32 %v3182, %v3238
    %v3247 = vmul.f32 %v3185, %v3239
    %v3248 = vmul.f32 %v3190, %v3240
    %v3249 = vmul.f32 %v3193, %v3241
    %v3250 = vmul.f32 %v3198, %v3242
    %v3251 = vmul.f32 %v3201, %v3243
    %v3252 = vpack.c.bf16 %v3245, %v3244
    %v3253 = vpack.c.bf16 %v3247, %v3246
    %v3254 = vpack.c.bf16 %v3249, %v3248
    %v3255 = vpack.c.bf16 %v3251, %v3250
    %v3256 = vld [vmem:[%s49] sm:$0xf]
    %v3257 = vld [vmem:[%s49 + $0x4] sm:$0xf]
    %v3258 = vld [vmem:[%s49 + $0x8] sm:$0xf]
    %v3259 = vld [vmem:[%s49 + $0xc] sm:$0xf]
    %v3260 = vld [vmem:[%s49 + $0x10] sm:$0xf]
    %v3261 = vld [vmem:[%s49 + $0x14] sm:$0xf]
    %v3262 = vld [vmem:[%s49 + $0x18] sm:$0xf]
    %v3263 = vld [vmem:[%s49 + $0x1c] sm:$0xf]
    %v3264 = vld [vmem:[%s49 + $0x20] sm:$0xf]
    %v3265 = vld [vmem:[%s49 + $0x24] sm:$0xf]
    %v3266 = vld [vmem:[%s49 + $0x28] sm:$0xf]
    %v3267 = vld [vmem:[%s49 + $0x2c] sm:$0xf]
    %v3268 = vld [vmem:[%s49 + $0x30] sm:$0xf]
    %v3269 = vld [vmem:[%s49 + $0x34] sm:$0xf]
    %v3270 = vld [vmem:[%s49 + $0x38] sm:$0xf]
    %v3271 = vld [vmem:[%s49 + $0x3c] sm:$0xf]
    %v3272 = vld [vmem:[%s51] sm:$0x1]
    %v3274 = vlaneseq
    %v3275 = vshrl.u32 %v3274, 7
    %v3276 = vsub.s32 0, %v3275
    %v3277 = vrot.slane %v3272, %v3276
    %v3295 = vunpack.c.l.b16 %v3256
    %v3296 = vunpack.c.l.b16 %v3257
    %v3297 = vunpack.c.l.b16 %v3258
    %v3298 = vunpack.c.l.b16 %v3259
    %v3299 = vunpack.c.l.b16 %v3260
    %v3300 = vunpack.c.l.b16 %v3261
    %v3301 = vunpack.c.l.b16 %v3262
    %v3302 = vunpack.c.l.b16 %v3263
    %v3303 = vunpack.c.l.b16 %v3264
    %v3304 = vunpack.c.l.b16 %v3265
    %v3305 = vunpack.c.l.b16 %v3266
    %v3306 = vunpack.c.l.b16 %v3267
    %v3307 = vunpack.c.l.b16 %v3268
    %v3308 = vunpack.c.l.b16 %v3269
    %v3309 = vunpack.c.l.b16 %v3270
    %v3310 = vunpack.c.l.b16 %v3271
    %v3311 = vpack.c.b16 %v3296, %v3295
    %v3312 = vpack.c.b16 %v3298, %v3297
    %v3313 = vpack.c.b16 %v3300, %v3299
    %v3314 = vpack.c.b16 %v3302, %v3301
    %v3315 = vpack.c.b16 %v3304, %v3303
    %v3316 = vpack.c.b16 %v3306, %v3305
    %v3317 = vpack.c.b16 %v3308, %v3307
    %v3318 = vpack.c.b16 %v3310, %v3309
    %3327 = vmatprep.subr.bf16.mxu0 0
    %3328 = vmatpush1.bf16.msra.mxu0 %v3318
    %3329 = vmatprep.subr.bf16.mxu0 0
    %3330 = vmatpush1.bf16.msra.mxu0 %v3317
    %3331 = vmatprep.subr.bf16.mxu0 0
    %3332 = vmatpush1.bf16.msra.mxu0 %v3316
    %3333 = vmatprep.subr.bf16.mxu0 0
    %3334 = vmatpush1.bf16.msra.mxu0 %v3315
    %3335 = vmatprep.subr.bf16.mxu0 0
    %3336 = vmatpush1.bf16.msra.mxu0 %v3314
    %3337 = vmatprep.subr.bf16.mxu0 0
    %3338 = vmatpush1.bf16.msra.mxu0 %v3313
    %3339 = vmatprep.subr.bf16.mxu0 0
    %3340 = vmatpush1.bf16.msra.mxu0 %v3312
    %3341 = vmatprep.subr.bf16.mxu0 0
    %3342 = vmatpush1.bf16.msra.mxu0 %v3311
    %3343 = vmatprep.subr.bf16.mxu0 0
    %3344 = vmatpush2.bf16.msra.mxu0 0
    %3345 = vmatprep.subr.bf16.mxu0 0
    %3346 = vmatpush2.bf16.msra.mxu0 0
    %3347 = vmatprep.subr.bf16.mxu0 0
    %3348 = vmatpush2.bf16.msra.mxu0 0
    %3349 = vmatprep.subr.bf16.mxu0 0
    %3350 = vmatpush2.bf16.msra.mxu0 0
    %3351 = vmatprep.subr.bf16.mxu0 0
    %3352 = vmatpush2.bf16.msra.mxu0 0
    %3353 = vmatprep.subr.bf16.mxu0 0
    %3354 = vmatpush2.bf16.msra.mxu0 0
    %3355 = vmatprep.subr.bf16.mxu0 0
    %3356 = vmatpush2.bf16.msra.mxu0 0
    %3357 = vmatprep.subr.bf16.mxu0 0
    %3358 = vmatpush2.bf16.msra.mxu0 0
    %3359 = vmatprep.mubr.bf16.mxu0 0
    %3360 = vmatmul.mubr.bf16.gmra.mxu0 %v3252
    %v3361 = vpop.f32.mrf.mxu0
    %v3362 = vadd.f32 %v3277, %v3361
    %v3363 = vpop.f32.mrf.mxu0
    %v3364 = vpop.f32.mrf.mxu0
    %v3365 = vpop.f32.mrf.mxu0
    %3366 = vmatprep.mubr.bf16.mxu0 0
    %3367 = vmatmul.mubr.bf16.gmra.mxu0 %v3253
    %v3368 = vpop.f32.mrf.mxu0
    %v3369 = vpop.f32.mrf.mxu0
    %v3370 = vpop.f32.mrf.mxu0
    %v3371 = vpop.f32.mrf.mxu0
    %3372 = vmatprep.mubr.bf16.mxu0 0
    %3373 = vmatmul.mubr.bf16.gmra.mxu0 %v3254
    %v3374 = vpop.f32.mrf.mxu0
    %v3375 = vadd.f32 %v3277, %v3374
    %v3376 = vpop.f32.mrf.mxu0
    %v3377 = vpop.f32.mrf.mxu0
    %v3378 = vpop.f32.mrf.mxu0
    %3379 = vmatprep.mubr.bf16.mxu0 0
    %3380 = vmatmul.mubr.bf16.gmra.mxu0 %v3255
    %v3381 = vpop.f32.mrf.mxu0
    %v3382 = vpop.f32.mrf.mxu0
    %v3383 = vpop.f32.mrf.mxu0
    %v3384 = vpop.f32.mrf.mxu0
    %3385 = vdwg.mxu0
    %v3386 = vadd.f32 %v2922, %v3362
    %v3387 = vadd.f32 %v2926, %v3375
    %v3388 = vld [vmem:[%s53] sm:$0x1]
    %v3389 = vld [vmem:[%s55] sm:$0x1]
    %v3390 = vsel %vm925, %v3386, 0.0
    %v3391 = vsel %vm768, %v3390, 0.0
    %3392 = vadd.xlane.f32.xlu0 %v3391
    %v3393 = vpop.xlane.xlu0 %3392
    %v3394 = vmul.f32 %v3393, 0.03125
    %v3395 = vsub.f32 %v3386, %v3394
    %v3396 = vsel %vm925, %v3395, 0.0
    %v3397 = vmul.f32 %v3396, %v3396
    %v3398 = vsel %vm768, %v3397, 0.0
    %3399 = vadd.xlane.f32.xlu0 %v3398
    %v3400 = vpop.xlane.xlu0 %3399
    %v3401 = vmul.f32 %v3400, 0.03125
    %v3402 = vadd.f32 %v3401, 1e-05
    %v3403 = vrsqrt.pop %v3402
    %v3404 = vmul.f32 %v3396, %v3403
    %v3405 = vmul.f32 %v3404, %v3388
    %v3406 = vadd.f32 %v3405, %v3389
    %v3407 = vpack.c.bf16 %v3406, %v3406
    %v3408 = vld [vmem:[%s57] sm:$0xf]
    %v3409 = vld [vmem:[%s57 + $0x4] sm:$0xf]
    %v3410 = vld [vmem:[%s57 + $0x8] sm:$0xf]
    %v3411 = vld [vmem:[%s57 + $0xc] sm:$0xf]
    %v3412 = vld [vmem:[%s57 + $0x10] sm:$0xf]
    %v3413 = vld [vmem:[%s57 + $0x14] sm:$0xf]
    %v3414 = vld [vmem:[%s57 + $0x18] sm:$0xf]
    %v3415 = vld [vmem:[%s57 + $0x1c] sm:$0xf]
    %v3416 = vld [vmem:[%s57 + $0x20] sm:$0xf]
    %v3417 = vld [vmem:[%s57 + $0x24] sm:$0xf]
    %v3418 = vld [vmem:[%s57 + $0x28] sm:$0xf]
    %v3419 = vld [vmem:[%s57 + $0x2c] sm:$0xf]
    %v3420 = vld [vmem:[%s57 + $0x30] sm:$0xf]
    %v3421 = vld [vmem:[%s57 + $0x34] sm:$0xf]
    %v3422 = vld [vmem:[%s57 + $0x38] sm:$0xf]
    %v3423 = vld [vmem:[%s57 + $0x3c] sm:$0xf]
    %v3440 = vunpack.c.l.b16 %v3408
    %v3441 = vunpack.c.l.b16 %v3409
    %v3442 = vunpack.c.l.b16 %v3410
    %v3443 = vunpack.c.l.b16 %v3411
    %v3444 = vunpack.c.l.b16 %v3412
    %v3445 = vunpack.c.l.b16 %v3413
    %v3446 = vunpack.c.l.b16 %v3414
    %v3447 = vunpack.c.l.b16 %v3415
    %v3448 = vunpack.c.l.b16 %v3416
    %v3449 = vunpack.c.l.b16 %v3417
    %v3450 = vunpack.c.l.b16 %v3418
    %v3451 = vunpack.c.l.b16 %v3419
    %v3452 = vunpack.c.l.b16 %v3420
    %v3453 = vunpack.c.l.b16 %v3421
    %v3454 = vunpack.c.l.b16 %v3422
    %v3455 = vunpack.c.l.b16 %v3423
    %v3456 = vpack.c.b16 %v3441, %v3440
    %v3457 = vpack.c.b16 %v3443, %v3442
    %v3458 = vpack.c.b16 %v3445, %v3444
    %v3459 = vpack.c.b16 %v3447, %v3446
    %v3460 = vpack.c.b16 %v3449, %v3448
    %v3461 = vpack.c.b16 %v3451, %v3450
    %v3462 = vpack.c.b16 %v3453, %v3452
    %v3463 = vpack.c.b16 %v3455, %v3454
    %3472 = vmatprep.subr.bf16.mxu0 0
    %3473 = vmatpush1.bf16.msra.mxu0 %v3463
    %3474 = vmatprep.subr.bf16.mxu0 0
    %3475 = vmatpush1.bf16.msra.mxu0 %v3462
    %3476 = vmatprep.subr.bf16.mxu0 0
    %3477 = vmatpush1.bf16.msra.mxu0 %v3461
    %3478 = vmatprep.subr.bf16.mxu0 0
    %3479 = vmatpush1.bf16.msra.mxu0 %v3460
    %3480 = vmatprep.subr.bf16.mxu0 0
    %3481 = vmatpush1.bf16.msra.mxu0 %v3459
    %3482 = vmatprep.subr.bf16.mxu0 0
    %3483 = vmatpush1.bf16.msra.mxu0 %v3458
    %3484 = vmatprep.subr.bf16.mxu0 0
    %3485 = vmatpush1.bf16.msra.mxu0 %v3457
    %3486 = vmatprep.subr.bf16.mxu0 0
    %3487 = vmatpush1.bf16.msra.mxu0 %v3456
    %3488 = vmatprep.subr.bf16.mxu0 0
    %3489 = vmatpush2.bf16.msra.mxu0 0
    %3490 = vmatprep.subr.bf16.mxu0 0
    %3491 = vmatpush2.bf16.msra.mxu0 0
    %3492 = vmatprep.subr.bf16.mxu0 0
    %3493 = vmatpush2.bf16.msra.mxu0 0
    %3494 = vmatprep.subr.bf16.mxu0 0
    %3495 = vmatpush2.bf16.msra.mxu0 0
    %3496 = vmatprep.subr.bf16.mxu0 0
    %3497 = vmatpush2.bf16.msra.mxu0 0
    %3498 = vmatprep.subr.bf16.mxu0 0
    %3499 = vmatpush2.bf16.msra.mxu0 0
    %3500 = vmatprep.subr.bf16.mxu0 0
    %3501 = vmatpush2.bf16.msra.mxu0 0
    %3502 = vmatprep.subr.bf16.mxu0 0
    %3503 = vmatpush2.bf16.msra.mxu0 0
    %3504 = vmatprep.mubr.bf16.mxu0 0
    %3505 = vmatmul.mubr.bf16.gmra.mxu0 %v3407
    %v3506 = vpop.f32.mrf.mxu0
    %v3507 = vadd.f32 0.0, %v3506
    %v3508 = vpop.f32.mrf.mxu0
    %v3509 = vpop.f32.mrf.mxu0
    %v3510 = vpop.f32.mrf.mxu0
    %3511 = vdwg.mxu0
    %3512 = vst [vmem:[#allocation3] sm:$0x1] %v3507
    %v3513 = vld [vmem:[%s53] sm:$0x1]
    %v3514 = vld [vmem:[%s55] sm:$0x1]
    %v3515 = vsel %vm925, %v3387, 0.0
    %v3516 = vsel %vm768, %v3515, 0.0
    %3517 = vadd.xlane.f32.xlu0 %v3516
    %v3518 = vpop.xlane.xlu0 %3517
    %v3519 = vmul.f32 %v3518, 0.03125
    %v3520 = vsub.f32 %v3387, %v3519
    %v3521 = vsel %vm925, %v3520, 0.0
    %v3522 = vmul.f32 %v3521, %v3521
    %v3523 = vsel %vm768, %v3522, 0.0
    %3524 = vadd.xlane.f32.xlu0 %v3523
    %v3525 = vpop.xlane.xlu0 %3524
    %v3526 = vmul.f32 %v3525, 0.03125
    %v3527 = vadd.f32 %v3526, 1e-05
    %v3528 = vrsqrt.pop %v3527
    %v3529 = vmul.f32 %v3521, %v3528
    %v3530 = vmul.f32 %v3529, %v3513
    %v3531 = vadd.f32 %v3530, %v3514
    %v3532 = vpack.c.bf16 %v3531, %v3531
    %v3533 = vld [vmem:[%s57] sm:$0xf]
    %v3534 = vld [vmem:[%s57 + $0x4] sm:$0xf]
    %v3535 = vld [vmem:[%s57 + $0x8] sm:$0xf]
    %v3536 = vld [vmem:[%s57 + $0xc] sm:$0xf]
    %v3537 = vld [vmem:[%s57 + $0x10] sm:$0xf]
    %v3538 = vld [vmem:[%s57 + $0x14] sm:$0xf]
    %v3539 = vld [vmem:[%s57 + $0x18] sm:$0xf]
    %v3540 = vld [vmem:[%s57 + $0x1c] sm:$0xf]
    %v3541 = vld [vmem:[%s57 + $0x20] sm:$0xf]
    %v3542 = vld [vmem:[%s57 + $0x24] sm:$0xf]
    %v3543 = vld [vmem:[%s57 + $0x28] sm:$0xf]
    %v3544 = vld [vmem:[%s57 + $0x2c] sm:$0xf]
    %v3545 = vld [vmem:[%s57 + $0x30] sm:$0xf]
    %v3546 = vld [vmem:[%s57 + $0x34] sm:$0xf]
    %v3547 = vld [vmem:[%s57 + $0x38] sm:$0xf]
    %v3548 = vld [vmem:[%s57 + $0x3c] sm:$0xf]
    %v3565 = vunpack.c.l.b16 %v3533
    %v3566 = vunpack.c.l.b16 %v3534
    %v3567 = vunpack.c.l.b16 %v3535
    %v3568 = vunpack.c.l.b16 %v3536
    %v3569 = vunpack.c.l.b16 %v3537
    %v3570 = vunpack.c.l.b16 %v3538
    %v3571 = vunpack.c.l.b16 %v3539
    %v3572 = vunpack.c.l.b16 %v3540
    %v3573 = vunpack.c.l.b16 %v3541
    %v3574 = vunpack.c.l.b16 %v3542
    %v3575 = vunpack.c.l.b16 %v3543
    %v3576 = vunpack.c.l.b16 %v3544
    %v3577 = vunpack.c.l.b16 %v3545
    %v3578 = vunpack.c.l.b16 %v3546
    %v3579 = vunpack.c.l.b16 %v3547
    %v3580 = vunpack.c.l.b16 %v3548
    %v3581 = vpack.c.b16 %v3566, %v3565
    %v3582 = vpack.c.b16 %v3568, %v3567
    %v3583 = vpack.c.b16 %v3570, %v3569
    %v3584 = vpack.c.b16 %v3572, %v3571
    %v3585 = vpack.c.b16 %v3574, %v3573
    %v3586 = vpack.c.b16 %v3576, %v3575
    %v3587 = vpack.c.b16 %v3578, %v3577
    %v3588 = vpack.c.b16 %v3580, %v3579
    %3597 = vmatprep.subr.bf16.mxu0 0
    %3598 = vmatpush1.bf16.msra.mxu0 %v3588
    %3599 = vmatprep.subr.bf16.mxu0 0
    %3600 = vmatpush1.bf16.msra.mxu0 %v3587
    %3601 = vmatprep.subr.bf16.mxu0 0
    %3602 = vmatpush1.bf16.msra.mxu0 %v3586
    %3603 = vmatprep.subr.bf16.mxu0 0
    %3604 = vmatpush1.bf16.msra.mxu0 %v3585
    %3605 = vmatprep.subr.bf16.mxu0 0
    %3606 = vmatpush1.bf16.msra.mxu0 %v3584
    %3607 = vmatprep.subr.bf16.mxu0 0
    %3608 = vmatpush1.bf16.msra.mxu0 %v3583
    %3609 = vmatprep.subr.bf16.mxu0 0
    %3610 = vmatpush1.bf16.msra.mxu0 %v3582
    %3611 = vmatprep.subr.bf16.mxu0 0
    %3612 = vmatpush1.bf16.msra.mxu0 %v3581
    %3613 = vmatprep.subr.bf16.mxu0 0
    %3614 = vmatpush2.bf16.msra.mxu0 0
    %3615 = vmatprep.subr.bf16.mxu0 0
    %3616 = vmatpush2.bf16.msra.mxu0 0
    %3617 = vmatprep.subr.bf16.mxu0 0
    %3618 = vmatpush2.bf16.msra.mxu0 0
    %3619 = vmatprep.subr.bf16.mxu0 0
    %3620 = vmatpush2.bf16.msra.mxu0 0
    %3621 = vmatprep.subr.bf16.mxu0 0
    %3622 = vmatpush2.bf16.msra.mxu0 0
    %3623 = vmatprep.subr.bf16.mxu0 0
    %3624 = vmatpush2.bf16.msra.mxu0 0
    %3625 = vmatprep.subr.bf16.mxu0 0
    %3626 = vmatpush2.bf16.msra.mxu0 0
    %3627 = vmatprep.subr.bf16.mxu0 0
    %3628 = vmatpush2.bf16.msra.mxu0 0
    %3629 = vmatprep.mubr.bf16.mxu0 0
    %3630 = vmatmul.mubr.bf16.gmra.mxu0 %v3532
    %v3631 = vpop.f32.mrf.mxu0
    %v3632 = vadd.f32 0.0, %v3631
    %v3633 = vpop.f32.mrf.mxu0
    %v3634 = vpop.f32.mrf.mxu0
    %v3635 = vpop.f32.mrf.mxu0
    %3636 = vdwg.mxu0
    %3637 = vst [vmem:[#allocation3 + $0x1] sm:$0x1] %v3632
    // Predicated region
    $region118: #{image_encoder_forward.7} parent=1 // pred_check
      _
    $region119: #{image_encoder_forward.7} parent=1 // pred_check_branch
      %3639 = sbr.rel (0) target = $region121
    $region120: #{image_encoder_forward.7} parent=1 // pred_region
      _
    $region121: #{image_encoder_forward.7} parent=1 // pred_fallthru
      _
    // Predicated region
    $region122: #{image_encoder_forward.7} parent=1 // pred_check
      _
    $region123: #{image_encoder_forward.7} parent=1 // pred_check_branch
      %3641 = sbr.rel (0) target = $region125
    $region124: #{image_encoder_forward.7} parent=1 // pred_region
      %s3643 = ssub.s32 32, 32
      %3644 = vsyncadd [#allocation4], %s3643
      %s3646 = sshll.u32 [#allocation3], 4
      %s3647 = int_to_ptr.vmem [resolvable:$true] %s3646
      %3649 = dma.vmem_to_hbm [thread:$0]  %s3647, 32, %s61, [#allocation4]
    $region125: #{image_encoder_forward.7} parent=1 // pred_fallthru
      _
    // Predicated region
    $region126: #{image_encoder_forward.7} parent=1 // pred_check
      _
    $region127: #{image_encoder_forward.7} parent=1 // pred_check_branch
      %3651 = sbr.rel (0) target = $region129
    $region128: #{image_encoder_forward.7} parent=1 // pred_region
      _
    $region129: #{image_encoder_forward.7} parent=1 // pred_fallthru
      _
    // Predicated region
    $region130: #{image_encoder_forward.7} parent=1 // pred_check
      _
    $region131: #{image_encoder_forward.7} parent=1 // pred_check_branch
      %3653 = sbr.rel (0) target = $region133
    $region132: #{image_encoder_forward.7} parent=1 // pred_region
      %3654 = dma.done [#allocation4], 32
    $region133: #{image_encoder_forward.7} parent=1 // pred_fallthru
      _
    %3655 = vsyncpa [#allocation4], 1

</llo_original>
